<compile_context>
chip_gen: v7x
topology: tpu7x:2x2x1
jax: 0.10.0
libtpu: 0.0.40
codegen_flags: <defaults>
</compile_context>

<pallas_src>
import functools

import numpy as np

import jax
import jax.numpy as jnp
from jax.experimental import pallas as pl
from jax.experimental.pallas import tpu as pltpu


# -----------------------------------------------------------------------------
# Fused forward kernel: head conv + 5 down convs + n_blocks ResnetBlocks.
# One grid step == one batch element.
# -----------------------------------------------------------------------------
def _dip_kernel(xpad_ref, whead_ref, bhead_ref, *args, H, W, KH, nf, n_down, n_blocks):
    o_ref = args[-1]
    lw = args[:-1]                     # (M, bias_row) pairs for the 9 post-head convs
    hw = W * nf                        # head output row width, columns ordered x*nf + c

    # ---- Head: ReflectionPad2d(3) (done in glue) + Conv2d(64, nf, 7) + ReLU ----
    # xpad_ref: (Hp, Wp*Cin); whead_ref[i]: banded (Wp*Cin, W*nf) matrix for kernel row i.
    acc = jnp.zeros((H, hw), jnp.float32)
    for i in range(KH):
        acc = acc + jnp.dot(xpad_ref[i:i + H, :], whead_ref[i],
                            preferred_element_type=jnp.float32)
    h2d = jnp.maximum(acc + bhead_ref[...], 0.0)          # (H, W*nf), HWC feature order

    # ---- down0: Conv2d(nf, 2nf, 3, s=2, p=1) + ReLU as a dense GEMM.
    # Contraction over both dims of h2d -> row-sliced accumulation (no reshapes).
    m0, b0 = lw[0], lw[1]                                  # (H*W*nf, F1), (1, F1)
    h = b0[...]
    for y in range(H):
        h = h + jnp.dot(h2d[y:y + 1, :], m0[y * hw:(y + 1) * hw, :],
                        preferred_element_type=jnp.float32)
    h = jnp.maximum(h, 0.0)                                # (1, F1)

    # ---- down1 .. down4: ReLU(h @ M + b) ----
    for li in range(1, n_down):
        m, b = lw[2 * li], lw[2 * li + 1]
        h = jnp.maximum(
            jnp.dot(h, m[...], preferred_element_type=jnp.float32) + b[...], 0.0)

    # ---- ResnetBlocks: x + conv3x3(ReLU(conv3x3(x)))  (norm='none') ----
    base = 2 * n_down
    for bi in range(n_blocks):
        ma, ba = lw[base + 4 * bi], lw[base + 4 * bi + 1]
        mb, bb = lw[base + 4 * bi + 2], lw[base + 4 * bi + 3]
        y1 = jnp.maximum(
            jnp.dot(h, ma[...], preferred_element_type=jnp.float32) + ba[...], 0.0)
        # TODO(synk): nn.Dropout(0.5) path (opt['use_dropout']=True, train mode) not implemented.
        h = h + jnp.dot(y1, mb[...], preferred_element_type=jnp.float32) + bb[...]

    o_ref[...] = h.astype(o_ref.dtype)                     # (1, kernel_dim)


# -----------------------------------------------------------------------------
# Parameter preparation (pure numpy, runs once): exact conv -> GEMM reformulation.
# -----------------------------------------------------------------------------
def _map_pad_index(i, n, mode):
    if 0 <= i < n:
        return i
    if mode == "zero":
        return None
    if mode == "reflect":
        j = -i if i < 0 else 2 * n - 2 - i
    else:  # replicate
        j = min(max(i, 0), n - 1)
    return j if 0 <= j < n else None


def _conv_to_dense(w, b, Hi, Wi, Ci, stride, pad, pad_mode):
    """Exact dense matrix M (Hi*Wi*Ci, Ho*Wo*Co) + bias row so flat_out = flat_in @ M + b.
    Flatten order: feature = (y*W + x)*C + c (HWC)."""
    w = np.asarray(w, np.float32)
    b = np.asarray(b, np.float32)
    Co, Ci_w, KH, KW = w.shape
    assert Ci_w == Ci
    Ho = (Hi + 2 * pad - KH) // stride + 1
    Wo = (Wi + 2 * pad - KW) // stride + 1
    M = np.zeros((Hi * Wi * Ci, Ho * Wo * Co), np.float32)
    for yo in range(Ho):
        for xo in range(Wo):
            fo = (yo * Wo + xo) * Co
            for ki in range(KH):
                yi = _map_pad_index(stride * yo - pad + ki, Hi, pad_mode)
                if yi is None:
                    continue
                for kj in range(KW):
                    xi = _map_pad_index(stride * xo - pad + kj, Wi, pad_mode)
                    if xi is None:
                        continue
                    fi = (yi * Wi + xi) * Ci
                    M[fi:fi + Ci, fo:fo + Co] += w[:, :, ki, kj].T
    b_row = np.tile(b, Ho * Wo)[None, :]
    return M, b_row, Ho, Wo, Co


def prepare_kernel_dip_params(params, opt, H=16, W=16):
    nf, kd, n_blocks = opt["nf"], opt["kernel_dim"], opt["n_blocks"]
    pad_type = opt["padding_type"]
    pad = 3
    Wp = W + 2 * pad

    wh = np.asarray(params["head"]["w"], np.float32)       # (nf, 64, 7, 7)
    bh = np.asarray(params["head"]["b"], np.float32)
    c_out, c_in, KH, KW = wh.shape
    # Banded block-Toeplitz matrices: head conv == sum_i xpad[i:i+H, :] @ w_head[i].
    w_head = np.zeros((KH, Wp * c_in, W * c_out), np.float32)
    for i in range(KH):
        for j in range(KW):
            blk = wh[:, :, i, j].T                          # (c_in, c_out)
            for x in range(W):
                wc = x + j
                w_head[i, wc * c_in:(wc + 1) * c_in, x * c_out:(x + 1) * c_out] = blk
    b_head = np.tile(bh, W)[None, :]                        # (1, W*nf)

    layers = []
    Hc, Wc, Cc = H, W, nf
    for p in params["down"]:
        M, b_row, Hc, Wc, Cc = _conv_to_dense(p["w"], p["b"], Hc, Wc, Cc,
                                              stride=2, pad=1, pad_mode="zero")
        layers.append((M, b_row))
    for blk in params["res"]:
        for cname in ("conv1", "conv2"):
            M, b_row, Hc, Wc, Cc = _conv_to_dense(blk[cname]["w"], blk[cname]["b"],
                                                  Hc, Wc, Cc, stride=1, pad=1,
                                                  pad_mode=pad_type)
            layers.append((M, b_row))
    assert Hc == 1 and Wc == 1 and Cc == kd

    return {
        "w_head": jnp.asarray(w_head),
        "b_head": jnp.asarray(b_head),
        "layers": [(jnp.asarray(M), jnp.asarray(b)) for (M, b) in layers],
    }


# -----------------------------------------------------------------------------
# Jitted forward: NCHW -> reflect pad -> one fused pallas_call -> (N, kd, 1, 1)
# -----------------------------------------------------------------------------
def build_kernel_dip_forward(opt):
    nf, kd, n_blocks = opt["nf"], opt["kernel_dim"], opt["n_blocks"]
    n_down = 5

    @jax.jit
    def forward(noise_nchw, prep):
        N, Cin, H, W = noise_nchw.shape
        pad = 3
        Hp, Wp = H + 2 * pad, W + 2 * pad

        x = jnp.transpose(noise_nchw, (0, 2, 3, 1))                    # NCHW -> NHWC
        xp = jnp.pad(x, ((0, 0), (pad, pad), (pad, pad), (0, 0)), mode="reflect")
        xp = xp.reshape(N, Hp, Wp * Cin).astype(jnp.float32)           # lane-dense rows

        w_head, b_head = prep["w_head"], prep["b_head"]
        flat_lw = [a for pair in prep["layers"] for a in pair]
        operands = [xp, w_head, b_head] + flat_lw

        kern = functools.partial(_dip_kernel, H=H, W=W, KH=w_head.shape[0],
                                 nf=nf, n_down=n_down, n_blocks=n_blocks)

        in_specs = [
            pl.BlockSpec((None, Hp, Wp * Cin), lambda n: (n, 0, 0)),
            pl.BlockSpec(w_head.shape, lambda n: (0, 0, 0)),
            pl.BlockSpec(b_head.shape, lambda n: (0, 0)),
        ]
        for a in flat_lw:
            in_specs.append(pl.BlockSpec(a.shape, lambda n: (0, 0)))

        out = pl.pallas_call(
            kern,
            out_shape=jax.ShapeDtypeStruct((N, 1, kd), jnp.float32),
            grid_spec=pltpu.PrefetchScalarGridSpec(
                num_scalar_prefetch=0,
                grid=(N,),
                in_specs=in_specs,
                out_specs=pl.BlockSpec((None, 1, kd), lambda n: (n, 0, 0)),
            ),
            compiler_params=pltpu.CompilerParams(
                dimension_semantics=("parallel",),
                vmem_limit_bytes=32 * 1024 * 1024,
            ),
        )(*operands)

        return out.reshape(N, kd, 1, 1)                                # NCHW output

    return forward


# -----------------------------------------------------------------------------
# Deterministic in-script parameter init (PyTorch-layout conv weights).
# -----------------------------------------------------------------------------
def _conv_init(key, c_out, c_in, k):
    kw_, kb_ = jax.random.split(key)
    fan_in = c_in * k * k
    std = (2.0 / fan_in) ** 0.5
    w = std * jax.random.normal(kw_, (c_out, c_in, k, k), jnp.float32)
    b = 0.01 * jax.random.normal(kb_, (c_out,), jnp.float32)
    return {"w": w, "b": b}


def init_kernel_dip_params(key, opt):
    nf, kd, n_blocks = opt["nf"], opt["kernel_dim"], opt["n_blocks"]
    n_down = 5
    keys = jax.random.split(key, 1 + n_down + 2 * n_blocks)
    ki = iter(keys)
    params = {"head": _conv_init(next(ki), nf, 64, 7), "down": [], "res": []}
    for i in range(n_down):
        mult = 2 ** i
        c_in = min(nf * mult, kd)
        c_out = min(nf * mult * 2, kd)
        params["down"].append(_conv_init(next(ki), c_out, c_in, 3))
    for _ in range(n_blocks):
        params["res"].append({"conv1": _conv_init(next(ki), kd, kd, 3),
                              "conv2": _conv_init(next(ki), kd, kd, 3)})
    return params


if __name__ == "__main__":
    opt = {
        "n_blocks": 2,
        "nf": 4,
        "padding_type": "zero",
        "use_dropout": False,
        "kernel_dim": 16,
    }
    key = jax.random.PRNGKey(0)
    k_noise, k_params = jax.random.split(key)

    # KernelDIP input is fixed at 64 channels (input_nc = 64).
    noise = jax.random.normal(k_noise, (2, 64, 16, 16), jnp.float32)
    params = init_kernel_dip_params(k_params, opt)
    prep = prepare_kernel_dip_params(params, opt, H=16, W=16)

    forward = build_kernel_dip_forward(opt)
    out = jax.block_until_ready(forward(noise, prep))
    assert out.shape == (2, opt["kernel_dim"], 1, 1), out.shape
    print("KERNEL_OK")
</pallas_src>

<mosaic_0001>
module attributes {stable_mosaic.version = 11 : i64} {
  func.func @_dip_kernel(%arg0: i32, %arg1: memref<1x22x1408xf32, #tpu.memory_space<vmem>>, %arg2: memref<7x1408x64xf32, #tpu.memory_space<vmem>>, %arg3: memref<1x64xf32, #tpu.memory_space<vmem>>, %arg4: memref<1024x512xf32, #tpu.memory_space<vmem>>, %arg5: memref<1x512xf32, #tpu.memory_space<vmem>>, %arg6: memref<512x256xf32, #tpu.memory_space<vmem>>, %arg7: memref<1x256xf32, #tpu.memory_space<vmem>>, %arg8: memref<256x64xf32, #tpu.memory_space<vmem>>, %arg9: memref<1x64xf32, #tpu.memory_space<vmem>>, %arg10: memref<64x16xf32, #tpu.memory_space<vmem>>, %arg11: memref<1x16xf32, #tpu.memory_space<vmem>>, %arg12: memref<16x16xf32, #tpu.memory_space<vmem>>, %arg13: memref<1x16xf32, #tpu.memory_space<vmem>>, %arg14: memref<16x16xf32, #tpu.memory_space<vmem>>, %arg15: memref<1x16xf32, #tpu.memory_space<vmem>>, %arg16: memref<16x16xf32, #tpu.memory_space<vmem>>, %arg17: memref<1x16xf32, #tpu.memory_space<vmem>>, %arg18: memref<16x16xf32, #tpu.memory_space<vmem>>, %arg19: memref<1x16xf32, #tpu.memory_space<vmem>>, %arg20: memref<16x16xf32, #tpu.memory_space<vmem>>, %arg21: memref<1x16xf32, #tpu.memory_space<vmem>>, %arg22: memref<1x1x16xf32, #tpu.memory_space<vmem>>) attributes {dimension_semantics = [#tpu.dimension_semantics<parallel>], iteration_bounds = array<i64: 2>, scalar_prefetch = 0 : i64, scratch_operands = 0 : i64, tpu.core_type = #tpu.core_type<tc>, window_params = [{transform_indices = @transform_0, window_bounds = array<i64: 1, 22, 1408>}, {pipeline_mode = #tpu.pipeline_mode<synchronous>, transform_indices = @transform_1, window_bounds = array<i64: 7, 1408, 64>}, {pipeline_mode = #tpu.pipeline_mode<synchronous>, transform_indices = @transform_2, window_bounds = array<i64: 1, 64>}, {pipeline_mode = #tpu.pipeline_mode<synchronous>, transform_indices = @transform_3, window_bounds = array<i64: 1024, 512>}, {pipeline_mode = #tpu.pipeline_mode<synchronous>, transform_indices = @transform_4, window_bounds = array<i64: 1, 512>}, {pipeline_mode = #tpu.pipeline_mode<synchronous>, transform_indices = @transform_5, window_bounds = array<i64: 512, 256>}, {pipeline_mode = #tpu.pipeline_mode<synchronous>, transform_indices = @transform_6, window_bounds = array<i64: 1, 256>}, {pipeline_mode = #tpu.pipeline_mode<synchronous>, transform_indices = @transform_7, window_bounds = array<i64: 256, 64>}, {pipeline_mode = #tpu.pipeline_mode<synchronous>, transform_indices = @transform_8, window_bounds = array<i64: 1, 64>}, {pipeline_mode = #tpu.pipeline_mode<synchronous>, transform_indices = @transform_9, window_bounds = array<i64: 64, 16>}, {pipeline_mode = #tpu.pipeline_mode<synchronous>, transform_indices = @transform_10, window_bounds = array<i64: 1, 16>}, {pipeline_mode = #tpu.pipeline_mode<synchronous>, transform_indices = @transform_11, window_bounds = array<i64: 16, 16>}, {pipeline_mode = #tpu.pipeline_mode<synchronous>, transform_indices = @transform_12, window_bounds = array<i64: 1, 16>}, {pipeline_mode = #tpu.pipeline_mode<synchronous>, transform_indices = @transform_13, window_bounds = array<i64: 16, 16>}, {pipeline_mode = #tpu.pipeline_mode<synchronous>, transform_indices = @transform_14, window_bounds = array<i64: 1, 16>}, {pipeline_mode = #tpu.pipeline_mode<synchronous>, transform_indices = @transform_15, window_bounds = array<i64: 16, 16>}, {pipeline_mode = #tpu.pipeline_mode<synchronous>, transform_indices = @transform_16, window_bounds = array<i64: 1, 16>}, {pipeline_mode = #tpu.pipeline_mode<synchronous>, transform_indices = @transform_17, window_bounds = array<i64: 16, 16>}, {pipeline_mode = #tpu.pipeline_mode<synchronous>, transform_indices = @transform_18, window_bounds = array<i64: 1, 16>}, {pipeline_mode = #tpu.pipeline_mode<synchronous>, transform_indices = @transform_19, window_bounds = array<i64: 16, 16>}, {pipeline_mode = #tpu.pipeline_mode<synchronous>, transform_indices = @transform_20, window_bounds = array<i64: 1, 16>}, {transform_indices = @transform_21, window_bounds = array<i64: 1, 1, 16>}]} {
    %cst = arith.constant 0.000000e+00 : f32
    %0 = vector.broadcast %cst : f32 to vector<16x64xf32>
    %c0 = arith.constant 0 : index
    %c0_0 = arith.constant 0 : index
    %c0_1 = arith.constant 0 : index
    %1 = vector.load %arg1[%c0, %c0_0, %c0_1] : memref<1x22x1408xf32, #tpu.memory_space<vmem>>, vector<1x16x1408xf32>
    %2 = vector.shape_cast %1 : vector<1x16x1408xf32> to vector<16x1408xf32>
    %c0_2 = arith.constant 0 : index
    %c0_3 = arith.constant 0 : index
    %c0_4 = arith.constant 0 : index
    %3 = vector.load %arg2[%c0_2, %c0_3, %c0_4] : memref<7x1408x64xf32, #tpu.memory_space<vmem>>, vector<1x1408x64xf32>
    %4 = vector.shape_cast %3 : vector<1x1408x64xf32> to vector<1408x64xf32>
    %cst_5 = arith.constant dense<0.000000e+00> : vector<16x64xf32>
    %5 = tpu.matmul %2, %4, %cst_5 {dimension_numbers = #tpu.dot_dimension_numbers<[1], [0], [0], [1], [0, 0, 1, 1], [], []>} : vector<16x1408xf32>, vector<1408x64xf32>, vector<16x64xf32> -> vector<16x64xf32>
    %6 = arith.addf %0, %5 : vector<16x64xf32>
    %c0_6 = arith.constant 0 : index
    %c1 = arith.constant 1 : index
    %c0_7 = arith.constant 0 : index
    %7 = vector.load %arg1[%c0_6, %c1, %c0_7] : memref<1x22x1408xf32, #tpu.memory_space<vmem>>, vector<1x16x1408xf32>
    %8 = vector.shape_cast %7 : vector<1x16x1408xf32> to vector<16x1408xf32>
    %c1_8 = arith.constant 1 : index
    %c0_9 = arith.constant 0 : index
    %c0_10 = arith.constant 0 : index
    %9 = vector.load %arg2[%c1_8, %c0_9, %c0_10] : memref<7x1408x64xf32, #tpu.memory_space<vmem>>, vector<1x1408x64xf32>
    %10 = vector.shape_cast %9 : vector<1x1408x64xf32> to vector<1408x64xf32>
    %cst_11 = arith.constant dense<0.000000e+00> : vector<16x64xf32>
    %11 = tpu.matmul %8, %10, %cst_11 {dimension_numbers = #tpu.dot_dimension_numbers<[1], [0], [0], [1], [0, 0, 1, 1], [], []>} : vector<16x1408xf32>, vector<1408x64xf32>, vector<16x64xf32> -> vector<16x64xf32>
    %12 = arith.addf %6, %11 : vector<16x64xf32>
    %c0_12 = arith.constant 0 : index
    %c2 = arith.constant 2 : index
    %c0_13 = arith.constant 0 : index
    %13 = vector.load %arg1[%c0_12, %c2, %c0_13] : memref<1x22x1408xf32, #tpu.memory_space<vmem>>, vector<1x16x1408xf32>
    %14 = vector.shape_cast %13 : vector<1x16x1408xf32> to vector<16x1408xf32>
    %c2_14 = arith.constant 2 : index
    %c0_15 = arith.constant 0 : index
    %c0_16 = arith.constant 0 : index
    %15 = vector.load %arg2[%c2_14, %c0_15, %c0_16] : memref<7x1408x64xf32, #tpu.memory_space<vmem>>, vector<1x1408x64xf32>
    %16 = vector.shape_cast %15 : vector<1x1408x64xf32> to vector<1408x64xf32>
    %cst_17 = arith.constant dense<0.000000e+00> : vector<16x64xf32>
    %17 = tpu.matmul %14, %16, %cst_17 {dimension_numbers = #tpu.dot_dimension_numbers<[1], [0], [0], [1], [0, 0, 1, 1], [], []>} : vector<16x1408xf32>, vector<1408x64xf32>, vector<16x64xf32> -> vector<16x64xf32>
    %18 = arith.addf %12, %17 : vector<16x64xf32>
    %c0_18 = arith.constant 0 : index
    %c3 = arith.constant 3 : index
    %c0_19 = arith.constant 0 : index
    %19 = vector.load %arg1[%c0_18, %c3, %c0_19] : memref<1x22x1408xf32, #tpu.memory_space<vmem>>, vector<1x16x1408xf32>
    %20 = vector.shape_cast %19 : vector<1x16x1408xf32> to vector<16x1408xf32>
    %c3_20 = arith.constant 3 : index
    %c0_21 = arith.constant 0 : index
    %c0_22 = arith.constant 0 : index
    %21 = vector.load %arg2[%c3_20, %c0_21, %c0_22] : memref<7x1408x64xf32, #tpu.memory_space<vmem>>, vector<1x1408x64xf32>
    %22 = vector.shape_cast %21 : vector<1x1408x64xf32> to vector<1408x64xf32>
    %cst_23 = arith.constant dense<0.000000e+00> : vector<16x64xf32>
    %23 = tpu.matmul %20, %22, %cst_23 {dimension_numbers = #tpu.dot_dimension_numbers<[1], [0], [0], [1], [0, 0, 1, 1], [], []>} : vector<16x1408xf32>, vector<1408x64xf32>, vector<16x64xf32> -> vector<16x64xf32>
    %24 = arith.addf %18, %23 : vector<16x64xf32>
    %c0_24 = arith.constant 0 : index
    %c4 = arith.constant 4 : index
    %c0_25 = arith.constant 0 : index
    %25 = vector.load %arg1[%c0_24, %c4, %c0_25] : memref<1x22x1408xf32, #tpu.memory_space<vmem>>, vector<1x16x1408xf32>
    %26 = vector.shape_cast %25 : vector<1x16x1408xf32> to vector<16x1408xf32>
    %c4_26 = arith.constant 4 : index
    %c0_27 = arith.constant 0 : index
    %c0_28 = arith.constant 0 : index
    %27 = vector.load %arg2[%c4_26, %c0_27, %c0_28] : memref<7x1408x64xf32, #tpu.memory_space<vmem>>, vector<1x1408x64xf32>
    %28 = vector.shape_cast %27 : vector<1x1408x64xf32> to vector<1408x64xf32>
    %cst_29 = arith.constant dense<0.000000e+00> : vector<16x64xf32>
    %29 = tpu.matmul %26, %28, %cst_29 {dimension_numbers = #tpu.dot_dimension_numbers<[1], [0], [0], [1], [0, 0, 1, 1], [], []>} : vector<16x1408xf32>, vector<1408x64xf32>, vector<16x64xf32> -> vector<16x64xf32>
    %30 = arith.addf %24, %29 : vector<16x64xf32>
    %c0_30 = arith.constant 0 : index
    %c5 = arith.constant 5 : index
    %c0_31 = arith.constant 0 : index
    %31 = vector.load %arg1[%c0_30, %c5, %c0_31] : memref<1x22x1408xf32, #tpu.memory_space<vmem>>, vector<1x16x1408xf32>
    %32 = vector.shape_cast %31 : vector<1x16x1408xf32> to vector<16x1408xf32>
    %c5_32 = arith.constant 5 : index
    %c0_33 = arith.constant 0 : index
    %c0_34 = arith.constant 0 : index
    %33 = vector.load %arg2[%c5_32, %c0_33, %c0_34] : memref<7x1408x64xf32, #tpu.memory_space<vmem>>, vector<1x1408x64xf32>
    %34 = vector.shape_cast %33 : vector<1x1408x64xf32> to vector<1408x64xf32>
    %cst_35 = arith.constant dense<0.000000e+00> : vector<16x64xf32>
    %35 = tpu.matmul %32, %34, %cst_35 {dimension_numbers = #tpu.dot_dimension_numbers<[1], [0], [0], [1], [0, 0, 1, 1], [], []>} : vector<16x1408xf32>, vector<1408x64xf32>, vector<16x64xf32> -> vector<16x64xf32>
    %36 = arith.addf %30, %35 : vector<16x64xf32>
    %c0_36 = arith.constant 0 : index
    %c6 = arith.constant 6 : index
    %c0_37 = arith.constant 0 : index
    %37 = vector.load %arg1[%c0_36, %c6, %c0_37] : memref<1x22x1408xf32, #tpu.memory_space<vmem>>, vector<1x16x1408xf32>
    %38 = vector.shape_cast %37 : vector<1x16x1408xf32> to vector<16x1408xf32>
    %c6_38 = arith.constant 6 : index
    %c0_39 = arith.constant 0 : index
    %c0_40 = arith.constant 0 : index
    %39 = vector.load %arg2[%c6_38, %c0_39, %c0_40] : memref<7x1408x64xf32, #tpu.memory_space<vmem>>, vector<1x1408x64xf32>
    %40 = vector.shape_cast %39 : vector<1x1408x64xf32> to vector<1408x64xf32>
    %cst_41 = arith.constant dense<0.000000e+00> : vector<16x64xf32>
    %41 = tpu.matmul %38, %40, %cst_41 {dimension_numbers = #tpu.dot_dimension_numbers<[1], [0], [0], [1], [0, 0, 1, 1], [], []>} : vector<16x1408xf32>, vector<1408x64xf32>, vector<16x64xf32> -> vector<16x64xf32>
    %42 = arith.addf %36, %41 : vector<16x64xf32>
    %c0_42 = arith.constant 0 : index
    %c0_43 = arith.constant 0 : index
    %43 = vector.load %arg3[%c0_42, %c0_43] : memref<1x64xf32, #tpu.memory_space<vmem>>, vector<1x64xf32>
    %44 = vector.broadcast %43 : vector<1x64xf32> to vector<16x64xf32>
    %45 = arith.addf %42, %44 : vector<16x64xf32>
    %cst_44 = arith.constant 0.000000e+00 : f32
    %46 = vector.broadcast %cst_44 : f32 to vector<16x64xf32>
    %47 = arith.maximumf %45, %46 : vector<16x64xf32>
    %c0_45 = arith.constant 0 : index
    %c0_46 = arith.constant 0 : index
    %48 = vector.load %arg5[%c0_45, %c0_46] : memref<1x512xf32, #tpu.memory_space<vmem>>, vector<1x512xf32>
    %49 = vector.extract_strided_slice %47 {offsets = [0, 0], sizes = [1, 64], strides = [1, 1]} : vector<16x64xf32> to vector<1x64xf32>
    %c0_47 = arith.constant 0 : index
    %c0_48 = arith.constant 0 : index
    %50 = vector.load %arg4[%c0_47, %c0_48] : memref<1024x512xf32, #tpu.memory_space<vmem>>, vector<64x512xf32>
    %cst_49 = arith.constant dense<0.000000e+00> : vector<1x512xf32>
    %51 = tpu.matmul %49, %50, %cst_49 {dimension_numbers = #tpu.dot_dimension_numbers<[1], [0], [0], [1], [0, 0, 1, 1], [], []>} : vector<1x64xf32>, vector<64x512xf32>, vector<1x512xf32> -> vector<1x512xf32>
    %52 = arith.addf %48, %51 : vector<1x512xf32>
    %53 = vector.extract_strided_slice %47 {offsets = [1, 0], sizes = [1, 64], strides = [1, 1]} : vector<16x64xf32> to vector<1x64xf32>
    %c64 = arith.constant 64 : index
    %c0_50 = arith.constant 0 : index
    %54 = vector.load %arg4[%c64, %c0_50] : memref<1024x512xf32, #tpu.memory_space<vmem>>, vector<64x512xf32>
    %cst_51 = arith.constant dense<0.000000e+00> : vector<1x512xf32>
    %55 = tpu.matmul %53, %54, %cst_51 {dimension_numbers = #tpu.dot_dimension_numbers<[1], [0], [0], [1], [0, 0, 1, 1], [], []>} : vector<1x64xf32>, vector<64x512xf32>, vector<1x512xf32> -> vector<1x512xf32>
    %56 = arith.addf %52, %55 : vector<1x512xf32>
    %57 = vector.extract_strided_slice %47 {offsets = [2, 0], sizes = [1, 64], strides = [1, 1]} : vector<16x64xf32> to vector<1x64xf32>
    %c128 = arith.constant 128 : index
    %c0_52 = arith.constant 0 : index
    %58 = vector.load %arg4[%c128, %c0_52] : memref<1024x512xf32, #tpu.memory_space<vmem>>, vector<64x512xf32>
    %cst_53 = arith.constant dense<0.000000e+00> : vector<1x512xf32>
    %59 = tpu.matmul %57, %58, %cst_53 {dimension_numbers = #tpu.dot_dimension_numbers<[1], [0], [0], [1], [0, 0, 1, 1], [], []>} : vector<1x64xf32>, vector<64x512xf32>, vector<1x512xf32> -> vector<1x512xf32>
    %60 = arith.addf %56, %59 : vector<1x512xf32>
    %61 = vector.extract_strided_slice %47 {offsets = [3, 0], sizes = [1, 64], strides = [1, 1]} : vector<16x64xf32> to vector<1x64xf32>
    %c192 = arith.constant 192 : index
    %c0_54 = arith.constant 0 : index
    %62 = vector.load %arg4[%c192, %c0_54] : memref<1024x512xf32, #tpu.memory_space<vmem>>, vector<64x512xf32>
    %cst_55 = arith.constant dense<0.000000e+00> : vector<1x512xf32>
    %63 = tpu.matmul %61, %62, %cst_55 {dimension_numbers = #tpu.dot_dimension_numbers<[1], [0], [0], [1], [0, 0, 1, 1], [], []>} : vector<1x64xf32>, vector<64x512xf32>, vector<1x512xf32> -> vector<1x512xf32>
    %64 = arith.addf %60, %63 : vector<1x512xf32>
    %65 = vector.extract_strided_slice %47 {offsets = [4, 0], sizes = [1, 64], strides = [1, 1]} : vector<16x64xf32> to vector<1x64xf32>
    %c256 = arith.constant 256 : index
    %c0_56 = arith.constant 0 : index
    %66 = vector.load %arg4[%c256, %c0_56] : memref<1024x512xf32, #tpu.memory_space<vmem>>, vector<64x512xf32>
    %cst_57 = arith.constant dense<0.000000e+00> : vector<1x512xf32>
    %67 = tpu.matmul %65, %66, %cst_57 {dimension_numbers = #tpu.dot_dimension_numbers<[1], [0], [0], [1], [0, 0, 1, 1], [], []>} : vector<1x64xf32>, vector<64x512xf32>, vector<1x512xf32> -> vector<1x512xf32>
    %68 = arith.addf %64, %67 : vector<1x512xf32>
    %69 = vector.extract_strided_slice %47 {offsets = [5, 0], sizes = [1, 64], strides = [1, 1]} : vector<16x64xf32> to vector<1x64xf32>
    %c320 = arith.constant 320 : index
    %c0_58 = arith.constant 0 : index
    %70 = vector.load %arg4[%c320, %c0_58] : memref<1024x512xf32, #tpu.memory_space<vmem>>, vector<64x512xf32>
    %cst_59 = arith.constant dense<0.000000e+00> : vector<1x512xf32>
    %71 = tpu.matmul %69, %70, %cst_59 {dimension_numbers = #tpu.dot_dimension_numbers<[1], [0], [0], [1], [0, 0, 1, 1], [], []>} : vector<1x64xf32>, vector<64x512xf32>, vector<1x512xf32> -> vector<1x512xf32>
    %72 = arith.addf %68, %71 : vector<1x512xf32>
    %73 = vector.extract_strided_slice %47 {offsets = [6, 0], sizes = [1, 64], strides = [1, 1]} : vector<16x64xf32> to vector<1x64xf32>
    %c384 = arith.constant 384 : index
    %c0_60 = arith.constant 0 : index
    %74 = vector.load %arg4[%c384, %c0_60] : memref<1024x512xf32, #tpu.memory_space<vmem>>, vector<64x512xf32>
    %cst_61 = arith.constant dense<0.000000e+00> : vector<1x512xf32>
    %75 = tpu.matmul %73, %74, %cst_61 {dimension_numbers = #tpu.dot_dimension_numbers<[1], [0], [0], [1], [0, 0, 1, 1], [], []>} : vector<1x64xf32>, vector<64x512xf32>, vector<1x512xf32> -> vector<1x512xf32>
    %76 = arith.addf %72, %75 : vector<1x512xf32>
    %77 = vector.extract_strided_slice %47 {offsets = [7, 0], sizes = [1, 64], strides = [1, 1]} : vector<16x64xf32> to vector<1x64xf32>
    %c448 = arith.constant 448 : index
    %c0_62 = arith.constant 0 : index
    %78 = vector.load %arg4[%c448, %c0_62] : memref<1024x512xf32, #tpu.memory_space<vmem>>, vector<64x512xf32>
    %cst_63 = arith.constant dense<0.000000e+00> : vector<1x512xf32>
    %79 = tpu.matmul %77, %78, %cst_63 {dimension_numbers = #tpu.dot_dimension_numbers<[1], [0], [0], [1], [0, 0, 1, 1], [], []>} : vector<1x64xf32>, vector<64x512xf32>, vector<1x512xf32> -> vector<1x512xf32>
    %80 = arith.addf %76, %79 : vector<1x512xf32>
    %81 = vector.extract_strided_slice %47 {offsets = [8, 0], sizes = [1, 64], strides = [1, 1]} : vector<16x64xf32> to vector<1x64xf32>
    %c512 = arith.constant 512 : index
    %c0_64 = arith.constant 0 : index
    %82 = vector.load %arg4[%c512, %c0_64] : memref<1024x512xf32, #tpu.memory_space<vmem>>, vector<64x512xf32>
    %cst_65 = arith.constant dense<0.000000e+00> : vector<1x512xf32>
    %83 = tpu.matmul %81, %82, %cst_65 {dimension_numbers = #tpu.dot_dimension_numbers<[1], [0], [0], [1], [0, 0, 1, 1], [], []>} : vector<1x64xf32>, vector<64x512xf32>, vector<1x512xf32> -> vector<1x512xf32>
    %84 = arith.addf %80, %83 : vector<1x512xf32>
    %85 = vector.extract_strided_slice %47 {offsets = [9, 0], sizes = [1, 64], strides = [1, 1]} : vector<16x64xf32> to vector<1x64xf32>
    %c576 = arith.constant 576 : index
    %c0_66 = arith.constant 0 : index
    %86 = vector.load %arg4[%c576, %c0_66] : memref<1024x512xf32, #tpu.memory_space<vmem>>, vector<64x512xf32>
    %cst_67 = arith.constant dense<0.000000e+00> : vector<1x512xf32>
    %87 = tpu.matmul %85, %86, %cst_67 {dimension_numbers = #tpu.dot_dimension_numbers<[1], [0], [0], [1], [0, 0, 1, 1], [], []>} : vector<1x64xf32>, vector<64x512xf32>, vector<1x512xf32> -> vector<1x512xf32>
    %88 = arith.addf %84, %87 : vector<1x512xf32>
    %89 = vector.extract_strided_slice %47 {offsets = [10, 0], sizes = [1, 64], strides = [1, 1]} : vector<16x64xf32> to vector<1x64xf32>
    %c640 = arith.constant 640 : index
    %c0_68 = arith.constant 0 : index
    %90 = vector.load %arg4[%c640, %c0_68] : memref<1024x512xf32, #tpu.memory_space<vmem>>, vector<64x512xf32>
    %cst_69 = arith.constant dense<0.000000e+00> : vector<1x512xf32>
    %91 = tpu.matmul %89, %90, %cst_69 {dimension_numbers = #tpu.dot_dimension_numbers<[1], [0], [0], [1], [0, 0, 1, 1], [], []>} : vector<1x64xf32>, vector<64x512xf32>, vector<1x512xf32> -> vector<1x512xf32>
    %92 = arith.addf %88, %91 : vector<1x512xf32>
    %93 = vector.extract_strided_slice %47 {offsets = [11, 0], sizes = [1, 64], strides = [1, 1]} : vector<16x64xf32> to vector<1x64xf32>
    %c704 = arith.constant 704 : index
    %c0_70 = arith.constant 0 : index
    %94 = vector.load %arg4[%c704, %c0_70] : memref<1024x512xf32, #tpu.memory_space<vmem>>, vector<64x512xf32>
    %cst_71 = arith.constant dense<0.000000e+00> : vector<1x512xf32>
    %95 = tpu.matmul %93, %94, %cst_71 {dimension_numbers = #tpu.dot_dimension_numbers<[1], [0], [0], [1], [0, 0, 1, 1], [], []>} : vector<1x64xf32>, vector<64x512xf32>, vector<1x512xf32> -> vector<1x512xf32>
    %96 = arith.addf %92, %95 : vector<1x512xf32>
    %97 = vector.extract_strided_slice %47 {offsets = [12, 0], sizes = [1, 64], strides = [1, 1]} : vector<16x64xf32> to vector<1x64xf32>
    %c768 = arith.constant 768 : index
    %c0_72 = arith.constant 0 : index
    %98 = vector.load %arg4[%c768, %c0_72] : memref<1024x512xf32, #tpu.memory_space<vmem>>, vector<64x512xf32>
    %cst_73 = arith.constant dense<0.000000e+00> : vector<1x512xf32>
    %99 = tpu.matmul %97, %98, %cst_73 {dimension_numbers = #tpu.dot_dimension_numbers<[1], [0], [0], [1], [0, 0, 1, 1], [], []>} : vector<1x64xf32>, vector<64x512xf32>, vector<1x512xf32> -> vector<1x512xf32>
    %100 = arith.addf %96, %99 : vector<1x512xf32>
    %101 = vector.extract_strided_slice %47 {offsets = [13, 0], sizes = [1, 64], strides = [1, 1]} : vector<16x64xf32> to vector<1x64xf32>
    %c832 = arith.constant 832 : index
    %c0_74 = arith.constant 0 : index
    %102 = vector.load %arg4[%c832, %c0_74] : memref<1024x512xf32, #tpu.memory_space<vmem>>, vector<64x512xf32>
    %cst_75 = arith.constant dense<0.000000e+00> : vector<1x512xf32>
    %103 = tpu.matmul %101, %102, %cst_75 {dimension_numbers = #tpu.dot_dimension_numbers<[1], [0], [0], [1], [0, 0, 1, 1], [], []>} : vector<1x64xf32>, vector<64x512xf32>, vector<1x512xf32> -> vector<1x512xf32>
    %104 = arith.addf %100, %103 : vector<1x512xf32>
    %105 = vector.extract_strided_slice %47 {offsets = [14, 0], sizes = [1, 64], strides = [1, 1]} : vector<16x64xf32> to vector<1x64xf32>
    %c896 = arith.constant 896 : index
    %c0_76 = arith.constant 0 : index
    %106 = vector.load %arg4[%c896, %c0_76] : memref<1024x512xf32, #tpu.memory_space<vmem>>, vector<64x512xf32>
    %cst_77 = arith.constant dense<0.000000e+00> : vector<1x512xf32>
    %107 = tpu.matmul %105, %106, %cst_77 {dimension_numbers = #tpu.dot_dimension_numbers<[1], [0], [0], [1], [0, 0, 1, 1], [], []>} : vector<1x64xf32>, vector<64x512xf32>, vector<1x512xf32> -> vector<1x512xf32>
    %108 = arith.addf %104, %107 : vector<1x512xf32>
    %109 = vector.extract_strided_slice %47 {offsets = [15, 0], sizes = [1, 64], strides = [1, 1]} : vector<16x64xf32> to vector<1x64xf32>
    %c960 = arith.constant 960 : index
    %c0_78 = arith.constant 0 : index
    %110 = vector.load %arg4[%c960, %c0_78] : memref<1024x512xf32, #tpu.memory_space<vmem>>, vector<64x512xf32>
    %cst_79 = arith.constant dense<0.000000e+00> : vector<1x512xf32>
    %111 = tpu.matmul %109, %110, %cst_79 {dimension_numbers = #tpu.dot_dimension_numbers<[1], [0], [0], [1], [0, 0, 1, 1], [], []>} : vector<1x64xf32>, vector<64x512xf32>, vector<1x512xf32> -> vector<1x512xf32>
    %112 = arith.addf %108, %111 : vector<1x512xf32>
    %cst_80 = arith.constant 0.000000e+00 : f32
    %113 = vector.broadcast %cst_80 : f32 to vector<1x512xf32>
    %114 = arith.maximumf %112, %113 : vector<1x512xf32>
    %c0_81 = arith.constant 0 : index
    %c0_82 = arith.constant 0 : index
    %115 = vector.load %arg6[%c0_81, %c0_82] : memref<512x256xf32, #tpu.memory_space<vmem>>, vector<512x256xf32>
    %cst_83 = arith.constant dense<0.000000e+00> : vector<1x256xf32>
    %116 = tpu.matmul %114, %115, %cst_83 {dimension_numbers = #tpu.dot_dimension_numbers<[1], [0], [0], [1], [0, 0, 1, 1], [], []>} : vector<1x512xf32>, vector<512x256xf32>, vector<1x256xf32> -> vector<1x256xf32>
    %c0_84 = arith.constant 0 : index
    %c0_85 = arith.constant 0 : index
    %117 = vector.load %arg7[%c0_84, %c0_85] : memref<1x256xf32, #tpu.memory_space<vmem>>, vector<1x256xf32>
    %118 = arith.addf %116, %117 : vector<1x256xf32>
    %cst_86 = arith.constant 0.000000e+00 : f32
    %119 = vector.broadcast %cst_86 : f32 to vector<1x256xf32>
    %120 = arith.maximumf %118, %119 : vector<1x256xf32>
    %c0_87 = arith.constant 0 : index
    %c0_88 = arith.constant 0 : index
    %121 = vector.load %arg8[%c0_87, %c0_88] : memref<256x64xf32, #tpu.memory_space<vmem>>, vector<256x64xf32>
    %cst_89 = arith.constant dense<0.000000e+00> : vector<1x64xf32>
    %122 = tpu.matmul %120, %121, %cst_89 {dimension_numbers = #tpu.dot_dimension_numbers<[1], [0], [0], [1], [0, 0, 1, 1], [], []>} : vector<1x256xf32>, vector<256x64xf32>, vector<1x64xf32> -> vector<1x64xf32>
    %c0_90 = arith.constant 0 : index
    %c0_91 = arith.constant 0 : index
    %123 = vector.load %arg9[%c0_90, %c0_91] : memref<1x64xf32, #tpu.memory_space<vmem>>, vector<1x64xf32>
    %124 = arith.addf %122, %123 : vector<1x64xf32>
    %cst_92 = arith.constant 0.000000e+00 : f32
    %125 = vector.broadcast %cst_92 : f32 to vector<1x64xf32>
    %126 = arith.maximumf %124, %125 : vector<1x64xf32>
    %c0_93 = arith.constant 0 : index
    %c0_94 = arith.constant 0 : index
    %127 = vector.load %arg10[%c0_93, %c0_94] : memref<64x16xf32, #tpu.memory_space<vmem>>, vector<64x16xf32>
    %cst_95 = arith.constant dense<0.000000e+00> : vector<1x16xf32>
    %128 = tpu.matmul %126, %127, %cst_95 {dimension_numbers = #tpu.dot_dimension_numbers<[1], [0], [0], [1], [0, 0, 1, 1], [], []>} : vector<1x64xf32>, vector<64x16xf32>, vector<1x16xf32> -> vector<1x16xf32>
    %c0_96 = arith.constant 0 : index
    %c0_97 = arith.constant 0 : index
    %129 = vector.load %arg11[%c0_96, %c0_97] : memref<1x16xf32, #tpu.memory_space<vmem>>, vector<1x16xf32>
    %130 = arith.addf %128, %129 : vector<1x16xf32>
    %cst_98 = arith.constant 0.000000e+00 : f32
    %131 = vector.broadcast %cst_98 : f32 to vector<1x16xf32>
    %132 = arith.maximumf %130, %131 : vector<1x16xf32>
    %c0_99 = arith.constant 0 : index
    %c0_100 = arith.constant 0 : index
    %133 = vector.load %arg12[%c0_99, %c0_100] : memref<16x16xf32, #tpu.memory_space<vmem>>, vector<16x16xf32>
    %cst_101 = arith.constant dense<0.000000e+00> : vector<1x16xf32>
    %134 = tpu.matmul %132, %133, %cst_101 {dimension_numbers = #tpu.dot_dimension_numbers<[1], [0], [0], [1], [0, 0, 1, 1], [], []>} : vector<1x16xf32>, vector<16x16xf32>, vector<1x16xf32> -> vector<1x16xf32>
    %c0_102 = arith.constant 0 : index
    %c0_103 = arith.constant 0 : index
    %135 = vector.load %arg13[%c0_102, %c0_103] : memref<1x16xf32, #tpu.memory_space<vmem>>, vector<1x16xf32>
    %136 = arith.addf %134, %135 : vector<1x16xf32>
    %cst_104 = arith.constant 0.000000e+00 : f32
    %137 = vector.broadcast %cst_104 : f32 to vector<1x16xf32>
    %138 = arith.maximumf %136, %137 : vector<1x16xf32>
    %c0_105 = arith.constant 0 : index
    %c0_106 = arith.constant 0 : index
    %139 = vector.load %arg14[%c0_105, %c0_106] : memref<16x16xf32, #tpu.memory_space<vmem>>, vector<16x16xf32>
    %cst_107 = arith.constant dense<0.000000e+00> : vector<1x16xf32>
    %140 = tpu.matmul %138, %139, %cst_107 {dimension_numbers = #tpu.dot_dimension_numbers<[1], [0], [0], [1], [0, 0, 1, 1], [], []>} : vector<1x16xf32>, vector<16x16xf32>, vector<1x16xf32> -> vector<1x16xf32>
    %c0_108 = arith.constant 0 : index
    %c0_109 = arith.constant 0 : index
    %141 = vector.load %arg15[%c0_108, %c0_109] : memref<1x16xf32, #tpu.memory_space<vmem>>, vector<1x16xf32>
    %142 = arith.addf %140, %141 : vector<1x16xf32>
    %cst_110 = arith.constant 0.000000e+00 : f32
    %143 = vector.broadcast %cst_110 : f32 to vector<1x16xf32>
    %144 = arith.maximumf %142, %143 : vector<1x16xf32>
    %c0_111 = arith.constant 0 : index
    %c0_112 = arith.constant 0 : index
    %145 = vector.load %arg16[%c0_111, %c0_112] : memref<16x16xf32, #tpu.memory_space<vmem>>, vector<16x16xf32>
    %cst_113 = arith.constant dense<0.000000e+00> : vector<1x16xf32>
    %146 = tpu.matmul %144, %145, %cst_113 {dimension_numbers = #tpu.dot_dimension_numbers<[1], [0], [0], [1], [0, 0, 1, 1], [], []>} : vector<1x16xf32>, vector<16x16xf32>, vector<1x16xf32> -> vector<1x16xf32>
    %147 = arith.addf %138, %146 : vector<1x16xf32>
    %c0_114 = arith.constant 0 : index
    %c0_115 = arith.constant 0 : index
    %148 = vector.load %arg17[%c0_114, %c0_115] : memref<1x16xf32, #tpu.memory_space<vmem>>, vector<1x16xf32>
    %149 = arith.addf %147, %148 : vector<1x16xf32>
    %c0_116 = arith.constant 0 : index
    %c0_117 = arith.constant 0 : index
    %150 = vector.load %arg18[%c0_116, %c0_117] : memref<16x16xf32, #tpu.memory_space<vmem>>, vector<16x16xf32>
    %cst_118 = arith.constant dense<0.000000e+00> : vector<1x16xf32>
    %151 = tpu.matmul %149, %150, %cst_118 {dimension_numbers = #tpu.dot_dimension_numbers<[1], [0], [0], [1], [0, 0, 1, 1], [], []>} : vector<1x16xf32>, vector<16x16xf32>, vector<1x16xf32> -> vector<1x16xf32>
    %c0_119 = arith.constant 0 : index
    %c0_120 = arith.constant 0 : index
    %152 = vector.load %arg19[%c0_119, %c0_120] : memref<1x16xf32, #tpu.memory_space<vmem>>, vector<1x16xf32>
    %153 = arith.addf %151, %152 : vector<1x16xf32>
    %cst_121 = arith.constant 0.000000e+00 : f32
    %154 = vector.broadcast %cst_121 : f32 to vector<1x16xf32>
    %155 = arith.maximumf %153, %154 : vector<1x16xf32>
    %c0_122 = arith.constant 0 : index
    %c0_123 = arith.constant 0 : index
    %156 = vector.load %arg20[%c0_122, %c0_123] : memref<16x16xf32, #tpu.memory_space<vmem>>, vector<16x16xf32>
    %cst_124 = arith.constant dense<0.000000e+00> : vector<1x16xf32>
    %157 = tpu.matmul %155, %156, %cst_124 {dimension_numbers = #tpu.dot_dimension_numbers<[1], [0], [0], [1], [0, 0, 1, 1], [], []>} : vector<1x16xf32>, vector<16x16xf32>, vector<1x16xf32> -> vector<1x16xf32>
    %158 = arith.addf %149, %157 : vector<1x16xf32>
    %c0_125 = arith.constant 0 : index
    %c0_126 = arith.constant 0 : index
    %159 = vector.load %arg21[%c0_125, %c0_126] : memref<1x16xf32, #tpu.memory_space<vmem>>, vector<1x16xf32>
    %160 = arith.addf %158, %159 : vector<1x16xf32>
    %c0_127 = arith.constant 0 : index
    %c0_128 = arith.constant 0 : index
    %c0_129 = arith.constant 0 : index
    %161 = vector.load %arg22[%c0_127, %c0_128, %c0_129] : memref<1x1x16xf32, #tpu.memory_space<vmem>>, vector<1x1x16xf32>
    %162 = vector.shape_cast %161 : vector<1x1x16xf32> to vector<1x16xf32>
    %163 = vector.shape_cast %160 : vector<1x16xf32> to vector<1x1x16xf32>
    tpu.vector_store %arg22[%c0_127, %c0_128, %c0_129], %163 {strides = array<i32>} : memref<1x1x16xf32, #tpu.memory_space<vmem>>, vector<1x1x16xf32>,
    return
  }
  func.func @transform_0(%arg0: i32) -> (i32, i32, i32) {
    %c0_i32 = arith.constant 0 : i32
    %c0_i32_0 = arith.constant 0 : i32
    %c0_i32_1 = arith.constant 0 : i32
    return %arg0, %c0_i32, %c0_i32_0 : i32, i32, i32
  }
  func.func @transform_1(%arg0: i32) -> (i32, i32, i32) {
    %c0_i32 = arith.constant 0 : i32
    %c0_i32_0 = arith.constant 0 : i32
    %c0_i32_1 = arith.constant 0 : i32
    %c0_i32_2 = arith.constant 0 : i32
    return %c0_i32, %c0_i32_0, %c0_i32_1 : i32, i32, i32
  }
  func.func @transform_2(%arg0: i32) -> (i32, i32) {
    %c0_i32 = arith.constant 0 : i32
    %c0_i32_0 = arith.constant 0 : i32
    %c0_i32_1 = arith.constant 0 : i32
    return %c0_i32, %c0_i32_0 : i32, i32
  }
  func.func @transform_3(%arg0: i32) -> (i32, i32) {
    %c0_i32 = arith.constant 0 : i32
    %c0_i32_0 = arith.constant 0 : i32
    %c0_i32_1 = arith.constant 0 : i32
    return %c0_i32, %c0_i32_0 : i32, i32
  }
  func.func @transform_4(%arg0: i32) -> (i32, i32) {
    %c0_i32 = arith.constant 0 : i32
    %c0_i32_0 = arith.constant 0 : i32
    %c0_i32_1 = arith.constant 0 : i32
    return %c0_i32, %c0_i32_0 : i32, i32
  }
  func.func @transform_5(%arg0: i32) -> (i32, i32) {
    %c0_i32 = arith.constant 0 : i32
    %c0_i32_0 = arith.constant 0 : i32
    %c0_i32_1 = arith.constant 0 : i32
    return %c0_i32, %c0_i32_0 : i32, i32
  }
  func.func @transform_6(%arg0: i32) -> (i32, i32) {
    %c0_i32 = arith.constant 0 : i32
    %c0_i32_0 = arith.constant 0 : i32
    %c0_i32_1 = arith.constant 0 : i32
    return %c0_i32, %c0_i32_0 : i32, i32
  }
  func.func @transform_7(%arg0: i32) -> (i32, i32) {
    %c0_i32 = arith.constant 0 : i32
    %c0_i32_0 = arith.constant 0 : i32
    %c0_i32_1 = arith.constant 0 : i32
    return %c0_i32, %c0_i32_0 : i32, i32
  }
  func.func @transform_8(%arg0: i32) -> (i32, i32) {
    %c0_i32 = arith.constant 0 : i32
    %c0_i32_0 = arith.constant 0 : i32
    %c0_i32_1 = arith.constant 0 : i32
    return %c0_i32, %c0_i32_0 : i32, i32
  }
  func.func @transform_9(%arg0: i32) -> (i32, i32) {
    %c0_i32 = arith.constant 0 : i32
    %c0_i32_0 = arith.constant 0 : i32
    %c0_i32_1 = arith.constant 0 : i32
    return %c0_i32, %c0_i32_0 : i32, i32
  }
  func.func @transform_10(%arg0: i32) -> (i32, i32) {
    %c0_i32 = arith.constant 0 : i32
    %c0_i32_0 = arith.constant 0 : i32
    %c0_i32_1 = arith.constant 0 : i32
    return %c0_i32, %c0_i32_0 : i32, i32
  }
  func.func @transform_11(%arg0: i32) -> (i32, i32) {
    %c0_i32 = arith.constant 0 : i32
    %c0_i32_0 = arith.constant 0 : i32
    %c0_i32_1 = arith.constant 0 : i32
    return %c0_i32, %c0_i32_0 : i32, i32
  }
  func.func @transform_12(%arg0: i32) -> (i32, i32) {
    %c0_i32 = arith.constant 0 : i32
    %c0_i32_0 = arith.constant 0 : i32
    %c0_i32_1 = arith.constant 0 : i32
    return %c0_i32, %c0_i32_0 : i32, i32
  }
  func.func @transform_13(%arg0: i32) -> (i32, i32) {
    %c0_i32 = arith.constant 0 : i32
    %c0_i32_0 = arith.constant 0 : i32
    %c0_i32_1 = arith.constant 0 : i32
    return %c0_i32, %c0_i32_0 : i32, i32
  }
  func.func @transform_14(%arg0: i32) -> (i32, i32) {
    %c0_i32 = arith.constant 0 : i32
    %c0_i32_0 = arith.constant 0 : i32
    %c0_i32_1 = arith.constant 0 : i32
    return %c0_i32, %c0_i32_0 : i32, i32
  }
  func.func @transform_15(%arg0: i32) -> (i32, i32) {
    %c0_i32 = arith.constant 0 : i32
    %c0_i32_0 = arith.constant 0 : i32
    %c0_i32_1 = arith.constant 0 : i32
    return %c0_i32, %c0_i32_0 : i32, i32
  }
  func.func @transform_16(%arg0: i32) -> (i32, i32) {
    %c0_i32 = arith.constant 0 : i32
    %c0_i32_0 = arith.constant 0 : i32
    %c0_i32_1 = arith.constant 0 : i32
    return %c0_i32, %c0_i32_0 : i32, i32
  }
  func.func @transform_17(%arg0: i32) -> (i32, i32) {
    %c0_i32 = arith.constant 0 : i32
    %c0_i32_0 = arith.constant 0 : i32
    %c0_i32_1 = arith.constant 0 : i32
    return %c0_i32, %c0_i32_0 : i32, i32
  }
  func.func @transform_18(%arg0: i32) -> (i32, i32) {
    %c0_i32 = arith.constant 0 : i32
    %c0_i32_0 = arith.constant 0 : i32
    %c0_i32_1 = arith.constant 0 : i32
    return %c0_i32, %c0_i32_0 : i32, i32
  }
  func.func @transform_19(%arg0: i32) -> (i32, i32) {
    %c0_i32 = arith.constant 0 : i32
    %c0_i32_0 = arith.constant 0 : i32
    %c0_i32_1 = arith.constant 0 : i32
    return %c0_i32, %c0_i32_0 : i32, i32
  }
  func.func @transform_20(%arg0: i32) -> (i32, i32) {
    %c0_i32 = arith.constant 0 : i32
    %c0_i32_0 = arith.constant 0 : i32
    %c0_i32_1 = arith.constant 0 : i32
    return %c0_i32, %c0_i32_0 : i32, i32
  }
  func.func @transform_21(%arg0: i32) -> (i32, i32, i32) {
    %c0_i32 = arith.constant 0 : i32
    %c0_i32_0 = arith.constant 0 : i32
    %c0_i32_1 = arith.constant 0 : i32
    return %arg0, %c0_i32, %c0_i32_0 : i32, i32, i32
  }
}

</mosaic_0001>

<llo_original>
// kernel: forward.1
$region0: #{forward.1}
  #allocation0 [shape = 'u32[]', space=smem, size = 0x4, offset = 0x4, fixed_abs, tag = 'smem constant byte address 0x4 - core index']
  #allocation1 [shape = 'u32[144,128]{1,0:T(1,128)}', space=vmem, size = 0x12000, scoped, tag = 'internal scratch']
  %s0 = inlined_call_operand.vmem [shape: f32[2,22,1408], index: 0, kind: input, shape index: {}]
  %s1 = inlined_call_operand.vmem [shape: f32[7,1408,64], index: 1, kind: input, shape index: {}]
  %s2 = inlined_call_operand.vmem [shape: f32[1,64], index: 2, kind: input, shape index: {}]
  %s3 = inlined_call_operand.vmem [shape: f32[1024,512], index: 3, kind: input, shape index: {}]
  %s4 = inlined_call_operand.vmem [shape: f32[1,512], index: 4, kind: input, shape index: {}]
  %s5 = inlined_call_operand.vmem [shape: f32[512,256], index: 5, kind: input, shape index: {}]
  %s6 = inlined_call_operand.vmem [shape: f32[1,256], index: 6, kind: input, shape index: {}]
  %s7 = inlined_call_operand.vmem [shape: f32[256,64], index: 7, kind: input, shape index: {}]
  %s8 = inlined_call_operand.vmem [shape: f32[1,64], index: 8, kind: input, shape index: {}]
  %s9 = inlined_call_operand.vmem [shape: f32[64,16], index: 9, kind: input, shape index: {}]
  %s10 = inlined_call_operand.vmem [shape: f32[1,16], index: 10, kind: input, shape index: {}]
  %s11 = inlined_call_operand.vmem [shape: f32[16,16], index: 11, kind: input, shape index: {}]
  %s12 = inlined_call_operand.vmem [shape: f32[1,16], index: 12, kind: input, shape index: {}]
  %s13 = inlined_call_operand.vmem [shape: f32[16,16], index: 13, kind: input, shape index: {}]
  %s14 = inlined_call_operand.vmem [shape: f32[1,16], index: 14, kind: input, shape index: {}]
  %s15 = inlined_call_operand.vmem [shape: f32[16,16], index: 15, kind: input, shape index: {}]
  %s16 = inlined_call_operand.vmem [shape: f32[1,16], index: 16, kind: input, shape index: {}]
  %s17 = inlined_call_operand.vmem [shape: f32[16,16], index: 17, kind: input, shape index: {}]
  %s18 = inlined_call_operand.vmem [shape: f32[1,16], index: 18, kind: input, shape index: {}]
  %s19 = inlined_call_operand.vmem [shape: f32[16,16], index: 19, kind: input, shape index: {}]
  %s20 = inlined_call_operand.vmem [shape: f32[1,16], index: 20, kind: input, shape index: {}]
  %s21 = inlined_call_operand.hbm [shape: f32[2,1,16], index: 21, kind: output, shape index: {}]
  %s22 = sld [smem:[#allocation0]]
  $region117: #{forward.1} parent=0
    _
  %s24 = ssub.s32 1, %s22
  %s25 = scalar_select 0, %s24, %s22
  $region1: #{forward.1} parent=0
    #allocation2 [shape = 'u8[1024]{0}', space=vmem, size = 0x400, scoped, tag = 'output window, operand 0']
    #allocation3 [shape = 's32[2]{0}', space=sflag, size = 0x8, scoped, tag = 'scoped memory for forward.1']
    %26 = vsyncpa [#allocation3], 0
    %s27 = scalar_lea.sflag [#allocation3], 1
    %28 = vsyncpa %s27, 0
    loop: start=0, step=1, limit=4
    $region2: #{forward.1} parent=1 // loop_pre_header
      _
    $region3: #{forward.1} parent=1 // loop_header
      %s30 = sphi 0, %s34
      %p31 = scmp.ge.s32.totalorder %s30, 4
      %s40 = sphi 0, %s42
      %s43 = sphi 0, %s40
      %s44 = sphi 0, %s43
      %s60 = sphi 0, %s44
      %s64 = sphi 0, %s64
      %s66 = sphi 0, %s64
      %s67 = sphi 0, %s66
      %s81 = sphi 0, %s67
      %s85 = sphi 0, %s85
      %s87 = sphi 0, %s85
      %s88 = sphi 0, %s87
      %s102 = sphi 0, %s88
      %s106 = sphi 0, %s106
      %s108 = sphi 0, %s106
      %s109 = sphi 0, %s108
      %s123 = sphi 0, %s109
      %s127 = sphi 0, %s127
      %s129 = sphi 0, %s127
      %s130 = sphi 0, %s129
      %s144 = sphi 0, %s130
      %s148 = sphi 0, %s148
      %s150 = sphi 0, %s148
      %s151 = sphi 0, %s150
      %s165 = sphi 0, %s151
      %s169 = sphi 0, %s169
      %s171 = sphi 0, %s169
      %s172 = sphi 0, %s171
      %s186 = sphi 0, %s172
      %s190 = sphi 0, %s190
      %s192 = sphi 0, %s190
      %s193 = sphi 0, %s192
      %s207 = sphi 0, %s193
      %s211 = sphi 0, %s211
      %s213 = sphi 0, %s211
      %s214 = sphi 0, %s213
      %s228 = sphi 0, %s214
      %s232 = sphi 0, %s232
      %s234 = sphi 0, %s232
      %s235 = sphi 0, %s234
      %s249 = sphi 0, %s235
      %s253 = sphi 0, %s253
      %s255 = sphi 0, %s253
      %s256 = sphi 0, %s255
      %s270 = sphi 0, %s256
      %s274 = sphi 0, %s274
      %s276 = sphi 0, %s274
      %s277 = sphi 0, %s276
      %s291 = sphi 0, %s277
      %s295 = sphi 0, %s295
      %s297 = sphi 0, %s295
      %s298 = sphi 0, %s297
      %s312 = sphi 0, %s298
      %s316 = sphi 0, %s316
      %s318 = sphi 0, %s316
      %s319 = sphi 0, %s318
      %s333 = sphi 0, %s319
      %s337 = sphi 0, %s337
      %s339 = sphi 0, %s337
      %s340 = sphi 0, %s339
      %s354 = sphi 0, %s340
      %s358 = sphi 0, %s358
      %s360 = sphi 0, %s358
      %s361 = sphi 0, %s360
      %s375 = sphi 0, %s361
      %s379 = sphi 0, %s379
      %s381 = sphi 0, %s379
      %s382 = sphi 0, %s381
      %s396 = sphi 0, %s382
      %s400 = sphi 0, %s400
      %s402 = sphi 0, %s400
      %s403 = sphi 0, %s402
      %s417 = sphi 0, %s403
      %s421 = sphi 0, %s421
      %s423 = sphi 0, %s421
      %s424 = sphi 0, %s423
      %s438 = sphi 0, %s424
      %s442 = sphi 0, %s442
      %s444 = sphi 0, %s442
      %s445 = sphi 0, %s444
      %s459 = sphi 0, %s445
      %s463 = sphi 0, %s463
      %s465 = sphi 0, %s463
      %s466 = sphi 0, %s465
      %s480 = sphi 0, %s466
      %s486 = sphi 0, %s488
      %s489 = sphi 0, %s486
      %s490 = sphi 0, %s489
      %s506 = sphi 0, %s490
    $region4: #{forward.1} parent=1 // loop_header_branch
      %33 = sbr.rel (%p31) target = $region8
    $region5: #{forward.1} parent=1 // loop_body
      %s35 = ssub.s32 %s30, 1
      %s36 = ssub.s32 %s30, 2
      %s37 = sadd.s32 %s30, 1
      %s38 = ssub.s32 %s30, %s37
      %p39 = scmp.eq.s32.totalorder %s38, 0
      %s41 = sadd.s32 %s40, 1
      %s42 = scalar_select %p39, %s40, %s41
      %p45 = pneg %p39
      %p46 = scmp.eq.s32.totalorder %s30, 1
      %p47 = por %p45, %p46
      %p48 = scmp.ne.s32.totalorder %s40, %s43
      %p49 = scmp.eq.s32.totalorder %s30, 0
      %p50 = por %p48, %p49
      %p51 = scmp.ne.s32.totalorder %s40, %s43
      %p52 = scmp.eq.s32.totalorder %s35, 1
      %p53 = por %p51, %p52
      %p54 = scmp.ne.s32.totalorder %s43, %s44
      %p55 = scmp.eq.s32.totalorder %s35, 0
      %p56 = por %p54, %p55
      %p57 = scmp.ne.s32.totalorder %s43, %s44
      %p58 = scmp.eq.s32.totalorder %s36, 1
      %p59 = por %p57, %p58
      %p61 = scmp.ne.s32.totalorder %s44, %s60
      %p62 = scmp.eq.s32.totalorder %s36, 0
      %p63 = por %p61, %p62
      %s65 = sadd.s32 %s64, 1
      %p68 = scmp.eq.s32.totalorder %s30, 1
      %p69 = scmp.ne.s32.totalorder %s64, %s66
      %p70 = scmp.eq.s32.totalorder %s30, 0
      %p71 = por %p69, %p70
      %p72 = scmp.ne.s32.totalorder %s64, %s66
      %p73 = scmp.eq.s32.totalorder %s35, 1
      %p74 = por %p72, %p73
      %p75 = scmp.ne.s32.totalorder %s66, %s67
      %p76 = scmp.eq.s32.totalorder %s35, 0
      %p77 = por %p75, %p76
      %p78 = scmp.ne.s32.totalorder %s66, %s67
      %p79 = scmp.eq.s32.totalorder %s36, 1
      %p80 = por %p78, %p79
      %p82 = scmp.ne.s32.totalorder %s67, %s81
      %p83 = scmp.eq.s32.totalorder %s36, 0
      %p84 = por %p82, %p83
      %s86 = sadd.s32 %s85, 1
      %p89 = scmp.eq.s32.totalorder %s30, 1
      %p90 = scmp.ne.s32.totalorder %s85, %s87
      %p91 = scmp.eq.s32.totalorder %s30, 0
      %p92 = por %p90, %p91
      %p93 = scmp.ne.s32.totalorder %s85, %s87
      %p94 = scmp.eq.s32.totalorder %s35, 1
      %p95 = por %p93, %p94
      %p96 = scmp.ne.s32.totalorder %s87, %s88
      %p97 = scmp.eq.s32.totalorder %s35, 0
      %p98 = por %p96, %p97
      %p99 = scmp.ne.s32.totalorder %s87, %s88
      %p100 = scmp.eq.s32.totalorder %s36, 1
      %p101 = por %p99, %p100
      %p103 = scmp.ne.s32.totalorder %s88, %s102
      %p104 = scmp.eq.s32.totalorder %s36, 0
      %p105 = por %p103, %p104
      %s107 = sadd.s32 %s106, 1
      %p110 = scmp.eq.s32.totalorder %s30, 1
      %p111 = scmp.ne.s32.totalorder %s106, %s108
      %p112 = scmp.eq.s32.totalorder %s30, 0
      %p113 = por %p111, %p112
      %p114 = scmp.ne.s32.totalorder %s106, %s108
      %p115 = scmp.eq.s32.totalorder %s35, 1
      %p116 = por %p114, %p115
      %p117 = scmp.ne.s32.totalorder %s108, %s109
      %p118 = scmp.eq.s32.totalorder %s35, 0
      %p119 = por %p117, %p118
      %p120 = scmp.ne.s32.totalorder %s108, %s109
      %p121 = scmp.eq.s32.totalorder %s36, 1
      %p122 = por %p120, %p121
      %p124 = scmp.ne.s32.totalorder %s109, %s123
      %p125 = scmp.eq.s32.totalorder %s36, 0
      %p126 = por %p124, %p125
      %s128 = sadd.s32 %s127, 1
      %p131 = scmp.eq.s32.totalorder %s30, 1
      %p132 = scmp.ne.s32.totalorder %s127, %s129
      %p133 = scmp.eq.s32.totalorder %s30, 0
      %p134 = por %p132, %p133
      %p135 = scmp.ne.s32.totalorder %s127, %s129
      %p136 = scmp.eq.s32.totalorder %s35, 1
      %p137 = por %p135, %p136
      %p138 = scmp.ne.s32.totalorder %s129, %s130
      %p139 = scmp.eq.s32.totalorder %s35, 0
      %p140 = por %p138, %p139
      %p141 = scmp.ne.s32.totalorder %s129, %s130
      %p142 = scmp.eq.s32.totalorder %s36, 1
      %p143 = por %p141, %p142
      %p145 = scmp.ne.s32.totalorder %s130, %s144
      %p146 = scmp.eq.s32.totalorder %s36, 0
      %p147 = por %p145, %p146
      %s149 = sadd.s32 %s148, 1
      %p152 = scmp.eq.s32.totalorder %s30, 1
      %p153 = scmp.ne.s32.totalorder %s148, %s150
      %p154 = scmp.eq.s32.totalorder %s30, 0
      %p155 = por %p153, %p154
      %p156 = scmp.ne.s32.totalorder %s148, %s150
      %p157 = scmp.eq.s32.totalorder %s35, 1
      %p158 = por %p156, %p157
      %p159 = scmp.ne.s32.totalorder %s150, %s151
      %p160 = scmp.eq.s32.totalorder %s35, 0
      %p161 = por %p159, %p160
      %p162 = scmp.ne.s32.totalorder %s150, %s151
      %p163 = scmp.eq.s32.totalorder %s36, 1
      %p164 = por %p162, %p163
      %p166 = scmp.ne.s32.totalorder %s151, %s165
      %p167 = scmp.eq.s32.totalorder %s36, 0
      %p168 = por %p166, %p167
      %s170 = sadd.s32 %s169, 1
      %p173 = scmp.eq.s32.totalorder %s30, 1
      %p174 = scmp.ne.s32.totalorder %s169, %s171
      %p175 = scmp.eq.s32.totalorder %s30, 0
      %p176 = por %p174, %p175
      %p177 = scmp.ne.s32.totalorder %s169, %s171
      %p178 = scmp.eq.s32.totalorder %s35, 1
      %p179 = por %p177, %p178
      %p180 = scmp.ne.s32.totalorder %s171, %s172
      %p181 = scmp.eq.s32.totalorder %s35, 0
      %p182 = por %p180, %p181
      %p183 = scmp.ne.s32.totalorder %s171, %s172
      %p184 = scmp.eq.s32.totalorder %s36, 1
      %p185 = por %p183, %p184
      %p187 = scmp.ne.s32.totalorder %s172, %s186
      %p188 = scmp.eq.s32.totalorder %s36, 0
      %p189 = por %p187, %p188
      %s191 = sadd.s32 %s190, 1
      %p194 = scmp.eq.s32.totalorder %s30, 1
      %p195 = scmp.ne.s32.totalorder %s190, %s192
      %p196 = scmp.eq.s32.totalorder %s30, 0
      %p197 = por %p195, %p196
      %p198 = scmp.ne.s32.totalorder %s190, %s192
      %p199 = scmp.eq.s32.totalorder %s35, 1
      %p200 = por %p198, %p199
      %p201 = scmp.ne.s32.totalorder %s192, %s193
      %p202 = scmp.eq.s32.totalorder %s35, 0
      %p203 = por %p201, %p202
      %p204 = scmp.ne.s32.totalorder %s192, %s193
      %p205 = scmp.eq.s32.totalorder %s36, 1
      %p206 = por %p204, %p205
      %p208 = scmp.ne.s32.totalorder %s193, %s207
      %p209 = scmp.eq.s32.totalorder %s36, 0
      %p210 = por %p208, %p209
      %s212 = sadd.s32 %s211, 1
      %p215 = scmp.eq.s32.totalorder %s30, 1
      %p216 = scmp.ne.s32.totalorder %s211, %s213
      %p217 = scmp.eq.s32.totalorder %s30, 0
      %p218 = por %p216, %p217
      %p219 = scmp.ne.s32.totalorder %s211, %s213
      %p220 = scmp.eq.s32.totalorder %s35, 1
      %p221 = por %p219, %p220
      %p222 = scmp.ne.s32.totalorder %s213, %s214
      %p223 = scmp.eq.s32.totalorder %s35, 0
      %p224 = por %p222, %p223
      %p225 = scmp.ne.s32.totalorder %s213, %s214
      %p226 = scmp.eq.s32.totalorder %s36, 1
      %p227 = por %p225, %p226
      %p229 = scmp.ne.s32.totalorder %s214, %s228
      %p230 = scmp.eq.s32.totalorder %s36, 0
      %p231 = por %p229, %p230
      %s233 = sadd.s32 %s232, 1
      %p236 = scmp.eq.s32.totalorder %s30, 1
      %p237 = scmp.ne.s32.totalorder %s232, %s234
      %p238 = scmp.eq.s32.totalorder %s30, 0
      %p239 = por %p237, %p238
      %p240 = scmp.ne.s32.totalorder %s232, %s234
      %p241 = scmp.eq.s32.totalorder %s35, 1
      %p242 = por %p240, %p241
      %p243 = scmp.ne.s32.totalorder %s234, %s235
      %p244 = scmp.eq.s32.totalorder %s35, 0
      %p245 = por %p243, %p244
      %p246 = scmp.ne.s32.totalorder %s234, %s235
      %p247 = scmp.eq.s32.totalorder %s36, 1
      %p248 = por %p246, %p247
      %p250 = scmp.ne.s32.totalorder %s235, %s249
      %p251 = scmp.eq.s32.totalorder %s36, 0
      %p252 = por %p250, %p251
      %s254 = sadd.s32 %s253, 1
      %p257 = scmp.eq.s32.totalorder %s30, 1
      %p258 = scmp.ne.s32.totalorder %s253, %s255
      %p259 = scmp.eq.s32.totalorder %s30, 0
      %p260 = por %p258, %p259
      %p261 = scmp.ne.s32.totalorder %s253, %s255
      %p262 = scmp.eq.s32.totalorder %s35, 1
      %p263 = por %p261, %p262
      %p264 = scmp.ne.s32.totalorder %s255, %s256
      %p265 = scmp.eq.s32.totalorder %s35, 0
      %p266 = por %p264, %p265
      %p267 = scmp.ne.s32.totalorder %s255, %s256
      %p268 = scmp.eq.s32.totalorder %s36, 1
      %p269 = por %p267, %p268
      %p271 = scmp.ne.s32.totalorder %s256, %s270
      %p272 = scmp.eq.s32.totalorder %s36, 0
      %p273 = por %p271, %p272
      %s275 = sadd.s32 %s274, 1
      %p278 = scmp.eq.s32.totalorder %s30, 1
      %p279 = scmp.ne.s32.totalorder %s274, %s276
      %p280 = scmp.eq.s32.totalorder %s30, 0
      %p281 = por %p279, %p280
      %p282 = scmp.ne.s32.totalorder %s274, %s276
      %p283 = scmp.eq.s32.totalorder %s35, 1
      %p284 = por %p282, %p283
      %p285 = scmp.ne.s32.totalorder %s276, %s277
      %p286 = scmp.eq.s32.totalorder %s35, 0
      %p287 = por %p285, %p286
      %p288 = scmp.ne.s32.totalorder %s276, %s277
      %p289 = scmp.eq.s32.totalorder %s36, 1
      %p290 = por %p288, %p289
      %p292 = scmp.ne.s32.totalorder %s277, %s291
      %p293 = scmp.eq.s32.totalorder %s36, 0
      %p294 = por %p292, %p293
      %s296 = sadd.s32 %s295, 1
      %p299 = scmp.eq.s32.totalorder %s30, 1
      %p300 = scmp.ne.s32.totalorder %s295, %s297
      %p301 = scmp.eq.s32.totalorder %s30, 0
      %p302 = por %p300, %p301
      %p303 = scmp.ne.s32.totalorder %s295, %s297
      %p304 = scmp.eq.s32.totalorder %s35, 1
      %p305 = por %p303, %p304
      %p306 = scmp.ne.s32.totalorder %s297, %s298
      %p307 = scmp.eq.s32.totalorder %s35, 0
      %p308 = por %p306, %p307
      %p309 = scmp.ne.s32.totalorder %s297, %s298
      %p310 = scmp.eq.s32.totalorder %s36, 1
      %p311 = por %p309, %p310
      %p313 = scmp.ne.s32.totalorder %s298, %s312
      %p314 = scmp.eq.s32.totalorder %s36, 0
      %p315 = por %p313, %p314
      %s317 = sadd.s32 %s316, 1
      %p320 = scmp.eq.s32.totalorder %s30, 1
      %p321 = scmp.ne.s32.totalorder %s316, %s318
      %p322 = scmp.eq.s32.totalorder %s30, 0
      %p323 = por %p321, %p322
      %p324 = scmp.ne.s32.totalorder %s316, %s318
      %p325 = scmp.eq.s32.totalorder %s35, 1
      %p326 = por %p324, %p325
      %p327 = scmp.ne.s32.totalorder %s318, %s319
      %p328 = scmp.eq.s32.totalorder %s35, 0
      %p329 = por %p327, %p328
      %p330 = scmp.ne.s32.totalorder %s318, %s319
      %p331 = scmp.eq.s32.totalorder %s36, 1
      %p332 = por %p330, %p331
      %p334 = scmp.ne.s32.totalorder %s319, %s333
      %p335 = scmp.eq.s32.totalorder %s36, 0
      %p336 = por %p334, %p335
      %s338 = sadd.s32 %s337, 1
      %p341 = scmp.eq.s32.totalorder %s30, 1
      %p342 = scmp.ne.s32.totalorder %s337, %s339
      %p343 = scmp.eq.s32.totalorder %s30, 0
      %p344 = por %p342, %p343
      %p345 = scmp.ne.s32.totalorder %s337, %s339
      %p346 = scmp.eq.s32.totalorder %s35, 1
      %p347 = por %p345, %p346
      %p348 = scmp.ne.s32.totalorder %s339, %s340
      %p349 = scmp.eq.s32.totalorder %s35, 0
      %p350 = por %p348, %p349
      %p351 = scmp.ne.s32.totalorder %s339, %s340
      %p352 = scmp.eq.s32.totalorder %s36, 1
      %p353 = por %p351, %p352
      %p355 = scmp.ne.s32.totalorder %s340, %s354
      %p356 = scmp.eq.s32.totalorder %s36, 0
      %p357 = por %p355, %p356
      %s359 = sadd.s32 %s358, 1
      %p362 = scmp.eq.s32.totalorder %s30, 1
      %p363 = scmp.ne.s32.totalorder %s358, %s360
      %p364 = scmp.eq.s32.totalorder %s30, 0
      %p365 = por %p363, %p364
      %p366 = scmp.ne.s32.totalorder %s358, %s360
      %p367 = scmp.eq.s32.totalorder %s35, 1
      %p368 = por %p366, %p367
      %p369 = scmp.ne.s32.totalorder %s360, %s361
      %p370 = scmp.eq.s32.totalorder %s35, 0
      %p371 = por %p369, %p370
      %p372 = scmp.ne.s32.totalorder %s360, %s361
      %p373 = scmp.eq.s32.totalorder %s36, 1
      %p374 = por %p372, %p373
      %p376 = scmp.ne.s32.totalorder %s361, %s375
      %p377 = scmp.eq.s32.totalorder %s36, 0
      %p378 = por %p376, %p377
      %s380 = sadd.s32 %s379, 1
      %p383 = scmp.eq.s32.totalorder %s30, 1
      %p384 = scmp.ne.s32.totalorder %s379, %s381
      %p385 = scmp.eq.s32.totalorder %s30, 0
      %p386 = por %p384, %p385
      %p387 = scmp.ne.s32.totalorder %s379, %s381
      %p388 = scmp.eq.s32.totalorder %s35, 1
      %p389 = por %p387, %p388
      %p390 = scmp.ne.s32.totalorder %s381, %s382
      %p391 = scmp.eq.s32.totalorder %s35, 0
      %p392 = por %p390, %p391
      %p393 = scmp.ne.s32.totalorder %s381, %s382
      %p394 = scmp.eq.s32.totalorder %s36, 1
      %p395 = por %p393, %p394
      %p397 = scmp.ne.s32.totalorder %s382, %s396
      %p398 = scmp.eq.s32.totalorder %s36, 0
      %p399 = por %p397, %p398
      %s401 = sadd.s32 %s400, 1
      %p404 = scmp.eq.s32.totalorder %s30, 1
      %p405 = scmp.ne.s32.totalorder %s400, %s402
      %p406 = scmp.eq.s32.totalorder %s30, 0
      %p407 = por %p405, %p406
      %p408 = scmp.ne.s32.totalorder %s400, %s402
      %p409 = scmp.eq.s32.totalorder %s35, 1
      %p410 = por %p408, %p409
      %p411 = scmp.ne.s32.totalorder %s402, %s403
      %p412 = scmp.eq.s32.totalorder %s35, 0
      %p413 = por %p411, %p412
      %p414 = scmp.ne.s32.totalorder %s402, %s403
      %p415 = scmp.eq.s32.totalorder %s36, 1
      %p416 = por %p414, %p415
      %p418 = scmp.ne.s32.totalorder %s403, %s417
      %p419 = scmp.eq.s32.totalorder %s36, 0
      %p420 = por %p418, %p419
      %s422 = sadd.s32 %s421, 1
      %p425 = scmp.eq.s32.totalorder %s30, 1
      %p426 = scmp.ne.s32.totalorder %s421, %s423
      %p427 = scmp.eq.s32.totalorder %s30, 0
      %p428 = por %p426, %p427
      %p429 = scmp.ne.s32.totalorder %s421, %s423
      %p430 = scmp.eq.s32.totalorder %s35, 1
      %p431 = por %p429, %p430
      %p432 = scmp.ne.s32.totalorder %s423, %s424
      %p433 = scmp.eq.s32.totalorder %s35, 0
      %p434 = por %p432, %p433
      %p435 = scmp.ne.s32.totalorder %s423, %s424
      %p436 = scmp.eq.s32.totalorder %s36, 1
      %p437 = por %p435, %p436
      %p439 = scmp.ne.s32.totalorder %s424, %s438
      %p440 = scmp.eq.s32.totalorder %s36, 0
      %p441 = por %p439, %p440
      %s443 = sadd.s32 %s442, 1
      %p446 = scmp.eq.s32.totalorder %s30, 1
      %p447 = scmp.ne.s32.totalorder %s442, %s444
      %p448 = scmp.eq.s32.totalorder %s30, 0
      %p449 = por %p447, %p448
      %p450 = scmp.ne.s32.totalorder %s442, %s444
      %p451 = scmp.eq.s32.totalorder %s35, 1
      %p452 = por %p450, %p451
      %p453 = scmp.ne.s32.totalorder %s444, %s445
      %p454 = scmp.eq.s32.totalorder %s35, 0
      %p455 = por %p453, %p454
      %p456 = scmp.ne.s32.totalorder %s444, %s445
      %p457 = scmp.eq.s32.totalorder %s36, 1
      %p458 = por %p456, %p457
      %p460 = scmp.ne.s32.totalorder %s445, %s459
      %p461 = scmp.eq.s32.totalorder %s36, 0
      %p462 = por %p460, %p461
      %s464 = sadd.s32 %s463, 1
      %p467 = scmp.eq.s32.totalorder %s30, 1
      %p468 = scmp.ne.s32.totalorder %s463, %s465
      %p469 = scmp.eq.s32.totalorder %s30, 0
      %p470 = por %p468, %p469
      %p471 = scmp.ne.s32.totalorder %s463, %s465
      %p472 = scmp.eq.s32.totalorder %s35, 1
      %p473 = por %p471, %p472
      %p474 = scmp.ne.s32.totalorder %s465, %s466
      %p475 = scmp.eq.s32.totalorder %s35, 0
      %p476 = por %p474, %p475
      %p477 = scmp.ne.s32.totalorder %s465, %s466
      %p478 = scmp.eq.s32.totalorder %s36, 1
      %p479 = por %p477, %p478
      %p481 = scmp.ne.s32.totalorder %s466, %s480
      %p482 = scmp.eq.s32.totalorder %s36, 0
      %p483 = por %p481, %p482
      %s484 = ssub.s32 %s30, %s37
      %p485 = scmp.eq.s32.totalorder %s484, 0
      %s487 = sadd.s32 %s486, 1
      %s488 = scalar_select %p485, %s486, %s487
      %p491 = pneg %p485
      %p492 = scmp.eq.s32.totalorder %s30, 1
      %p493 = por %p491, %p492
      %p494 = scmp.ne.s32.totalorder %s486, %s489
      %p495 = scmp.eq.s32.totalorder %s30, 0
      %p496 = por %p494, %p495
      %p497 = scmp.ne.s32.totalorder %s486, %s489
      %p498 = scmp.eq.s32.totalorder %s35, 1
      %p499 = por %p497, %p498
      %p500 = scmp.ne.s32.totalorder %s489, %s490
      %p501 = scmp.eq.s32.totalorder %s35, 0
      %p502 = por %p500, %p501
      %p503 = scmp.ne.s32.totalorder %s489, %s490
      %p504 = scmp.eq.s32.totalorder %s36, 1
      %p505 = por %p503, %p504
      %p507 = scmp.ne.s32.totalorder %s490, %s506
      %p508 = scmp.eq.s32.totalorder %s36, 0
      %p509 = por %p507, %p508
      %p510 = scmp.le.s32.totalorder 1, %s30
      %p511 = scmp.lt.s32.totalorder %s30, 3
      %p512 = pnand %p510, %p511
      %p513 = pneg %p512
      // Predicated region
      $region9: #{forward.1} parent=5 // pred_check
        _
      $region10: #{forward.1} parent=5 // pred_check_branch
        %515 = sbr.rel (%p512) target = $region12
      $region11: #{forward.1} parent=5 // pred_region
        %s516 = ssub.s32 %s30, 1
        // Predicated region
        $region13: #{forward.1} parent=11 // pred_check
          %p517 = pneg %p77
        $region14: #{forward.1} parent=11 // pred_check_branch
          %519 = sbr.rel (%p517) target = $region16
        $region15: #{forward.1} parent=11 // pred_region
          _
        $region16: #{forward.1} parent=11 // pred_fallthru
          _
        // Predicated region
        $region17: #{forward.1} parent=11 // pred_check
          %p520 = pneg %p98
        $region18: #{forward.1} parent=11 // pred_check_branch
          %522 = sbr.rel (%p520) target = $region20
        $region19: #{forward.1} parent=11 // pred_region
          _
        $region20: #{forward.1} parent=11 // pred_fallthru
          _
        // Predicated region
        $region21: #{forward.1} parent=11 // pred_check
          %p523 = pneg %p119
        $region22: #{forward.1} parent=11 // pred_check_branch
          %525 = sbr.rel (%p523) target = $region24
        $region23: #{forward.1} parent=11 // pred_region
          _
        $region24: #{forward.1} parent=11 // pred_fallthru
          _
        // Predicated region
        $region25: #{forward.1} parent=11 // pred_check
          %p526 = pneg %p140
        $region26: #{forward.1} parent=11 // pred_check_branch
          %528 = sbr.rel (%p526) target = $region28
        $region27: #{forward.1} parent=11 // pred_region
          _
        $region28: #{forward.1} parent=11 // pred_fallthru
          _
        // Predicated region
        $region29: #{forward.1} parent=11 // pred_check
          %p529 = pneg %p161
        $region30: #{forward.1} parent=11 // pred_check_branch
          %531 = sbr.rel (%p529) target = $region32
        $region31: #{forward.1} parent=11 // pred_region
          _
        $region32: #{forward.1} parent=11 // pred_fallthru
          _
        // Predicated region
        $region33: #{forward.1} parent=11 // pred_check
          %p532 = pneg %p182
        $region34: #{forward.1} parent=11 // pred_check_branch
          %534 = sbr.rel (%p532) target = $region36
        $region35: #{forward.1} parent=11 // pred_region
          _
        $region36: #{forward.1} parent=11 // pred_fallthru
          _
        // Predicated region
        $region37: #{forward.1} parent=11 // pred_check
          %p535 = pneg %p203
        $region38: #{forward.1} parent=11 // pred_check_branch
          %537 = sbr.rel (%p535) target = $region40
        $region39: #{forward.1} parent=11 // pred_region
          _
        $region40: #{forward.1} parent=11 // pred_fallthru
          _
        // Predicated region
        $region41: #{forward.1} parent=11 // pred_check
          %p538 = pneg %p224
        $region42: #{forward.1} parent=11 // pred_check_branch
          %540 = sbr.rel (%p538) target = $region44
        $region43: #{forward.1} parent=11 // pred_region
          _
        $region44: #{forward.1} parent=11 // pred_fallthru
          _
        // Predicated region
        $region45: #{forward.1} parent=11 // pred_check
          %p541 = pneg %p245
        $region46: #{forward.1} parent=11 // pred_check_branch
          %543 = sbr.rel (%p541) target = $region48
        $region47: #{forward.1} parent=11 // pred_region
          _
        $region48: #{forward.1} parent=11 // pred_fallthru
          _
        // Predicated region
        $region49: #{forward.1} parent=11 // pred_check
          %p544 = pneg %p266
        $region50: #{forward.1} parent=11 // pred_check_branch
          %546 = sbr.rel (%p544) target = $region52
        $region51: #{forward.1} parent=11 // pred_region
          _
        $region52: #{forward.1} parent=11 // pred_fallthru
          _
        // Predicated region
        $region53: #{forward.1} parent=11 // pred_check
          %p547 = pneg %p287
        $region54: #{forward.1} parent=11 // pred_check_branch
          %549 = sbr.rel (%p547) target = $region56
        $region55: #{forward.1} parent=11 // pred_region
          _
        $region56: #{forward.1} parent=11 // pred_fallthru
          _
        // Predicated region
        $region57: #{forward.1} parent=11 // pred_check
          %p550 = pneg %p308
        $region58: #{forward.1} parent=11 // pred_check_branch
          %552 = sbr.rel (%p550) target = $region60
        $region59: #{forward.1} parent=11 // pred_region
          _
        $region60: #{forward.1} parent=11 // pred_fallthru
          _
        // Predicated region
        $region61: #{forward.1} parent=11 // pred_check
          %p553 = pneg %p329
        $region62: #{forward.1} parent=11 // pred_check_branch
          %555 = sbr.rel (%p553) target = $region64
        $region63: #{forward.1} parent=11 // pred_region
          _
        $region64: #{forward.1} parent=11 // pred_fallthru
          _
        // Predicated region
        $region65: #{forward.1} parent=11 // pred_check
          %p556 = pneg %p350
        $region66: #{forward.1} parent=11 // pred_check_branch
          %558 = sbr.rel (%p556) target = $region68
        $region67: #{forward.1} parent=11 // pred_region
          _
        $region68: #{forward.1} parent=11 // pred_fallthru
          _
        // Predicated region
        $region69: #{forward.1} parent=11 // pred_check
          %p559 = pneg %p371
        $region70: #{forward.1} parent=11 // pred_check_branch
          %561 = sbr.rel (%p559) target = $region72
        $region71: #{forward.1} parent=11 // pred_region
          _
        $region72: #{forward.1} parent=11 // pred_fallthru
          _
        // Predicated region
        $region73: #{forward.1} parent=11 // pred_check
          %p562 = pneg %p392
        $region74: #{forward.1} parent=11 // pred_check_branch
          %564 = sbr.rel (%p562) target = $region76
        $region75: #{forward.1} parent=11 // pred_region
          _
        $region76: #{forward.1} parent=11 // pred_fallthru
          _
        // Predicated region
        $region77: #{forward.1} parent=11 // pred_check
          %p565 = pneg %p413
        $region78: #{forward.1} parent=11 // pred_check_branch
          %567 = sbr.rel (%p565) target = $region80
        $region79: #{forward.1} parent=11 // pred_region
          _
        $region80: #{forward.1} parent=11 // pred_fallthru
          _
        // Predicated region
        $region81: #{forward.1} parent=11 // pred_check
          %p568 = pneg %p434
        $region82: #{forward.1} parent=11 // pred_check_branch
          %570 = sbr.rel (%p568) target = $region84
        $region83: #{forward.1} parent=11 // pred_region
          _
        $region84: #{forward.1} parent=11 // pred_fallthru
          _
        // Predicated region
        $region85: #{forward.1} parent=11 // pred_check
          %p571 = pneg %p455
        $region86: #{forward.1} parent=11 // pred_check_branch
          %573 = sbr.rel (%p571) target = $region88
        $region87: #{forward.1} parent=11 // pred_region
          _
        $region88: #{forward.1} parent=11 // pred_fallthru
          _
        // Predicated region
        $region89: #{forward.1} parent=11 // pred_check
          %p574 = pneg %p476
        $region90: #{forward.1} parent=11 // pred_check_branch
          %576 = sbr.rel (%p574) target = $region92
        $region91: #{forward.1} parent=11 // pred_region
          _
        $region92: #{forward.1} parent=11 // pred_fallthru
          _
      $region12: #{forward.1} parent=5 // pred_fallthru
        _
      %p577 = scmp.lt.s32.totalorder %s30, 2
      // Predicated region
      $region93: #{forward.1} parent=5 // pred_check
        %p578 = pneg %p577
      $region94: #{forward.1} parent=5 // pred_check_branch
        %580 = sbr.rel (%p578) target = $region96
      $region95: #{forward.1} parent=5 // pred_region
        // Predicated region
        $region97: #{forward.1} parent=95 // pred_check
          %p581 = pneg %p50
        $region98: #{forward.1} parent=95 // pred_check_branch
          %583 = sbr.rel (%p581) target = $region100
        $region99: #{forward.1} parent=95 // pred_region
          %p584 = scmp.lt.s32.totalorder %s30, 1
          %s585 = scalar_select %p584, %s30, 1
          %s586 = smul.addr %s585, 33
          %s587 = smul.addr %s586, 8
          %s588 = scalar_lea.vmem %s0, %s587
        $region100: #{forward.1} parent=95 // pred_fallthru
          _
      $region96: #{forward.1} parent=5 // pred_fallthru
        _
      %p589 = scmp.le.s32.totalorder 1, %s30
      %p590 = scmp.lt.s32.totalorder %s30, 3
      %p591 = pnand %p589, %p590
      %p592 = pneg %p591
      // Predicated region
      $region101: #{forward.1} parent=5 // pred_check
        _
      $region102: #{forward.1} parent=5 // pred_check_branch
        %594 = sbr.rel (%p591) target = $region104
      $region103: #{forward.1} parent=5 // pred_region
        %s595 = ssub.s32 %s30, 1
        %p596 = scmp.lt.s32.totalorder %s35, 1
        %s597 = scalar_select %p596, %s35, 1
        %s598 = smul.addr %s597, 33
        %s599 = smul.addr %s598, 8
        %s600 = scalar_lea.vmem %s0, %s599
        %p601 = pneg %p56
        %p602 = pneg %p53
        %p603 = pneg %p77
        %p604 = pneg %p74
        %p605 = pneg %p98
        %p606 = pneg %p95
        %p607 = pneg %p119
        %p608 = pneg %p116
        %p609 = pneg %p140
        %p610 = pneg %p137
        %p611 = pneg %p161
        %p612 = pneg %p158
        %p613 = pneg %p182
        %p614 = pneg %p179
        %p615 = pneg %p203
        %p616 = pneg %p200
        %p617 = pneg %p224
        %p618 = pneg %p221
        %p619 = pneg %p245
        %p620 = pneg %p242
        %p621 = pneg %p266
        %p622 = pneg %p263
        %p623 = pneg %p287
        %p624 = pneg %p284
        %p625 = pneg %p308
        %p626 = pneg %p305
        %p627 = pneg %p329
        %p628 = pneg %p326
        %p629 = pneg %p350
        %p630 = pneg %p347
        %p631 = pneg %p371
        %p632 = pneg %p368
        %p633 = pneg %p392
        %p634 = pneg %p389
        %p635 = pneg %p413
        %p636 = pneg %p410
        %p637 = pneg %p434
        %p638 = pneg %p431
        %p639 = pneg %p455
        %p640 = pneg %p452
        %p641 = pneg %p476
        %p642 = pneg %p473
        %p643 = pneg %p502
        %p644 = pneg %p499
        %s645 = sand.u32 %s489, 1
        %s646 = scalar_lea.sflag [#allocation3], %s645
        %s647 = sand.u32 %s489, 1
        %s648 = scalar_lea.vmem [#allocation2], %s647
        %p649 = scmp.lt.s32.totalorder %s35, 1
        %s650 = scalar_select %p649, %s35, 1
        %s651 = smul.addr %s650, 33
        %s652 = smul.addr %s651, 8
        %s653 = scalar_lea.vmem %s0, %s652
        %v654 = vld [vmem:[%s653] sm:$0xff]
        %v655 = vld [vmem:[%s653 + $0x8] sm:$0xff]
        %v656 = vld [vmem:[%s653 + $0x10] sm:$0xff]
        %v657 = vld [vmem:[%s653 + $0x18] sm:$0xff]
        %v658 = vld [vmem:[%s653 + $0x20] sm:$0xff]
        %v659 = vld [vmem:[%s653 + $0x28] sm:$0xff]
        %v660 = vld [vmem:[%s653 + $0x30] sm:$0xff]
        %v661 = vld [vmem:[%s653 + $0x38] sm:$0xff]
        %v662 = vld [vmem:[%s653 + $0x40] sm:$0xff]
        %v663 = vld [vmem:[%s653 + $0x48] sm:$0xff]
        %v664 = vld [vmem:[%s653 + $0x50] sm:$0xff]
        %v665 = vld [vmem:[%s653 + $0x58] sm:$0xff]
        %v666 = vld [vmem:[%s653 + $0x60] sm:$0xff]
        %v667 = vld [vmem:[%s653 + $0x68] sm:$0xff]
        %v668 = vld [vmem:[%s653 + $0x70] sm:$0xff]
        %v669 = vld [vmem:[%s653 + $0x78] sm:$0xff]
        %v670 = vld [vmem:[%s653 + $0x80] sm:$0xff]
        %v671 = vld [vmem:[%s653 + $0x88] sm:$0xff]
        %v672 = vld [vmem:[%s653 + $0x90] sm:$0xff]
        %v673 = vld [vmem:[%s653 + $0x98] sm:$0xff]
        %v674 = vld [vmem:[%s653 + $0xa0] sm:$0xff]
        %v675 = vld [vmem:[%s653 + $0xa8] sm:$0xff]
        %v676 = vld [vmem:[%s1] sm:$0xff]
        %v677 = vld [vmem:[%s1 + $0x8] sm:$0xff]
        %v678 = vld [vmem:[%s1 + $0x10] sm:$0xff]
        %v679 = vld [vmem:[%s1 + $0x18] sm:$0xff]
        %v680 = vld [vmem:[%s1 + $0x20] sm:$0xff]
        %v681 = vld [vmem:[%s1 + $0x28] sm:$0xff]
        %v682 = vld [vmem:[%s1 + $0x30] sm:$0xff]
        %v683 = vld [vmem:[%s1 + $0x38] sm:$0xff]
        %v684 = vld [vmem:[%s1 + $0x40] sm:$0xff]
        %v685 = vld [vmem:[%s1 + $0x48] sm:$0xff]
        %v686 = vld [vmem:[%s1 + $0x50] sm:$0xff]
        %v687 = vld [vmem:[%s1 + $0x58] sm:$0xff]
        %v688 = vld [vmem:[%s1 + $0x60] sm:$0xff]
        %v689 = vld [vmem:[%s1 + $0x68] sm:$0xff]
        %v690 = vld [vmem:[%s1 + $0x70] sm:$0xff]
        %v691 = vld [vmem:[%s1 + $0x78] sm:$0xff]
        %v692 = vld [vmem:[%s1 + $0x80] sm:$0xff]
        %v693 = vld [vmem:[%s1 + $0x88] sm:$0xff]
        %v694 = vld [vmem:[%s1 + $0x90] sm:$0xff]
        %v695 = vld [vmem:[%s1 + $0x98] sm:$0xff]
        %v696 = vld [vmem:[%s1 + $0xa0] sm:$0xff]
        %v697 = vld [vmem:[%s1 + $0xa8] sm:$0xff]
        %v698 = vld [vmem:[%s1 + $0xb0] sm:$0xff]
        %v699 = vld [vmem:[%s1 + $0xb8] sm:$0xff]
        %v700 = vld [vmem:[%s1 + $0xc0] sm:$0xff]
        %v701 = vld [vmem:[%s1 + $0xc8] sm:$0xff]
        %v702 = vld [vmem:[%s1 + $0xd0] sm:$0xff]
        %v703 = vld [vmem:[%s1 + $0xd8] sm:$0xff]
        %v704 = vld [vmem:[%s1 + $0xe0] sm:$0xff]
        %v705 = vld [vmem:[%s1 + $0xe8] sm:$0xff]
        %v706 = vld [vmem:[%s1 + $0xf0] sm:$0xff]
        %v707 = vld [vmem:[%s1 + $0xf8] sm:$0xff]
        %v708 = vld [vmem:[%s1 + $0x100] sm:$0xff]
        %v709 = vld [vmem:[%s1 + $0x108] sm:$0xff]
        %v710 = vld [vmem:[%s1 + $0x110] sm:$0xff]
        %v711 = vld [vmem:[%s1 + $0x118] sm:$0xff]
        %v712 = vld [vmem:[%s1 + $0x120] sm:$0xff]
        %v713 = vld [vmem:[%s1 + $0x128] sm:$0xff]
        %v714 = vld [vmem:[%s1 + $0x130] sm:$0xff]
        %v715 = vld [vmem:[%s1 + $0x138] sm:$0xff]
        %v716 = vld [vmem:[%s1 + $0x140] sm:$0xff]
        %v717 = vld [vmem:[%s1 + $0x148] sm:$0xff]
        %v718 = vld [vmem:[%s1 + $0x150] sm:$0xff]
        %v719 = vld [vmem:[%s1 + $0x158] sm:$0xff]
        %v720 = vld [vmem:[%s1 + $0x160] sm:$0xff]
        %v721 = vld [vmem:[%s1 + $0x168] sm:$0xff]
        %v722 = vld [vmem:[%s1 + $0x170] sm:$0xff]
        %v723 = vld [vmem:[%s1 + $0x178] sm:$0xff]
        %v724 = vld [vmem:[%s1 + $0x180] sm:$0xff]
        %v725 = vld [vmem:[%s1 + $0x188] sm:$0xff]
        %v726 = vld [vmem:[%s1 + $0x190] sm:$0xff]
        %v727 = vld [vmem:[%s1 + $0x198] sm:$0xff]
        %v728 = vld [vmem:[%s1 + $0x1a0] sm:$0xff]
        %v729 = vld [vmem:[%s1 + $0x1a8] sm:$0xff]
        %v730 = vld [vmem:[%s1 + $0x1b0] sm:$0xff]
        %v731 = vld [vmem:[%s1 + $0x1b8] sm:$0xff]
        %v732 = vld [vmem:[%s1 + $0x1c0] sm:$0xff]
        %v733 = vld [vmem:[%s1 + $0x1c8] sm:$0xff]
        %v734 = vld [vmem:[%s1 + $0x1d0] sm:$0xff]
        %v735 = vld [vmem:[%s1 + $0x1d8] sm:$0xff]
        %v736 = vld [vmem:[%s1 + $0x1e0] sm:$0xff]
        %v737 = vld [vmem:[%s1 + $0x1e8] sm:$0xff]
        %v738 = vld [vmem:[%s1 + $0x1f0] sm:$0xff]
        %v739 = vld [vmem:[%s1 + $0x1f8] sm:$0xff]
        %v740 = vld [vmem:[%s1 + $0x200] sm:$0xff]
        %v741 = vld [vmem:[%s1 + $0x208] sm:$0xff]
        %v742 = vld [vmem:[%s1 + $0x210] sm:$0xff]
        %v743 = vld [vmem:[%s1 + $0x218] sm:$0xff]
        %v744 = vld [vmem:[%s1 + $0x220] sm:$0xff]
        %v745 = vld [vmem:[%s1 + $0x228] sm:$0xff]
        %v746 = vld [vmem:[%s1 + $0x230] sm:$0xff]
        %v747 = vld [vmem:[%s1 + $0x238] sm:$0xff]
        %v748 = vld [vmem:[%s1 + $0x240] sm:$0xff]
        %v749 = vld [vmem:[%s1 + $0x248] sm:$0xff]
        %v750 = vld [vmem:[%s1 + $0x250] sm:$0xff]
        %v751 = vld [vmem:[%s1 + $0x258] sm:$0xff]
        %v752 = vld [vmem:[%s1 + $0x260] sm:$0xff]
        %v753 = vld [vmem:[%s1 + $0x268] sm:$0xff]
        %v754 = vld [vmem:[%s1 + $0x270] sm:$0xff]
        %v755 = vld [vmem:[%s1 + $0x278] sm:$0xff]
        %v756 = vld [vmem:[%s1 + $0x280] sm:$0xff]
        %v757 = vld [vmem:[%s1 + $0x288] sm:$0xff]
        %v758 = vld [vmem:[%s1 + $0x290] sm:$0xff]
        %v759 = vld [vmem:[%s1 + $0x298] sm:$0xff]
        %v760 = vld [vmem:[%s1 + $0x2a0] sm:$0xff]
        %v761 = vld [vmem:[%s1 + $0x2a8] sm:$0xff]
        %v762 = vld [vmem:[%s1 + $0x2b0] sm:$0xff]
        %v763 = vld [vmem:[%s1 + $0x2b8] sm:$0xff]
        %v764 = vld [vmem:[%s1 + $0x2c0] sm:$0xff]
        %v765 = vld [vmem:[%s1 + $0x2c8] sm:$0xff]
        %v766 = vld [vmem:[%s1 + $0x2d0] sm:$0xff]
        %v767 = vld [vmem:[%s1 + $0x2d8] sm:$0xff]
        %v768 = vld [vmem:[%s1 + $0x2e0] sm:$0xff]
        %v769 = vld [vmem:[%s1 + $0x2e8] sm:$0xff]
        %v770 = vld [vmem:[%s1 + $0x2f0] sm:$0xff]
        %v771 = vld [vmem:[%s1 + $0x2f8] sm:$0xff]
        %v772 = vld [vmem:[%s1 + $0x300] sm:$0xff]
        %v773 = vld [vmem:[%s1 + $0x308] sm:$0xff]
        %v774 = vld [vmem:[%s1 + $0x310] sm:$0xff]
        %v775 = vld [vmem:[%s1 + $0x318] sm:$0xff]
        %v776 = vld [vmem:[%s1 + $0x320] sm:$0xff]
        %v777 = vld [vmem:[%s1 + $0x328] sm:$0xff]
        %v778 = vld [vmem:[%s1 + $0x330] sm:$0xff]
        %v779 = vld [vmem:[%s1 + $0x338] sm:$0xff]
        %v780 = vld [vmem:[%s1 + $0x340] sm:$0xff]
        %v781 = vld [vmem:[%s1 + $0x348] sm:$0xff]
        %v782 = vld [vmem:[%s1 + $0x350] sm:$0xff]
        %v783 = vld [vmem:[%s1 + $0x358] sm:$0xff]
        %v784 = vld [vmem:[%s1 + $0x360] sm:$0xff]
        %v785 = vld [vmem:[%s1 + $0x368] sm:$0xff]
        %v786 = vld [vmem:[%s1 + $0x370] sm:$0xff]
        %v787 = vld [vmem:[%s1 + $0x378] sm:$0xff]
        %v788 = vld [vmem:[%s1 + $0x380] sm:$0xff]
        %v789 = vld [vmem:[%s1 + $0x388] sm:$0xff]
        %v790 = vld [vmem:[%s1 + $0x390] sm:$0xff]
        %v791 = vld [vmem:[%s1 + $0x398] sm:$0xff]
        %v792 = vld [vmem:[%s1 + $0x3a0] sm:$0xff]
        %v793 = vld [vmem:[%s1 + $0x3a8] sm:$0xff]
        %v794 = vld [vmem:[%s1 + $0x3b0] sm:$0xff]
        %v795 = vld [vmem:[%s1 + $0x3b8] sm:$0xff]
        %v796 = vld [vmem:[%s1 + $0x3c0] sm:$0xff]
        %v797 = vld [vmem:[%s1 + $0x3c8] sm:$0xff]
        %v798 = vld [vmem:[%s1 + $0x3d0] sm:$0xff]
        %v799 = vld [vmem:[%s1 + $0x3d8] sm:$0xff]
        %v800 = vld [vmem:[%s1 + $0x3e0] sm:$0xff]
        %v801 = vld [vmem:[%s1 + $0x3e8] sm:$0xff]
        %v802 = vld [vmem:[%s1 + $0x3f0] sm:$0xff]
        %v803 = vld [vmem:[%s1 + $0x3f8] sm:$0xff]
        %v804 = vld [vmem:[%s1 + $0x400] sm:$0xff]
        %v805 = vld [vmem:[%s1 + $0x408] sm:$0xff]
        %v806 = vld [vmem:[%s1 + $0x410] sm:$0xff]
        %v807 = vld [vmem:[%s1 + $0x418] sm:$0xff]
        %v808 = vld [vmem:[%s1 + $0x420] sm:$0xff]
        %v809 = vld [vmem:[%s1 + $0x428] sm:$0xff]
        %v810 = vld [vmem:[%s1 + $0x430] sm:$0xff]
        %v811 = vld [vmem:[%s1 + $0x438] sm:$0xff]
        %v812 = vld [vmem:[%s1 + $0x440] sm:$0xff]
        %v813 = vld [vmem:[%s1 + $0x448] sm:$0xff]
        %v814 = vld [vmem:[%s1 + $0x450] sm:$0xff]
        %v815 = vld [vmem:[%s1 + $0x458] sm:$0xff]
        %v816 = vld [vmem:[%s1 + $0x460] sm:$0xff]
        %v817 = vld [vmem:[%s1 + $0x468] sm:$0xff]
        %v818 = vld [vmem:[%s1 + $0x470] sm:$0xff]
        %v819 = vld [vmem:[%s1 + $0x478] sm:$0xff]
        %v820 = vld [vmem:[%s1 + $0x480] sm:$0xff]
        %v821 = vld [vmem:[%s1 + $0x488] sm:$0xff]
        %v822 = vld [vmem:[%s1 + $0x490] sm:$0xff]
        %v823 = vld [vmem:[%s1 + $0x498] sm:$0xff]
        %v824 = vld [vmem:[%s1 + $0x4a0] sm:$0xff]
        %v825 = vld [vmem:[%s1 + $0x4a8] sm:$0xff]
        %v826 = vld [vmem:[%s1 + $0x4b0] sm:$0xff]
        %v827 = vld [vmem:[%s1 + $0x4b8] sm:$0xff]
        %v828 = vld [vmem:[%s1 + $0x4c0] sm:$0xff]
        %v829 = vld [vmem:[%s1 + $0x4c8] sm:$0xff]
        %v830 = vld [vmem:[%s1 + $0x4d0] sm:$0xff]
        %v831 = vld [vmem:[%s1 + $0x4d8] sm:$0xff]
        %v832 = vld [vmem:[%s1 + $0x4e0] sm:$0xff]
        %v833 = vld [vmem:[%s1 + $0x4e8] sm:$0xff]
        %v834 = vld [vmem:[%s1 + $0x4f0] sm:$0xff]
        %v835 = vld [vmem:[%s1 + $0x4f8] sm:$0xff]
        %v836 = vld [vmem:[%s1 + $0x500] sm:$0xff]
        %v837 = vld [vmem:[%s1 + $0x508] sm:$0xff]
        %v838 = vld [vmem:[%s1 + $0x510] sm:$0xff]
        %v839 = vld [vmem:[%s1 + $0x518] sm:$0xff]
        %v840 = vld [vmem:[%s1 + $0x520] sm:$0xff]
        %v841 = vld [vmem:[%s1 + $0x528] sm:$0xff]
        %v842 = vld [vmem:[%s1 + $0x530] sm:$0xff]
        %v843 = vld [vmem:[%s1 + $0x538] sm:$0xff]
        %v844 = vld [vmem:[%s1 + $0x540] sm:$0xff]
        %v845 = vld [vmem:[%s1 + $0x548] sm:$0xff]
        %v846 = vld [vmem:[%s1 + $0x550] sm:$0xff]
        %v847 = vld [vmem:[%s1 + $0x558] sm:$0xff]
        %v848 = vld [vmem:[%s1 + $0x560] sm:$0xff]
        %v849 = vld [vmem:[%s1 + $0x568] sm:$0xff]
        %v850 = vld [vmem:[%s1 + $0x570] sm:$0xff]
        %v851 = vld [vmem:[%s1 + $0x578] sm:$0xff]
        %v852 = vld [vmem:[%s653] sm:$0xfe]
        %v853 = vld [vmem:[%s653 + $0x8] sm:$0xfe]
        %v854 = vld [vmem:[%s653 + $0x10] sm:$0xfe]
        %v855 = vld [vmem:[%s653 + $0x18] sm:$0xfe]
        %v856 = vld [vmem:[%s653 + $0x20] sm:$0xfe]
        %v857 = vld [vmem:[%s653 + $0x28] sm:$0xfe]
        %v858 = vld [vmem:[%s653 + $0x30] sm:$0xfe]
        %v859 = vld [vmem:[%s653 + $0x38] sm:$0xfe]
        %v860 = vld [vmem:[%s653 + $0x40] sm:$0xfe]
        %v861 = vld [vmem:[%s653 + $0x48] sm:$0xfe]
        %v862 = vld [vmem:[%s653 + $0x50] sm:$0xfe]
        %v863 = vld [vmem:[%s653 + $0xb0] sm:$0x1]
        %v864 = vld [vmem:[%s653 + $0xb8] sm:$0x1]
        %v865 = vld [vmem:[%s653 + $0xc0] sm:$0x1]
        %v866 = vld [vmem:[%s653 + $0xc8] sm:$0x1]
        %v867 = vld [vmem:[%s653 + $0xd0] sm:$0x1]
        %v868 = vld [vmem:[%s653 + $0xd8] sm:$0x1]
        %v869 = vld [vmem:[%s653 + $0xe0] sm:$0x1]
        %v870 = vld [vmem:[%s653 + $0xe8] sm:$0x1]
        %v871 = vld [vmem:[%s653 + $0xf0] sm:$0x1]
        %v872 = vld [vmem:[%s653 + $0xf8] sm:$0x1]
        %v873 = vld [vmem:[%s653 + $0x100] sm:$0x1]
        %s874 = scalar_lea.vmem %s1, 1408
        %v875 = vld [vmem:[%s874] sm:$0xff]
        %v876 = vld [vmem:[%s874 + $0x8] sm:$0xff]
        %v877 = vld [vmem:[%s874 + $0x10] sm:$0xff]
        %v878 = vld [vmem:[%s874 + $0x18] sm:$0xff]
        %v879 = vld [vmem:[%s874 + $0x20] sm:$0xff]
        %v880 = vld [vmem:[%s874 + $0x28] sm:$0xff]
        %v881 = vld [vmem:[%s874 + $0x30] sm:$0xff]
        %v882 = vld [vmem:[%s874 + $0x38] sm:$0xff]
        %v883 = vld [vmem:[%s874 + $0x40] sm:$0xff]
        %v884 = vld [vmem:[%s874 + $0x48] sm:$0xff]
        %v885 = vld [vmem:[%s874 + $0x50] sm:$0xff]
        %v886 = vld [vmem:[%s874 + $0x58] sm:$0xff]
        %v887 = vld [vmem:[%s874 + $0x60] sm:$0xff]
        %v888 = vld [vmem:[%s874 + $0x68] sm:$0xff]
        %v889 = vld [vmem:[%s874 + $0x70] sm:$0xff]
        %v890 = vld [vmem:[%s874 + $0x78] sm:$0xff]
        %v891 = vld [vmem:[%s874 + $0x80] sm:$0xff]
        %v892 = vld [vmem:[%s874 + $0x88] sm:$0xff]
        %v893 = vld [vmem:[%s874 + $0x90] sm:$0xff]
        %v894 = vld [vmem:[%s874 + $0x98] sm:$0xff]
        %v895 = vld [vmem:[%s874 + $0xa0] sm:$0xff]
        %v896 = vld [vmem:[%s874 + $0xa8] sm:$0xff]
        %v897 = vld [vmem:[%s874 + $0xb0] sm:$0xff]
        %v898 = vld [vmem:[%s874 + $0xb8] sm:$0xff]
        %v899 = vld [vmem:[%s874 + $0xc0] sm:$0xff]
        %v900 = vld [vmem:[%s874 + $0xc8] sm:$0xff]
        %v901 = vld [vmem:[%s874 + $0xd0] sm:$0xff]
        %v902 = vld [vmem:[%s874 + $0xd8] sm:$0xff]
        %v903 = vld [vmem:[%s874 + $0xe0] sm:$0xff]
        %v904 = vld [vmem:[%s874 + $0xe8] sm:$0xff]
        %v905 = vld [vmem:[%s874 + $0xf0] sm:$0xff]
        %v906 = vld [vmem:[%s874 + $0xf8] sm:$0xff]
        %v907 = vld [vmem:[%s874 + $0x100] sm:$0xff]
        %v908 = vld [vmem:[%s874 + $0x108] sm:$0xff]
        %v909 = vld [vmem:[%s874 + $0x110] sm:$0xff]
        %v910 = vld [vmem:[%s874 + $0x118] sm:$0xff]
        %v911 = vld [vmem:[%s874 + $0x120] sm:$0xff]
        %v912 = vld [vmem:[%s874 + $0x128] sm:$0xff]
        %v913 = vld [vmem:[%s874 + $0x130] sm:$0xff]
        %v914 = vld [vmem:[%s874 + $0x138] sm:$0xff]
        %v915 = vld [vmem:[%s874 + $0x140] sm:$0xff]
        %v916 = vld [vmem:[%s874 + $0x148] sm:$0xff]
        %v917 = vld [vmem:[%s874 + $0x150] sm:$0xff]
        %v918 = vld [vmem:[%s874 + $0x158] sm:$0xff]
        %v919 = vld [vmem:[%s874 + $0x160] sm:$0xff]
        %v920 = vld [vmem:[%s874 + $0x168] sm:$0xff]
        %v921 = vld [vmem:[%s874 + $0x170] sm:$0xff]
        %v922 = vld [vmem:[%s874 + $0x178] sm:$0xff]
        %v923 = vld [vmem:[%s874 + $0x180] sm:$0xff]
        %v924 = vld [vmem:[%s874 + $0x188] sm:$0xff]
        %v925 = vld [vmem:[%s874 + $0x190] sm:$0xff]
        %v926 = vld [vmem:[%s874 + $0x198] sm:$0xff]
        %v927 = vld [vmem:[%s874 + $0x1a0] sm:$0xff]
        %v928 = vld [vmem:[%s874 + $0x1a8] sm:$0xff]
        %v929 = vld [vmem:[%s874 + $0x1b0] sm:$0xff]
        %v930 = vld [vmem:[%s874 + $0x1b8] sm:$0xff]
        %v931 = vld [vmem:[%s874 + $0x1c0] sm:$0xff]
        %v932 = vld [vmem:[%s874 + $0x1c8] sm:$0xff]
        %v933 = vld [vmem:[%s874 + $0x1d0] sm:$0xff]
        %v934 = vld [vmem:[%s874 + $0x1d8] sm:$0xff]
        %v935 = vld [vmem:[%s874 + $0x1e0] sm:$0xff]
        %v936 = vld [vmem:[%s874 + $0x1e8] sm:$0xff]
        %v937 = vld [vmem:[%s874 + $0x1f0] sm:$0xff]
        %v938 = vld [vmem:[%s874 + $0x1f8] sm:$0xff]
        %v939 = vld [vmem:[%s874 + $0x200] sm:$0xff]
        %v940 = vld [vmem:[%s874 + $0x208] sm:$0xff]
        %v941 = vld [vmem:[%s874 + $0x210] sm:$0xff]
        %v942 = vld [vmem:[%s874 + $0x218] sm:$0xff]
        %v943 = vld [vmem:[%s874 + $0x220] sm:$0xff]
        %v944 = vld [vmem:[%s874 + $0x228] sm:$0xff]
        %v945 = vld [vmem:[%s874 + $0x230] sm:$0xff]
        %v946 = vld [vmem:[%s874 + $0x238] sm:$0xff]
        %v947 = vld [vmem:[%s874 + $0x240] sm:$0xff]
        %v948 = vld [vmem:[%s874 + $0x248] sm:$0xff]
        %v949 = vld [vmem:[%s874 + $0x250] sm:$0xff]
        %v950 = vld [vmem:[%s874 + $0x258] sm:$0xff]
        %v951 = vld [vmem:[%s874 + $0x260] sm:$0xff]
        %v952 = vld [vmem:[%s874 + $0x268] sm:$0xff]
        %v953 = vld [vmem:[%s874 + $0x270] sm:$0xff]
        %v954 = vld [vmem:[%s874 + $0x278] sm:$0xff]
        %v955 = vld [vmem:[%s874 + $0x280] sm:$0xff]
        %v956 = vld [vmem:[%s874 + $0x288] sm:$0xff]
        %v957 = vld [vmem:[%s874 + $0x290] sm:$0xff]
        %v958 = vld [vmem:[%s874 + $0x298] sm:$0xff]
        %v959 = vld [vmem:[%s874 + $0x2a0] sm:$0xff]
        %v960 = vld [vmem:[%s874 + $0x2a8] sm:$0xff]
        %v961 = vld [vmem:[%s874 + $0x2b0] sm:$0xff]
        %v962 = vld [vmem:[%s874 + $0x2b8] sm:$0xff]
        %v963 = vld [vmem:[%s874 + $0x2c0] sm:$0xff]
        %v964 = vld [vmem:[%s874 + $0x2c8] sm:$0xff]
        %v965 = vld [vmem:[%s874 + $0x2d0] sm:$0xff]
        %v966 = vld [vmem:[%s874 + $0x2d8] sm:$0xff]
        %v967 = vld [vmem:[%s874 + $0x2e0] sm:$0xff]
        %v968 = vld [vmem:[%s874 + $0x2e8] sm:$0xff]
        %v969 = vld [vmem:[%s874 + $0x2f0] sm:$0xff]
        %v970 = vld [vmem:[%s874 + $0x2f8] sm:$0xff]
        %v971 = vld [vmem:[%s874 + $0x300] sm:$0xff]
        %v972 = vld [vmem:[%s874 + $0x308] sm:$0xff]
        %v973 = vld [vmem:[%s874 + $0x310] sm:$0xff]
        %v974 = vld [vmem:[%s874 + $0x318] sm:$0xff]
        %v975 = vld [vmem:[%s874 + $0x320] sm:$0xff]
        %v976 = vld [vmem:[%s874 + $0x328] sm:$0xff]
        %v977 = vld [vmem:[%s874 + $0x330] sm:$0xff]
        %v978 = vld [vmem:[%s874 + $0x338] sm:$0xff]
        %v979 = vld [vmem:[%s874 + $0x340] sm:$0xff]
        %v980 = vld [vmem:[%s874 + $0x348] sm:$0xff]
        %v981 = vld [vmem:[%s874 + $0x350] sm:$0xff]
        %v982 = vld [vmem:[%s874 + $0x358] sm:$0xff]
        %v983 = vld [vmem:[%s874 + $0x360] sm:$0xff]
        %v984 = vld [vmem:[%s874 + $0x368] sm:$0xff]
        %v985 = vld [vmem:[%s874 + $0x370] sm:$0xff]
        %v986 = vld [vmem:[%s874 + $0x378] sm:$0xff]
        %v987 = vld [vmem:[%s874 + $0x380] sm:$0xff]
        %v988 = vld [vmem:[%s874 + $0x388] sm:$0xff]
        %v989 = vld [vmem:[%s874 + $0x390] sm:$0xff]
        %v990 = vld [vmem:[%s874 + $0x398] sm:$0xff]
        %v991 = vld [vmem:[%s874 + $0x3a0] sm:$0xff]
        %v992 = vld [vmem:[%s874 + $0x3a8] sm:$0xff]
        %v993 = vld [vmem:[%s874 + $0x3b0] sm:$0xff]
        %v994 = vld [vmem:[%s874 + $0x3b8] sm:$0xff]
        %v995 = vld [vmem:[%s874 + $0x3c0] sm:$0xff]
        %v996 = vld [vmem:[%s874 + $0x3c8] sm:$0xff]
        %v997 = vld [vmem:[%s874 + $0x3d0] sm:$0xff]
        %v998 = vld [vmem:[%s874 + $0x3d8] sm:$0xff]
        %v999 = vld [vmem:[%s874 + $0x3e0] sm:$0xff]
        %v1000 = vld [vmem:[%s874 + $0x3e8] sm:$0xff]
        %v1001 = vld [vmem:[%s874 + $0x3f0] sm:$0xff]
        %v1002 = vld [vmem:[%s874 + $0x3f8] sm:$0xff]
        %v1003 = vld [vmem:[%s874 + $0x400] sm:$0xff]
        %v1004 = vld [vmem:[%s874 + $0x408] sm:$0xff]
        %v1005 = vld [vmem:[%s874 + $0x410] sm:$0xff]
        %v1006 = vld [vmem:[%s874 + $0x418] sm:$0xff]
        %v1007 = vld [vmem:[%s874 + $0x420] sm:$0xff]
        %v1008 = vld [vmem:[%s874 + $0x428] sm:$0xff]
        %v1009 = vld [vmem:[%s874 + $0x430] sm:$0xff]
        %v1010 = vld [vmem:[%s874 + $0x438] sm:$0xff]
        %v1011 = vld [vmem:[%s874 + $0x440] sm:$0xff]
        %v1012 = vld [vmem:[%s874 + $0x448] sm:$0xff]
        %v1013 = vld [vmem:[%s874 + $0x450] sm:$0xff]
        %v1014 = vld [vmem:[%s874 + $0x458] sm:$0xff]
        %v1015 = vld [vmem:[%s874 + $0x460] sm:$0xff]
        %v1016 = vld [vmem:[%s874 + $0x468] sm:$0xff]
        %v1017 = vld [vmem:[%s874 + $0x470] sm:$0xff]
        %v1018 = vld [vmem:[%s874 + $0x478] sm:$0xff]
        %v1019 = vld [vmem:[%s874 + $0x480] sm:$0xff]
        %v1020 = vld [vmem:[%s874 + $0x488] sm:$0xff]
        %v1021 = vld [vmem:[%s874 + $0x490] sm:$0xff]
        %v1022 = vld [vmem:[%s874 + $0x498] sm:$0xff]
        %v1023 = vld [vmem:[%s874 + $0x4a0] sm:$0xff]
        %v1024 = vld [vmem:[%s874 + $0x4a8] sm:$0xff]
        %v1025 = vld [vmem:[%s874 + $0x4b0] sm:$0xff]
        %v1026 = vld [vmem:[%s874 + $0x4b8] sm:$0xff]
        %v1027 = vld [vmem:[%s874 + $0x4c0] sm:$0xff]
        %v1028 = vld [vmem:[%s874 + $0x4c8] sm:$0xff]
        %v1029 = vld [vmem:[%s874 + $0x4d0] sm:$0xff]
        %v1030 = vld [vmem:[%s874 + $0x4d8] sm:$0xff]
        %v1031 = vld [vmem:[%s874 + $0x4e0] sm:$0xff]
        %v1032 = vld [vmem:[%s874 + $0x4e8] sm:$0xff]
        %v1033 = vld [vmem:[%s874 + $0x4f0] sm:$0xff]
        %v1034 = vld [vmem:[%s874 + $0x4f8] sm:$0xff]
        %v1035 = vld [vmem:[%s874 + $0x500] sm:$0xff]
        %v1036 = vld [vmem:[%s874 + $0x508] sm:$0xff]
        %v1037 = vld [vmem:[%s874 + $0x510] sm:$0xff]
        %v1038 = vld [vmem:[%s874 + $0x518] sm:$0xff]
        %v1039 = vld [vmem:[%s874 + $0x520] sm:$0xff]
        %v1040 = vld [vmem:[%s874 + $0x528] sm:$0xff]
        %v1041 = vld [vmem:[%s874 + $0x530] sm:$0xff]
        %v1042 = vld [vmem:[%s874 + $0x538] sm:$0xff]
        %v1043 = vld [vmem:[%s874 + $0x540] sm:$0xff]
        %v1044 = vld [vmem:[%s874 + $0x548] sm:$0xff]
        %v1045 = vld [vmem:[%s874 + $0x550] sm:$0xff]
        %v1046 = vld [vmem:[%s874 + $0x558] sm:$0xff]
        %v1047 = vld [vmem:[%s874 + $0x560] sm:$0xff]
        %v1048 = vld [vmem:[%s874 + $0x568] sm:$0xff]
        %v1049 = vld [vmem:[%s874 + $0x570] sm:$0xff]
        %v1050 = vld [vmem:[%s874 + $0x578] sm:$0xff]
        %vm1084 = vcmask 1046528
        %v1085 = vrot.slane %v852, 1
        %v1086 = vrot.slane %v665, 1
        %v1087 = vsel %vm1084, %v1085, %v1086
        %v1088 = vrot.slane %v853, 1
        %v1089 = vrot.slane %v666, 1
        %v1090 = vsel %vm1084, %v1088, %v1089
        %v1091 = vrot.slane %v854, 1
        %v1092 = vrot.slane %v667, 1
        %v1093 = vsel %vm1084, %v1091, %v1092
        %v1094 = vrot.slane %v855, 1
        %v1095 = vrot.slane %v668, 1
        %v1096 = vsel %vm1084, %v1094, %v1095
        %v1097 = vrot.slane %v856, 1
        %v1098 = vrot.slane %v669, 1
        %v1099 = vsel %vm1084, %v1097, %v1098
        %v1100 = vrot.slane %v857, 1
        %v1101 = vrot.slane %v670, 1
        %v1102 = vsel %vm1084, %v1100, %v1101
        %v1103 = vrot.slane %v858, 1
        %v1104 = vrot.slane %v671, 1
        %v1105 = vsel %vm1084, %v1103, %v1104
        %v1106 = vrot.slane %v859, 1
        %v1107 = vrot.slane %v672, 1
        %v1108 = vsel %vm1084, %v1106, %v1107
        %v1109 = vrot.slane %v860, 1
        %v1110 = vrot.slane %v673, 1
        %v1111 = vsel %vm1084, %v1109, %v1110
        %v1112 = vrot.slane %v861, 1
        %v1113 = vrot.slane %v674, 1
        %v1114 = vsel %vm1084, %v1112, %v1113
        %v1115 = vrot.slane %v862, 1
        %v1116 = vrot.slane %v675, 1
        %v1117 = vsel %vm1084, %v1115, %v1116
        %v1118 = vrot.slane %v863, 1
        %v1119 = vsel %vm1084, %v1086, %v1118
        %v1120 = vrot.slane %v864, 1
        %v1121 = vsel %vm1084, %v1089, %v1120
        %v1122 = vrot.slane %v865, 1
        %v1123 = vsel %vm1084, %v1092, %v1122
        %v1124 = vrot.slane %v866, 1
        %v1125 = vsel %vm1084, %v1095, %v1124
        %v1126 = vrot.slane %v867, 1
        %v1127 = vsel %vm1084, %v1098, %v1126
        %v1128 = vrot.slane %v868, 1
        %v1129 = vsel %vm1084, %v1101, %v1128
        %v1130 = vrot.slane %v869, 1
        %v1131 = vsel %vm1084, %v1104, %v1130
        %v1132 = vrot.slane %v870, 1
        %v1133 = vsel %vm1084, %v1107, %v1132
        %v1134 = vrot.slane %v871, 1
        %v1135 = vsel %vm1084, %v1110, %v1134
        %v1136 = vrot.slane %v872, 1
        %v1137 = vsel %vm1084, %v1113, %v1136
        %v1138 = vrot.slane %v873, 1
        %v1139 = vsel %vm1084, %v1116, %v1138
        %1162 = vmatprep.subr.mxu0 0.0
        %1163 = vmatpush1.msra.mxu0 %v875
        %1164 = vmatprep.subr.mxu0 0.0
        %1165 = vmatpush1.msra.mxu0 %v876
        %1166 = vmatprep.subr.mxu0 0.0
        %1167 = vmatpush1.msra.mxu0 %v877
        %1168 = vmatprep.subr.mxu0 0.0
        %1169 = vmatpush1.msra.mxu0 %v878
        %1170 = vmatprep.subr.mxu0 0.0
        %1171 = vmatpush1.msra.mxu0 %v879
        %1172 = vmatprep.subr.mxu0 0.0
        %1173 = vmatpush1.msra.mxu0 %v880
        %1174 = vmatprep.subr.mxu0 0.0
        %1175 = vmatpush1.msra.mxu0 %v881
        %1176 = vmatprep.subr.mxu0 0.0
        %1177 = vmatpush1.msra.mxu0 %v882
        %1178 = vmatprep.subr.mxu0 0.0
        %1179 = vmatpush1.msra.mxu0 %v883
        %1180 = vmatprep.subr.mxu0 0.0
        %1181 = vmatpush1.msra.mxu0 %v884
        %1182 = vmatprep.subr.mxu0 0.0
        %1183 = vmatpush1.msra.mxu0 %v885
        %1184 = vmatprep.subr.mxu0 0.0
        %1185 = vmatpush1.msra.mxu0 %v886
        %1186 = vmatprep.subr.mxu0 0.0
        %1187 = vmatpush1.msra.mxu0 %v887
        %1188 = vmatprep.subr.mxu0 0.0
        %1189 = vmatpush1.msra.mxu0 %v888
        %1190 = vmatprep.subr.mxu0 0.0
        %1191 = vmatpush1.msra.mxu0 %v889
        %1192 = vmatprep.subr.mxu0 0.0
        %1193 = vmatpush1.msra.mxu0 %v890
        %1194 = vmatprep.subr.mxu0 0.0
        %1195 = vmatpush1.msra.mxu0 %v891
        %1196 = vmatprep.subr.mxu0 0.0
        %1197 = vmatpush1.msra.mxu0 %v892
        %1198 = vmatprep.subr.mxu0 0.0
        %1199 = vmatpush1.msra.mxu0 %v893
        %1200 = vmatprep.subr.mxu0 0.0
        %1201 = vmatpush1.msra.mxu0 %v894
        %1202 = vmatprep.subr.mxu0 0.0
        %1203 = vmatpush1.msra.mxu0 %v895
        %1204 = vmatprep.subr.mxu0 0.0
        %1205 = vmatpush1.msra.mxu0 %v896
        %1206 = vmatprep.subr.mxu0 0.0
        %1207 = vmatpush1.msra.mxu0 %v897
        %1208 = vmatprep.subr.mxu0 0.0
        %1209 = vmatpush1.msra.mxu0 %v898
        %1210 = vmatprep.subr.mxu0 0.0
        %1211 = vmatpush1.msra.mxu0 %v899
        %1212 = vmatprep.subr.mxu0 0.0
        %1213 = vmatpush1.msra.mxu0 %v900
        %1214 = vmatprep.subr.mxu0 0.0
        %1215 = vmatpush1.msra.mxu0 %v901
        %1216 = vmatprep.subr.mxu0 0.0
        %1217 = vmatpush1.msra.mxu0 %v902
        %1218 = vmatprep.subr.mxu0 0.0
        %1219 = vmatpush1.msra.mxu0 %v903
        %1220 = vmatprep.subr.mxu0 0.0
        %1221 = vmatpush1.msra.mxu0 %v904
        %1222 = vmatprep.subr.mxu0 0.0
        %1223 = vmatpush1.msra.mxu0 %v905
        %1224 = vmatprep.subr.mxu0 0.0
        %1225 = vmatpush1.msra.mxu0 %v906
        %1226 = vmatprep.mubr.f32.mxu0 %v1090
        %1227 = vmatmul.mubr.f32.gmra.mrb[0].mxu0 %v1087
        %v1228 = vpop.f32.mrb[0].mxu0
        %v1229 = vadd.f32 0.0, %v1228
        %v1230 = vpop.f32.mrb[0].mxu0
        %1231 = vmatprep.mubr.f32.mxu0 %v1121
        %1232 = vmatmul.mubr.f32.gmra.mrb[0].mxu0 %v1119
        %v1233 = vpop.f32.mrb[0].mxu0
        %v1234 = vadd.f32 0.0, %v1233
        %v1235 = vpop.f32.mrb[0].mxu0
        %1236 = vdwg.mxu0
        %1237 = vmatprep.subr.mxu0 0.0
        %1238 = vmatpush1.msra.mxu0 %v907
        %1239 = vmatprep.subr.mxu0 0.0
        %1240 = vmatpush1.msra.mxu0 %v908
        %1241 = vmatprep.subr.mxu0 0.0
        %1242 = vmatpush1.msra.mxu0 %v909
        %1243 = vmatprep.subr.mxu0 0.0
        %1244 = vmatpush1.msra.mxu0 %v910
        %1245 = vmatprep.subr.mxu0 0.0
        %1246 = vmatpush1.msra.mxu0 %v911
        %1247 = vmatprep.subr.mxu0 0.0
        %1248 = vmatpush1.msra.mxu0 %v912
        %1249 = vmatprep.subr.mxu0 0.0
        %1250 = vmatpush1.msra.mxu0 %v913
        %1251 = vmatprep.subr.mxu0 0.0
        %1252 = vmatpush1.msra.mxu0 %v914
        %1253 = vmatprep.subr.mxu0 0.0
        %1254 = vmatpush1.msra.mxu0 %v915
        %1255 = vmatprep.subr.mxu0 0.0
        %1256 = vmatpush1.msra.mxu0 %v916
        %1257 = vmatprep.subr.mxu0 0.0
        %1258 = vmatpush1.msra.mxu0 %v917
        %1259 = vmatprep.subr.mxu0 0.0
        %1260 = vmatpush1.msra.mxu0 %v918
        %1261 = vmatprep.subr.mxu0 0.0
        %1262 = vmatpush1.msra.mxu0 %v919
        %1263 = vmatprep.subr.mxu0 0.0
        %1264 = vmatpush1.msra.mxu0 %v920
        %1265 = vmatprep.subr.mxu0 0.0
        %1266 = vmatpush1.msra.mxu0 %v921
        %1267 = vmatprep.subr.mxu0 0.0
        %1268 = vmatpush1.msra.mxu0 %v922
        %1269 = vmatprep.subr.mxu0 0.0
        %1270 = vmatpush1.msra.mxu0 %v923
        %1271 = vmatprep.subr.mxu0 0.0
        %1272 = vmatpush1.msra.mxu0 %v924
        %1273 = vmatprep.subr.mxu0 0.0
        %1274 = vmatpush1.msra.mxu0 %v925
        %1275 = vmatprep.subr.mxu0 0.0
        %1276 = vmatpush1.msra.mxu0 %v926
        %1277 = vmatprep.subr.mxu0 0.0
        %1278 = vmatpush1.msra.mxu0 %v927
        %1279 = vmatprep.subr.mxu0 0.0
        %1280 = vmatpush1.msra.mxu0 %v928
        %1281 = vmatprep.subr.mxu0 0.0
        %1282 = vmatpush1.msra.mxu0 %v929
        %1283 = vmatprep.subr.mxu0 0.0
        %1284 = vmatpush1.msra.mxu0 %v930
        %1285 = vmatprep.subr.mxu0 0.0
        %1286 = vmatpush1.msra.mxu0 %v931
        %1287 = vmatprep.subr.mxu0 0.0
        %1288 = vmatpush1.msra.mxu0 %v932
        %1289 = vmatprep.subr.mxu0 0.0
        %1290 = vmatpush1.msra.mxu0 %v933
        %1291 = vmatprep.subr.mxu0 0.0
        %1292 = vmatpush1.msra.mxu0 %v934
        %1293 = vmatprep.subr.mxu0 0.0
        %1294 = vmatpush1.msra.mxu0 %v935
        %1295 = vmatprep.subr.mxu0 0.0
        %1296 = vmatpush1.msra.mxu0 %v936
        %1297 = vmatprep.subr.mxu0 0.0
        %1298 = vmatpush1.msra.mxu0 %v937
        %1299 = vmatprep.subr.mxu0 0.0
        %1300 = vmatpush1.msra.mxu0 %v938
        %1301 = vmatprep.mubr.f32.mxu0 %v1096
        %1302 = vmatmul.mubr.f32.gmra.mrb[0].mxu0 %v1093
        %v1303 = vpop.f32.mrb[0].mxu0
        %v1304 = vadd.f32 %v1229, %v1303
        %v1305 = vpop.f32.mrb[0].mxu0
        %1306 = vmatprep.mubr.f32.mxu0 %v1125
        %1307 = vmatmul.mubr.f32.gmra.mrb[0].mxu0 %v1123
        %v1308 = vpop.f32.mrb[0].mxu0
        %v1309 = vadd.f32 %v1234, %v1308
        %v1310 = vpop.f32.mrb[0].mxu0
        %1311 = vdwg.mxu0
        %1312 = vmatprep.subr.mxu0 0.0
        %1313 = vmatpush1.msra.mxu0 %v939
        %1314 = vmatprep.subr.mxu0 0.0
        %1315 = vmatpush1.msra.mxu0 %v940
        %1316 = vmatprep.subr.mxu0 0.0
        %1317 = vmatpush1.msra.mxu0 %v941
        %1318 = vmatprep.subr.mxu0 0.0
        %1319 = vmatpush1.msra.mxu0 %v942
        %1320 = vmatprep.subr.mxu0 0.0
        %1321 = vmatpush1.msra.mxu0 %v943
        %1322 = vmatprep.subr.mxu0 0.0
        %1323 = vmatpush1.msra.mxu0 %v944
        %1324 = vmatprep.subr.mxu0 0.0
        %1325 = vmatpush1.msra.mxu0 %v945
        %1326 = vmatprep.subr.mxu0 0.0
        %1327 = vmatpush1.msra.mxu0 %v946
        %1328 = vmatprep.subr.mxu0 0.0
        %1329 = vmatpush1.msra.mxu0 %v947
        %1330 = vmatprep.subr.mxu0 0.0
        %1331 = vmatpush1.msra.mxu0 %v948
        %1332 = vmatprep.subr.mxu0 0.0
        %1333 = vmatpush1.msra.mxu0 %v949
        %1334 = vmatprep.subr.mxu0 0.0
        %1335 = vmatpush1.msra.mxu0 %v950
        %1336 = vmatprep.subr.mxu0 0.0
        %1337 = vmatpush1.msra.mxu0 %v951
        %1338 = vmatprep.subr.mxu0 0.0
        %1339 = vmatpush1.msra.mxu0 %v952
        %1340 = vmatprep.subr.mxu0 0.0
        %1341 = vmatpush1.msra.mxu0 %v953
        %1342 = vmatprep.subr.mxu0 0.0
        %1343 = vmatpush1.msra.mxu0 %v954
        %1344 = vmatprep.subr.mxu0 0.0
        %1345 = vmatpush1.msra.mxu0 %v955
        %1346 = vmatprep.subr.mxu0 0.0
        %1347 = vmatpush1.msra.mxu0 %v956
        %1348 = vmatprep.subr.mxu0 0.0
        %1349 = vmatpush1.msra.mxu0 %v957
        %1350 = vmatprep.subr.mxu0 0.0
        %1351 = vmatpush1.msra.mxu0 %v958
        %1352 = vmatprep.subr.mxu0 0.0
        %1353 = vmatpush1.msra.mxu0 %v959
        %1354 = vmatprep.subr.mxu0 0.0
        %1355 = vmatpush1.msra.mxu0 %v960
        %1356 = vmatprep.subr.mxu0 0.0
        %1357 = vmatpush1.msra.mxu0 %v961
        %1358 = vmatprep.subr.mxu0 0.0
        %1359 = vmatpush1.msra.mxu0 %v962
        %1360 = vmatprep.subr.mxu0 0.0
        %1361 = vmatpush1.msra.mxu0 %v963
        %1362 = vmatprep.subr.mxu0 0.0
        %1363 = vmatpush1.msra.mxu0 %v964
        %1364 = vmatprep.subr.mxu0 0.0
        %1365 = vmatpush1.msra.mxu0 %v965
        %1366 = vmatprep.subr.mxu0 0.0
        %1367 = vmatpush1.msra.mxu0 %v966
        %1368 = vmatprep.subr.mxu0 0.0
        %1369 = vmatpush1.msra.mxu0 %v967
        %1370 = vmatprep.subr.mxu0 0.0
        %1371 = vmatpush1.msra.mxu0 %v968
        %1372 = vmatprep.subr.mxu0 0.0
        %1373 = vmatpush1.msra.mxu0 %v969
        %1374 = vmatprep.subr.mxu0 0.0
        %1375 = vmatpush1.msra.mxu0 %v970
        %1376 = vmatprep.mubr.f32.mxu0 %v1102
        %1377 = vmatmul.mubr.f32.gmra.mrb[0].mxu0 %v1099
        %v1378 = vpop.f32.mrb[0].mxu0
        %v1379 = vadd.f32 %v1304, %v1378
        %v1380 = vpop.f32.mrb[0].mxu0
        %1381 = vmatprep.mubr.f32.mxu0 %v1129
        %1382 = vmatmul.mubr.f32.gmra.mrb[0].mxu0 %v1127
        %v1383 = vpop.f32.mrb[0].mxu0
        %v1384 = vadd.f32 %v1309, %v1383
        %v1385 = vpop.f32.mrb[0].mxu0
        %1386 = vdwg.mxu0
        %1387 = vmatprep.subr.mxu0 0.0
        %1388 = vmatpush1.msra.mxu0 %v971
        %1389 = vmatprep.subr.mxu0 0.0
        %1390 = vmatpush1.msra.mxu0 %v972
        %1391 = vmatprep.subr.mxu0 0.0
        %1392 = vmatpush1.msra.mxu0 %v973
        %1393 = vmatprep.subr.mxu0 0.0
        %1394 = vmatpush1.msra.mxu0 %v974
        %1395 = vmatprep.subr.mxu0 0.0
        %1396 = vmatpush1.msra.mxu0 %v975
        %1397 = vmatprep.subr.mxu0 0.0
        %1398 = vmatpush1.msra.mxu0 %v976
        %1399 = vmatprep.subr.mxu0 0.0
        %1400 = vmatpush1.msra.mxu0 %v977
        %1401 = vmatprep.subr.mxu0 0.0
        %1402 = vmatpush1.msra.mxu0 %v978
        %1403 = vmatprep.subr.mxu0 0.0
        %1404 = vmatpush1.msra.mxu0 %v979
        %1405 = vmatprep.subr.mxu0 0.0
        %1406 = vmatpush1.msra.mxu0 %v980
        %1407 = vmatprep.subr.mxu0 0.0
        %1408 = vmatpush1.msra.mxu0 %v981
        %1409 = vmatprep.subr.mxu0 0.0
        %1410 = vmatpush1.msra.mxu0 %v982
        %1411 = vmatprep.subr.mxu0 0.0
        %1412 = vmatpush1.msra.mxu0 %v983
        %1413 = vmatprep.subr.mxu0 0.0
        %1414 = vmatpush1.msra.mxu0 %v984
        %1415 = vmatprep.subr.mxu0 0.0
        %1416 = vmatpush1.msra.mxu0 %v985
        %1417 = vmatprep.subr.mxu0 0.0
        %1418 = vmatpush1.msra.mxu0 %v986
        %1419 = vmatprep.subr.mxu0 0.0
        %1420 = vmatpush1.msra.mxu0 %v987
        %1421 = vmatprep.subr.mxu0 0.0
        %1422 = vmatpush1.msra.mxu0 %v988
        %1423 = vmatprep.subr.mxu0 0.0
        %1424 = vmatpush1.msra.mxu0 %v989
        %1425 = vmatprep.subr.mxu0 0.0
        %1426 = vmatpush1.msra.mxu0 %v990
        %1427 = vmatprep.subr.mxu0 0.0
        %1428 = vmatpush1.msra.mxu0 %v991
        %1429 = vmatprep.subr.mxu0 0.0
        %1430 = vmatpush1.msra.mxu0 %v992
        %1431 = vmatprep.subr.mxu0 0.0
        %1432 = vmatpush1.msra.mxu0 %v993
        %1433 = vmatprep.subr.mxu0 0.0
        %1434 = vmatpush1.msra.mxu0 %v994
        %1435 = vmatprep.subr.mxu0 0.0
        %1436 = vmatpush1.msra.mxu0 %v995
        %1437 = vmatprep.subr.mxu0 0.0
        %1438 = vmatpush1.msra.mxu0 %v996
        %1439 = vmatprep.subr.mxu0 0.0
        %1440 = vmatpush1.msra.mxu0 %v997
        %1441 = vmatprep.subr.mxu0 0.0
        %1442 = vmatpush1.msra.mxu0 %v998
        %1443 = vmatprep.subr.mxu0 0.0
        %1444 = vmatpush1.msra.mxu0 %v999
        %1445 = vmatprep.subr.mxu0 0.0
        %1446 = vmatpush1.msra.mxu0 %v1000
        %1447 = vmatprep.subr.mxu0 0.0
        %1448 = vmatpush1.msra.mxu0 %v1001
        %1449 = vmatprep.subr.mxu0 0.0
        %1450 = vmatpush1.msra.mxu0 %v1002
        %1451 = vmatprep.mubr.f32.mxu0 %v1108
        %1452 = vmatmul.mubr.f32.gmra.mrb[0].mxu0 %v1105
        %v1453 = vpop.f32.mrb[0].mxu0
        %v1454 = vadd.f32 %v1379, %v1453
        %v1455 = vpop.f32.mrb[0].mxu0
        %1456 = vmatprep.mubr.f32.mxu0 %v1133
        %1457 = vmatmul.mubr.f32.gmra.mrb[0].mxu0 %v1131
        %v1458 = vpop.f32.mrb[0].mxu0
        %v1459 = vadd.f32 %v1384, %v1458
        %v1460 = vpop.f32.mrb[0].mxu0
        %1461 = vdwg.mxu0
        %1462 = vmatprep.subr.mxu0 0.0
        %1463 = vmatpush1.msra.mxu0 %v1003
        %1464 = vmatprep.subr.mxu0 0.0
        %1465 = vmatpush1.msra.mxu0 %v1004
        %1466 = vmatprep.subr.mxu0 0.0
        %1467 = vmatpush1.msra.mxu0 %v1005
        %1468 = vmatprep.subr.mxu0 0.0
        %1469 = vmatpush1.msra.mxu0 %v1006
        %1470 = vmatprep.subr.mxu0 0.0
        %1471 = vmatpush1.msra.mxu0 %v1007
        %1472 = vmatprep.subr.mxu0 0.0
        %1473 = vmatpush1.msra.mxu0 %v1008
        %1474 = vmatprep.subr.mxu0 0.0
        %1475 = vmatpush1.msra.mxu0 %v1009
        %1476 = vmatprep.subr.mxu0 0.0
        %1477 = vmatpush1.msra.mxu0 %v1010
        %1478 = vmatprep.subr.mxu0 0.0
        %1479 = vmatpush1.msra.mxu0 %v1011
        %1480 = vmatprep.subr.mxu0 0.0
        %1481 = vmatpush1.msra.mxu0 %v1012
        %1482 = vmatprep.subr.mxu0 0.0
        %1483 = vmatpush1.msra.mxu0 %v1013
        %1484 = vmatprep.subr.mxu0 0.0
        %1485 = vmatpush1.msra.mxu0 %v1014
        %1486 = vmatprep.subr.mxu0 0.0
        %1487 = vmatpush1.msra.mxu0 %v1015
        %1488 = vmatprep.subr.mxu0 0.0
        %1489 = vmatpush1.msra.mxu0 %v1016
        %1490 = vmatprep.subr.mxu0 0.0
        %1491 = vmatpush1.msra.mxu0 %v1017
        %1492 = vmatprep.subr.mxu0 0.0
        %1493 = vmatpush1.msra.mxu0 %v1018
        %1494 = vmatprep.subr.mxu0 0.0
        %1495 = vmatpush1.msra.mxu0 %v1019
        %1496 = vmatprep.subr.mxu0 0.0
        %1497 = vmatpush1.msra.mxu0 %v1020
        %1498 = vmatprep.subr.mxu0 0.0
        %1499 = vmatpush1.msra.mxu0 %v1021
        %1500 = vmatprep.subr.mxu0 0.0
        %1501 = vmatpush1.msra.mxu0 %v1022
        %1502 = vmatprep.subr.mxu0 0.0
        %1503 = vmatpush1.msra.mxu0 %v1023
        %1504 = vmatprep.subr.mxu0 0.0
        %1505 = vmatpush1.msra.mxu0 %v1024
        %1506 = vmatprep.subr.mxu0 0.0
        %1507 = vmatpush1.msra.mxu0 %v1025
        %1508 = vmatprep.subr.mxu0 0.0
        %1509 = vmatpush1.msra.mxu0 %v1026
        %1510 = vmatprep.subr.mxu0 0.0
        %1511 = vmatpush1.msra.mxu0 %v1027
        %1512 = vmatprep.subr.mxu0 0.0
        %1513 = vmatpush1.msra.mxu0 %v1028
        %1514 = vmatprep.subr.mxu0 0.0
        %1515 = vmatpush1.msra.mxu0 %v1029
        %1516 = vmatprep.subr.mxu0 0.0
        %1517 = vmatpush1.msra.mxu0 %v1030
        %1518 = vmatprep.subr.mxu0 0.0
        %1519 = vmatpush1.msra.mxu0 %v1031
        %1520 = vmatprep.subr.mxu0 0.0
        %1521 = vmatpush1.msra.mxu0 %v1032
        %1522 = vmatprep.subr.mxu0 0.0
        %1523 = vmatpush1.msra.mxu0 %v1033
        %1524 = vmatprep.subr.mxu0 0.0
        %1525 = vmatpush1.msra.mxu0 %v1034
        %1526 = vmatprep.mubr.f32.mxu0 %v1114
        %1527 = vmatmul.mubr.f32.gmra.mrb[0].mxu0 %v1111
        %v1528 = vpop.f32.mrb[0].mxu0
        %v1529 = vadd.f32 %v1454, %v1528
        %v1530 = vpop.f32.mrb[0].mxu0
        %1531 = vmatprep.mubr.f32.mxu0 %v1137
        %1532 = vmatmul.mubr.f32.gmra.mrb[0].mxu0 %v1135
        %v1533 = vpop.f32.mrb[0].mxu0
        %v1534 = vadd.f32 %v1459, %v1533
        %v1535 = vpop.f32.mrb[0].mxu0
        %1536 = vdwg.mxu0
        %1537 = vmatprep.subr.mxu0 0.0
        %1538 = vmatpush1.msra.mxu0 %v1035
        %1539 = vmatprep.subr.mxu0 0.0
        %1540 = vmatpush1.msra.mxu0 %v1036
        %1541 = vmatprep.subr.mxu0 0.0
        %1542 = vmatpush1.msra.mxu0 %v1037
        %1543 = vmatprep.subr.mxu0 0.0
        %1544 = vmatpush1.msra.mxu0 %v1038
        %1545 = vmatprep.subr.mxu0 0.0
        %1546 = vmatpush1.msra.mxu0 %v1039
        %1547 = vmatprep.subr.mxu0 0.0
        %1548 = vmatpush1.msra.mxu0 %v1040
        %1549 = vmatprep.subr.mxu0 0.0
        %1550 = vmatpush1.msra.mxu0 %v1041
        %1551 = vmatprep.subr.mxu0 0.0
        %1552 = vmatpush1.msra.mxu0 %v1042
        %1553 = vmatprep.subr.mxu0 0.0
        %1554 = vmatpush1.msra.mxu0 %v1043
        %1555 = vmatprep.subr.mxu0 0.0
        %1556 = vmatpush1.msra.mxu0 %v1044
        %1557 = vmatprep.subr.mxu0 0.0
        %1558 = vmatpush1.msra.mxu0 %v1045
        %1559 = vmatprep.subr.mxu0 0.0
        %1560 = vmatpush1.msra.mxu0 %v1046
        %1561 = vmatprep.subr.mxu0 0.0
        %1562 = vmatpush1.msra.mxu0 %v1047
        %1563 = vmatprep.subr.mxu0 0.0
        %1564 = vmatpush1.msra.mxu0 %v1048
        %1565 = vmatprep.subr.mxu0 0.0
        %1566 = vmatpush1.msra.mxu0 %v1049
        %1567 = vmatprep.subr.mxu0 0.0
        %1568 = vmatpush1.msra.mxu0 %v1050
        %1569 = vmatprep.subr.mxu0 0.0
        %1570 = vmatpush1.msra.mxu0 0.0
        %1571 = vmatprep.subr.mxu0 0.0
        %1572 = vmatpush1.msra.mxu0 0.0
        %1573 = vmatprep.subr.mxu0 0.0
        %1574 = vmatpush1.msra.mxu0 0.0
        %1575 = vmatprep.subr.mxu0 0.0
        %1576 = vmatpush1.msra.mxu0 0.0
        %1577 = vmatprep.subr.mxu0 0.0
        %1578 = vmatpush1.msra.mxu0 0.0
        %1579 = vmatprep.subr.mxu0 0.0
        %1580 = vmatpush1.msra.mxu0 0.0
        %1581 = vmatprep.subr.mxu0 0.0
        %1582 = vmatpush1.msra.mxu0 0.0
        %1583 = vmatprep.subr.mxu0 0.0
        %1584 = vmatpush1.msra.mxu0 0.0
        %1585 = vmatprep.subr.mxu0 0.0
        %1586 = vmatpush1.msra.mxu0 0.0
        %1587 = vmatprep.subr.mxu0 0.0
        %1588 = vmatpush1.msra.mxu0 0.0
        %1589 = vmatprep.subr.mxu0 0.0
        %1590 = vmatpush1.msra.mxu0 0.0
        %1591 = vmatprep.subr.mxu0 0.0
        %1592 = vmatpush1.msra.mxu0 0.0
        %1593 = vmatprep.subr.mxu0 0.0
        %1594 = vmatpush1.msra.mxu0 0.0
        %1595 = vmatprep.subr.mxu0 0.0
        %1596 = vmatpush1.msra.mxu0 0.0
        %1597 = vmatprep.subr.mxu0 0.0
        %1598 = vmatpush1.msra.mxu0 0.0
        %1599 = vmatprep.subr.mxu0 0.0
        %1600 = vmatpush1.msra.mxu0 0.0
        %1601 = vmatprep.mubr.f32.mxu0 0.0
        %1602 = vmatmul.mubr.f32.gmra.mrb[0].mxu0 %v1117
        %v1603 = vpop.f32.mrb[0].mxu0
        %v1604 = vadd.f32 %v1529, %v1603
        %v1605 = vpop.f32.mrb[0].mxu0
        %1606 = vmatprep.mubr.f32.mxu0 0.0
        %1607 = vmatmul.mubr.f32.gmra.mrb[0].mxu0 %v1139
        %v1608 = vpop.f32.mrb[0].mxu0
        %v1609 = vadd.f32 %v1534, %v1608
        %v1610 = vpop.f32.mrb[0].mxu0
        %1611 = vdwg.mxu0
        %1612 = vmatprep.subr.mxu0 0.0
        %1613 = vmatpush1.msra.mxu0 %v676
        %1614 = vmatprep.subr.mxu0 0.0
        %1615 = vmatpush1.msra.mxu0 %v677
        %1616 = vmatprep.subr.mxu0 0.0
        %1617 = vmatpush1.msra.mxu0 %v678
        %1618 = vmatprep.subr.mxu0 0.0
        %1619 = vmatpush1.msra.mxu0 %v679
        %1620 = vmatprep.subr.mxu0 0.0
        %1621 = vmatpush1.msra.mxu0 %v680
        %1622 = vmatprep.subr.mxu0 0.0
        %1623 = vmatpush1.msra.mxu0 %v681
        %1624 = vmatprep.subr.mxu0 0.0
        %1625 = vmatpush1.msra.mxu0 %v682
        %1626 = vmatprep.subr.mxu0 0.0
        %1627 = vmatpush1.msra.mxu0 %v683
        %1628 = vmatprep.subr.mxu0 0.0
        %1629 = vmatpush1.msra.mxu0 %v684
        %1630 = vmatprep.subr.mxu0 0.0
        %1631 = vmatpush1.msra.mxu0 %v685
        %1632 = vmatprep.subr.mxu0 0.0
        %1633 = vmatpush1.msra.mxu0 %v686
        %1634 = vmatprep.subr.mxu0 0.0
        %1635 = vmatpush1.msra.mxu0 %v687
        %1636 = vmatprep.subr.mxu0 0.0
        %1637 = vmatpush1.msra.mxu0 %v688
        %1638 = vmatprep.subr.mxu0 0.0
        %1639 = vmatpush1.msra.mxu0 %v689
        %1640 = vmatprep.subr.mxu0 0.0
        %1641 = vmatpush1.msra.mxu0 %v690
        %1642 = vmatprep.subr.mxu0 0.0
        %1643 = vmatpush1.msra.mxu0 %v691
        %1644 = vmatprep.subr.mxu0 0.0
        %1645 = vmatpush1.msra.mxu0 %v692
        %1646 = vmatprep.subr.mxu0 0.0
        %1647 = vmatpush1.msra.mxu0 %v693
        %1648 = vmatprep.subr.mxu0 0.0
        %1649 = vmatpush1.msra.mxu0 %v694
        %1650 = vmatprep.subr.mxu0 0.0
        %1651 = vmatpush1.msra.mxu0 %v695
        %1652 = vmatprep.subr.mxu0 0.0
        %1653 = vmatpush1.msra.mxu0 %v696
        %1654 = vmatprep.subr.mxu0 0.0
        %1655 = vmatpush1.msra.mxu0 %v697
        %1656 = vmatprep.subr.mxu0 0.0
        %1657 = vmatpush1.msra.mxu0 %v698
        %1658 = vmatprep.subr.mxu0 0.0
        %1659 = vmatpush1.msra.mxu0 %v699
        %1660 = vmatprep.subr.mxu0 0.0
        %1661 = vmatpush1.msra.mxu0 %v700
        %1662 = vmatprep.subr.mxu0 0.0
        %1663 = vmatpush1.msra.mxu0 %v701
        %1664 = vmatprep.subr.mxu0 0.0
        %1665 = vmatpush1.msra.mxu0 %v702
        %1666 = vmatprep.subr.mxu0 0.0
        %1667 = vmatpush1.msra.mxu0 %v703
        %1668 = vmatprep.subr.mxu0 0.0
        %1669 = vmatpush1.msra.mxu0 %v704
        %1670 = vmatprep.subr.mxu0 0.0
        %1671 = vmatpush1.msra.mxu0 %v705
        %1672 = vmatprep.subr.mxu0 0.0
        %1673 = vmatpush1.msra.mxu0 %v706
        %1674 = vmatprep.subr.mxu0 0.0
        %1675 = vmatpush1.msra.mxu0 %v707
        %1676 = vmatprep.mubr.f32.mxu0 %v655
        %1677 = vmatmul.mubr.f32.gmra.mrb[0].mxu0 %v654
        %v1678 = vpop.f32.mrb[0].mxu0
        %v1679 = vadd.f32 %v1604, %v1678
        %v1680 = vpop.f32.mrb[0].mxu0
        %1681 = vmatprep.mubr.f32.mxu0 %v666
        %1682 = vmatmul.mubr.f32.gmra.mrb[0].mxu0 %v665
        %v1683 = vpop.f32.mrb[0].mxu0
        %v1684 = vadd.f32 %v1609, %v1683
        %v1685 = vpop.f32.mrb[0].mxu0
        %1686 = vdwg.mxu0
        %1687 = vmatprep.subr.mxu0 0.0
        %1688 = vmatpush1.msra.mxu0 %v708
        %1689 = vmatprep.subr.mxu0 0.0
        %1690 = vmatpush1.msra.mxu0 %v709
        %1691 = vmatprep.subr.mxu0 0.0
        %1692 = vmatpush1.msra.mxu0 %v710
        %1693 = vmatprep.subr.mxu0 0.0
        %1694 = vmatpush1.msra.mxu0 %v711
        %1695 = vmatprep.subr.mxu0 0.0
        %1696 = vmatpush1.msra.mxu0 %v712
        %1697 = vmatprep.subr.mxu0 0.0
        %1698 = vmatpush1.msra.mxu0 %v713
        %1699 = vmatprep.subr.mxu0 0.0
        %1700 = vmatpush1.msra.mxu0 %v714
        %1701 = vmatprep.subr.mxu0 0.0
        %1702 = vmatpush1.msra.mxu0 %v715
        %1703 = vmatprep.subr.mxu0 0.0
        %1704 = vmatpush1.msra.mxu0 %v716
        %1705 = vmatprep.subr.mxu0 0.0
        %1706 = vmatpush1.msra.mxu0 %v717
        %1707 = vmatprep.subr.mxu0 0.0
        %1708 = vmatpush1.msra.mxu0 %v718
        %1709 = vmatprep.subr.mxu0 0.0
        %1710 = vmatpush1.msra.mxu0 %v719
        %1711 = vmatprep.subr.mxu0 0.0
        %1712 = vmatpush1.msra.mxu0 %v720
        %1713 = vmatprep.subr.mxu0 0.0
        %1714 = vmatpush1.msra.mxu0 %v721
        %1715 = vmatprep.subr.mxu0 0.0
        %1716 = vmatpush1.msra.mxu0 %v722
        %1717 = vmatprep.subr.mxu0 0.0
        %1718 = vmatpush1.msra.mxu0 %v723
        %1719 = vmatprep.subr.mxu0 0.0
        %1720 = vmatpush1.msra.mxu0 %v724
        %1721 = vmatprep.subr.mxu0 0.0
        %1722 = vmatpush1.msra.mxu0 %v725
        %1723 = vmatprep.subr.mxu0 0.0
        %1724 = vmatpush1.msra.mxu0 %v726
        %1725 = vmatprep.subr.mxu0 0.0
        %1726 = vmatpush1.msra.mxu0 %v727
        %1727 = vmatprep.subr.mxu0 0.0
        %1728 = vmatpush1.msra.mxu0 %v728
        %1729 = vmatprep.subr.mxu0 0.0
        %1730 = vmatpush1.msra.mxu0 %v729
        %1731 = vmatprep.subr.mxu0 0.0
        %1732 = vmatpush1.msra.mxu0 %v730
        %1733 = vmatprep.subr.mxu0 0.0
        %1734 = vmatpush1.msra.mxu0 %v731
        %1735 = vmatprep.subr.mxu0 0.0
        %1736 = vmatpush1.msra.mxu0 %v732
        %1737 = vmatprep.subr.mxu0 0.0
        %1738 = vmatpush1.msra.mxu0 %v733
        %1739 = vmatprep.subr.mxu0 0.0
        %1740 = vmatpush1.msra.mxu0 %v734
        %1741 = vmatprep.subr.mxu0 0.0
        %1742 = vmatpush1.msra.mxu0 %v735
        %1743 = vmatprep.subr.mxu0 0.0
        %1744 = vmatpush1.msra.mxu0 %v736
        %1745 = vmatprep.subr.mxu0 0.0
        %1746 = vmatpush1.msra.mxu0 %v737
        %1747 = vmatprep.subr.mxu0 0.0
        %1748 = vmatpush1.msra.mxu0 %v738
        %1749 = vmatprep.subr.mxu0 0.0
        %1750 = vmatpush1.msra.mxu0 %v739
        %1751 = vmatprep.mubr.f32.mxu0 %v657
        %1752 = vmatmul.mubr.f32.gmra.mrb[0].mxu0 %v656
        %v1753 = vpop.f32.mrb[0].mxu0
        %v1754 = vadd.f32 %v1679, %v1753
        %v1755 = vpop.f32.mrb[0].mxu0
        %1756 = vmatprep.mubr.f32.mxu0 %v668
        %1757 = vmatmul.mubr.f32.gmra.mrb[0].mxu0 %v667
        %v1758 = vpop.f32.mrb[0].mxu0
        %v1759 = vadd.f32 %v1684, %v1758
        %v1760 = vpop.f32.mrb[0].mxu0
        %1761 = vdwg.mxu0
        %1762 = vmatprep.subr.mxu0 0.0
        %1763 = vmatpush1.msra.mxu0 %v740
        %1764 = vmatprep.subr.mxu0 0.0
        %1765 = vmatpush1.msra.mxu0 %v741
        %1766 = vmatprep.subr.mxu0 0.0
        %1767 = vmatpush1.msra.mxu0 %v742
        %1768 = vmatprep.subr.mxu0 0.0
        %1769 = vmatpush1.msra.mxu0 %v743
        %1770 = vmatprep.subr.mxu0 0.0
        %1771 = vmatpush1.msra.mxu0 %v744
        %1772 = vmatprep.subr.mxu0 0.0
        %1773 = vmatpush1.msra.mxu0 %v745
        %1774 = vmatprep.subr.mxu0 0.0
        %1775 = vmatpush1.msra.mxu0 %v746
        %1776 = vmatprep.subr.mxu0 0.0
        %1777 = vmatpush1.msra.mxu0 %v747
        %1778 = vmatprep.subr.mxu0 0.0
        %1779 = vmatpush1.msra.mxu0 %v748
        %1780 = vmatprep.subr.mxu0 0.0
        %1781 = vmatpush1.msra.mxu0 %v749
        %1782 = vmatprep.subr.mxu0 0.0
        %1783 = vmatpush1.msra.mxu0 %v750
        %1784 = vmatprep.subr.mxu0 0.0
        %1785 = vmatpush1.msra.mxu0 %v751
        %1786 = vmatprep.subr.mxu0 0.0
        %1787 = vmatpush1.msra.mxu0 %v752
        %1788 = vmatprep.subr.mxu0 0.0
        %1789 = vmatpush1.msra.mxu0 %v753
        %1790 = vmatprep.subr.mxu0 0.0
        %1791 = vmatpush1.msra.mxu0 %v754
        %1792 = vmatprep.subr.mxu0 0.0
        %1793 = vmatpush1.msra.mxu0 %v755
        %1794 = vmatprep.subr.mxu0 0.0
        %1795 = vmatpush1.msra.mxu0 %v756
        %1796 = vmatprep.subr.mxu0 0.0
        %1797 = vmatpush1.msra.mxu0 %v757
        %1798 = vmatprep.subr.mxu0 0.0
        %1799 = vmatpush1.msra.mxu0 %v758
        %1800 = vmatprep.subr.mxu0 0.0
        %1801 = vmatpush1.msra.mxu0 %v759
        %1802 = vmatprep.subr.mxu0 0.0
        %1803 = vmatpush1.msra.mxu0 %v760
        %1804 = vmatprep.subr.mxu0 0.0
        %1805 = vmatpush1.msra.mxu0 %v761
        %1806 = vmatprep.subr.mxu0 0.0
        %1807 = vmatpush1.msra.mxu0 %v762
        %1808 = vmatprep.subr.mxu0 0.0
        %1809 = vmatpush1.msra.mxu0 %v763
        %1810 = vmatprep.subr.mxu0 0.0
        %1811 = vmatpush1.msra.mxu0 %v764
        %1812 = vmatprep.subr.mxu0 0.0
        %1813 = vmatpush1.msra.mxu0 %v765
        %1814 = vmatprep.subr.mxu0 0.0
        %1815 = vmatpush1.msra.mxu0 %v766
        %1816 = vmatprep.subr.mxu0 0.0
        %1817 = vmatpush1.msra.mxu0 %v767
        %1818 = vmatprep.subr.mxu0 0.0
        %1819 = vmatpush1.msra.mxu0 %v768
        %1820 = vmatprep.subr.mxu0 0.0
        %1821 = vmatpush1.msra.mxu0 %v769
        %1822 = vmatprep.subr.mxu0 0.0
        %1823 = vmatpush1.msra.mxu0 %v770
        %1824 = vmatprep.subr.mxu0 0.0
        %1825 = vmatpush1.msra.mxu0 %v771
        %1826 = vmatprep.mubr.f32.mxu0 %v659
        %1827 = vmatmul.mubr.f32.gmra.mrb[0].mxu0 %v658
        %v1828 = vpop.f32.mrb[0].mxu0
        %v1829 = vadd.f32 %v1754, %v1828
        %v1830 = vpop.f32.mrb[0].mxu0
        %1831 = vmatprep.mubr.f32.mxu0 %v670
        %1832 = vmatmul.mubr.f32.gmra.mrb[0].mxu0 %v669
        %v1833 = vpop.f32.mrb[0].mxu0
        %v1834 = vadd.f32 %v1759, %v1833
        %v1835 = vpop.f32.mrb[0].mxu0
        %1836 = vdwg.mxu0
        %1837 = vmatprep.subr.mxu0 0.0
        %1838 = vmatpush1.msra.mxu0 %v772
        %1839 = vmatprep.subr.mxu0 0.0
        %1840 = vmatpush1.msra.mxu0 %v773
        %1841 = vmatprep.subr.mxu0 0.0
        %1842 = vmatpush1.msra.mxu0 %v774
        %1843 = vmatprep.subr.mxu0 0.0
        %1844 = vmatpush1.msra.mxu0 %v775
        %1845 = vmatprep.subr.mxu0 0.0
        %1846 = vmatpush1.msra.mxu0 %v776
        %1847 = vmatprep.subr.mxu0 0.0
        %1848 = vmatpush1.msra.mxu0 %v777
        %1849 = vmatprep.subr.mxu0 0.0
        %1850 = vmatpush1.msra.mxu0 %v778
        %1851 = vmatprep.subr.mxu0 0.0
        %1852 = vmatpush1.msra.mxu0 %v779
        %1853 = vmatprep.subr.mxu0 0.0
        %1854 = vmatpush1.msra.mxu0 %v780
        %1855 = vmatprep.subr.mxu0 0.0
        %1856 = vmatpush1.msra.mxu0 %v781
        %1857 = vmatprep.subr.mxu0 0.0
        %1858 = vmatpush1.msra.mxu0 %v782
        %1859 = vmatprep.subr.mxu0 0.0
        %1860 = vmatpush1.msra.mxu0 %v783
        %1861 = vmatprep.subr.mxu0 0.0
        %1862 = vmatpush1.msra.mxu0 %v784
        %1863 = vmatprep.subr.mxu0 0.0
        %1864 = vmatpush1.msra.mxu0 %v785
        %1865 = vmatprep.subr.mxu0 0.0
        %1866 = vmatpush1.msra.mxu0 %v786
        %1867 = vmatprep.subr.mxu0 0.0
        %1868 = vmatpush1.msra.mxu0 %v787
        %1869 = vmatprep.subr.mxu0 0.0
        %1870 = vmatpush1.msra.mxu0 %v788
        %1871 = vmatprep.subr.mxu0 0.0
        %1872 = vmatpush1.msra.mxu0 %v789
        %1873 = vmatprep.subr.mxu0 0.0
        %1874 = vmatpush1.msra.mxu0 %v790
        %1875 = vmatprep.subr.mxu0 0.0
        %1876 = vmatpush1.msra.mxu0 %v791
        %1877 = vmatprep.subr.mxu0 0.0
        %1878 = vmatpush1.msra.mxu0 %v792
        %1879 = vmatprep.subr.mxu0 0.0
        %1880 = vmatpush1.msra.mxu0 %v793
        %1881 = vmatprep.subr.mxu0 0.0
        %1882 = vmatpush1.msra.mxu0 %v794
        %1883 = vmatprep.subr.mxu0 0.0
        %1884 = vmatpush1.msra.mxu0 %v795
        %1885 = vmatprep.subr.mxu0 0.0
        %1886 = vmatpush1.msra.mxu0 %v796
        %1887 = vmatprep.subr.mxu0 0.0
        %1888 = vmatpush1.msra.mxu0 %v797
        %1889 = vmatprep.subr.mxu0 0.0
        %1890 = vmatpush1.msra.mxu0 %v798
        %1891 = vmatprep.subr.mxu0 0.0
        %1892 = vmatpush1.msra.mxu0 %v799
        %1893 = vmatprep.subr.mxu0 0.0
        %1894 = vmatpush1.msra.mxu0 %v800
        %1895 = vmatprep.subr.mxu0 0.0
        %1896 = vmatpush1.msra.mxu0 %v801
        %1897 = vmatprep.subr.mxu0 0.0
        %1898 = vmatpush1.msra.mxu0 %v802
        %1899 = vmatprep.subr.mxu0 0.0
        %1900 = vmatpush1.msra.mxu0 %v803
        %1901 = vmatprep.mubr.f32.mxu0 %v661
        %1902 = vmatmul.mubr.f32.gmra.mrb[0].mxu0 %v660
        %v1903 = vpop.f32.mrb[0].mxu0
        %v1904 = vadd.f32 %v1829, %v1903
        %v1905 = vpop.f32.mrb[0].mxu0
        %1906 = vmatprep.mubr.f32.mxu0 %v672
        %1907 = vmatmul.mubr.f32.gmra.mrb[0].mxu0 %v671
        %v1908 = vpop.f32.mrb[0].mxu0
        %v1909 = vadd.f32 %v1834, %v1908
        %v1910 = vpop.f32.mrb[0].mxu0
        %1911 = vdwg.mxu0
        %1912 = vmatprep.subr.mxu0 0.0
        %1913 = vmatpush1.msra.mxu0 %v804
        %1914 = vmatprep.subr.mxu0 0.0
        %1915 = vmatpush1.msra.mxu0 %v805
        %1916 = vmatprep.subr.mxu0 0.0
        %1917 = vmatpush1.msra.mxu0 %v806
        %1918 = vmatprep.subr.mxu0 0.0
        %1919 = vmatpush1.msra.mxu0 %v807
        %1920 = vmatprep.subr.mxu0 0.0
        %1921 = vmatpush1.msra.mxu0 %v808
        %1922 = vmatprep.subr.mxu0 0.0
        %1923 = vmatpush1.msra.mxu0 %v809
        %1924 = vmatprep.subr.mxu0 0.0
        %1925 = vmatpush1.msra.mxu0 %v810
        %1926 = vmatprep.subr.mxu0 0.0
        %1927 = vmatpush1.msra.mxu0 %v811
        %1928 = vmatprep.subr.mxu0 0.0
        %1929 = vmatpush1.msra.mxu0 %v812
        %1930 = vmatprep.subr.mxu0 0.0
        %1931 = vmatpush1.msra.mxu0 %v813
        %1932 = vmatprep.subr.mxu0 0.0
        %1933 = vmatpush1.msra.mxu0 %v814
        %1934 = vmatprep.subr.mxu0 0.0
        %1935 = vmatpush1.msra.mxu0 %v815
        %1936 = vmatprep.subr.mxu0 0.0
        %1937 = vmatpush1.msra.mxu0 %v816
        %1938 = vmatprep.subr.mxu0 0.0
        %1939 = vmatpush1.msra.mxu0 %v817
        %1940 = vmatprep.subr.mxu0 0.0
        %1941 = vmatpush1.msra.mxu0 %v818
        %1942 = vmatprep.subr.mxu0 0.0
        %1943 = vmatpush1.msra.mxu0 %v819
        %1944 = vmatprep.subr.mxu0 0.0
        %1945 = vmatpush1.msra.mxu0 %v820
        %1946 = vmatprep.subr.mxu0 0.0
        %1947 = vmatpush1.msra.mxu0 %v821
        %1948 = vmatprep.subr.mxu0 0.0
        %1949 = vmatpush1.msra.mxu0 %v822
        %1950 = vmatprep.subr.mxu0 0.0
        %1951 = vmatpush1.msra.mxu0 %v823
        %1952 = vmatprep.subr.mxu0 0.0
        %1953 = vmatpush1.msra.mxu0 %v824
        %1954 = vmatprep.subr.mxu0 0.0
        %1955 = vmatpush1.msra.mxu0 %v825
        %1956 = vmatprep.subr.mxu0 0.0
        %1957 = vmatpush1.msra.mxu0 %v826
        %1958 = vmatprep.subr.mxu0 0.0
        %1959 = vmatpush1.msra.mxu0 %v827
        %1960 = vmatprep.subr.mxu0 0.0
        %1961 = vmatpush1.msra.mxu0 %v828
        %1962 = vmatprep.subr.mxu0 0.0
        %1963 = vmatpush1.msra.mxu0 %v829
        %1964 = vmatprep.subr.mxu0 0.0
        %1965 = vmatpush1.msra.mxu0 %v830
        %1966 = vmatprep.subr.mxu0 0.0
        %1967 = vmatpush1.msra.mxu0 %v831
        %1968 = vmatprep.subr.mxu0 0.0
        %1969 = vmatpush1.msra.mxu0 %v832
        %1970 = vmatprep.subr.mxu0 0.0
        %1971 = vmatpush1.msra.mxu0 %v833
        %1972 = vmatprep.subr.mxu0 0.0
        %1973 = vmatpush1.msra.mxu0 %v834
        %1974 = vmatprep.subr.mxu0 0.0
        %1975 = vmatpush1.msra.mxu0 %v835
        %1976 = vmatprep.mubr.f32.mxu0 %v663
        %1977 = vmatmul.mubr.f32.gmra.mrb[0].mxu0 %v662
        %v1978 = vpop.f32.mrb[0].mxu0
        %v1979 = vadd.f32 %v1904, %v1978
        %v1980 = vpop.f32.mrb[0].mxu0
        %1981 = vmatprep.mubr.f32.mxu0 %v674
        %1982 = vmatmul.mubr.f32.gmra.mrb[0].mxu0 %v673
        %v1983 = vpop.f32.mrb[0].mxu0
        %v1984 = vadd.f32 %v1909, %v1983
        %v1985 = vpop.f32.mrb[0].mxu0
        %1986 = vdwg.mxu0
        %1987 = vmatprep.subr.mxu0 0.0
        %1988 = vmatpush1.msra.mxu0 %v836
        %1989 = vmatprep.subr.mxu0 0.0
        %1990 = vmatpush1.msra.mxu0 %v837
        %1991 = vmatprep.subr.mxu0 0.0
        %1992 = vmatpush1.msra.mxu0 %v838
        %1993 = vmatprep.subr.mxu0 0.0
        %1994 = vmatpush1.msra.mxu0 %v839
        %1995 = vmatprep.subr.mxu0 0.0
        %1996 = vmatpush1.msra.mxu0 %v840
        %1997 = vmatprep.subr.mxu0 0.0
        %1998 = vmatpush1.msra.mxu0 %v841
        %1999 = vmatprep.subr.mxu0 0.0
        %2000 = vmatpush1.msra.mxu0 %v842
        %2001 = vmatprep.subr.mxu0 0.0
        %2002 = vmatpush1.msra.mxu0 %v843
        %2003 = vmatprep.subr.mxu0 0.0
        %2004 = vmatpush1.msra.mxu0 %v844
        %2005 = vmatprep.subr.mxu0 0.0
        %2006 = vmatpush1.msra.mxu0 %v845
        %2007 = vmatprep.subr.mxu0 0.0
        %2008 = vmatpush1.msra.mxu0 %v846
        %2009 = vmatprep.subr.mxu0 0.0
        %2010 = vmatpush1.msra.mxu0 %v847
        %2011 = vmatprep.subr.mxu0 0.0
        %2012 = vmatpush1.msra.mxu0 %v848
        %2013 = vmatprep.subr.mxu0 0.0
        %2014 = vmatpush1.msra.mxu0 %v849
        %2015 = vmatprep.subr.mxu0 0.0
        %2016 = vmatpush1.msra.mxu0 %v850
        %2017 = vmatprep.subr.mxu0 0.0
        %2018 = vmatpush1.msra.mxu0 %v851
        %2019 = vmatprep.subr.mxu0 0.0
        %2020 = vmatpush1.msra.mxu0 0.0
        %2021 = vmatprep.subr.mxu0 0.0
        %2022 = vmatpush1.msra.mxu0 0.0
        %2023 = vmatprep.subr.mxu0 0.0
        %2024 = vmatpush1.msra.mxu0 0.0
        %2025 = vmatprep.subr.mxu0 0.0
        %2026 = vmatpush1.msra.mxu0 0.0
        %2027 = vmatprep.subr.mxu0 0.0
        %2028 = vmatpush1.msra.mxu0 0.0
        %2029 = vmatprep.subr.mxu0 0.0
        %2030 = vmatpush1.msra.mxu0 0.0
        %2031 = vmatprep.subr.mxu0 0.0
        %2032 = vmatpush1.msra.mxu0 0.0
        %2033 = vmatprep.subr.mxu0 0.0
        %2034 = vmatpush1.msra.mxu0 0.0
        %2035 = vmatprep.subr.mxu0 0.0
        %2036 = vmatpush1.msra.mxu0 0.0
        %2037 = vmatprep.subr.mxu0 0.0
        %2038 = vmatpush1.msra.mxu0 0.0
        %2039 = vmatprep.subr.mxu0 0.0
        %2040 = vmatpush1.msra.mxu0 0.0
        %2041 = vmatprep.subr.mxu0 0.0
        %2042 = vmatpush1.msra.mxu0 0.0
        %2043 = vmatprep.subr.mxu0 0.0
        %2044 = vmatpush1.msra.mxu0 0.0
        %2045 = vmatprep.subr.mxu0 0.0
        %2046 = vmatpush1.msra.mxu0 0.0
        %2047 = vmatprep.subr.mxu0 0.0
        %2048 = vmatpush1.msra.mxu0 0.0
        %2049 = vmatprep.subr.mxu0 0.0
        %2050 = vmatpush1.msra.mxu0 0.0
        %2051 = vmatprep.mubr.f32.mxu0 0.0
        %2052 = vmatmul.mubr.f32.gmra.mrb[0].mxu0 %v664
        %v2053 = vpop.f32.mrb[0].mxu0
        %v2054 = vadd.f32 %v1979, %v2053
        %v2055 = vpop.f32.mrb[0].mxu0
        %2056 = vmatprep.mubr.f32.mxu0 0.0
        %2057 = vmatmul.mubr.f32.gmra.mrb[0].mxu0 %v675
        %v2058 = vpop.f32.mrb[0].mxu0
        %v2059 = vadd.f32 %v1984, %v2058
        %v2060 = vpop.f32.mrb[0].mxu0
        %2061 = vdwg.mxu0
        %v2062 = vld [vmem:[%s653] sm:$0xfc]
        %v2063 = vld [vmem:[%s653 + $0x8] sm:$0xfc]
        %v2064 = vld [vmem:[%s653 + $0x10] sm:$0xfc]
        %v2065 = vld [vmem:[%s653 + $0x18] sm:$0xfc]
        %v2066 = vld [vmem:[%s653 + $0x20] sm:$0xfc]
        %v2067 = vld [vmem:[%s653 + $0x28] sm:$0xfc]
        %v2068 = vld [vmem:[%s653 + $0x30] sm:$0xfc]
        %v2069 = vld [vmem:[%s653 + $0x38] sm:$0xfc]
        %v2070 = vld [vmem:[%s653 + $0x40] sm:$0xfc]
        %v2071 = vld [vmem:[%s653 + $0x48] sm:$0xfc]
        %v2072 = vld [vmem:[%s653 + $0x50] sm:$0xfc]
        %v2073 = vld [vmem:[%s653 + $0xb0] sm:$0x3]
        %v2074 = vld [vmem:[%s653 + $0xb8] sm:$0x3]
        %v2075 = vld [vmem:[%s653 + $0xc0] sm:$0x3]
        %v2076 = vld [vmem:[%s653 + $0xc8] sm:$0x3]
        %v2077 = vld [vmem:[%s653 + $0xd0] sm:$0x3]
        %v2078 = vld [vmem:[%s653 + $0xd8] sm:$0x3]
        %v2079 = vld [vmem:[%s653 + $0xe0] sm:$0x3]
        %v2080 = vld [vmem:[%s653 + $0xe8] sm:$0x3]
        %v2081 = vld [vmem:[%s653 + $0xf0] sm:$0x3]
        %v2082 = vld [vmem:[%s653 + $0xf8] sm:$0x3]
        %v2083 = vld [vmem:[%s653 + $0x100] sm:$0x3]
        %s2084 = scalar_lea.vmem %s1, 2816
        %v2085 = vld [vmem:[%s2084] sm:$0xff]
        %v2086 = vld [vmem:[%s2084 + $0x8] sm:$0xff]
        %v2087 = vld [vmem:[%s2084 + $0x10] sm:$0xff]
        %v2088 = vld [vmem:[%s2084 + $0x18] sm:$0xff]
        %v2089 = vld [vmem:[%s2084 + $0x20] sm:$0xff]
        %v2090 = vld [vmem:[%s2084 + $0x28] sm:$0xff]
        %v2091 = vld [vmem:[%s2084 + $0x30] sm:$0xff]
        %v2092 = vld [vmem:[%s2084 + $0x38] sm:$0xff]
        %v2093 = vld [vmem:[%s2084 + $0x40] sm:$0xff]
        %v2094 = vld [vmem:[%s2084 + $0x48] sm:$0xff]
        %v2095 = vld [vmem:[%s2084 + $0x50] sm:$0xff]
        %v2096 = vld [vmem:[%s2084 + $0x58] sm:$0xff]
        %v2097 = vld [vmem:[%s2084 + $0x60] sm:$0xff]
        %v2098 = vld [vmem:[%s2084 + $0x68] sm:$0xff]
        %v2099 = vld [vmem:[%s2084 + $0x70] sm:$0xff]
        %v2100 = vld [vmem:[%s2084 + $0x78] sm:$0xff]
        %v2101 = vld [vmem:[%s2084 + $0x80] sm:$0xff]
        %v2102 = vld [vmem:[%s2084 + $0x88] sm:$0xff]
        %v2103 = vld [vmem:[%s2084 + $0x90] sm:$0xff]
        %v2104 = vld [vmem:[%s2084 + $0x98] sm:$0xff]
        %v2105 = vld [vmem:[%s2084 + $0xa0] sm:$0xff]
        %v2106 = vld [vmem:[%s2084 + $0xa8] sm:$0xff]
        %v2107 = vld [vmem:[%s2084 + $0xb0] sm:$0xff]
        %v2108 = vld [vmem:[%s2084 + $0xb8] sm:$0xff]
        %v2109 = vld [vmem:[%s2084 + $0xc0] sm:$0xff]
        %v2110 = vld [vmem:[%s2084 + $0xc8] sm:$0xff]
        %v2111 = vld [vmem:[%s2084 + $0xd0] sm:$0xff]
        %v2112 = vld [vmem:[%s2084 + $0xd8] sm:$0xff]
        %v2113 = vld [vmem:[%s2084 + $0xe0] sm:$0xff]
        %v2114 = vld [vmem:[%s2084 + $0xe8] sm:$0xff]
        %v2115 = vld [vmem:[%s2084 + $0xf0] sm:$0xff]
        %v2116 = vld [vmem:[%s2084 + $0xf8] sm:$0xff]
        %v2117 = vld [vmem:[%s2084 + $0x100] sm:$0xff]
        %v2118 = vld [vmem:[%s2084 + $0x108] sm:$0xff]
        %v2119 = vld [vmem:[%s2084 + $0x110] sm:$0xff]
        %v2120 = vld [vmem:[%s2084 + $0x118] sm:$0xff]
        %v2121 = vld [vmem:[%s2084 + $0x120] sm:$0xff]
        %v2122 = vld [vmem:[%s2084 + $0x128] sm:$0xff]
        %v2123 = vld [vmem:[%s2084 + $0x130] sm:$0xff]
        %v2124 = vld [vmem:[%s2084 + $0x138] sm:$0xff]
        %v2125 = vld [vmem:[%s2084 + $0x140] sm:$0xff]
        %v2126 = vld [vmem:[%s2084 + $0x148] sm:$0xff]
        %v2127 = vld [vmem:[%s2084 + $0x150] sm:$0xff]
        %v2128 = vld [vmem:[%s2084 + $0x158] sm:$0xff]
        %v2129 = vld [vmem:[%s2084 + $0x160] sm:$0xff]
        %v2130 = vld [vmem:[%s2084 + $0x168] sm:$0xff]
        %v2131 = vld [vmem:[%s2084 + $0x170] sm:$0xff]
        %v2132 = vld [vmem:[%s2084 + $0x178] sm:$0xff]
        %v2133 = vld [vmem:[%s2084 + $0x180] sm:$0xff]
        %v2134 = vld [vmem:[%s2084 + $0x188] sm:$0xff]
        %v2135 = vld [vmem:[%s2084 + $0x190] sm:$0xff]
        %v2136 = vld [vmem:[%s2084 + $0x198] sm:$0xff]
        %v2137 = vld [vmem:[%s2084 + $0x1a0] sm:$0xff]
        %v2138 = vld [vmem:[%s2084 + $0x1a8] sm:$0xff]
        %v2139 = vld [vmem:[%s2084 + $0x1b0] sm:$0xff]
        %v2140 = vld [vmem:[%s2084 + $0x1b8] sm:$0xff]
        %v2141 = vld [vmem:[%s2084 + $0x1c0] sm:$0xff]
        %v2142 = vld [vmem:[%s2084 + $0x1c8] sm:$0xff]
        %v2143 = vld [vmem:[%s2084 + $0x1d0] sm:$0xff]
        %v2144 = vld [vmem:[%s2084 + $0x1d8] sm:$0xff]
        %v2145 = vld [vmem:[%s2084 + $0x1e0] sm:$0xff]
        %v2146 = vld [vmem:[%s2084 + $0x1e8] sm:$0xff]
        %v2147 = vld [vmem:[%s2084 + $0x1f0] sm:$0xff]
        %v2148 = vld [vmem:[%s2084 + $0x1f8] sm:$0xff]
        %v2149 = vld [vmem:[%s2084 + $0x200] sm:$0xff]
        %v2150 = vld [vmem:[%s2084 + $0x208] sm:$0xff]
        %v2151 = vld [vmem:[%s2084 + $0x210] sm:$0xff]
        %v2152 = vld [vmem:[%s2084 + $0x218] sm:$0xff]
        %v2153 = vld [vmem:[%s2084 + $0x220] sm:$0xff]
        %v2154 = vld [vmem:[%s2084 + $0x228] sm:$0xff]
        %v2155 = vld [vmem:[%s2084 + $0x230] sm:$0xff]
        %v2156 = vld [vmem:[%s2084 + $0x238] sm:$0xff]
        %v2157 = vld [vmem:[%s2084 + $0x240] sm:$0xff]
        %v2158 = vld [vmem:[%s2084 + $0x248] sm:$0xff]
        %v2159 = vld [vmem:[%s2084 + $0x250] sm:$0xff]
        %v2160 = vld [vmem:[%s2084 + $0x258] sm:$0xff]
        %v2161 = vld [vmem:[%s2084 + $0x260] sm:$0xff]
        %v2162 = vld [vmem:[%s2084 + $0x268] sm:$0xff]
        %v2163 = vld [vmem:[%s2084 + $0x270] sm:$0xff]
        %v2164 = vld [vmem:[%s2084 + $0x278] sm:$0xff]
        %v2165 = vld [vmem:[%s2084 + $0x280] sm:$0xff]
        %v2166 = vld [vmem:[%s2084 + $0x288] sm:$0xff]
        %v2167 = vld [vmem:[%s2084 + $0x290] sm:$0xff]
        %v2168 = vld [vmem:[%s2084 + $0x298] sm:$0xff]
        %v2169 = vld [vmem:[%s2084 + $0x2a0] sm:$0xff]
        %v2170 = vld [vmem:[%s2084 + $0x2a8] sm:$0xff]
        %v2171 = vld [vmem:[%s2084 + $0x2b0] sm:$0xff]
        %v2172 = vld [vmem:[%s2084 + $0x2b8] sm:$0xff]
        %v2173 = vld [vmem:[%s2084 + $0x2c0] sm:$0xff]
        %v2174 = vld [vmem:[%s2084 + $0x2c8] sm:$0xff]
        %v2175 = vld [vmem:[%s2084 + $0x2d0] sm:$0xff]
        %v2176 = vld [vmem:[%s2084 + $0x2d8] sm:$0xff]
        %v2177 = vld [vmem:[%s2084 + $0x2e0] sm:$0xff]
        %v2178 = vld [vmem:[%s2084 + $0x2e8] sm:$0xff]
        %v2179 = vld [vmem:[%s2084 + $0x2f0] sm:$0xff]
        %v2180 = vld [vmem:[%s2084 + $0x2f8] sm:$0xff]
        %v2181 = vld [vmem:[%s2084 + $0x300] sm:$0xff]
        %v2182 = vld [vmem:[%s2084 + $0x308] sm:$0xff]
        %v2183 = vld [vmem:[%s2084 + $0x310] sm:$0xff]
        %v2184 = vld [vmem:[%s2084 + $0x318] sm:$0xff]
        %v2185 = vld [vmem:[%s2084 + $0x320] sm:$0xff]
        %v2186 = vld [vmem:[%s2084 + $0x328] sm:$0xff]
        %v2187 = vld [vmem:[%s2084 + $0x330] sm:$0xff]
        %v2188 = vld [vmem:[%s2084 + $0x338] sm:$0xff]
        %v2189 = vld [vmem:[%s2084 + $0x340] sm:$0xff]
        %v2190 = vld [vmem:[%s2084 + $0x348] sm:$0xff]
        %v2191 = vld [vmem:[%s2084 + $0x350] sm:$0xff]
        %v2192 = vld [vmem:[%s2084 + $0x358] sm:$0xff]
        %v2193 = vld [vmem:[%s2084 + $0x360] sm:$0xff]
        %v2194 = vld [vmem:[%s2084 + $0x368] sm:$0xff]
        %v2195 = vld [vmem:[%s2084 + $0x370] sm:$0xff]
        %v2196 = vld [vmem:[%s2084 + $0x378] sm:$0xff]
        %v2197 = vld [vmem:[%s2084 + $0x380] sm:$0xff]
        %v2198 = vld [vmem:[%s2084 + $0x388] sm:$0xff]
        %v2199 = vld [vmem:[%s2084 + $0x390] sm:$0xff]
        %v2200 = vld [vmem:[%s2084 + $0x398] sm:$0xff]
        %v2201 = vld [vmem:[%s2084 + $0x3a0] sm:$0xff]
        %v2202 = vld [vmem:[%s2084 + $0x3a8] sm:$0xff]
        %v2203 = vld [vmem:[%s2084 + $0x3b0] sm:$0xff]
        %v2204 = vld [vmem:[%s2084 + $0x3b8] sm:$0xff]
        %v2205 = vld [vmem:[%s2084 + $0x3c0] sm:$0xff]
        %v2206 = vld [vmem:[%s2084 + $0x3c8] sm:$0xff]
        %v2207 = vld [vmem:[%s2084 + $0x3d0] sm:$0xff]
        %v2208 = vld [vmem:[%s2084 + $0x3d8] sm:$0xff]
        %v2209 = vld [vmem:[%s2084 + $0x3e0] sm:$0xff]
        %v2210 = vld [vmem:[%s2084 + $0x3e8] sm:$0xff]
        %v2211 = vld [vmem:[%s2084 + $0x3f0] sm:$0xff]
        %v2212 = vld [vmem:[%s2084 + $0x3f8] sm:$0xff]
        %v2213 = vld [vmem:[%s2084 + $0x400] sm:$0xff]
        %v2214 = vld [vmem:[%s2084 + $0x408] sm:$0xff]
        %v2215 = vld [vmem:[%s2084 + $0x410] sm:$0xff]
        %v2216 = vld [vmem:[%s2084 + $0x418] sm:$0xff]
        %v2217 = vld [vmem:[%s2084 + $0x420] sm:$0xff]
        %v2218 = vld [vmem:[%s2084 + $0x428] sm:$0xff]
        %v2219 = vld [vmem:[%s2084 + $0x430] sm:$0xff]
        %v2220 = vld [vmem:[%s2084 + $0x438] sm:$0xff]
        %v2221 = vld [vmem:[%s2084 + $0x440] sm:$0xff]
        %v2222 = vld [vmem:[%s2084 + $0x448] sm:$0xff]
        %v2223 = vld [vmem:[%s2084 + $0x450] sm:$0xff]
        %v2224 = vld [vmem:[%s2084 + $0x458] sm:$0xff]
        %v2225 = vld [vmem:[%s2084 + $0x460] sm:$0xff]
        %v2226 = vld [vmem:[%s2084 + $0x468] sm:$0xff]
        %v2227 = vld [vmem:[%s2084 + $0x470] sm:$0xff]
        %v2228 = vld [vmem:[%s2084 + $0x478] sm:$0xff]
        %v2229 = vld [vmem:[%s2084 + $0x480] sm:$0xff]
        %v2230 = vld [vmem:[%s2084 + $0x488] sm:$0xff]
        %v2231 = vld [vmem:[%s2084 + $0x490] sm:$0xff]
        %v2232 = vld [vmem:[%s2084 + $0x498] sm:$0xff]
        %v2233 = vld [vmem:[%s2084 + $0x4a0] sm:$0xff]
        %v2234 = vld [vmem:[%s2084 + $0x4a8] sm:$0xff]
        %v2235 = vld [vmem:[%s2084 + $0x4b0] sm:$0xff]
        %v2236 = vld [vmem:[%s2084 + $0x4b8] sm:$0xff]
        %v2237 = vld [vmem:[%s2084 + $0x4c0] sm:$0xff]
        %v2238 = vld [vmem:[%s2084 + $0x4c8] sm:$0xff]
        %v2239 = vld [vmem:[%s2084 + $0x4d0] sm:$0xff]
        %v2240 = vld [vmem:[%s2084 + $0x4d8] sm:$0xff]
        %v2241 = vld [vmem:[%s2084 + $0x4e0] sm:$0xff]
        %v2242 = vld [vmem:[%s2084 + $0x4e8] sm:$0xff]
        %v2243 = vld [vmem:[%s2084 + $0x4f0] sm:$0xff]
        %v2244 = vld [vmem:[%s2084 + $0x4f8] sm:$0xff]
        %v2245 = vld [vmem:[%s2084 + $0x500] sm:$0xff]
        %v2246 = vld [vmem:[%s2084 + $0x508] sm:$0xff]
        %v2247 = vld [vmem:[%s2084 + $0x510] sm:$0xff]
        %v2248 = vld [vmem:[%s2084 + $0x518] sm:$0xff]
        %v2249 = vld [vmem:[%s2084 + $0x520] sm:$0xff]
        %v2250 = vld [vmem:[%s2084 + $0x528] sm:$0xff]
        %v2251 = vld [vmem:[%s2084 + $0x530] sm:$0xff]
        %v2252 = vld [vmem:[%s2084 + $0x538] sm:$0xff]
        %v2253 = vld [vmem:[%s2084 + $0x540] sm:$0xff]
        %v2254 = vld [vmem:[%s2084 + $0x548] sm:$0xff]
        %v2255 = vld [vmem:[%s2084 + $0x550] sm:$0xff]
        %v2256 = vld [vmem:[%s2084 + $0x558] sm:$0xff]
        %v2257 = vld [vmem:[%s2084 + $0x560] sm:$0xff]
        %v2258 = vld [vmem:[%s2084 + $0x568] sm:$0xff]
        %v2259 = vld [vmem:[%s2084 + $0x570] sm:$0xff]
        %v2260 = vld [vmem:[%s2084 + $0x578] sm:$0xff]
        %vm2283 = vcmask 1045504
        %v2284 = vrot.slane %v2062, 2
        %v2285 = vrot.slane %v665, 2
        %v2286 = vsel %vm2283, %v2284, %v2285
        %v2287 = vrot.slane %v2063, 2
        %v2288 = vrot.slane %v666, 2
        %v2289 = vsel %vm2283, %v2287, %v2288
        %v2290 = vrot.slane %v2064, 2
        %v2291 = vrot.slane %v667, 2
        %v2292 = vsel %vm2283, %v2290, %v2291
        %v2293 = vrot.slane %v2065, 2
        %v2294 = vrot.slane %v668, 2
        %v2295 = vsel %vm2283, %v2293, %v2294
        %v2296 = vrot.slane %v2066, 2
        %v2297 = vrot.slane %v669, 2
        %v2298 = vsel %vm2283, %v2296, %v2297
        %v2299 = vrot.slane %v2067, 2
        %v2300 = vrot.slane %v670, 2
        %v2301 = vsel %vm2283, %v2299, %v2300
        %v2302 = vrot.slane %v2068, 2
        %v2303 = vrot.slane %v671, 2
        %v2304 = vsel %vm2283, %v2302, %v2303
        %v2305 = vrot.slane %v2069, 2
        %v2306 = vrot.slane %v672, 2
        %v2307 = vsel %vm2283, %v2305, %v2306
        %v2308 = vrot.slane %v2070, 2
        %v2309 = vrot.slane %v673, 2
        %v2310 = vsel %vm2283, %v2308, %v2309
        %v2311 = vrot.slane %v2071, 2
        %v2312 = vrot.slane %v674, 2
        %v2313 = vsel %vm2283, %v2311, %v2312
        %v2314 = vrot.slane %v2072, 2
        %v2315 = vrot.slane %v675, 2
        %v2316 = vsel %vm2283, %v2314, %v2315
        %v2317 = vrot.slane %v2073, 2
        %v2318 = vsel %vm2283, %v2285, %v2317
        %v2319 = vrot.slane %v2074, 2
        %v2320 = vsel %vm2283, %v2288, %v2319
        %v2321 = vrot.slane %v2075, 2
        %v2322 = vsel %vm2283, %v2291, %v2321
        %v2323 = vrot.slane %v2076, 2
        %v2324 = vsel %vm2283, %v2294, %v2323
        %v2325 = vrot.slane %v2077, 2
        %v2326 = vsel %vm2283, %v2297, %v2325
        %v2327 = vrot.slane %v2078, 2
        %v2328 = vsel %vm2283, %v2300, %v2327
        %v2329 = vrot.slane %v2079, 2
        %v2330 = vsel %vm2283, %v2303, %v2329
        %v2331 = vrot.slane %v2080, 2
        %v2332 = vsel %vm2283, %v2306, %v2331
        %v2333 = vrot.slane %v2081, 2
        %v2334 = vsel %vm2283, %v2309, %v2333
        %v2335 = vrot.slane %v2082, 2
        %v2336 = vsel %vm2283, %v2312, %v2335
        %v2337 = vrot.slane %v2083, 2
        %v2338 = vsel %vm2283, %v2315, %v2337
        %2361 = vmatprep.subr.mxu0 0.0
        %2362 = vmatpush1.msra.mxu0 %v2085
        %2363 = vmatprep.subr.mxu0 0.0
        %2364 = vmatpush1.msra.mxu0 %v2086
        %2365 = vmatprep.subr.mxu0 0.0
        %2366 = vmatpush1.msra.mxu0 %v2087
        %2367 = vmatprep.subr.mxu0 0.0
        %2368 = vmatpush1.msra.mxu0 %v2088
        %2369 = vmatprep.subr.mxu0 0.0
        %2370 = vmatpush1.msra.mxu0 %v2089
        %2371 = vmatprep.subr.mxu0 0.0
        %2372 = vmatpush1.msra.mxu0 %v2090
        %2373 = vmatprep.subr.mxu0 0.0
        %2374 = vmatpush1.msra.mxu0 %v2091
        %2375 = vmatprep.subr.mxu0 0.0
        %2376 = vmatpush1.msra.mxu0 %v2092
        %2377 = vmatprep.subr.mxu0 0.0
        %2378 = vmatpush1.msra.mxu0 %v2093
        %2379 = vmatprep.subr.mxu0 0.0
        %2380 = vmatpush1.msra.mxu0 %v2094
        %2381 = vmatprep.subr.mxu0 0.0
        %2382 = vmatpush1.msra.mxu0 %v2095
        %2383 = vmatprep.subr.mxu0 0.0
        %2384 = vmatpush1.msra.mxu0 %v2096
        %2385 = vmatprep.subr.mxu0 0.0
        %2386 = vmatpush1.msra.mxu0 %v2097
        %2387 = vmatprep.subr.mxu0 0.0
        %2388 = vmatpush1.msra.mxu0 %v2098
        %2389 = vmatprep.subr.mxu0 0.0
        %2390 = vmatpush1.msra.mxu0 %v2099
        %2391 = vmatprep.subr.mxu0 0.0
        %2392 = vmatpush1.msra.mxu0 %v2100
        %2393 = vmatprep.subr.mxu0 0.0
        %2394 = vmatpush1.msra.mxu0 %v2101
        %2395 = vmatprep.subr.mxu0 0.0
        %2396 = vmatpush1.msra.mxu0 %v2102
        %2397 = vmatprep.subr.mxu0 0.0
        %2398 = vmatpush1.msra.mxu0 %v2103
        %2399 = vmatprep.subr.mxu0 0.0
        %2400 = vmatpush1.msra.mxu0 %v2104
        %2401 = vmatprep.subr.mxu0 0.0
        %2402 = vmatpush1.msra.mxu0 %v2105
        %2403 = vmatprep.subr.mxu0 0.0
        %2404 = vmatpush1.msra.mxu0 %v2106
        %2405 = vmatprep.subr.mxu0 0.0
        %2406 = vmatpush1.msra.mxu0 %v2107
        %2407 = vmatprep.subr.mxu0 0.0
        %2408 = vmatpush1.msra.mxu0 %v2108
        %2409 = vmatprep.subr.mxu0 0.0
        %2410 = vmatpush1.msra.mxu0 %v2109
        %2411 = vmatprep.subr.mxu0 0.0
        %2412 = vmatpush1.msra.mxu0 %v2110
        %2413 = vmatprep.subr.mxu0 0.0
        %2414 = vmatpush1.msra.mxu0 %v2111
        %2415 = vmatprep.subr.mxu0 0.0
        %2416 = vmatpush1.msra.mxu0 %v2112
        %2417 = vmatprep.subr.mxu0 0.0
        %2418 = vmatpush1.msra.mxu0 %v2113
        %2419 = vmatprep.subr.mxu0 0.0
        %2420 = vmatpush1.msra.mxu0 %v2114
        %2421 = vmatprep.subr.mxu0 0.0
        %2422 = vmatpush1.msra.mxu0 %v2115
        %2423 = vmatprep.subr.mxu0 0.0
        %2424 = vmatpush1.msra.mxu0 %v2116
        %2425 = vmatprep.mubr.f32.mxu0 %v2289
        %2426 = vmatmul.mubr.f32.gmra.mrb[0].mxu0 %v2286
        %v2427 = vpop.f32.mrb[0].mxu0
        %v2428 = vadd.f32 0.0, %v2427
        %v2429 = vpop.f32.mrb[0].mxu0
        %2430 = vmatprep.mubr.f32.mxu0 %v2320
        %2431 = vmatmul.mubr.f32.gmra.mrb[0].mxu0 %v2318
        %v2432 = vpop.f32.mrb[0].mxu0
        %v2433 = vadd.f32 0.0, %v2432
        %v2434 = vpop.f32.mrb[0].mxu0
        %2435 = vdwg.mxu0
        %2436 = vmatprep.subr.mxu0 0.0
        %2437 = vmatpush1.msra.mxu0 %v2117
        %2438 = vmatprep.subr.mxu0 0.0
        %2439 = vmatpush1.msra.mxu0 %v2118
        %2440 = vmatprep.subr.mxu0 0.0
        %2441 = vmatpush1.msra.mxu0 %v2119
        %2442 = vmatprep.subr.mxu0 0.0
        %2443 = vmatpush1.msra.mxu0 %v2120
        %2444 = vmatprep.subr.mxu0 0.0
        %2445 = vmatpush1.msra.mxu0 %v2121
        %2446 = vmatprep.subr.mxu0 0.0
        %2447 = vmatpush1.msra.mxu0 %v2122
        %2448 = vmatprep.subr.mxu0 0.0
        %2449 = vmatpush1.msra.mxu0 %v2123
        %2450 = vmatprep.subr.mxu0 0.0
        %2451 = vmatpush1.msra.mxu0 %v2124
        %2452 = vmatprep.subr.mxu0 0.0
        %2453 = vmatpush1.msra.mxu0 %v2125
        %2454 = vmatprep.subr.mxu0 0.0
        %2455 = vmatpush1.msra.mxu0 %v2126
        %2456 = vmatprep.subr.mxu0 0.0
        %2457 = vmatpush1.msra.mxu0 %v2127
        %2458 = vmatprep.subr.mxu0 0.0
        %2459 = vmatpush1.msra.mxu0 %v2128
        %2460 = vmatprep.subr.mxu0 0.0
        %2461 = vmatpush1.msra.mxu0 %v2129
        %2462 = vmatprep.subr.mxu0 0.0
        %2463 = vmatpush1.msra.mxu0 %v2130
        %2464 = vmatprep.subr.mxu0 0.0
        %2465 = vmatpush1.msra.mxu0 %v2131
        %2466 = vmatprep.subr.mxu0 0.0
        %2467 = vmatpush1.msra.mxu0 %v2132
        %2468 = vmatprep.subr.mxu0 0.0
        %2469 = vmatpush1.msra.mxu0 %v2133
        %2470 = vmatprep.subr.mxu0 0.0
        %2471 = vmatpush1.msra.mxu0 %v2134
        %2472 = vmatprep.subr.mxu0 0.0
        %2473 = vmatpush1.msra.mxu0 %v2135
        %2474 = vmatprep.subr.mxu0 0.0
        %2475 = vmatpush1.msra.mxu0 %v2136
        %2476 = vmatprep.subr.mxu0 0.0
        %2477 = vmatpush1.msra.mxu0 %v2137
        %2478 = vmatprep.subr.mxu0 0.0
        %2479 = vmatpush1.msra.mxu0 %v2138
        %2480 = vmatprep.subr.mxu0 0.0
        %2481 = vmatpush1.msra.mxu0 %v2139
        %2482 = vmatprep.subr.mxu0 0.0
        %2483 = vmatpush1.msra.mxu0 %v2140
        %2484 = vmatprep.subr.mxu0 0.0
        %2485 = vmatpush1.msra.mxu0 %v2141
        %2486 = vmatprep.subr.mxu0 0.0
        %2487 = vmatpush1.msra.mxu0 %v2142
        %2488 = vmatprep.subr.mxu0 0.0
        %2489 = vmatpush1.msra.mxu0 %v2143
        %2490 = vmatprep.subr.mxu0 0.0
        %2491 = vmatpush1.msra.mxu0 %v2144
        %2492 = vmatprep.subr.mxu0 0.0
        %2493 = vmatpush1.msra.mxu0 %v2145
        %2494 = vmatprep.subr.mxu0 0.0
        %2495 = vmatpush1.msra.mxu0 %v2146
        %2496 = vmatprep.subr.mxu0 0.0
        %2497 = vmatpush1.msra.mxu0 %v2147
        %2498 = vmatprep.subr.mxu0 0.0
        %2499 = vmatpush1.msra.mxu0 %v2148
        %2500 = vmatprep.mubr.f32.mxu0 %v2295
        %2501 = vmatmul.mubr.f32.gmra.mrb[0].mxu0 %v2292
        %v2502 = vpop.f32.mrb[0].mxu0
        %v2503 = vadd.f32 %v2428, %v2502
        %v2504 = vpop.f32.mrb[0].mxu0
        %2505 = vmatprep.mubr.f32.mxu0 %v2324
        %2506 = vmatmul.mubr.f32.gmra.mrb[0].mxu0 %v2322
        %v2507 = vpop.f32.mrb[0].mxu0
        %v2508 = vadd.f32 %v2433, %v2507
        %v2509 = vpop.f32.mrb[0].mxu0
        %2510 = vdwg.mxu0
        %2511 = vmatprep.subr.mxu0 0.0
        %2512 = vmatpush1.msra.mxu0 %v2149
        %2513 = vmatprep.subr.mxu0 0.0
        %2514 = vmatpush1.msra.mxu0 %v2150
        %2515 = vmatprep.subr.mxu0 0.0
        %2516 = vmatpush1.msra.mxu0 %v2151
        %2517 = vmatprep.subr.mxu0 0.0
        %2518 = vmatpush1.msra.mxu0 %v2152
        %2519 = vmatprep.subr.mxu0 0.0
        %2520 = vmatpush1.msra.mxu0 %v2153
        %2521 = vmatprep.subr.mxu0 0.0
        %2522 = vmatpush1.msra.mxu0 %v2154
        %2523 = vmatprep.subr.mxu0 0.0
        %2524 = vmatpush1.msra.mxu0 %v2155
        %2525 = vmatprep.subr.mxu0 0.0
        %2526 = vmatpush1.msra.mxu0 %v2156
        %2527 = vmatprep.subr.mxu0 0.0
        %2528 = vmatpush1.msra.mxu0 %v2157
        %2529 = vmatprep.subr.mxu0 0.0
        %2530 = vmatpush1.msra.mxu0 %v2158
        %2531 = vmatprep.subr.mxu0 0.0
        %2532 = vmatpush1.msra.mxu0 %v2159
        %2533 = vmatprep.subr.mxu0 0.0
        %2534 = vmatpush1.msra.mxu0 %v2160
        %2535 = vmatprep.subr.mxu0 0.0
        %2536 = vmatpush1.msra.mxu0 %v2161
        %2537 = vmatprep.subr.mxu0 0.0
        %2538 = vmatpush1.msra.mxu0 %v2162
        %2539 = vmatprep.subr.mxu0 0.0
        %2540 = vmatpush1.msra.mxu0 %v2163
        %2541 = vmatprep.subr.mxu0 0.0
        %2542 = vmatpush1.msra.mxu0 %v2164
        %2543 = vmatprep.subr.mxu0 0.0
        %2544 = vmatpush1.msra.mxu0 %v2165
        %2545 = vmatprep.subr.mxu0 0.0
        %2546 = vmatpush1.msra.mxu0 %v2166
        %2547 = vmatprep.subr.mxu0 0.0
        %2548 = vmatpush1.msra.mxu0 %v2167
        %2549 = vmatprep.subr.mxu0 0.0
        %2550 = vmatpush1.msra.mxu0 %v2168
        %2551 = vmatprep.subr.mxu0 0.0
        %2552 = vmatpush1.msra.mxu0 %v2169
        %2553 = vmatprep.subr.mxu0 0.0
        %2554 = vmatpush1.msra.mxu0 %v2170
        %2555 = vmatprep.subr.mxu0 0.0
        %2556 = vmatpush1.msra.mxu0 %v2171
        %2557 = vmatprep.subr.mxu0 0.0
        %2558 = vmatpush1.msra.mxu0 %v2172
        %2559 = vmatprep.subr.mxu0 0.0
        %2560 = vmatpush1.msra.mxu0 %v2173
        %2561 = vmatprep.subr.mxu0 0.0
        %2562 = vmatpush1.msra.mxu0 %v2174
        %2563 = vmatprep.subr.mxu0 0.0
        %2564 = vmatpush1.msra.mxu0 %v2175
        %2565 = vmatprep.subr.mxu0 0.0
        %2566 = vmatpush1.msra.mxu0 %v2176
        %2567 = vmatprep.subr.mxu0 0.0
        %2568 = vmatpush1.msra.mxu0 %v2177
        %2569 = vmatprep.subr.mxu0 0.0
        %2570 = vmatpush1.msra.mxu0 %v2178
        %2571 = vmatprep.subr.mxu0 0.0
        %2572 = vmatpush1.msra.mxu0 %v2179
        %2573 = vmatprep.subr.mxu0 0.0
        %2574 = vmatpush1.msra.mxu0 %v2180
        %2575 = vmatprep.mubr.f32.mxu0 %v2301
        %2576 = vmatmul.mubr.f32.gmra.mrb[0].mxu0 %v2298
        %v2577 = vpop.f32.mrb[0].mxu0
        %v2578 = vadd.f32 %v2503, %v2577
        %v2579 = vpop.f32.mrb[0].mxu0
        %2580 = vmatprep.mubr.f32.mxu0 %v2328
        %2581 = vmatmul.mubr.f32.gmra.mrb[0].mxu0 %v2326
        %v2582 = vpop.f32.mrb[0].mxu0
        %v2583 = vadd.f32 %v2508, %v2582
        %v2584 = vpop.f32.mrb[0].mxu0
        %2585 = vdwg.mxu0
        %2586 = vmatprep.subr.mxu0 0.0
        %2587 = vmatpush1.msra.mxu0 %v2181
        %2588 = vmatprep.subr.mxu0 0.0
        %2589 = vmatpush1.msra.mxu0 %v2182
        %2590 = vmatprep.subr.mxu0 0.0
        %2591 = vmatpush1.msra.mxu0 %v2183
        %2592 = vmatprep.subr.mxu0 0.0
        %2593 = vmatpush1.msra.mxu0 %v2184
        %2594 = vmatprep.subr.mxu0 0.0
        %2595 = vmatpush1.msra.mxu0 %v2185
        %2596 = vmatprep.subr.mxu0 0.0
        %2597 = vmatpush1.msra.mxu0 %v2186
        %2598 = vmatprep.subr.mxu0 0.0
        %2599 = vmatpush1.msra.mxu0 %v2187
        %2600 = vmatprep.subr.mxu0 0.0
        %2601 = vmatpush1.msra.mxu0 %v2188
        %2602 = vmatprep.subr.mxu0 0.0
        %2603 = vmatpush1.msra.mxu0 %v2189
        %2604 = vmatprep.subr.mxu0 0.0
        %2605 = vmatpush1.msra.mxu0 %v2190
        %2606 = vmatprep.subr.mxu0 0.0
        %2607 = vmatpush1.msra.mxu0 %v2191
        %2608 = vmatprep.subr.mxu0 0.0
        %2609 = vmatpush1.msra.mxu0 %v2192
        %2610 = vmatprep.subr.mxu0 0.0
        %2611 = vmatpush1.msra.mxu0 %v2193
        %2612 = vmatprep.subr.mxu0 0.0
        %2613 = vmatpush1.msra.mxu0 %v2194
        %2614 = vmatprep.subr.mxu0 0.0
        %2615 = vmatpush1.msra.mxu0 %v2195
        %2616 = vmatprep.subr.mxu0 0.0
        %2617 = vmatpush1.msra.mxu0 %v2196
        %2618 = vmatprep.subr.mxu0 0.0
        %2619 = vmatpush1.msra.mxu0 %v2197
        %2620 = vmatprep.subr.mxu0 0.0
        %2621 = vmatpush1.msra.mxu0 %v2198
        %2622 = vmatprep.subr.mxu0 0.0
        %2623 = vmatpush1.msra.mxu0 %v2199
        %2624 = vmatprep.subr.mxu0 0.0
        %2625 = vmatpush1.msra.mxu0 %v2200
        %2626 = vmatprep.subr.mxu0 0.0
        %2627 = vmatpush1.msra.mxu0 %v2201
        %2628 = vmatprep.subr.mxu0 0.0
        %2629 = vmatpush1.msra.mxu0 %v2202
        %2630 = vmatprep.subr.mxu0 0.0
        %2631 = vmatpush1.msra.mxu0 %v2203
        %2632 = vmatprep.subr.mxu0 0.0
        %2633 = vmatpush1.msra.mxu0 %v2204
        %2634 = vmatprep.subr.mxu0 0.0
        %2635 = vmatpush1.msra.mxu0 %v2205
        %2636 = vmatprep.subr.mxu0 0.0
        %2637 = vmatpush1.msra.mxu0 %v2206
        %2638 = vmatprep.subr.mxu0 0.0
        %2639 = vmatpush1.msra.mxu0 %v2207
        %2640 = vmatprep.subr.mxu0 0.0
        %2641 = vmatpush1.msra.mxu0 %v2208
        %2642 = vmatprep.subr.mxu0 0.0
        %2643 = vmatpush1.msra.mxu0 %v2209
        %2644 = vmatprep.subr.mxu0 0.0
        %2645 = vmatpush1.msra.mxu0 %v2210
        %2646 = vmatprep.subr.mxu0 0.0
        %2647 = vmatpush1.msra.mxu0 %v2211
        %2648 = vmatprep.subr.mxu0 0.0
        %2649 = vmatpush1.msra.mxu0 %v2212
        %2650 = vmatprep.mubr.f32.mxu0 %v2307
        %2651 = vmatmul.mubr.f32.gmra.mrb[0].mxu0 %v2304
        %v2652 = vpop.f32.mrb[0].mxu0
        %v2653 = vadd.f32 %v2578, %v2652
        %v2654 = vpop.f32.mrb[0].mxu0
        %2655 = vmatprep.mubr.f32.mxu0 %v2332
        %2656 = vmatmul.mubr.f32.gmra.mrb[0].mxu0 %v2330
        %v2657 = vpop.f32.mrb[0].mxu0
        %v2658 = vadd.f32 %v2583, %v2657
        %v2659 = vpop.f32.mrb[0].mxu0
        %2660 = vdwg.mxu0
        %2661 = vmatprep.subr.mxu0 0.0
        %2662 = vmatpush1.msra.mxu0 %v2213
        %2663 = vmatprep.subr.mxu0 0.0
        %2664 = vmatpush1.msra.mxu0 %v2214
        %2665 = vmatprep.subr.mxu0 0.0
        %2666 = vmatpush1.msra.mxu0 %v2215
        %2667 = vmatprep.subr.mxu0 0.0
        %2668 = vmatpush1.msra.mxu0 %v2216
        %2669 = vmatprep.subr.mxu0 0.0
        %2670 = vmatpush1.msra.mxu0 %v2217
        %2671 = vmatprep.subr.mxu0 0.0
        %2672 = vmatpush1.msra.mxu0 %v2218
        %2673 = vmatprep.subr.mxu0 0.0
        %2674 = vmatpush1.msra.mxu0 %v2219
        %2675 = vmatprep.subr.mxu0 0.0
        %2676 = vmatpush1.msra.mxu0 %v2220
        %2677 = vmatprep.subr.mxu0 0.0
        %2678 = vmatpush1.msra.mxu0 %v2221
        %2679 = vmatprep.subr.mxu0 0.0
        %2680 = vmatpush1.msra.mxu0 %v2222
        %2681 = vmatprep.subr.mxu0 0.0
        %2682 = vmatpush1.msra.mxu0 %v2223
        %2683 = vmatprep.subr.mxu0 0.0
        %2684 = vmatpush1.msra.mxu0 %v2224
        %2685 = vmatprep.subr.mxu0 0.0
        %2686 = vmatpush1.msra.mxu0 %v2225
        %2687 = vmatprep.subr.mxu0 0.0
        %2688 = vmatpush1.msra.mxu0 %v2226
        %2689 = vmatprep.subr.mxu0 0.0
        %2690 = vmatpush1.msra.mxu0 %v2227
        %2691 = vmatprep.subr.mxu0 0.0
        %2692 = vmatpush1.msra.mxu0 %v2228
        %2693 = vmatprep.subr.mxu0 0.0
        %2694 = vmatpush1.msra.mxu0 %v2229
        %2695 = vmatprep.subr.mxu0 0.0
        %2696 = vmatpush1.msra.mxu0 %v2230
        %2697 = vmatprep.subr.mxu0 0.0
        %2698 = vmatpush1.msra.mxu0 %v2231
        %2699 = vmatprep.subr.mxu0 0.0
        %2700 = vmatpush1.msra.mxu0 %v2232
        %2701 = vmatprep.subr.mxu0 0.0
        %2702 = vmatpush1.msra.mxu0 %v2233
        %2703 = vmatprep.subr.mxu0 0.0
        %2704 = vmatpush1.msra.mxu0 %v2234
        %2705 = vmatprep.subr.mxu0 0.0
        %2706 = vmatpush1.msra.mxu0 %v2235
        %2707 = vmatprep.subr.mxu0 0.0
        %2708 = vmatpush1.msra.mxu0 %v2236
        %2709 = vmatprep.subr.mxu0 0.0
        %2710 = vmatpush1.msra.mxu0 %v2237
        %2711 = vmatprep.subr.mxu0 0.0
        %2712 = vmatpush1.msra.mxu0 %v2238
        %2713 = vmatprep.subr.mxu0 0.0
        %2714 = vmatpush1.msra.mxu0 %v2239
        %2715 = vmatprep.subr.mxu0 0.0
        %2716 = vmatpush1.msra.mxu0 %v2240
        %2717 = vmatprep.subr.mxu0 0.0
        %2718 = vmatpush1.msra.mxu0 %v2241
        %2719 = vmatprep.subr.mxu0 0.0
        %2720 = vmatpush1.msra.mxu0 %v2242
        %2721 = vmatprep.subr.mxu0 0.0
        %2722 = vmatpush1.msra.mxu0 %v2243
        %2723 = vmatprep.subr.mxu0 0.0
        %2724 = vmatpush1.msra.mxu0 %v2244
        %2725 = vmatprep.mubr.f32.mxu0 %v2313
        %2726 = vmatmul.mubr.f32.gmra.mrb[0].mxu0 %v2310
        %v2727 = vpop.f32.mrb[0].mxu0
        %v2728 = vadd.f32 %v2653, %v2727
        %v2729 = vpop.f32.mrb[0].mxu0
        %2730 = vmatprep.mubr.f32.mxu0 %v2336
        %2731 = vmatmul.mubr.f32.gmra.mrb[0].mxu0 %v2334
        %v2732 = vpop.f32.mrb[0].mxu0
        %v2733 = vadd.f32 %v2658, %v2732
        %v2734 = vpop.f32.mrb[0].mxu0
        %2735 = vdwg.mxu0
        %2736 = vmatprep.subr.mxu0 0.0
        %2737 = vmatpush1.msra.mxu0 %v2245
        %2738 = vmatprep.subr.mxu0 0.0
        %2739 = vmatpush1.msra.mxu0 %v2246
        %2740 = vmatprep.subr.mxu0 0.0
        %2741 = vmatpush1.msra.mxu0 %v2247
        %2742 = vmatprep.subr.mxu0 0.0
        %2743 = vmatpush1.msra.mxu0 %v2248
        %2744 = vmatprep.subr.mxu0 0.0
        %2745 = vmatpush1.msra.mxu0 %v2249
        %2746 = vmatprep.subr.mxu0 0.0
        %2747 = vmatpush1.msra.mxu0 %v2250
        %2748 = vmatprep.subr.mxu0 0.0
        %2749 = vmatpush1.msra.mxu0 %v2251
        %2750 = vmatprep.subr.mxu0 0.0
        %2751 = vmatpush1.msra.mxu0 %v2252
        %2752 = vmatprep.subr.mxu0 0.0
        %2753 = vmatpush1.msra.mxu0 %v2253
        %2754 = vmatprep.subr.mxu0 0.0
        %2755 = vmatpush1.msra.mxu0 %v2254
        %2756 = vmatprep.subr.mxu0 0.0
        %2757 = vmatpush1.msra.mxu0 %v2255
        %2758 = vmatprep.subr.mxu0 0.0
        %2759 = vmatpush1.msra.mxu0 %v2256
        %2760 = vmatprep.subr.mxu0 0.0
        %2761 = vmatpush1.msra.mxu0 %v2257
        %2762 = vmatprep.subr.mxu0 0.0
        %2763 = vmatpush1.msra.mxu0 %v2258
        %2764 = vmatprep.subr.mxu0 0.0
        %2765 = vmatpush1.msra.mxu0 %v2259
        %2766 = vmatprep.subr.mxu0 0.0
        %2767 = vmatpush1.msra.mxu0 %v2260
        %2768 = vmatprep.subr.mxu0 0.0
        %2769 = vmatpush1.msra.mxu0 0.0
        %2770 = vmatprep.subr.mxu0 0.0
        %2771 = vmatpush1.msra.mxu0 0.0
        %2772 = vmatprep.subr.mxu0 0.0
        %2773 = vmatpush1.msra.mxu0 0.0
        %2774 = vmatprep.subr.mxu0 0.0
        %2775 = vmatpush1.msra.mxu0 0.0
        %2776 = vmatprep.subr.mxu0 0.0
        %2777 = vmatpush1.msra.mxu0 0.0
        %2778 = vmatprep.subr.mxu0 0.0
        %2779 = vmatpush1.msra.mxu0 0.0
        %2780 = vmatprep.subr.mxu0 0.0
        %2781 = vmatpush1.msra.mxu0 0.0
        %2782 = vmatprep.subr.mxu0 0.0
        %2783 = vmatpush1.msra.mxu0 0.0
        %2784 = vmatprep.subr.mxu0 0.0
        %2785 = vmatpush1.msra.mxu0 0.0
        %2786 = vmatprep.subr.mxu0 0.0
        %2787 = vmatpush1.msra.mxu0 0.0
        %2788 = vmatprep.subr.mxu0 0.0
        %2789 = vmatpush1.msra.mxu0 0.0
        %2790 = vmatprep.subr.mxu0 0.0
        %2791 = vmatpush1.msra.mxu0 0.0
        %2792 = vmatprep.subr.mxu0 0.0
        %2793 = vmatpush1.msra.mxu0 0.0
        %2794 = vmatprep.subr.mxu0 0.0
        %2795 = vmatpush1.msra.mxu0 0.0
        %2796 = vmatprep.subr.mxu0 0.0
        %2797 = vmatpush1.msra.mxu0 0.0
        %2798 = vmatprep.subr.mxu0 0.0
        %2799 = vmatpush1.msra.mxu0 0.0
        %2800 = vmatprep.mubr.f32.mxu0 0.0
        %2801 = vmatmul.mubr.f32.gmra.mrb[0].mxu0 %v2316
        %v2802 = vpop.f32.mrb[0].mxu0
        %v2803 = vadd.f32 %v2728, %v2802
        %v2804 = vpop.f32.mrb[0].mxu0
        %2805 = vmatprep.mubr.f32.mxu0 0.0
        %2806 = vmatmul.mubr.f32.gmra.mrb[0].mxu0 %v2338
        %v2807 = vpop.f32.mrb[0].mxu0
        %v2808 = vadd.f32 %v2733, %v2807
        %v2809 = vpop.f32.mrb[0].mxu0
        %2810 = vdwg.mxu0
        %v2811 = vadd.f32 %v2054, %v2803
        %v2812 = vadd.f32 %v2059, %v2808
        %v2813 = vld [vmem:[%s653] sm:$0xf8]
        %v2814 = vld [vmem:[%s653 + $0x8] sm:$0xf8]
        %v2815 = vld [vmem:[%s653 + $0x10] sm:$0xf8]
        %v2816 = vld [vmem:[%s653 + $0x18] sm:$0xf8]
        %v2817 = vld [vmem:[%s653 + $0x20] sm:$0xf8]
        %v2818 = vld [vmem:[%s653 + $0x28] sm:$0xf8]
        %v2819 = vld [vmem:[%s653 + $0x30] sm:$0xf8]
        %v2820 = vld [vmem:[%s653 + $0x38] sm:$0xf8]
        %v2821 = vld [vmem:[%s653 + $0x40] sm:$0xf8]
        %v2822 = vld [vmem:[%s653 + $0x48] sm:$0xf8]
        %v2823 = vld [vmem:[%s653 + $0x50] sm:$0xf8]
        %v2824 = vld [vmem:[%s653 + $0xb0] sm:$0x7]
        %v2825 = vld [vmem:[%s653 + $0xb8] sm:$0x7]
        %v2826 = vld [vmem:[%s653 + $0xc0] sm:$0x7]
        %v2827 = vld [vmem:[%s653 + $0xc8] sm:$0x7]
        %v2828 = vld [vmem:[%s653 + $0xd0] sm:$0x7]
        %v2829 = vld [vmem:[%s653 + $0xd8] sm:$0x7]
        %v2830 = vld [vmem:[%s653 + $0xe0] sm:$0x7]
        %v2831 = vld [vmem:[%s653 + $0xe8] sm:$0x7]
        %v2832 = vld [vmem:[%s653 + $0xf0] sm:$0x7]
        %v2833 = vld [vmem:[%s653 + $0xf8] sm:$0x7]
        %v2834 = vld [vmem:[%s653 + $0x100] sm:$0x7]
        %s2835 = scalar_lea.vmem %s1, 4224
        %v2836 = vld [vmem:[%s2835] sm:$0xff]
        %v2837 = vld [vmem:[%s2835 + $0x8] sm:$0xff]
        %v2838 = vld [vmem:[%s2835 + $0x10] sm:$0xff]
        %v2839 = vld [vmem:[%s2835 + $0x18] sm:$0xff]
        %v2840 = vld [vmem:[%s2835 + $0x20] sm:$0xff]
        %v2841 = vld [vmem:[%s2835 + $0x28] sm:$0xff]
        %v2842 = vld [vmem:[%s2835 + $0x30] sm:$0xff]
        %v2843 = vld [vmem:[%s2835 + $0x38] sm:$0xff]
        %v2844 = vld [vmem:[%s2835 + $0x40] sm:$0xff]
        %v2845 = vld [vmem:[%s2835 + $0x48] sm:$0xff]
        %v2846 = vld [vmem:[%s2835 + $0x50] sm:$0xff]
        %v2847 = vld [vmem:[%s2835 + $0x58] sm:$0xff]
        %v2848 = vld [vmem:[%s2835 + $0x60] sm:$0xff]
        %v2849 = vld [vmem:[%s2835 + $0x68] sm:$0xff]
        %v2850 = vld [vmem:[%s2835 + $0x70] sm:$0xff]
        %v2851 = vld [vmem:[%s2835 + $0x78] sm:$0xff]
        %v2852 = vld [vmem:[%s2835 + $0x80] sm:$0xff]
        %v2853 = vld [vmem:[%s2835 + $0x88] sm:$0xff]
        %v2854 = vld [vmem:[%s2835 + $0x90] sm:$0xff]
        %v2855 = vld [vmem:[%s2835 + $0x98] sm:$0xff]
        %v2856 = vld [vmem:[%s2835 + $0xa0] sm:$0xff]
        %v2857 = vld [vmem:[%s2835 + $0xa8] sm:$0xff]
        %v2858 = vld [vmem:[%s2835 + $0xb0] sm:$0xff]
        %v2859 = vld [vmem:[%s2835 + $0xb8] sm:$0xff]
        %v2860 = vld [vmem:[%s2835 + $0xc0] sm:$0xff]
        %v2861 = vld [vmem:[%s2835 + $0xc8] sm:$0xff]
        %v2862 = vld [vmem:[%s2835 + $0xd0] sm:$0xff]
        %v2863 = vld [vmem:[%s2835 + $0xd8] sm:$0xff]
        %v2864 = vld [vmem:[%s2835 + $0xe0] sm:$0xff]
        %v2865 = vld [vmem:[%s2835 + $0xe8] sm:$0xff]
        %v2866 = vld [vmem:[%s2835 + $0xf0] sm:$0xff]
        %v2867 = vld [vmem:[%s2835 + $0xf8] sm:$0xff]
        %v2868 = vld [vmem:[%s2835 + $0x100] sm:$0xff]
        %v2869 = vld [vmem:[%s2835 + $0x108] sm:$0xff]
        %v2870 = vld [vmem:[%s2835 + $0x110] sm:$0xff]
        %v2871 = vld [vmem:[%s2835 + $0x118] sm:$0xff]
        %v2872 = vld [vmem:[%s2835 + $0x120] sm:$0xff]
        %v2873 = vld [vmem:[%s2835 + $0x128] sm:$0xff]
        %v2874 = vld [vmem:[%s2835 + $0x130] sm:$0xff]
        %v2875 = vld [vmem:[%s2835 + $0x138] sm:$0xff]
        %v2876 = vld [vmem:[%s2835 + $0x140] sm:$0xff]
        %v2877 = vld [vmem:[%s2835 + $0x148] sm:$0xff]
        %v2878 = vld [vmem:[%s2835 + $0x150] sm:$0xff]
        %v2879 = vld [vmem:[%s2835 + $0x158] sm:$0xff]
        %v2880 = vld [vmem:[%s2835 + $0x160] sm:$0xff]
        %v2881 = vld [vmem:[%s2835 + $0x168] sm:$0xff]
        %v2882 = vld [vmem:[%s2835 + $0x170] sm:$0xff]
        %v2883 = vld [vmem:[%s2835 + $0x178] sm:$0xff]
        %v2884 = vld [vmem:[%s2835 + $0x180] sm:$0xff]
        %v2885 = vld [vmem:[%s2835 + $0x188] sm:$0xff]
        %v2886 = vld [vmem:[%s2835 + $0x190] sm:$0xff]
        %v2887 = vld [vmem:[%s2835 + $0x198] sm:$0xff]
        %v2888 = vld [vmem:[%s2835 + $0x1a0] sm:$0xff]
        %v2889 = vld [vmem:[%s2835 + $0x1a8] sm:$0xff]
        %v2890 = vld [vmem:[%s2835 + $0x1b0] sm:$0xff]
        %v2891 = vld [vmem:[%s2835 + $0x1b8] sm:$0xff]
        %v2892 = vld [vmem:[%s2835 + $0x1c0] sm:$0xff]
        %v2893 = vld [vmem:[%s2835 + $0x1c8] sm:$0xff]
        %v2894 = vld [vmem:[%s2835 + $0x1d0] sm:$0xff]
        %v2895 = vld [vmem:[%s2835 + $0x1d8] sm:$0xff]
        %v2896 = vld [vmem:[%s2835 + $0x1e0] sm:$0xff]
        %v2897 = vld [vmem:[%s2835 + $0x1e8] sm:$0xff]
        %v2898 = vld [vmem:[%s2835 + $0x1f0] sm:$0xff]
        %v2899 = vld [vmem:[%s2835 + $0x1f8] sm:$0xff]
        %v2900 = vld [vmem:[%s2835 + $0x200] sm:$0xff]
        %v2901 = vld [vmem:[%s2835 + $0x208] sm:$0xff]
        %v2902 = vld [vmem:[%s2835 + $0x210] sm:$0xff]
        %v2903 = vld [vmem:[%s2835 + $0x218] sm:$0xff]
        %v2904 = vld [vmem:[%s2835 + $0x220] sm:$0xff]
        %v2905 = vld [vmem:[%s2835 + $0x228] sm:$0xff]
        %v2906 = vld [vmem:[%s2835 + $0x230] sm:$0xff]
        %v2907 = vld [vmem:[%s2835 + $0x238] sm:$0xff]
        %v2908 = vld [vmem:[%s2835 + $0x240] sm:$0xff]
        %v2909 = vld [vmem:[%s2835 + $0x248] sm:$0xff]
        %v2910 = vld [vmem:[%s2835 + $0x250] sm:$0xff]
        %v2911 = vld [vmem:[%s2835 + $0x258] sm:$0xff]
        %v2912 = vld [vmem:[%s2835 + $0x260] sm:$0xff]
        %v2913 = vld [vmem:[%s2835 + $0x268] sm:$0xff]
        %v2914 = vld [vmem:[%s2835 + $0x270] sm:$0xff]
        %v2915 = vld [vmem:[%s2835 + $0x278] sm:$0xff]
        %v2916 = vld [vmem:[%s2835 + $0x280] sm:$0xff]
        %v2917 = vld [vmem:[%s2835 + $0x288] sm:$0xff]
        %v2918 = vld [vmem:[%s2835 + $0x290] sm:$0xff]
        %v2919 = vld [vmem:[%s2835 + $0x298] sm:$0xff]
        %v2920 = vld [vmem:[%s2835 + $0x2a0] sm:$0xff]
        %v2921 = vld [vmem:[%s2835 + $0x2a8] sm:$0xff]
        %v2922 = vld [vmem:[%s2835 + $0x2b0] sm:$0xff]
        %v2923 = vld [vmem:[%s2835 + $0x2b8] sm:$0xff]
        %v2924 = vld [vmem:[%s2835 + $0x2c0] sm:$0xff]
        %v2925 = vld [vmem:[%s2835 + $0x2c8] sm:$0xff]
        %v2926 = vld [vmem:[%s2835 + $0x2d0] sm:$0xff]
        %v2927 = vld [vmem:[%s2835 + $0x2d8] sm:$0xff]
        %v2928 = vld [vmem:[%s2835 + $0x2e0] sm:$0xff]
        %v2929 = vld [vmem:[%s2835 + $0x2e8] sm:$0xff]
        %v2930 = vld [vmem:[%s2835 + $0x2f0] sm:$0xff]
        %v2931 = vld [vmem:[%s2835 + $0x2f8] sm:$0xff]
        %v2932 = vld [vmem:[%s2835 + $0x300] sm:$0xff]
        %v2933 = vld [vmem:[%s2835 + $0x308] sm:$0xff]
        %v2934 = vld [vmem:[%s2835 + $0x310] sm:$0xff]
        %v2935 = vld [vmem:[%s2835 + $0x318] sm:$0xff]
        %v2936 = vld [vmem:[%s2835 + $0x320] sm:$0xff]
        %v2937 = vld [vmem:[%s2835 + $0x328] sm:$0xff]
        %v2938 = vld [vmem:[%s2835 + $0x330] sm:$0xff]
        %v2939 = vld [vmem:[%s2835 + $0x338] sm:$0xff]
        %v2940 = vld [vmem:[%s2835 + $0x340] sm:$0xff]
        %v2941 = vld [vmem:[%s2835 + $0x348] sm:$0xff]
        %v2942 = vld [vmem:[%s2835 + $0x350] sm:$0xff]
        %v2943 = vld [vmem:[%s2835 + $0x358] sm:$0xff]
        %v2944 = vld [vmem:[%s2835 + $0x360] sm:$0xff]
        %v2945 = vld [vmem:[%s2835 + $0x368] sm:$0xff]
        %v2946 = vld [vmem:[%s2835 + $0x370] sm:$0xff]
        %v2947 = vld [vmem:[%s2835 + $0x378] sm:$0xff]
        %v2948 = vld [vmem:[%s2835 + $0x380] sm:$0xff]
        %v2949 = vld [vmem:[%s2835 + $0x388] sm:$0xff]
        %v2950 = vld [vmem:[%s2835 + $0x390] sm:$0xff]
        %v2951 = vld [vmem:[%s2835 + $0x398] sm:$0xff]
        %v2952 = vld [vmem:[%s2835 + $0x3a0] sm:$0xff]
        %v2953 = vld [vmem:[%s2835 + $0x3a8] sm:$0xff]
        %v2954 = vld [vmem:[%s2835 + $0x3b0] sm:$0xff]
        %v2955 = vld [vmem:[%s2835 + $0x3b8] sm:$0xff]
        %v2956 = vld [vmem:[%s2835 + $0x3c0] sm:$0xff]
        %v2957 = vld [vmem:[%s2835 + $0x3c8] sm:$0xff]
        %v2958 = vld [vmem:[%s2835 + $0x3d0] sm:$0xff]
        %v2959 = vld [vmem:[%s2835 + $0x3d8] sm:$0xff]
        %v2960 = vld [vmem:[%s2835 + $0x3e0] sm:$0xff]
        %v2961 = vld [vmem:[%s2835 + $0x3e8] sm:$0xff]
        %v2962 = vld [vmem:[%s2835 + $0x3f0] sm:$0xff]
        %v2963 = vld [vmem:[%s2835 + $0x3f8] sm:$0xff]
        %v2964 = vld [vmem:[%s2835 + $0x400] sm:$0xff]
        %v2965 = vld [vmem:[%s2835 + $0x408] sm:$0xff]
        %v2966 = vld [vmem:[%s2835 + $0x410] sm:$0xff]
        %v2967 = vld [vmem:[%s2835 + $0x418] sm:$0xff]
        %v2968 = vld [vmem:[%s2835 + $0x420] sm:$0xff]
        %v2969 = vld [vmem:[%s2835 + $0x428] sm:$0xff]
        %v2970 = vld [vmem:[%s2835 + $0x430] sm:$0xff]
        %v2971 = vld [vmem:[%s2835 + $0x438] sm:$0xff]
        %v2972 = vld [vmem:[%s2835 + $0x440] sm:$0xff]
        %v2973 = vld [vmem:[%s2835 + $0x448] sm:$0xff]
        %v2974 = vld [vmem:[%s2835 + $0x450] sm:$0xff]
        %v2975 = vld [vmem:[%s2835 + $0x458] sm:$0xff]
        %v2976 = vld [vmem:[%s2835 + $0x460] sm:$0xff]
        %v2977 = vld [vmem:[%s2835 + $0x468] sm:$0xff]
        %v2978 = vld [vmem:[%s2835 + $0x470] sm:$0xff]
        %v2979 = vld [vmem:[%s2835 + $0x478] sm:$0xff]
        %v2980 = vld [vmem:[%s2835 + $0x480] sm:$0xff]
        %v2981 = vld [vmem:[%s2835 + $0x488] sm:$0xff]
        %v2982 = vld [vmem:[%s2835 + $0x490] sm:$0xff]
        %v2983 = vld [vmem:[%s2835 + $0x498] sm:$0xff]
        %v2984 = vld [vmem:[%s2835 + $0x4a0] sm:$0xff]
        %v2985 = vld [vmem:[%s2835 + $0x4a8] sm:$0xff]
        %v2986 = vld [vmem:[%s2835 + $0x4b0] sm:$0xff]
        %v2987 = vld [vmem:[%s2835 + $0x4b8] sm:$0xff]
        %v2988 = vld [vmem:[%s2835 + $0x4c0] sm:$0xff]
        %v2989 = vld [vmem:[%s2835 + $0x4c8] sm:$0xff]
        %v2990 = vld [vmem:[%s2835 + $0x4d0] sm:$0xff]
        %v2991 = vld [vmem:[%s2835 + $0x4d8] sm:$0xff]
        %v2992 = vld [vmem:[%s2835 + $0x4e0] sm:$0xff]
        %v2993 = vld [vmem:[%s2835 + $0x4e8] sm:$0xff]
        %v2994 = vld [vmem:[%s2835 + $0x4f0] sm:$0xff]
        %v2995 = vld [vmem:[%s2835 + $0x4f8] sm:$0xff]
        %v2996 = vld [vmem:[%s2835 + $0x500] sm:$0xff]
        %v2997 = vld [vmem:[%s2835 + $0x508] sm:$0xff]
        %v2998 = vld [vmem:[%s2835 + $0x510] sm:$0xff]
        %v2999 = vld [vmem:[%s2835 + $0x518] sm:$0xff]
        %v3000 = vld [vmem:[%s2835 + $0x520] sm:$0xff]
        %v3001 = vld [vmem:[%s2835 + $0x528] sm:$0xff]
        %v3002 = vld [vmem:[%s2835 + $0x530] sm:$0xff]
        %v3003 = vld [vmem:[%s2835 + $0x538] sm:$0xff]
        %v3004 = vld [vmem:[%s2835 + $0x540] sm:$0xff]
        %v3005 = vld [vmem:[%s2835 + $0x548] sm:$0xff]
        %v3006 = vld [vmem:[%s2835 + $0x550] sm:$0xff]
        %v3007 = vld [vmem:[%s2835 + $0x558] sm:$0xff]
        %v3008 = vld [vmem:[%s2835 + $0x560] sm:$0xff]
        %v3009 = vld [vmem:[%s2835 + $0x568] sm:$0xff]
        %v3010 = vld [vmem:[%s2835 + $0x570] sm:$0xff]
        %v3011 = vld [vmem:[%s2835 + $0x578] sm:$0xff]
        %vm3034 = vcmask 1044480
        %v3035 = vrot.slane %v2813, 3
        %v3036 = vrot.slane %v665, 3
        %v3037 = vsel %vm3034, %v3035, %v3036
        %v3038 = vrot.slane %v2814, 3
        %v3039 = vrot.slane %v666, 3
        %v3040 = vsel %vm3034, %v3038, %v3039
        %v3041 = vrot.slane %v2815, 3
        %v3042 = vrot.slane %v667, 3
        %v3043 = vsel %vm3034, %v3041, %v3042
        %v3044 = vrot.slane %v2816, 3
        %v3045 = vrot.slane %v668, 3
        %v3046 = vsel %vm3034, %v3044, %v3045
        %v3047 = vrot.slane %v2817, 3
        %v3048 = vrot.slane %v669, 3
        %v3049 = vsel %vm3034, %v3047, %v3048
        %v3050 = vrot.slane %v2818, 3
        %v3051 = vrot.slane %v670, 3
        %v3052 = vsel %vm3034, %v3050, %v3051
        %v3053 = vrot.slane %v2819, 3
        %v3054 = vrot.slane %v671, 3
        %v3055 = vsel %vm3034, %v3053, %v3054
        %v3056 = vrot.slane %v2820, 3
        %v3057 = vrot.slane %v672, 3
        %v3058 = vsel %vm3034, %v3056, %v3057
        %v3059 = vrot.slane %v2821, 3
        %v3060 = vrot.slane %v673, 3
        %v3061 = vsel %vm3034, %v3059, %v3060
        %v3062 = vrot.slane %v2822, 3
        %v3063 = vrot.slane %v674, 3
        %v3064 = vsel %vm3034, %v3062, %v3063
        %v3065 = vrot.slane %v2823, 3
        %v3066 = vrot.slane %v675, 3
        %v3067 = vsel %vm3034, %v3065, %v3066
        %v3068 = vrot.slane %v2824, 3
        %v3069 = vsel %vm3034, %v3036, %v3068
        %v3070 = vrot.slane %v2825, 3
        %v3071 = vsel %vm3034, %v3039, %v3070
        %v3072 = vrot.slane %v2826, 3
        %v3073 = vsel %vm3034, %v3042, %v3072
        %v3074 = vrot.slane %v2827, 3
        %v3075 = vsel %vm3034, %v3045, %v3074
        %v3076 = vrot.slane %v2828, 3
        %v3077 = vsel %vm3034, %v3048, %v3076
        %v3078 = vrot.slane %v2829, 3
        %v3079 = vsel %vm3034, %v3051, %v3078
        %v3080 = vrot.slane %v2830, 3
        %v3081 = vsel %vm3034, %v3054, %v3080
        %v3082 = vrot.slane %v2831, 3
        %v3083 = vsel %vm3034, %v3057, %v3082
        %v3084 = vrot.slane %v2832, 3
        %v3085 = vsel %vm3034, %v3060, %v3084
        %v3086 = vrot.slane %v2833, 3
        %v3087 = vsel %vm3034, %v3063, %v3086
        %v3088 = vrot.slane %v2834, 3
        %v3089 = vsel %vm3034, %v3066, %v3088
        %3112 = vmatprep.subr.mxu0 0.0
        %3113 = vmatpush1.msra.mxu0 %v2836
        %3114 = vmatprep.subr.mxu0 0.0
        %3115 = vmatpush1.msra.mxu0 %v2837
        %3116 = vmatprep.subr.mxu0 0.0
        %3117 = vmatpush1.msra.mxu0 %v2838
        %3118 = vmatprep.subr.mxu0 0.0
        %3119 = vmatpush1.msra.mxu0 %v2839
        %3120 = vmatprep.subr.mxu0 0.0
        %3121 = vmatpush1.msra.mxu0 %v2840
        %3122 = vmatprep.subr.mxu0 0.0
        %3123 = vmatpush1.msra.mxu0 %v2841
        %3124 = vmatprep.subr.mxu0 0.0
        %3125 = vmatpush1.msra.mxu0 %v2842
        %3126 = vmatprep.subr.mxu0 0.0
        %3127 = vmatpush1.msra.mxu0 %v2843
        %3128 = vmatprep.subr.mxu0 0.0
        %3129 = vmatpush1.msra.mxu0 %v2844
        %3130 = vmatprep.subr.mxu0 0.0
        %3131 = vmatpush1.msra.mxu0 %v2845
        %3132 = vmatprep.subr.mxu0 0.0
        %3133 = vmatpush1.msra.mxu0 %v2846
        %3134 = vmatprep.subr.mxu0 0.0
        %3135 = vmatpush1.msra.mxu0 %v2847
        %3136 = vmatprep.subr.mxu0 0.0
        %3137 = vmatpush1.msra.mxu0 %v2848
        %3138 = vmatprep.subr.mxu0 0.0
        %3139 = vmatpush1.msra.mxu0 %v2849
        %3140 = vmatprep.subr.mxu0 0.0
        %3141 = vmatpush1.msra.mxu0 %v2850
        %3142 = vmatprep.subr.mxu0 0.0
        %3143 = vmatpush1.msra.mxu0 %v2851
        %3144 = vmatprep.subr.mxu0 0.0
        %3145 = vmatpush1.msra.mxu0 %v2852
        %3146 = vmatprep.subr.mxu0 0.0
        %3147 = vmatpush1.msra.mxu0 %v2853
        %3148 = vmatprep.subr.mxu0 0.0
        %3149 = vmatpush1.msra.mxu0 %v2854
        %3150 = vmatprep.subr.mxu0 0.0
        %3151 = vmatpush1.msra.mxu0 %v2855
        %3152 = vmatprep.subr.mxu0 0.0
        %3153 = vmatpush1.msra.mxu0 %v2856
        %3154 = vmatprep.subr.mxu0 0.0
        %3155 = vmatpush1.msra.mxu0 %v2857
        %3156 = vmatprep.subr.mxu0 0.0
        %3157 = vmatpush1.msra.mxu0 %v2858
        %3158 = vmatprep.subr.mxu0 0.0
        %3159 = vmatpush1.msra.mxu0 %v2859
        %3160 = vmatprep.subr.mxu0 0.0
        %3161 = vmatpush1.msra.mxu0 %v2860
        %3162 = vmatprep.subr.mxu0 0.0
        %3163 = vmatpush1.msra.mxu0 %v2861
        %3164 = vmatprep.subr.mxu0 0.0
        %3165 = vmatpush1.msra.mxu0 %v2862
        %3166 = vmatprep.subr.mxu0 0.0
        %3167 = vmatpush1.msra.mxu0 %v2863
        %3168 = vmatprep.subr.mxu0 0.0
        %3169 = vmatpush1.msra.mxu0 %v2864
        %3170 = vmatprep.subr.mxu0 0.0
        %3171 = vmatpush1.msra.mxu0 %v2865
        %3172 = vmatprep.subr.mxu0 0.0
        %3173 = vmatpush1.msra.mxu0 %v2866
        %3174 = vmatprep.subr.mxu0 0.0
        %3175 = vmatpush1.msra.mxu0 %v2867
        %3176 = vmatprep.mubr.f32.mxu0 %v3040
        %3177 = vmatmul.mubr.f32.gmra.mrb[0].mxu0 %v3037
        %v3178 = vpop.f32.mrb[0].mxu0
        %v3179 = vadd.f32 0.0, %v3178
        %v3180 = vpop.f32.mrb[0].mxu0
        %3181 = vmatprep.mubr.f32.mxu0 %v3071
        %3182 = vmatmul.mubr.f32.gmra.mrb[0].mxu0 %v3069
        %v3183 = vpop.f32.mrb[0].mxu0
        %v3184 = vadd.f32 0.0, %v3183
        %v3185 = vpop.f32.mrb[0].mxu0
        %3186 = vdwg.mxu0
        %3187 = vmatprep.subr.mxu0 0.0
        %3188 = vmatpush1.msra.mxu0 %v2868
        %3189 = vmatprep.subr.mxu0 0.0
        %3190 = vmatpush1.msra.mxu0 %v2869
        %3191 = vmatprep.subr.mxu0 0.0
        %3192 = vmatpush1.msra.mxu0 %v2870
        %3193 = vmatprep.subr.mxu0 0.0
        %3194 = vmatpush1.msra.mxu0 %v2871
        %3195 = vmatprep.subr.mxu0 0.0
        %3196 = vmatpush1.msra.mxu0 %v2872
        %3197 = vmatprep.subr.mxu0 0.0
        %3198 = vmatpush1.msra.mxu0 %v2873
        %3199 = vmatprep.subr.mxu0 0.0
        %3200 = vmatpush1.msra.mxu0 %v2874
        %3201 = vmatprep.subr.mxu0 0.0
        %3202 = vmatpush1.msra.mxu0 %v2875
        %3203 = vmatprep.subr.mxu0 0.0
        %3204 = vmatpush1.msra.mxu0 %v2876
        %3205 = vmatprep.subr.mxu0 0.0
        %3206 = vmatpush1.msra.mxu0 %v2877
        %3207 = vmatprep.subr.mxu0 0.0
        %3208 = vmatpush1.msra.mxu0 %v2878
        %3209 = vmatprep.subr.mxu0 0.0
        %3210 = vmatpush1.msra.mxu0 %v2879
        %3211 = vmatprep.subr.mxu0 0.0
        %3212 = vmatpush1.msra.mxu0 %v2880
        %3213 = vmatprep.subr.mxu0 0.0
        %3214 = vmatpush1.msra.mxu0 %v2881
        %3215 = vmatprep.subr.mxu0 0.0
        %3216 = vmatpush1.msra.mxu0 %v2882
        %3217 = vmatprep.subr.mxu0 0.0
        %3218 = vmatpush1.msra.mxu0 %v2883
        %3219 = vmatprep.subr.mxu0 0.0
        %3220 = vmatpush1.msra.mxu0 %v2884
        %3221 = vmatprep.subr.mxu0 0.0
        %3222 = vmatpush1.msra.mxu0 %v2885
        %3223 = vmatprep.subr.mxu0 0.0
        %3224 = vmatpush1.msra.mxu0 %v2886
        %3225 = vmatprep.subr.mxu0 0.0
        %3226 = vmatpush1.msra.mxu0 %v2887
        %3227 = vmatprep.subr.mxu0 0.0
        %3228 = vmatpush1.msra.mxu0 %v2888
        %3229 = vmatprep.subr.mxu0 0.0
        %3230 = vmatpush1.msra.mxu0 %v2889
        %3231 = vmatprep.subr.mxu0 0.0
        %3232 = vmatpush1.msra.mxu0 %v2890
        %3233 = vmatprep.subr.mxu0 0.0
        %3234 = vmatpush1.msra.mxu0 %v2891
        %3235 = vmatprep.subr.mxu0 0.0
        %3236 = vmatpush1.msra.mxu0 %v2892
        %3237 = vmatprep.subr.mxu0 0.0
        %3238 = vmatpush1.msra.mxu0 %v2893
        %3239 = vmatprep.subr.mxu0 0.0
        %3240 = vmatpush1.msra.mxu0 %v2894
        %3241 = vmatprep.subr.mxu0 0.0
        %3242 = vmatpush1.msra.mxu0 %v2895
        %3243 = vmatprep.subr.mxu0 0.0
        %3244 = vmatpush1.msra.mxu0 %v2896
        %3245 = vmatprep.subr.mxu0 0.0
        %3246 = vmatpush1.msra.mxu0 %v2897
        %3247 = vmatprep.subr.mxu0 0.0
        %3248 = vmatpush1.msra.mxu0 %v2898
        %3249 = vmatprep.subr.mxu0 0.0
        %3250 = vmatpush1.msra.mxu0 %v2899
        %3251 = vmatprep.mubr.f32.mxu0 %v3046
        %3252 = vmatmul.mubr.f32.gmra.mrb[0].mxu0 %v3043
        %v3253 = vpop.f32.mrb[0].mxu0
        %v3254 = vadd.f32 %v3179, %v3253
        %v3255 = vpop.f32.mrb[0].mxu0
        %3256 = vmatprep.mubr.f32.mxu0 %v3075
        %3257 = vmatmul.mubr.f32.gmra.mrb[0].mxu0 %v3073
        %v3258 = vpop.f32.mrb[0].mxu0
        %v3259 = vadd.f32 %v3184, %v3258
        %v3260 = vpop.f32.mrb[0].mxu0
        %3261 = vdwg.mxu0
        %3262 = vmatprep.subr.mxu0 0.0
        %3263 = vmatpush1.msra.mxu0 %v2900
        %3264 = vmatprep.subr.mxu0 0.0
        %3265 = vmatpush1.msra.mxu0 %v2901
        %3266 = vmatprep.subr.mxu0 0.0
        %3267 = vmatpush1.msra.mxu0 %v2902
        %3268 = vmatprep.subr.mxu0 0.0
        %3269 = vmatpush1.msra.mxu0 %v2903
        %3270 = vmatprep.subr.mxu0 0.0
        %3271 = vmatpush1.msra.mxu0 %v2904
        %3272 = vmatprep.subr.mxu0 0.0
        %3273 = vmatpush1.msra.mxu0 %v2905
        %3274 = vmatprep.subr.mxu0 0.0
        %3275 = vmatpush1.msra.mxu0 %v2906
        %3276 = vmatprep.subr.mxu0 0.0
        %3277 = vmatpush1.msra.mxu0 %v2907
        %3278 = vmatprep.subr.mxu0 0.0
        %3279 = vmatpush1.msra.mxu0 %v2908
        %3280 = vmatprep.subr.mxu0 0.0
        %3281 = vmatpush1.msra.mxu0 %v2909
        %3282 = vmatprep.subr.mxu0 0.0
        %3283 = vmatpush1.msra.mxu0 %v2910
        %3284 = vmatprep.subr.mxu0 0.0
        %3285 = vmatpush1.msra.mxu0 %v2911
        %3286 = vmatprep.subr.mxu0 0.0
        %3287 = vmatpush1.msra.mxu0 %v2912
        %3288 = vmatprep.subr.mxu0 0.0
        %3289 = vmatpush1.msra.mxu0 %v2913
        %3290 = vmatprep.subr.mxu0 0.0
        %3291 = vmatpush1.msra.mxu0 %v2914
        %3292 = vmatprep.subr.mxu0 0.0
        %3293 = vmatpush1.msra.mxu0 %v2915
        %3294 = vmatprep.subr.mxu0 0.0
        %3295 = vmatpush1.msra.mxu0 %v2916
        %3296 = vmatprep.subr.mxu0 0.0
        %3297 = vmatpush1.msra.mxu0 %v2917
        %3298 = vmatprep.subr.mxu0 0.0
        %3299 = vmatpush1.msra.mxu0 %v2918
        %3300 = vmatprep.subr.mxu0 0.0
        %3301 = vmatpush1.msra.mxu0 %v2919
        %3302 = vmatprep.subr.mxu0 0.0
        %3303 = vmatpush1.msra.mxu0 %v2920
        %3304 = vmatprep.subr.mxu0 0.0
        %3305 = vmatpush1.msra.mxu0 %v2921
        %3306 = vmatprep.subr.mxu0 0.0
        %3307 = vmatpush1.msra.mxu0 %v2922
        %3308 = vmatprep.subr.mxu0 0.0
        %3309 = vmatpush1.msra.mxu0 %v2923
        %3310 = vmatprep.subr.mxu0 0.0
        %3311 = vmatpush1.msra.mxu0 %v2924
        %3312 = vmatprep.subr.mxu0 0.0
        %3313 = vmatpush1.msra.mxu0 %v2925
        %3314 = vmatprep.subr.mxu0 0.0
        %3315 = vmatpush1.msra.mxu0 %v2926
        %3316 = vmatprep.subr.mxu0 0.0
        %3317 = vmatpush1.msra.mxu0 %v2927
        %3318 = vmatprep.subr.mxu0 0.0
        %3319 = vmatpush1.msra.mxu0 %v2928
        %3320 = vmatprep.subr.mxu0 0.0
        %3321 = vmatpush1.msra.mxu0 %v2929
        %3322 = vmatprep.subr.mxu0 0.0
        %3323 = vmatpush1.msra.mxu0 %v2930
        %3324 = vmatprep.subr.mxu0 0.0
        %3325 = vmatpush1.msra.mxu0 %v2931
        %3326 = vmatprep.mubr.f32.mxu0 %v3052
        %3327 = vmatmul.mubr.f32.gmra.mrb[0].mxu0 %v3049
        %v3328 = vpop.f32.mrb[0].mxu0
        %v3329 = vadd.f32 %v3254, %v3328
        %v3330 = vpop.f32.mrb[0].mxu0
        %3331 = vmatprep.mubr.f32.mxu0 %v3079
        %3332 = vmatmul.mubr.f32.gmra.mrb[0].mxu0 %v3077
        %v3333 = vpop.f32.mrb[0].mxu0
        %v3334 = vadd.f32 %v3259, %v3333
        %v3335 = vpop.f32.mrb[0].mxu0
        %3336 = vdwg.mxu0
        %3337 = vmatprep.subr.mxu0 0.0
        %3338 = vmatpush1.msra.mxu0 %v2932
        %3339 = vmatprep.subr.mxu0 0.0
        %3340 = vmatpush1.msra.mxu0 %v2933
        %3341 = vmatprep.subr.mxu0 0.0
        %3342 = vmatpush1.msra.mxu0 %v2934
        %3343 = vmatprep.subr.mxu0 0.0
        %3344 = vmatpush1.msra.mxu0 %v2935
        %3345 = vmatprep.subr.mxu0 0.0
        %3346 = vmatpush1.msra.mxu0 %v2936
        %3347 = vmatprep.subr.mxu0 0.0
        %3348 = vmatpush1.msra.mxu0 %v2937
        %3349 = vmatprep.subr.mxu0 0.0
        %3350 = vmatpush1.msra.mxu0 %v2938
        %3351 = vmatprep.subr.mxu0 0.0
        %3352 = vmatpush1.msra.mxu0 %v2939
        %3353 = vmatprep.subr.mxu0 0.0
        %3354 = vmatpush1.msra.mxu0 %v2940
        %3355 = vmatprep.subr.mxu0 0.0
        %3356 = vmatpush1.msra.mxu0 %v2941
        %3357 = vmatprep.subr.mxu0 0.0
        %3358 = vmatpush1.msra.mxu0 %v2942
        %3359 = vmatprep.subr.mxu0 0.0
        %3360 = vmatpush1.msra.mxu0 %v2943
        %3361 = vmatprep.subr.mxu0 0.0
        %3362 = vmatpush1.msra.mxu0 %v2944
        %3363 = vmatprep.subr.mxu0 0.0
        %3364 = vmatpush1.msra.mxu0 %v2945
        %3365 = vmatprep.subr.mxu0 0.0
        %3366 = vmatpush1.msra.mxu0 %v2946
        %3367 = vmatprep.subr.mxu0 0.0
        %3368 = vmatpush1.msra.mxu0 %v2947
        %3369 = vmatprep.subr.mxu0 0.0
        %3370 = vmatpush1.msra.mxu0 %v2948
        %3371 = vmatprep.subr.mxu0 0.0
        %3372 = vmatpush1.msra.mxu0 %v2949
        %3373 = vmatprep.subr.mxu0 0.0
        %3374 = vmatpush1.msra.mxu0 %v2950
        %3375 = vmatprep.subr.mxu0 0.0
        %3376 = vmatpush1.msra.mxu0 %v2951
        %3377 = vmatprep.subr.mxu0 0.0
        %3378 = vmatpush1.msra.mxu0 %v2952
        %3379 = vmatprep.subr.mxu0 0.0
        %3380 = vmatpush1.msra.mxu0 %v2953
        %3381 = vmatprep.subr.mxu0 0.0
        %3382 = vmatpush1.msra.mxu0 %v2954
        %3383 = vmatprep.subr.mxu0 0.0
        %3384 = vmatpush1.msra.mxu0 %v2955
        %3385 = vmatprep.subr.mxu0 0.0
        %3386 = vmatpush1.msra.mxu0 %v2956
        %3387 = vmatprep.subr.mxu0 0.0
        %3388 = vmatpush1.msra.mxu0 %v2957
        %3389 = vmatprep.subr.mxu0 0.0
        %3390 = vmatpush1.msra.mxu0 %v2958
        %3391 = vmatprep.subr.mxu0 0.0
        %3392 = vmatpush1.msra.mxu0 %v2959
        %3393 = vmatprep.subr.mxu0 0.0
        %3394 = vmatpush1.msra.mxu0 %v2960
        %3395 = vmatprep.subr.mxu0 0.0
        %3396 = vmatpush1.msra.mxu0 %v2961
        %3397 = vmatprep.subr.mxu0 0.0
        %3398 = vmatpush1.msra.mxu0 %v2962
        %3399 = vmatprep.subr.mxu0 0.0
        %3400 = vmatpush1.msra.mxu0 %v2963
        %3401 = vmatprep.mubr.f32.mxu0 %v3058
        %3402 = vmatmul.mubr.f32.gmra.mrb[0].mxu0 %v3055
        %v3403 = vpop.f32.mrb[0].mxu0
        %v3404 = vadd.f32 %v3329, %v3403
        %v3405 = vpop.f32.mrb[0].mxu0
        %3406 = vmatprep.mubr.f32.mxu0 %v3083
        %3407 = vmatmul.mubr.f32.gmra.mrb[0].mxu0 %v3081
        %v3408 = vpop.f32.mrb[0].mxu0
        %v3409 = vadd.f32 %v3334, %v3408
        %v3410 = vpop.f32.mrb[0].mxu0
        %3411 = vdwg.mxu0
        %3412 = vmatprep.subr.mxu0 0.0
        %3413 = vmatpush1.msra.mxu0 %v2964
        %3414 = vmatprep.subr.mxu0 0.0
        %3415 = vmatpush1.msra.mxu0 %v2965
        %3416 = vmatprep.subr.mxu0 0.0
        %3417 = vmatpush1.msra.mxu0 %v2966
        %3418 = vmatprep.subr.mxu0 0.0
        %3419 = vmatpush1.msra.mxu0 %v2967
        %3420 = vmatprep.subr.mxu0 0.0
        %3421 = vmatpush1.msra.mxu0 %v2968
        %3422 = vmatprep.subr.mxu0 0.0
        %3423 = vmatpush1.msra.mxu0 %v2969
        %3424 = vmatprep.subr.mxu0 0.0
        %3425 = vmatpush1.msra.mxu0 %v2970
        %3426 = vmatprep.subr.mxu0 0.0
        %3427 = vmatpush1.msra.mxu0 %v2971
        %3428 = vmatprep.subr.mxu0 0.0
        %3429 = vmatpush1.msra.mxu0 %v2972
        %3430 = vmatprep.subr.mxu0 0.0
        %3431 = vmatpush1.msra.mxu0 %v2973
        %3432 = vmatprep.subr.mxu0 0.0
        %3433 = vmatpush1.msra.mxu0 %v2974
        %3434 = vmatprep.subr.mxu0 0.0
        %3435 = vmatpush1.msra.mxu0 %v2975
        %3436 = vmatprep.subr.mxu0 0.0
        %3437 = vmatpush1.msra.mxu0 %v2976
        %3438 = vmatprep.subr.mxu0 0.0
        %3439 = vmatpush1.msra.mxu0 %v2977
        %3440 = vmatprep.subr.mxu0 0.0
        %3441 = vmatpush1.msra.mxu0 %v2978
        %3442 = vmatprep.subr.mxu0 0.0
        %3443 = vmatpush1.msra.mxu0 %v2979
        %3444 = vmatprep.subr.mxu0 0.0
        %3445 = vmatpush1.msra.mxu0 %v2980
        %3446 = vmatprep.subr.mxu0 0.0
        %3447 = vmatpush1.msra.mxu0 %v2981
        %3448 = vmatprep.subr.mxu0 0.0
        %3449 = vmatpush1.msra.mxu0 %v2982
        %3450 = vmatprep.subr.mxu0 0.0
        %3451 = vmatpush1.msra.mxu0 %v2983
        %3452 = vmatprep.subr.mxu0 0.0
        %3453 = vmatpush1.msra.mxu0 %v2984
        %3454 = vmatprep.subr.mxu0 0.0
        %3455 = vmatpush1.msra.mxu0 %v2985
        %3456 = vmatprep.subr.mxu0 0.0
        %3457 = vmatpush1.msra.mxu0 %v2986
        %3458 = vmatprep.subr.mxu0 0.0
        %3459 = vmatpush1.msra.mxu0 %v2987
        %3460 = vmatprep.subr.mxu0 0.0
        %3461 = vmatpush1.msra.mxu0 %v2988
        %3462 = vmatprep.subr.mxu0 0.0
        %3463 = vmatpush1.msra.mxu0 %v2989
        %3464 = vmatprep.subr.mxu0 0.0
        %3465 = vmatpush1.msra.mxu0 %v2990
        %3466 = vmatprep.subr.mxu0 0.0
        %3467 = vmatpush1.msra.mxu0 %v2991
        %3468 = vmatprep.subr.mxu0 0.0
        %3469 = vmatpush1.msra.mxu0 %v2992
        %3470 = vmatprep.subr.mxu0 0.0
        %3471 = vmatpush1.msra.mxu0 %v2993
        %3472 = vmatprep.subr.mxu0 0.0
        %3473 = vmatpush1.msra.mxu0 %v2994
        %3474 = vmatprep.subr.mxu0 0.0
        %3475 = vmatpush1.msra.mxu0 %v2995
        %3476 = vmatprep.mubr.f32.mxu0 %v3064
        %3477 = vmatmul.mubr.f32.gmra.mrb[0].mxu0 %v3061
        %v3478 = vpop.f32.mrb[0].mxu0
        %v3479 = vadd.f32 %v3404, %v3478
        %v3480 = vpop.f32.mrb[0].mxu0
        %3481 = vmatprep.mubr.f32.mxu0 %v3087
        %3482 = vmatmul.mubr.f32.gmra.mrb[0].mxu0 %v3085
        %v3483 = vpop.f32.mrb[0].mxu0
        %v3484 = vadd.f32 %v3409, %v3483
        %v3485 = vpop.f32.mrb[0].mxu0
        %3486 = vdwg.mxu0
        %3487 = vmatprep.subr.mxu0 0.0
        %3488 = vmatpush1.msra.mxu0 %v2996
        %3489 = vmatprep.subr.mxu0 0.0
        %3490 = vmatpush1.msra.mxu0 %v2997
        %3491 = vmatprep.subr.mxu0 0.0
        %3492 = vmatpush1.msra.mxu0 %v2998
        %3493 = vmatprep.subr.mxu0 0.0
        %3494 = vmatpush1.msra.mxu0 %v2999
        %3495 = vmatprep.subr.mxu0 0.0
        %3496 = vmatpush1.msra.mxu0 %v3000
        %3497 = vmatprep.subr.mxu0 0.0
        %3498 = vmatpush1.msra.mxu0 %v3001
        %3499 = vmatprep.subr.mxu0 0.0
        %3500 = vmatpush1.msra.mxu0 %v3002
        %3501 = vmatprep.subr.mxu0 0.0
        %3502 = vmatpush1.msra.mxu0 %v3003
        %3503 = vmatprep.subr.mxu0 0.0
        %3504 = vmatpush1.msra.mxu0 %v3004
        %3505 = vmatprep.subr.mxu0 0.0
        %3506 = vmatpush1.msra.mxu0 %v3005
        %3507 = vmatprep.subr.mxu0 0.0
        %3508 = vmatpush1.msra.mxu0 %v3006
        %3509 = vmatprep.subr.mxu0 0.0
        %3510 = vmatpush1.msra.mxu0 %v3007
        %3511 = vmatprep.subr.mxu0 0.0
        %3512 = vmatpush1.msra.mxu0 %v3008
        %3513 = vmatprep.subr.mxu0 0.0
        %3514 = vmatpush1.msra.mxu0 %v3009
        %3515 = vmatprep.subr.mxu0 0.0
        %3516 = vmatpush1.msra.mxu0 %v3010
        %3517 = vmatprep.subr.mxu0 0.0
        %3518 = vmatpush1.msra.mxu0 %v3011
        %3519 = vmatprep.subr.mxu0 0.0
        %3520 = vmatpush1.msra.mxu0 0.0
        %3521 = vmatprep.subr.mxu0 0.0
        %3522 = vmatpush1.msra.mxu0 0.0
        %3523 = vmatprep.subr.mxu0 0.0
        %3524 = vmatpush1.msra.mxu0 0.0
        %3525 = vmatprep.subr.mxu0 0.0
        %3526 = vmatpush1.msra.mxu0 0.0
        %3527 = vmatprep.subr.mxu0 0.0
        %3528 = vmatpush1.msra.mxu0 0.0
        %3529 = vmatprep.subr.mxu0 0.0
        %3530 = vmatpush1.msra.mxu0 0.0
        %3531 = vmatprep.subr.mxu0 0.0
        %3532 = vmatpush1.msra.mxu0 0.0
        %3533 = vmatprep.subr.mxu0 0.0
        %3534 = vmatpush1.msra.mxu0 0.0
        %3535 = vmatprep.subr.mxu0 0.0
        %3536 = vmatpush1.msra.mxu0 0.0
        %3537 = vmatprep.subr.mxu0 0.0
        %3538 = vmatpush1.msra.mxu0 0.0
        %3539 = vmatprep.subr.mxu0 0.0
        %3540 = vmatpush1.msra.mxu0 0.0
        %3541 = vmatprep.subr.mxu0 0.0
        %3542 = vmatpush1.msra.mxu0 0.0
        %3543 = vmatprep.subr.mxu0 0.0
        %3544 = vmatpush1.msra.mxu0 0.0
        %3545 = vmatprep.subr.mxu0 0.0
        %3546 = vmatpush1.msra.mxu0 0.0
        %3547 = vmatprep.subr.mxu0 0.0
        %3548 = vmatpush1.msra.mxu0 0.0
        %3549 = vmatprep.subr.mxu0 0.0
        %3550 = vmatpush1.msra.mxu0 0.0
        %3551 = vmatprep.mubr.f32.mxu0 0.0
        %3552 = vmatmul.mubr.f32.gmra.mrb[0].mxu0 %v3067
        %v3553 = vpop.f32.mrb[0].mxu0
        %v3554 = vadd.f32 %v3479, %v3553
        %v3555 = vpop.f32.mrb[0].mxu0
        %3556 = vmatprep.mubr.f32.mxu0 0.0
        %3557 = vmatmul.mubr.f32.gmra.mrb[0].mxu0 %v3089
        %v3558 = vpop.f32.mrb[0].mxu0
        %v3559 = vadd.f32 %v3484, %v3558
        %v3560 = vpop.f32.mrb[0].mxu0
        %3561 = vdwg.mxu0
        %v3562 = vadd.f32 %v2811, %v3554
        %v3563 = vadd.f32 %v2812, %v3559
        %v3564 = vld [vmem:[%s653] sm:$0xf0]
        %v3565 = vld [vmem:[%s653 + $0x8] sm:$0xf0]
        %v3566 = vld [vmem:[%s653 + $0x10] sm:$0xf0]
        %v3567 = vld [vmem:[%s653 + $0x18] sm:$0xf0]
        %v3568 = vld [vmem:[%s653 + $0x20] sm:$0xf0]
        %v3569 = vld [vmem:[%s653 + $0x28] sm:$0xf0]
        %v3570 = vld [vmem:[%s653 + $0x30] sm:$0xf0]
        %v3571 = vld [vmem:[%s653 + $0x38] sm:$0xf0]
        %v3572 = vld [vmem:[%s653 + $0x40] sm:$0xf0]
        %v3573 = vld [vmem:[%s653 + $0x48] sm:$0xf0]
        %v3574 = vld [vmem:[%s653 + $0x50] sm:$0xf0]
        %v3575 = vld [vmem:[%s653 + $0xb0] sm:$0xf]
        %v3576 = vld [vmem:[%s653 + $0xb8] sm:$0xf]
        %v3577 = vld [vmem:[%s653 + $0xc0] sm:$0xf]
        %v3578 = vld [vmem:[%s653 + $0xc8] sm:$0xf]
        %v3579 = vld [vmem:[%s653 + $0xd0] sm:$0xf]
        %v3580 = vld [vmem:[%s653 + $0xd8] sm:$0xf]
        %v3581 = vld [vmem:[%s653 + $0xe0] sm:$0xf]
        %v3582 = vld [vmem:[%s653 + $0xe8] sm:$0xf]
        %v3583 = vld [vmem:[%s653 + $0xf0] sm:$0xf]
        %v3584 = vld [vmem:[%s653 + $0xf8] sm:$0xf]
        %v3585 = vld [vmem:[%s653 + $0x100] sm:$0xf]
        %s3586 = scalar_lea.vmem %s1, 5632
        %v3587 = vld [vmem:[%s3586] sm:$0xff]
        %v3588 = vld [vmem:[%s3586 + $0x8] sm:$0xff]
        %v3589 = vld [vmem:[%s3586 + $0x10] sm:$0xff]
        %v3590 = vld [vmem:[%s3586 + $0x18] sm:$0xff]
        %v3591 = vld [vmem:[%s3586 + $0x20] sm:$0xff]
        %v3592 = vld [vmem:[%s3586 + $0x28] sm:$0xff]
        %v3593 = vld [vmem:[%s3586 + $0x30] sm:$0xff]
        %v3594 = vld [vmem:[%s3586 + $0x38] sm:$0xff]
        %v3595 = vld [vmem:[%s3586 + $0x40] sm:$0xff]
        %v3596 = vld [vmem:[%s3586 + $0x48] sm:$0xff]
        %v3597 = vld [vmem:[%s3586 + $0x50] sm:$0xff]
        %v3598 = vld [vmem:[%s3586 + $0x58] sm:$0xff]
        %v3599 = vld [vmem:[%s3586 + $0x60] sm:$0xff]
        %v3600 = vld [vmem:[%s3586 + $0x68] sm:$0xff]
        %v3601 = vld [vmem:[%s3586 + $0x70] sm:$0xff]
        %v3602 = vld [vmem:[%s3586 + $0x78] sm:$0xff]
        %v3603 = vld [vmem:[%s3586 + $0x80] sm:$0xff]
        %v3604 = vld [vmem:[%s3586 + $0x88] sm:$0xff]
        %v3605 = vld [vmem:[%s3586 + $0x90] sm:$0xff]
        %v3606 = vld [vmem:[%s3586 + $0x98] sm:$0xff]
        %v3607 = vld [vmem:[%s3586 + $0xa0] sm:$0xff]
        %v3608 = vld [vmem:[%s3586 + $0xa8] sm:$0xff]
        %v3609 = vld [vmem:[%s3586 + $0xb0] sm:$0xff]
        %v3610 = vld [vmem:[%s3586 + $0xb8] sm:$0xff]
        %v3611 = vld [vmem:[%s3586 + $0xc0] sm:$0xff]
        %v3612 = vld [vmem:[%s3586 + $0xc8] sm:$0xff]
        %v3613 = vld [vmem:[%s3586 + $0xd0] sm:$0xff]
        %v3614 = vld [vmem:[%s3586 + $0xd8] sm:$0xff]
        %v3615 = vld [vmem:[%s3586 + $0xe0] sm:$0xff]
        %v3616 = vld [vmem:[%s3586 + $0xe8] sm:$0xff]
        %v3617 = vld [vmem:[%s3586 + $0xf0] sm:$0xff]
        %v3618 = vld [vmem:[%s3586 + $0xf8] sm:$0xff]
        %v3619 = vld [vmem:[%s3586 + $0x100] sm:$0xff]
        %v3620 = vld [vmem:[%s3586 + $0x108] sm:$0xff]
        %v3621 = vld [vmem:[%s3586 + $0x110] sm:$0xff]
        %v3622 = vld [vmem:[%s3586 + $0x118] sm:$0xff]
        %v3623 = vld [vmem:[%s3586 + $0x120] sm:$0xff]
        %v3624 = vld [vmem:[%s3586 + $0x128] sm:$0xff]
        %v3625 = vld [vmem:[%s3586 + $0x130] sm:$0xff]
        %v3626 = vld [vmem:[%s3586 + $0x138] sm:$0xff]
        %v3627 = vld [vmem:[%s3586 + $0x140] sm:$0xff]
        %v3628 = vld [vmem:[%s3586 + $0x148] sm:$0xff]
        %v3629 = vld [vmem:[%s3586 + $0x150] sm:$0xff]
        %v3630 = vld [vmem:[%s3586 + $0x158] sm:$0xff]
        %v3631 = vld [vmem:[%s3586 + $0x160] sm:$0xff]
        %v3632 = vld [vmem:[%s3586 + $0x168] sm:$0xff]
        %v3633 = vld [vmem:[%s3586 + $0x170] sm:$0xff]
        %v3634 = vld [vmem:[%s3586 + $0x178] sm:$0xff]
        %v3635 = vld [vmem:[%s3586 + $0x180] sm:$0xff]
        %v3636 = vld [vmem:[%s3586 + $0x188] sm:$0xff]
        %v3637 = vld [vmem:[%s3586 + $0x190] sm:$0xff]
        %v3638 = vld [vmem:[%s3586 + $0x198] sm:$0xff]
        %v3639 = vld [vmem:[%s3586 + $0x1a0] sm:$0xff]
        %v3640 = vld [vmem:[%s3586 + $0x1a8] sm:$0xff]
        %v3641 = vld [vmem:[%s3586 + $0x1b0] sm:$0xff]
        %v3642 = vld [vmem:[%s3586 + $0x1b8] sm:$0xff]
        %v3643 = vld [vmem:[%s3586 + $0x1c0] sm:$0xff]
        %v3644 = vld [vmem:[%s3586 + $0x1c8] sm:$0xff]
        %v3645 = vld [vmem:[%s3586 + $0x1d0] sm:$0xff]
        %v3646 = vld [vmem:[%s3586 + $0x1d8] sm:$0xff]
        %v3647 = vld [vmem:[%s3586 + $0x1e0] sm:$0xff]
        %v3648 = vld [vmem:[%s3586 + $0x1e8] sm:$0xff]
        %v3649 = vld [vmem:[%s3586 + $0x1f0] sm:$0xff]
        %v3650 = vld [vmem:[%s3586 + $0x1f8] sm:$0xff]
        %v3651 = vld [vmem:[%s3586 + $0x200] sm:$0xff]
        %v3652 = vld [vmem:[%s3586 + $0x208] sm:$0xff]
        %v3653 = vld [vmem:[%s3586 + $0x210] sm:$0xff]
        %v3654 = vld [vmem:[%s3586 + $0x218] sm:$0xff]
        %v3655 = vld [vmem:[%s3586 + $0x220] sm:$0xff]
        %v3656 = vld [vmem:[%s3586 + $0x228] sm:$0xff]
        %v3657 = vld [vmem:[%s3586 + $0x230] sm:$0xff]
        %v3658 = vld [vmem:[%s3586 + $0x238] sm:$0xff]
        %v3659 = vld [vmem:[%s3586 + $0x240] sm:$0xff]
        %v3660 = vld [vmem:[%s3586 + $0x248] sm:$0xff]
        %v3661 = vld [vmem:[%s3586 + $0x250] sm:$0xff]
        %v3662 = vld [vmem:[%s3586 + $0x258] sm:$0xff]
        %v3663 = vld [vmem:[%s3586 + $0x260] sm:$0xff]
        %v3664 = vld [vmem:[%s3586 + $0x268] sm:$0xff]
        %v3665 = vld [vmem:[%s3586 + $0x270] sm:$0xff]
        %v3666 = vld [vmem:[%s3586 + $0x278] sm:$0xff]
        %v3667 = vld [vmem:[%s3586 + $0x280] sm:$0xff]
        %v3668 = vld [vmem:[%s3586 + $0x288] sm:$0xff]
        %v3669 = vld [vmem:[%s3586 + $0x290] sm:$0xff]
        %v3670 = vld [vmem:[%s3586 + $0x298] sm:$0xff]
        %v3671 = vld [vmem:[%s3586 + $0x2a0] sm:$0xff]
        %v3672 = vld [vmem:[%s3586 + $0x2a8] sm:$0xff]
        %v3673 = vld [vmem:[%s3586 + $0x2b0] sm:$0xff]
        %v3674 = vld [vmem:[%s3586 + $0x2b8] sm:$0xff]
        %v3675 = vld [vmem:[%s3586 + $0x2c0] sm:$0xff]
        %v3676 = vld [vmem:[%s3586 + $0x2c8] sm:$0xff]
        %v3677 = vld [vmem:[%s3586 + $0x2d0] sm:$0xff]
        %v3678 = vld [vmem:[%s3586 + $0x2d8] sm:$0xff]
        %v3679 = vld [vmem:[%s3586 + $0x2e0] sm:$0xff]
        %v3680 = vld [vmem:[%s3586 + $0x2e8] sm:$0xff]
        %v3681 = vld [vmem:[%s3586 + $0x2f0] sm:$0xff]
        %v3682 = vld [vmem:[%s3586 + $0x2f8] sm:$0xff]
        %v3683 = vld [vmem:[%s3586 + $0x300] sm:$0xff]
        %v3684 = vld [vmem:[%s3586 + $0x308] sm:$0xff]
        %v3685 = vld [vmem:[%s3586 + $0x310] sm:$0xff]
        %v3686 = vld [vmem:[%s3586 + $0x318] sm:$0xff]
        %v3687 = vld [vmem:[%s3586 + $0x320] sm:$0xff]
        %v3688 = vld [vmem:[%s3586 + $0x328] sm:$0xff]
        %v3689 = vld [vmem:[%s3586 + $0x330] sm:$0xff]
        %v3690 = vld [vmem:[%s3586 + $0x338] sm:$0xff]
        %v3691 = vld [vmem:[%s3586 + $0x340] sm:$0xff]
        %v3692 = vld [vmem:[%s3586 + $0x348] sm:$0xff]
        %v3693 = vld [vmem:[%s3586 + $0x350] sm:$0xff]
        %v3694 = vld [vmem:[%s3586 + $0x358] sm:$0xff]
        %v3695 = vld [vmem:[%s3586 + $0x360] sm:$0xff]
        %v3696 = vld [vmem:[%s3586 + $0x368] sm:$0xff]
        %v3697 = vld [vmem:[%s3586 + $0x370] sm:$0xff]
        %v3698 = vld [vmem:[%s3586 + $0x378] sm:$0xff]
        %v3699 = vld [vmem:[%s3586 + $0x380] sm:$0xff]
        %v3700 = vld [vmem:[%s3586 + $0x388] sm:$0xff]
        %v3701 = vld [vmem:[%s3586 + $0x390] sm:$0xff]
        %v3702 = vld [vmem:[%s3586 + $0x398] sm:$0xff]
        %v3703 = vld [vmem:[%s3586 + $0x3a0] sm:$0xff]
        %v3704 = vld [vmem:[%s3586 + $0x3a8] sm:$0xff]
        %v3705 = vld [vmem:[%s3586 + $0x3b0] sm:$0xff]
        %v3706 = vld [vmem:[%s3586 + $0x3b8] sm:$0xff]
        %v3707 = vld [vmem:[%s3586 + $0x3c0] sm:$0xff]
        %v3708 = vld [vmem:[%s3586 + $0x3c8] sm:$0xff]
        %v3709 = vld [vmem:[%s3586 + $0x3d0] sm:$0xff]
        %v3710 = vld [vmem:[%s3586 + $0x3d8] sm:$0xff]
        %v3711 = vld [vmem:[%s3586 + $0x3e0] sm:$0xff]
        %v3712 = vld [vmem:[%s3586 + $0x3e8] sm:$0xff]
        %v3713 = vld [vmem:[%s3586 + $0x3f0] sm:$0xff]
        %v3714 = vld [vmem:[%s3586 + $0x3f8] sm:$0xff]
        %v3715 = vld [vmem:[%s3586 + $0x400] sm:$0xff]
        %v3716 = vld [vmem:[%s3586 + $0x408] sm:$0xff]
        %v3717 = vld [vmem:[%s3586 + $0x410] sm:$0xff]
        %v3718 = vld [vmem:[%s3586 + $0x418] sm:$0xff]
        %v3719 = vld [vmem:[%s3586 + $0x420] sm:$0xff]
        %v3720 = vld [vmem:[%s3586 + $0x428] sm:$0xff]
        %v3721 = vld [vmem:[%s3586 + $0x430] sm:$0xff]
        %v3722 = vld [vmem:[%s3586 + $0x438] sm:$0xff]
        %v3723 = vld [vmem:[%s3586 + $0x440] sm:$0xff]
        %v3724 = vld [vmem:[%s3586 + $0x448] sm:$0xff]
        %v3725 = vld [vmem:[%s3586 + $0x450] sm:$0xff]
        %v3726 = vld [vmem:[%s3586 + $0x458] sm:$0xff]
        %v3727 = vld [vmem:[%s3586 + $0x460] sm:$0xff]
        %v3728 = vld [vmem:[%s3586 + $0x468] sm:$0xff]
        %v3729 = vld [vmem:[%s3586 + $0x470] sm:$0xff]
        %v3730 = vld [vmem:[%s3586 + $0x478] sm:$0xff]
        %v3731 = vld [vmem:[%s3586 + $0x480] sm:$0xff]
        %v3732 = vld [vmem:[%s3586 + $0x488] sm:$0xff]
        %v3733 = vld [vmem:[%s3586 + $0x490] sm:$0xff]
        %v3734 = vld [vmem:[%s3586 + $0x498] sm:$0xff]
        %v3735 = vld [vmem:[%s3586 + $0x4a0] sm:$0xff]
        %v3736 = vld [vmem:[%s3586 + $0x4a8] sm:$0xff]
        %v3737 = vld [vmem:[%s3586 + $0x4b0] sm:$0xff]
        %v3738 = vld [vmem:[%s3586 + $0x4b8] sm:$0xff]
        %v3739 = vld [vmem:[%s3586 + $0x4c0] sm:$0xff]
        %v3740 = vld [vmem:[%s3586 + $0x4c8] sm:$0xff]
        %v3741 = vld [vmem:[%s3586 + $0x4d0] sm:$0xff]
        %v3742 = vld [vmem:[%s3586 + $0x4d8] sm:$0xff]
        %v3743 = vld [vmem:[%s3586 + $0x4e0] sm:$0xff]
        %v3744 = vld [vmem:[%s3586 + $0x4e8] sm:$0xff]
        %v3745 = vld [vmem:[%s3586 + $0x4f0] sm:$0xff]
        %v3746 = vld [vmem:[%s3586 + $0x4f8] sm:$0xff]
        %v3747 = vld [vmem:[%s3586 + $0x500] sm:$0xff]
        %v3748 = vld [vmem:[%s3586 + $0x508] sm:$0xff]
        %v3749 = vld [vmem:[%s3586 + $0x510] sm:$0xff]
        %v3750 = vld [vmem:[%s3586 + $0x518] sm:$0xff]
        %v3751 = vld [vmem:[%s3586 + $0x520] sm:$0xff]
        %v3752 = vld [vmem:[%s3586 + $0x528] sm:$0xff]
        %v3753 = vld [vmem:[%s3586 + $0x530] sm:$0xff]
        %v3754 = vld [vmem:[%s3586 + $0x538] sm:$0xff]
        %v3755 = vld [vmem:[%s3586 + $0x540] sm:$0xff]
        %v3756 = vld [vmem:[%s3586 + $0x548] sm:$0xff]
        %v3757 = vld [vmem:[%s3586 + $0x550] sm:$0xff]
        %v3758 = vld [vmem:[%s3586 + $0x558] sm:$0xff]
        %v3759 = vld [vmem:[%s3586 + $0x560] sm:$0xff]
        %v3760 = vld [vmem:[%s3586 + $0x568] sm:$0xff]
        %v3761 = vld [vmem:[%s3586 + $0x570] sm:$0xff]
        %v3762 = vld [vmem:[%s3586 + $0x578] sm:$0xff]
        %vm3785 = vcmask 1043456
        %v3786 = vrot.slane %v3564, 4
        %v3787 = vrot.slane %v665, 4
        %v3788 = vsel %vm3785, %v3786, %v3787
        %v3789 = vrot.slane %v3565, 4
        %v3790 = vrot.slane %v666, 4
        %v3791 = vsel %vm3785, %v3789, %v3790
        %v3792 = vrot.slane %v3566, 4
        %v3793 = vrot.slane %v667, 4
        %v3794 = vsel %vm3785, %v3792, %v3793
        %v3795 = vrot.slane %v3567, 4
        %v3796 = vrot.slane %v668, 4
        %v3797 = vsel %vm3785, %v3795, %v3796
        %v3798 = vrot.slane %v3568, 4
        %v3799 = vrot.slane %v669, 4
        %v3800 = vsel %vm3785, %v3798, %v3799
        %v3801 = vrot.slane %v3569, 4
        %v3802 = vrot.slane %v670, 4
        %v3803 = vsel %vm3785, %v3801, %v3802
        %v3804 = vrot.slane %v3570, 4
        %v3805 = vrot.slane %v671, 4
        %v3806 = vsel %vm3785, %v3804, %v3805
        %v3807 = vrot.slane %v3571, 4
        %v3808 = vrot.slane %v672, 4
        %v3809 = vsel %vm3785, %v3807, %v3808
        %v3810 = vrot.slane %v3572, 4
        %v3811 = vrot.slane %v673, 4
        %v3812 = vsel %vm3785, %v3810, %v3811
        %v3813 = vrot.slane %v3573, 4
        %v3814 = vrot.slane %v674, 4
        %v3815 = vsel %vm3785, %v3813, %v3814
        %v3816 = vrot.slane %v3574, 4
        %v3817 = vrot.slane %v675, 4
        %v3818 = vsel %vm3785, %v3816, %v3817
        %v3819 = vrot.slane %v3575, 4
        %v3820 = vsel %vm3785, %v3787, %v3819
        %v3821 = vrot.slane %v3576, 4
        %v3822 = vsel %vm3785, %v3790, %v3821
        %v3823 = vrot.slane %v3577, 4
        %v3824 = vsel %vm3785, %v3793, %v3823
        %v3825 = vrot.slane %v3578, 4
        %v3826 = vsel %vm3785, %v3796, %v3825
        %v3827 = vrot.slane %v3579, 4
        %v3828 = vsel %vm3785, %v3799, %v3827
        %v3829 = vrot.slane %v3580, 4
        %v3830 = vsel %vm3785, %v3802, %v3829
        %v3831 = vrot.slane %v3581, 4
        %v3832 = vsel %vm3785, %v3805, %v3831
        %v3833 = vrot.slane %v3582, 4
        %v3834 = vsel %vm3785, %v3808, %v3833
        %v3835 = vrot.slane %v3583, 4
        %v3836 = vsel %vm3785, %v3811, %v3835
        %v3837 = vrot.slane %v3584, 4
        %v3838 = vsel %vm3785, %v3814, %v3837
        %v3839 = vrot.slane %v3585, 4
        %v3840 = vsel %vm3785, %v3817, %v3839
        %3863 = vmatprep.subr.mxu0 0.0
        %3864 = vmatpush1.msra.mxu0 %v3587
        %3865 = vmatprep.subr.mxu0 0.0
        %3866 = vmatpush1.msra.mxu0 %v3588
        %3867 = vmatprep.subr.mxu0 0.0
        %3868 = vmatpush1.msra.mxu0 %v3589
        %3869 = vmatprep.subr.mxu0 0.0
        %3870 = vmatpush1.msra.mxu0 %v3590
        %3871 = vmatprep.subr.mxu0 0.0
        %3872 = vmatpush1.msra.mxu0 %v3591
        %3873 = vmatprep.subr.mxu0 0.0
        %3874 = vmatpush1.msra.mxu0 %v3592
        %3875 = vmatprep.subr.mxu0 0.0
        %3876 = vmatpush1.msra.mxu0 %v3593
        %3877 = vmatprep.subr.mxu0 0.0
        %3878 = vmatpush1.msra.mxu0 %v3594
        %3879 = vmatprep.subr.mxu0 0.0
        %3880 = vmatpush1.msra.mxu0 %v3595
        %3881 = vmatprep.subr.mxu0 0.0
        %3882 = vmatpush1.msra.mxu0 %v3596
        %3883 = vmatprep.subr.mxu0 0.0
        %3884 = vmatpush1.msra.mxu0 %v3597
        %3885 = vmatprep.subr.mxu0 0.0
        %3886 = vmatpush1.msra.mxu0 %v3598
        %3887 = vmatprep.subr.mxu0 0.0
        %3888 = vmatpush1.msra.mxu0 %v3599
        %3889 = vmatprep.subr.mxu0 0.0
        %3890 = vmatpush1.msra.mxu0 %v3600
        %3891 = vmatprep.subr.mxu0 0.0
        %3892 = vmatpush1.msra.mxu0 %v3601
        %3893 = vmatprep.subr.mxu0 0.0
        %3894 = vmatpush1.msra.mxu0 %v3602
        %3895 = vmatprep.subr.mxu0 0.0
        %3896 = vmatpush1.msra.mxu0 %v3603
        %3897 = vmatprep.subr.mxu0 0.0
        %3898 = vmatpush1.msra.mxu0 %v3604
        %3899 = vmatprep.subr.mxu0 0.0
        %3900 = vmatpush1.msra.mxu0 %v3605
        %3901 = vmatprep.subr.mxu0 0.0
        %3902 = vmatpush1.msra.mxu0 %v3606
        %3903 = vmatprep.subr.mxu0 0.0
        %3904 = vmatpush1.msra.mxu0 %v3607
        %3905 = vmatprep.subr.mxu0 0.0
        %3906 = vmatpush1.msra.mxu0 %v3608
        %3907 = vmatprep.subr.mxu0 0.0
        %3908 = vmatpush1.msra.mxu0 %v3609
        %3909 = vmatprep.subr.mxu0 0.0
        %3910 = vmatpush1.msra.mxu0 %v3610
        %3911 = vmatprep.subr.mxu0 0.0
        %3912 = vmatpush1.msra.mxu0 %v3611
        %3913 = vmatprep.subr.mxu0 0.0
        %3914 = vmatpush1.msra.mxu0 %v3612
        %3915 = vmatprep.subr.mxu0 0.0
        %3916 = vmatpush1.msra.mxu0 %v3613
        %3917 = vmatprep.subr.mxu0 0.0
        %3918 = vmatpush1.msra.mxu0 %v3614
        %3919 = vmatprep.subr.mxu0 0.0
        %3920 = vmatpush1.msra.mxu0 %v3615
        %3921 = vmatprep.subr.mxu0 0.0
        %3922 = vmatpush1.msra.mxu0 %v3616
        %3923 = vmatprep.subr.mxu0 0.0
        %3924 = vmatpush1.msra.mxu0 %v3617
        %3925 = vmatprep.subr.mxu0 0.0
        %3926 = vmatpush1.msra.mxu0 %v3618
        %3927 = vmatprep.mubr.f32.mxu0 %v3791
        %3928 = vmatmul.mubr.f32.gmra.mrb[0].mxu0 %v3788
        %v3929 = vpop.f32.mrb[0].mxu0
        %v3930 = vadd.f32 0.0, %v3929
        %v3931 = vpop.f32.mrb[0].mxu0
        %3932 = vmatprep.mubr.f32.mxu0 %v3822
        %3933 = vmatmul.mubr.f32.gmra.mrb[0].mxu0 %v3820
        %v3934 = vpop.f32.mrb[0].mxu0
        %v3935 = vadd.f32 0.0, %v3934
        %v3936 = vpop.f32.mrb[0].mxu0
        %3937 = vdwg.mxu0
        %3938 = vmatprep.subr.mxu0 0.0
        %3939 = vmatpush1.msra.mxu0 %v3619
        %3940 = vmatprep.subr.mxu0 0.0
        %3941 = vmatpush1.msra.mxu0 %v3620
        %3942 = vmatprep.subr.mxu0 0.0
        %3943 = vmatpush1.msra.mxu0 %v3621
        %3944 = vmatprep.subr.mxu0 0.0
        %3945 = vmatpush1.msra.mxu0 %v3622
        %3946 = vmatprep.subr.mxu0 0.0
        %3947 = vmatpush1.msra.mxu0 %v3623
        %3948 = vmatprep.subr.mxu0 0.0
        %3949 = vmatpush1.msra.mxu0 %v3624
        %3950 = vmatprep.subr.mxu0 0.0
        %3951 = vmatpush1.msra.mxu0 %v3625
        %3952 = vmatprep.subr.mxu0 0.0
        %3953 = vmatpush1.msra.mxu0 %v3626
        %3954 = vmatprep.subr.mxu0 0.0
        %3955 = vmatpush1.msra.mxu0 %v3627
        %3956 = vmatprep.subr.mxu0 0.0
        %3957 = vmatpush1.msra.mxu0 %v3628
        %3958 = vmatprep.subr.mxu0 0.0
        %3959 = vmatpush1.msra.mxu0 %v3629
        %3960 = vmatprep.subr.mxu0 0.0
        %3961 = vmatpush1.msra.mxu0 %v3630
        %3962 = vmatprep.subr.mxu0 0.0
        %3963 = vmatpush1.msra.mxu0 %v3631
        %3964 = vmatprep.subr.mxu0 0.0
        %3965 = vmatpush1.msra.mxu0 %v3632
        %3966 = vmatprep.subr.mxu0 0.0
        %3967 = vmatpush1.msra.mxu0 %v3633
        %3968 = vmatprep.subr.mxu0 0.0
        %3969 = vmatpush1.msra.mxu0 %v3634
        %3970 = vmatprep.subr.mxu0 0.0
        %3971 = vmatpush1.msra.mxu0 %v3635
        %3972 = vmatprep.subr.mxu0 0.0
        %3973 = vmatpush1.msra.mxu0 %v3636
        %3974 = vmatprep.subr.mxu0 0.0
        %3975 = vmatpush1.msra.mxu0 %v3637
        %3976 = vmatprep.subr.mxu0 0.0
        %3977 = vmatpush1.msra.mxu0 %v3638
        %3978 = vmatprep.subr.mxu0 0.0
        %3979 = vmatpush1.msra.mxu0 %v3639
        %3980 = vmatprep.subr.mxu0 0.0
        %3981 = vmatpush1.msra.mxu0 %v3640
        %3982 = vmatprep.subr.mxu0 0.0
        %3983 = vmatpush1.msra.mxu0 %v3641
        %3984 = vmatprep.subr.mxu0 0.0
        %3985 = vmatpush1.msra.mxu0 %v3642
        %3986 = vmatprep.subr.mxu0 0.0
        %3987 = vmatpush1.msra.mxu0 %v3643
        %3988 = vmatprep.subr.mxu0 0.0
        %3989 = vmatpush1.msra.mxu0 %v3644
        %3990 = vmatprep.subr.mxu0 0.0
        %3991 = vmatpush1.msra.mxu0 %v3645
        %3992 = vmatprep.subr.mxu0 0.0
        %3993 = vmatpush1.msra.mxu0 %v3646
        %3994 = vmatprep.subr.mxu0 0.0
        %3995 = vmatpush1.msra.mxu0 %v3647
        %3996 = vmatprep.subr.mxu0 0.0
        %3997 = vmatpush1.msra.mxu0 %v3648
        %3998 = vmatprep.subr.mxu0 0.0
        %3999 = vmatpush1.msra.mxu0 %v3649
        %4000 = vmatprep.subr.mxu0 0.0
        %4001 = vmatpush1.msra.mxu0 %v3650
        %4002 = vmatprep.mubr.f32.mxu0 %v3797
        %4003 = vmatmul.mubr.f32.gmra.mrb[0].mxu0 %v3794
        %v4004 = vpop.f32.mrb[0].mxu0
        %v4005 = vadd.f32 %v3930, %v4004
        %v4006 = vpop.f32.mrb[0].mxu0
        %4007 = vmatprep.mubr.f32.mxu0 %v3826
        %4008 = vmatmul.mubr.f32.gmra.mrb[0].mxu0 %v3824
        %v4009 = vpop.f32.mrb[0].mxu0
        %v4010 = vadd.f32 %v3935, %v4009
        %v4011 = vpop.f32.mrb[0].mxu0
        %4012 = vdwg.mxu0
        %4013 = vmatprep.subr.mxu0 0.0
        %4014 = vmatpush1.msra.mxu0 %v3651
        %4015 = vmatprep.subr.mxu0 0.0
        %4016 = vmatpush1.msra.mxu0 %v3652
        %4017 = vmatprep.subr.mxu0 0.0
        %4018 = vmatpush1.msra.mxu0 %v3653
        %4019 = vmatprep.subr.mxu0 0.0
        %4020 = vmatpush1.msra.mxu0 %v3654
        %4021 = vmatprep.subr.mxu0 0.0
        %4022 = vmatpush1.msra.mxu0 %v3655
        %4023 = vmatprep.subr.mxu0 0.0
        %4024 = vmatpush1.msra.mxu0 %v3656
        %4025 = vmatprep.subr.mxu0 0.0
        %4026 = vmatpush1.msra.mxu0 %v3657
        %4027 = vmatprep.subr.mxu0 0.0
        %4028 = vmatpush1.msra.mxu0 %v3658
        %4029 = vmatprep.subr.mxu0 0.0
        %4030 = vmatpush1.msra.mxu0 %v3659
        %4031 = vmatprep.subr.mxu0 0.0
        %4032 = vmatpush1.msra.mxu0 %v3660
        %4033 = vmatprep.subr.mxu0 0.0
        %4034 = vmatpush1.msra.mxu0 %v3661
        %4035 = vmatprep.subr.mxu0 0.0
        %4036 = vmatpush1.msra.mxu0 %v3662
        %4037 = vmatprep.subr.mxu0 0.0
        %4038 = vmatpush1.msra.mxu0 %v3663
        %4039 = vmatprep.subr.mxu0 0.0
        %4040 = vmatpush1.msra.mxu0 %v3664
        %4041 = vmatprep.subr.mxu0 0.0
        %4042 = vmatpush1.msra.mxu0 %v3665
        %4043 = vmatprep.subr.mxu0 0.0
        %4044 = vmatpush1.msra.mxu0 %v3666
        %4045 = vmatprep.subr.mxu0 0.0
        %4046 = vmatpush1.msra.mxu0 %v3667
        %4047 = vmatprep.subr.mxu0 0.0
        %4048 = vmatpush1.msra.mxu0 %v3668
        %4049 = vmatprep.subr.mxu0 0.0
        %4050 = vmatpush1.msra.mxu0 %v3669
        %4051 = vmatprep.subr.mxu0 0.0
        %4052 = vmatpush1.msra.mxu0 %v3670
        %4053 = vmatprep.subr.mxu0 0.0
        %4054 = vmatpush1.msra.mxu0 %v3671
        %4055 = vmatprep.subr.mxu0 0.0
        %4056 = vmatpush1.msra.mxu0 %v3672
        %4057 = vmatprep.subr.mxu0 0.0
        %4058 = vmatpush1.msra.mxu0 %v3673
        %4059 = vmatprep.subr.mxu0 0.0
        %4060 = vmatpush1.msra.mxu0 %v3674
        %4061 = vmatprep.subr.mxu0 0.0
        %4062 = vmatpush1.msra.mxu0 %v3675
        %4063 = vmatprep.subr.mxu0 0.0
        %4064 = vmatpush1.msra.mxu0 %v3676
        %4065 = vmatprep.subr.mxu0 0.0
        %4066 = vmatpush1.msra.mxu0 %v3677
        %4067 = vmatprep.subr.mxu0 0.0
        %4068 = vmatpush1.msra.mxu0 %v3678
        %4069 = vmatprep.subr.mxu0 0.0
        %4070 = vmatpush1.msra.mxu0 %v3679
        %4071 = vmatprep.subr.mxu0 0.0
        %4072 = vmatpush1.msra.mxu0 %v3680
        %4073 = vmatprep.subr.mxu0 0.0
        %4074 = vmatpush1.msra.mxu0 %v3681
        %4075 = vmatprep.subr.mxu0 0.0
        %4076 = vmatpush1.msra.mxu0 %v3682
        %4077 = vmatprep.mubr.f32.mxu0 %v3803
        %4078 = vmatmul.mubr.f32.gmra.mrb[0].mxu0 %v3800
        %v4079 = vpop.f32.mrb[0].mxu0
        %v4080 = vadd.f32 %v4005, %v4079
        %v4081 = vpop.f32.mrb[0].mxu0
        %4082 = vmatprep.mubr.f32.mxu0 %v3830
        %4083 = vmatmul.mubr.f32.gmra.mrb[0].mxu0 %v3828
        %v4084 = vpop.f32.mrb[0].mxu0
        %v4085 = vadd.f32 %v4010, %v4084
        %v4086 = vpop.f32.mrb[0].mxu0
        %4087 = vdwg.mxu0
        %4088 = vmatprep.subr.mxu0 0.0
        %4089 = vmatpush1.msra.mxu0 %v3683
        %4090 = vmatprep.subr.mxu0 0.0
        %4091 = vmatpush1.msra.mxu0 %v3684
        %4092 = vmatprep.subr.mxu0 0.0
        %4093 = vmatpush1.msra.mxu0 %v3685
        %4094 = vmatprep.subr.mxu0 0.0
        %4095 = vmatpush1.msra.mxu0 %v3686
        %4096 = vmatprep.subr.mxu0 0.0
        %4097 = vmatpush1.msra.mxu0 %v3687
        %4098 = vmatprep.subr.mxu0 0.0
        %4099 = vmatpush1.msra.mxu0 %v3688
        %4100 = vmatprep.subr.mxu0 0.0
        %4101 = vmatpush1.msra.mxu0 %v3689
        %4102 = vmatprep.subr.mxu0 0.0
        %4103 = vmatpush1.msra.mxu0 %v3690
        %4104 = vmatprep.subr.mxu0 0.0
        %4105 = vmatpush1.msra.mxu0 %v3691
        %4106 = vmatprep.subr.mxu0 0.0
        %4107 = vmatpush1.msra.mxu0 %v3692
        %4108 = vmatprep.subr.mxu0 0.0
        %4109 = vmatpush1.msra.mxu0 %v3693
        %4110 = vmatprep.subr.mxu0 0.0
        %4111 = vmatpush1.msra.mxu0 %v3694
        %4112 = vmatprep.subr.mxu0 0.0
        %4113 = vmatpush1.msra.mxu0 %v3695
        %4114 = vmatprep.subr.mxu0 0.0
        %4115 = vmatpush1.msra.mxu0 %v3696
        %4116 = vmatprep.subr.mxu0 0.0
        %4117 = vmatpush1.msra.mxu0 %v3697
        %4118 = vmatprep.subr.mxu0 0.0
        %4119 = vmatpush1.msra.mxu0 %v3698
        %4120 = vmatprep.subr.mxu0 0.0
        %4121 = vmatpush1.msra.mxu0 %v3699
        %4122 = vmatprep.subr.mxu0 0.0
        %4123 = vmatpush1.msra.mxu0 %v3700
        %4124 = vmatprep.subr.mxu0 0.0
        %4125 = vmatpush1.msra.mxu0 %v3701
        %4126 = vmatprep.subr.mxu0 0.0
        %4127 = vmatpush1.msra.mxu0 %v3702
        %4128 = vmatprep.subr.mxu0 0.0
        %4129 = vmatpush1.msra.mxu0 %v3703
        %4130 = vmatprep.subr.mxu0 0.0
        %4131 = vmatpush1.msra.mxu0 %v3704
        %4132 = vmatprep.subr.mxu0 0.0
        %4133 = vmatpush1.msra.mxu0 %v3705
        %4134 = vmatprep.subr.mxu0 0.0
        %4135 = vmatpush1.msra.mxu0 %v3706
        %4136 = vmatprep.subr.mxu0 0.0
        %4137 = vmatpush1.msra.mxu0 %v3707
        %4138 = vmatprep.subr.mxu0 0.0
        %4139 = vmatpush1.msra.mxu0 %v3708
        %4140 = vmatprep.subr.mxu0 0.0
        %4141 = vmatpush1.msra.mxu0 %v3709
        %4142 = vmatprep.subr.mxu0 0.0
        %4143 = vmatpush1.msra.mxu0 %v3710
        %4144 = vmatprep.subr.mxu0 0.0
        %4145 = vmatpush1.msra.mxu0 %v3711
        %4146 = vmatprep.subr.mxu0 0.0
        %4147 = vmatpush1.msra.mxu0 %v3712
        %4148 = vmatprep.subr.mxu0 0.0
        %4149 = vmatpush1.msra.mxu0 %v3713
        %4150 = vmatprep.subr.mxu0 0.0
        %4151 = vmatpush1.msra.mxu0 %v3714
        %4152 = vmatprep.mubr.f32.mxu0 %v3809
        %4153 = vmatmul.mubr.f32.gmra.mrb[0].mxu0 %v3806
        %v4154 = vpop.f32.mrb[0].mxu0
        %v4155 = vadd.f32 %v4080, %v4154
        %v4156 = vpop.f32.mrb[0].mxu0
        %4157 = vmatprep.mubr.f32.mxu0 %v3834
        %4158 = vmatmul.mubr.f32.gmra.mrb[0].mxu0 %v3832
        %v4159 = vpop.f32.mrb[0].mxu0
        %v4160 = vadd.f32 %v4085, %v4159
        %v4161 = vpop.f32.mrb[0].mxu0
        %4162 = vdwg.mxu0
        %4163 = vmatprep.subr.mxu0 0.0
        %4164 = vmatpush1.msra.mxu0 %v3715
        %4165 = vmatprep.subr.mxu0 0.0
        %4166 = vmatpush1.msra.mxu0 %v3716
        %4167 = vmatprep.subr.mxu0 0.0
        %4168 = vmatpush1.msra.mxu0 %v3717
        %4169 = vmatprep.subr.mxu0 0.0
        %4170 = vmatpush1.msra.mxu0 %v3718
        %4171 = vmatprep.subr.mxu0 0.0
        %4172 = vmatpush1.msra.mxu0 %v3719
        %4173 = vmatprep.subr.mxu0 0.0
        %4174 = vmatpush1.msra.mxu0 %v3720
        %4175 = vmatprep.subr.mxu0 0.0
        %4176 = vmatpush1.msra.mxu0 %v3721
        %4177 = vmatprep.subr.mxu0 0.0
        %4178 = vmatpush1.msra.mxu0 %v3722
        %4179 = vmatprep.subr.mxu0 0.0
        %4180 = vmatpush1.msra.mxu0 %v3723
        %4181 = vmatprep.subr.mxu0 0.0
        %4182 = vmatpush1.msra.mxu0 %v3724
        %4183 = vmatprep.subr.mxu0 0.0
        %4184 = vmatpush1.msra.mxu0 %v3725
        %4185 = vmatprep.subr.mxu0 0.0
        %4186 = vmatpush1.msra.mxu0 %v3726
        %4187 = vmatprep.subr.mxu0 0.0
        %4188 = vmatpush1.msra.mxu0 %v3727
        %4189 = vmatprep.subr.mxu0 0.0
        %4190 = vmatpush1.msra.mxu0 %v3728
        %4191 = vmatprep.subr.mxu0 0.0
        %4192 = vmatpush1.msra.mxu0 %v3729
        %4193 = vmatprep.subr.mxu0 0.0
        %4194 = vmatpush1.msra.mxu0 %v3730
        %4195 = vmatprep.subr.mxu0 0.0
        %4196 = vmatpush1.msra.mxu0 %v3731
        %4197 = vmatprep.subr.mxu0 0.0
        %4198 = vmatpush1.msra.mxu0 %v3732
        %4199 = vmatprep.subr.mxu0 0.0
        %4200 = vmatpush1.msra.mxu0 %v3733
        %4201 = vmatprep.subr.mxu0 0.0
        %4202 = vmatpush1.msra.mxu0 %v3734
        %4203 = vmatprep.subr.mxu0 0.0
        %4204 = vmatpush1.msra.mxu0 %v3735
        %4205 = vmatprep.subr.mxu0 0.0
        %4206 = vmatpush1.msra.mxu0 %v3736
        %4207 = vmatprep.subr.mxu0 0.0
        %4208 = vmatpush1.msra.mxu0 %v3737
        %4209 = vmatprep.subr.mxu0 0.0
        %4210 = vmatpush1.msra.mxu0 %v3738
        %4211 = vmatprep.subr.mxu0 0.0
        %4212 = vmatpush1.msra.mxu0 %v3739
        %4213 = vmatprep.subr.mxu0 0.0
        %4214 = vmatpush1.msra.mxu0 %v3740
        %4215 = vmatprep.subr.mxu0 0.0
        %4216 = vmatpush1.msra.mxu0 %v3741
        %4217 = vmatprep.subr.mxu0 0.0
        %4218 = vmatpush1.msra.mxu0 %v3742
        %4219 = vmatprep.subr.mxu0 0.0
        %4220 = vmatpush1.msra.mxu0 %v3743
        %4221 = vmatprep.subr.mxu0 0.0
        %4222 = vmatpush1.msra.mxu0 %v3744
        %4223 = vmatprep.subr.mxu0 0.0
        %4224 = vmatpush1.msra.mxu0 %v3745
        %4225 = vmatprep.subr.mxu0 0.0
        %4226 = vmatpush1.msra.mxu0 %v3746
        %4227 = vmatprep.mubr.f32.mxu0 %v3815
        %4228 = vmatmul.mubr.f32.gmra.mrb[0].mxu0 %v3812
        %v4229 = vpop.f32.mrb[0].mxu0
        %v4230 = vadd.f32 %v4155, %v4229
        %v4231 = vpop.f32.mrb[0].mxu0
        %4232 = vmatprep.mubr.f32.mxu0 %v3838
        %4233 = vmatmul.mubr.f32.gmra.mrb[0].mxu0 %v3836
        %v4234 = vpop.f32.mrb[0].mxu0
        %v4235 = vadd.f32 %v4160, %v4234
        %v4236 = vpop.f32.mrb[0].mxu0
        %4237 = vdwg.mxu0
        %4238 = vmatprep.subr.mxu0 0.0
        %4239 = vmatpush1.msra.mxu0 %v3747
        %4240 = vmatprep.subr.mxu0 0.0
        %4241 = vmatpush1.msra.mxu0 %v3748
        %4242 = vmatprep.subr.mxu0 0.0
        %4243 = vmatpush1.msra.mxu0 %v3749
        %4244 = vmatprep.subr.mxu0 0.0
        %4245 = vmatpush1.msra.mxu0 %v3750
        %4246 = vmatprep.subr.mxu0 0.0
        %4247 = vmatpush1.msra.mxu0 %v3751
        %4248 = vmatprep.subr.mxu0 0.0
        %4249 = vmatpush1.msra.mxu0 %v3752
        %4250 = vmatprep.subr.mxu0 0.0
        %4251 = vmatpush1.msra.mxu0 %v3753
        %4252 = vmatprep.subr.mxu0 0.0
        %4253 = vmatpush1.msra.mxu0 %v3754
        %4254 = vmatprep.subr.mxu0 0.0
        %4255 = vmatpush1.msra.mxu0 %v3755
        %4256 = vmatprep.subr.mxu0 0.0
        %4257 = vmatpush1.msra.mxu0 %v3756
        %4258 = vmatprep.subr.mxu0 0.0
        %4259 = vmatpush1.msra.mxu0 %v3757
        %4260 = vmatprep.subr.mxu0 0.0
        %4261 = vmatpush1.msra.mxu0 %v3758
        %4262 = vmatprep.subr.mxu0 0.0
        %4263 = vmatpush1.msra.mxu0 %v3759
        %4264 = vmatprep.subr.mxu0 0.0
        %4265 = vmatpush1.msra.mxu0 %v3760
        %4266 = vmatprep.subr.mxu0 0.0
        %4267 = vmatpush1.msra.mxu0 %v3761
        %4268 = vmatprep.subr.mxu0 0.0
        %4269 = vmatpush1.msra.mxu0 %v3762
        %4270 = vmatprep.subr.mxu0 0.0
        %4271 = vmatpush1.msra.mxu0 0.0
        %4272 = vmatprep.subr.mxu0 0.0
        %4273 = vmatpush1.msra.mxu0 0.0
        %4274 = vmatprep.subr.mxu0 0.0
        %4275 = vmatpush1.msra.mxu0 0.0
        %4276 = vmatprep.subr.mxu0 0.0
        %4277 = vmatpush1.msra.mxu0 0.0
        %4278 = vmatprep.subr.mxu0 0.0
        %4279 = vmatpush1.msra.mxu0 0.0
        %4280 = vmatprep.subr.mxu0 0.0
        %4281 = vmatpush1.msra.mxu0 0.0
        %4282 = vmatprep.subr.mxu0 0.0
        %4283 = vmatpush1.msra.mxu0 0.0
        %4284 = vmatprep.subr.mxu0 0.0
        %4285 = vmatpush1.msra.mxu0 0.0
        %4286 = vmatprep.subr.mxu0 0.0
        %4287 = vmatpush1.msra.mxu0 0.0
        %4288 = vmatprep.subr.mxu0 0.0
        %4289 = vmatpush1.msra.mxu0 0.0
        %4290 = vmatprep.subr.mxu0 0.0
        %4291 = vmatpush1.msra.mxu0 0.0
        %4292 = vmatprep.subr.mxu0 0.0
        %4293 = vmatpush1.msra.mxu0 0.0
        %4294 = vmatprep.subr.mxu0 0.0
        %4295 = vmatpush1.msra.mxu0 0.0
        %4296 = vmatprep.subr.mxu0 0.0
        %4297 = vmatpush1.msra.mxu0 0.0
        %4298 = vmatprep.subr.mxu0 0.0
        %4299 = vmatpush1.msra.mxu0 0.0
        %4300 = vmatprep.subr.mxu0 0.0
        %4301 = vmatpush1.msra.mxu0 0.0
        %4302 = vmatprep.mubr.f32.mxu0 0.0
        %4303 = vmatmul.mubr.f32.gmra.mrb[0].mxu0 %v3818
        %v4304 = vpop.f32.mrb[0].mxu0
        %v4305 = vadd.f32 %v4230, %v4304
        %v4306 = vpop.f32.mrb[0].mxu0
        %4307 = vmatprep.mubr.f32.mxu0 0.0
        %4308 = vmatmul.mubr.f32.gmra.mrb[0].mxu0 %v3840
        %v4309 = vpop.f32.mrb[0].mxu0
        %v4310 = vadd.f32 %v4235, %v4309
        %v4311 = vpop.f32.mrb[0].mxu0
        %4312 = vdwg.mxu0
        %v4313 = vadd.f32 %v3562, %v4305
        %v4314 = vadd.f32 %v3563, %v4310
        %v4315 = vld [vmem:[%s653] sm:$0xe0]
        %v4316 = vld [vmem:[%s653 + $0x8] sm:$0xe0]
        %v4317 = vld [vmem:[%s653 + $0x10] sm:$0xe0]
        %v4318 = vld [vmem:[%s653 + $0x18] sm:$0xe0]
        %v4319 = vld [vmem:[%s653 + $0x20] sm:$0xe0]
        %v4320 = vld [vmem:[%s653 + $0x28] sm:$0xe0]
        %v4321 = vld [vmem:[%s653 + $0x30] sm:$0xe0]
        %v4322 = vld [vmem:[%s653 + $0x38] sm:$0xe0]
        %v4323 = vld [vmem:[%s653 + $0x40] sm:$0xe0]
        %v4324 = vld [vmem:[%s653 + $0x48] sm:$0xe0]
        %v4325 = vld [vmem:[%s653 + $0x50] sm:$0xe0]
        %v4326 = vld [vmem:[%s653 + $0xb0] sm:$0x1f]
        %v4327 = vld [vmem:[%s653 + $0xb8] sm:$0x1f]
        %v4328 = vld [vmem:[%s653 + $0xc0] sm:$0x1f]
        %v4329 = vld [vmem:[%s653 + $0xc8] sm:$0x1f]
        %v4330 = vld [vmem:[%s653 + $0xd0] sm:$0x1f]
        %v4331 = vld [vmem:[%s653 + $0xd8] sm:$0x1f]
        %v4332 = vld [vmem:[%s653 + $0xe0] sm:$0x1f]
        %v4333 = vld [vmem:[%s653 + $0xe8] sm:$0x1f]
        %v4334 = vld [vmem:[%s653 + $0xf0] sm:$0x1f]
        %v4335 = vld [vmem:[%s653 + $0xf8] sm:$0x1f]
        %v4336 = vld [vmem:[%s653 + $0x100] sm:$0x1f]
        %s4337 = scalar_lea.vmem %s1, 7040
        %v4338 = vld [vmem:[%s4337] sm:$0xff]
        %v4339 = vld [vmem:[%s4337 + $0x8] sm:$0xff]
        %v4340 = vld [vmem:[%s4337 + $0x10] sm:$0xff]
        %v4341 = vld [vmem:[%s4337 + $0x18] sm:$0xff]
        %v4342 = vld [vmem:[%s4337 + $0x20] sm:$0xff]
        %v4343 = vld [vmem:[%s4337 + $0x28] sm:$0xff]
        %v4344 = vld [vmem:[%s4337 + $0x30] sm:$0xff]
        %v4345 = vld [vmem:[%s4337 + $0x38] sm:$0xff]
        %v4346 = vld [vmem:[%s4337 + $0x40] sm:$0xff]
        %v4347 = vld [vmem:[%s4337 + $0x48] sm:$0xff]
        %v4348 = vld [vmem:[%s4337 + $0x50] sm:$0xff]
        %v4349 = vld [vmem:[%s4337 + $0x58] sm:$0xff]
        %v4350 = vld [vmem:[%s4337 + $0x60] sm:$0xff]
        %v4351 = vld [vmem:[%s4337 + $0x68] sm:$0xff]
        %v4352 = vld [vmem:[%s4337 + $0x70] sm:$0xff]
        %v4353 = vld [vmem:[%s4337 + $0x78] sm:$0xff]
        %v4354 = vld [vmem:[%s4337 + $0x80] sm:$0xff]
        %v4355 = vld [vmem:[%s4337 + $0x88] sm:$0xff]
        %v4356 = vld [vmem:[%s4337 + $0x90] sm:$0xff]
        %v4357 = vld [vmem:[%s4337 + $0x98] sm:$0xff]
        %v4358 = vld [vmem:[%s4337 + $0xa0] sm:$0xff]
        %v4359 = vld [vmem:[%s4337 + $0xa8] sm:$0xff]
        %v4360 = vld [vmem:[%s4337 + $0xb0] sm:$0xff]
        %v4361 = vld [vmem:[%s4337 + $0xb8] sm:$0xff]
        %v4362 = vld [vmem:[%s4337 + $0xc0] sm:$0xff]
        %v4363 = vld [vmem:[%s4337 + $0xc8] sm:$0xff]
        %v4364 = vld [vmem:[%s4337 + $0xd0] sm:$0xff]
        %v4365 = vld [vmem:[%s4337 + $0xd8] sm:$0xff]
        %v4366 = vld [vmem:[%s4337 + $0xe0] sm:$0xff]
        %v4367 = vld [vmem:[%s4337 + $0xe8] sm:$0xff]
        %v4368 = vld [vmem:[%s4337 + $0xf0] sm:$0xff]
        %v4369 = vld [vmem:[%s4337 + $0xf8] sm:$0xff]
        %v4370 = vld [vmem:[%s4337 + $0x100] sm:$0xff]
        %v4371 = vld [vmem:[%s4337 + $0x108] sm:$0xff]
        %v4372 = vld [vmem:[%s4337 + $0x110] sm:$0xff]
        %v4373 = vld [vmem:[%s4337 + $0x118] sm:$0xff]
        %v4374 = vld [vmem:[%s4337 + $0x120] sm:$0xff]
        %v4375 = vld [vmem:[%s4337 + $0x128] sm:$0xff]
        %v4376 = vld [vmem:[%s4337 + $0x130] sm:$0xff]
        %v4377 = vld [vmem:[%s4337 + $0x138] sm:$0xff]
        %v4378 = vld [vmem:[%s4337 + $0x140] sm:$0xff]
        %v4379 = vld [vmem:[%s4337 + $0x148] sm:$0xff]
        %v4380 = vld [vmem:[%s4337 + $0x150] sm:$0xff]
        %v4381 = vld [vmem:[%s4337 + $0x158] sm:$0xff]
        %v4382 = vld [vmem:[%s4337 + $0x160] sm:$0xff]
        %v4383 = vld [vmem:[%s4337 + $0x168] sm:$0xff]
        %v4384 = vld [vmem:[%s4337 + $0x170] sm:$0xff]
        %v4385 = vld [vmem:[%s4337 + $0x178] sm:$0xff]
        %v4386 = vld [vmem:[%s4337 + $0x180] sm:$0xff]
        %v4387 = vld [vmem:[%s4337 + $0x188] sm:$0xff]
        %v4388 = vld [vmem:[%s4337 + $0x190] sm:$0xff]
        %v4389 = vld [vmem:[%s4337 + $0x198] sm:$0xff]
        %v4390 = vld [vmem:[%s4337 + $0x1a0] sm:$0xff]
        %v4391 = vld [vmem:[%s4337 + $0x1a8] sm:$0xff]
        %v4392 = vld [vmem:[%s4337 + $0x1b0] sm:$0xff]
        %v4393 = vld [vmem:[%s4337 + $0x1b8] sm:$0xff]
        %v4394 = vld [vmem:[%s4337 + $0x1c0] sm:$0xff]
        %v4395 = vld [vmem:[%s4337 + $0x1c8] sm:$0xff]
        %v4396 = vld [vmem:[%s4337 + $0x1d0] sm:$0xff]
        %v4397 = vld [vmem:[%s4337 + $0x1d8] sm:$0xff]
        %v4398 = vld [vmem:[%s4337 + $0x1e0] sm:$0xff]
        %v4399 = vld [vmem:[%s4337 + $0x1e8] sm:$0xff]
        %v4400 = vld [vmem:[%s4337 + $0x1f0] sm:$0xff]
        %v4401 = vld [vmem:[%s4337 + $0x1f8] sm:$0xff]
        %v4402 = vld [vmem:[%s4337 + $0x200] sm:$0xff]
        %v4403 = vld [vmem:[%s4337 + $0x208] sm:$0xff]
        %v4404 = vld [vmem:[%s4337 + $0x210] sm:$0xff]
        %v4405 = vld [vmem:[%s4337 + $0x218] sm:$0xff]
        %v4406 = vld [vmem:[%s4337 + $0x220] sm:$0xff]
        %v4407 = vld [vmem:[%s4337 + $0x228] sm:$0xff]
        %v4408 = vld [vmem:[%s4337 + $0x230] sm:$0xff]
        %v4409 = vld [vmem:[%s4337 + $0x238] sm:$0xff]
        %v4410 = vld [vmem:[%s4337 + $0x240] sm:$0xff]
        %v4411 = vld [vmem:[%s4337 + $0x248] sm:$0xff]
        %v4412 = vld [vmem:[%s4337 + $0x250] sm:$0xff]
        %v4413 = vld [vmem:[%s4337 + $0x258] sm:$0xff]
        %v4414 = vld [vmem:[%s4337 + $0x260] sm:$0xff]
        %v4415 = vld [vmem:[%s4337 + $0x268] sm:$0xff]
        %v4416 = vld [vmem:[%s4337 + $0x270] sm:$0xff]
        %v4417 = vld [vmem:[%s4337 + $0x278] sm:$0xff]
        %v4418 = vld [vmem:[%s4337 + $0x280] sm:$0xff]
        %v4419 = vld [vmem:[%s4337 + $0x288] sm:$0xff]
        %v4420 = vld [vmem:[%s4337 + $0x290] sm:$0xff]
        %v4421 = vld [vmem:[%s4337 + $0x298] sm:$0xff]
        %v4422 = vld [vmem:[%s4337 + $0x2a0] sm:$0xff]
        %v4423 = vld [vmem:[%s4337 + $0x2a8] sm:$0xff]
        %v4424 = vld [vmem:[%s4337 + $0x2b0] sm:$0xff]
        %v4425 = vld [vmem:[%s4337 + $0x2b8] sm:$0xff]
        %v4426 = vld [vmem:[%s4337 + $0x2c0] sm:$0xff]
        %v4427 = vld [vmem:[%s4337 + $0x2c8] sm:$0xff]
        %v4428 = vld [vmem:[%s4337 + $0x2d0] sm:$0xff]
        %v4429 = vld [vmem:[%s4337 + $0x2d8] sm:$0xff]
        %v4430 = vld [vmem:[%s4337 + $0x2e0] sm:$0xff]
        %v4431 = vld [vmem:[%s4337 + $0x2e8] sm:$0xff]
        %v4432 = vld [vmem:[%s4337 + $0x2f0] sm:$0xff]
        %v4433 = vld [vmem:[%s4337 + $0x2f8] sm:$0xff]
        %v4434 = vld [vmem:[%s4337 + $0x300] sm:$0xff]
        %v4435 = vld [vmem:[%s4337 + $0x308] sm:$0xff]
        %v4436 = vld [vmem:[%s4337 + $0x310] sm:$0xff]
        %v4437 = vld [vmem:[%s4337 + $0x318] sm:$0xff]
        %v4438 = vld [vmem:[%s4337 + $0x320] sm:$0xff]
        %v4439 = vld [vmem:[%s4337 + $0x328] sm:$0xff]
        %v4440 = vld [vmem:[%s4337 + $0x330] sm:$0xff]
        %v4441 = vld [vmem:[%s4337 + $0x338] sm:$0xff]
        %v4442 = vld [vmem:[%s4337 + $0x340] sm:$0xff]
        %v4443 = vld [vmem:[%s4337 + $0x348] sm:$0xff]
        %v4444 = vld [vmem:[%s4337 + $0x350] sm:$0xff]
        %v4445 = vld [vmem:[%s4337 + $0x358] sm:$0xff]
        %v4446 = vld [vmem:[%s4337 + $0x360] sm:$0xff]
        %v4447 = vld [vmem:[%s4337 + $0x368] sm:$0xff]
        %v4448 = vld [vmem:[%s4337 + $0x370] sm:$0xff]
        %v4449 = vld [vmem:[%s4337 + $0x378] sm:$0xff]
        %v4450 = vld [vmem:[%s4337 + $0x380] sm:$0xff]
        %v4451 = vld [vmem:[%s4337 + $0x388] sm:$0xff]
        %v4452 = vld [vmem:[%s4337 + $0x390] sm:$0xff]
        %v4453 = vld [vmem:[%s4337 + $0x398] sm:$0xff]
        %v4454 = vld [vmem:[%s4337 + $0x3a0] sm:$0xff]
        %v4455 = vld [vmem:[%s4337 + $0x3a8] sm:$0xff]
        %v4456 = vld [vmem:[%s4337 + $0x3b0] sm:$0xff]
        %v4457 = vld [vmem:[%s4337 + $0x3b8] sm:$0xff]
        %v4458 = vld [vmem:[%s4337 + $0x3c0] sm:$0xff]
        %v4459 = vld [vmem:[%s4337 + $0x3c8] sm:$0xff]
        %v4460 = vld [vmem:[%s4337 + $0x3d0] sm:$0xff]
        %v4461 = vld [vmem:[%s4337 + $0x3d8] sm:$0xff]
        %v4462 = vld [vmem:[%s4337 + $0x3e0] sm:$0xff]
        %v4463 = vld [vmem:[%s4337 + $0x3e8] sm:$0xff]
        %v4464 = vld [vmem:[%s4337 + $0x3f0] sm:$0xff]
        %v4465 = vld [vmem:[%s4337 + $0x3f8] sm:$0xff]
        %v4466 = vld [vmem:[%s4337 + $0x400] sm:$0xff]
        %v4467 = vld [vmem:[%s4337 + $0x408] sm:$0xff]
        %v4468 = vld [vmem:[%s4337 + $0x410] sm:$0xff]
        %v4469 = vld [vmem:[%s4337 + $0x418] sm:$0xff]
        %v4470 = vld [vmem:[%s4337 + $0x420] sm:$0xff]
        %v4471 = vld [vmem:[%s4337 + $0x428] sm:$0xff]
        %v4472 = vld [vmem:[%s4337 + $0x430] sm:$0xff]
        %v4473 = vld [vmem:[%s4337 + $0x438] sm:$0xff]
        %v4474 = vld [vmem:[%s4337 + $0x440] sm:$0xff]
        %v4475 = vld [vmem:[%s4337 + $0x448] sm:$0xff]
        %v4476 = vld [vmem:[%s4337 + $0x450] sm:$0xff]
        %v4477 = vld [vmem:[%s4337 + $0x458] sm:$0xff]
        %v4478 = vld [vmem:[%s4337 + $0x460] sm:$0xff]
        %v4479 = vld [vmem:[%s4337 + $0x468] sm:$0xff]
        %v4480 = vld [vmem:[%s4337 + $0x470] sm:$0xff]
        %v4481 = vld [vmem:[%s4337 + $0x478] sm:$0xff]
        %v4482 = vld [vmem:[%s4337 + $0x480] sm:$0xff]
        %v4483 = vld [vmem:[%s4337 + $0x488] sm:$0xff]
        %v4484 = vld [vmem:[%s4337 + $0x490] sm:$0xff]
        %v4485 = vld [vmem:[%s4337 + $0x498] sm:$0xff]
        %v4486 = vld [vmem:[%s4337 + $0x4a0] sm:$0xff]
        %v4487 = vld [vmem:[%s4337 + $0x4a8] sm:$0xff]
        %v4488 = vld [vmem:[%s4337 + $0x4b0] sm:$0xff]
        %v4489 = vld [vmem:[%s4337 + $0x4b8] sm:$0xff]
        %v4490 = vld [vmem:[%s4337 + $0x4c0] sm:$0xff]
        %v4491 = vld [vmem:[%s4337 + $0x4c8] sm:$0xff]
        %v4492 = vld [vmem:[%s4337 + $0x4d0] sm:$0xff]
        %v4493 = vld [vmem:[%s4337 + $0x4d8] sm:$0xff]
        %v4494 = vld [vmem:[%s4337 + $0x4e0] sm:$0xff]
        %v4495 = vld [vmem:[%s4337 + $0x4e8] sm:$0xff]
        %v4496 = vld [vmem:[%s4337 + $0x4f0] sm:$0xff]
        %v4497 = vld [vmem:[%s4337 + $0x4f8] sm:$0xff]
        %v4498 = vld [vmem:[%s4337 + $0x500] sm:$0xff]
        %v4499 = vld [vmem:[%s4337 + $0x508] sm:$0xff]
        %v4500 = vld [vmem:[%s4337 + $0x510] sm:$0xff]
        %v4501 = vld [vmem:[%s4337 + $0x518] sm:$0xff]
        %v4502 = vld [vmem:[%s4337 + $0x520] sm:$0xff]
        %v4503 = vld [vmem:[%s4337 + $0x528] sm:$0xff]
        %v4504 = vld [vmem:[%s4337 + $0x530] sm:$0xff]
        %v4505 = vld [vmem:[%s4337 + $0x538] sm:$0xff]
        %v4506 = vld [vmem:[%s4337 + $0x540] sm:$0xff]
        %v4507 = vld [vmem:[%s4337 + $0x548] sm:$0xff]
        %v4508 = vld [vmem:[%s4337 + $0x550] sm:$0xff]
        %v4509 = vld [vmem:[%s4337 + $0x558] sm:$0xff]
        %v4510 = vld [vmem:[%s4337 + $0x560] sm:$0xff]
        %v4511 = vld [vmem:[%s4337 + $0x568] sm:$0xff]
        %v4512 = vld [vmem:[%s4337 + $0x570] sm:$0xff]
        %v4513 = vld [vmem:[%s4337 + $0x578] sm:$0xff]
        %vm4536 = vcmask 1042432
        %v4537 = vrot.slane %v4315, 5
        %v4538 = vrot.slane %v665, 5
        %v4539 = vsel %vm4536, %v4537, %v4538
        %v4540 = vrot.slane %v4316, 5
        %v4541 = vrot.slane %v666, 5
        %v4542 = vsel %vm4536, %v4540, %v4541
        %v4543 = vrot.slane %v4317, 5
        %v4544 = vrot.slane %v667, 5
        %v4545 = vsel %vm4536, %v4543, %v4544
        %v4546 = vrot.slane %v4318, 5
        %v4547 = vrot.slane %v668, 5
        %v4548 = vsel %vm4536, %v4546, %v4547
        %v4549 = vrot.slane %v4319, 5
        %v4550 = vrot.slane %v669, 5
        %v4551 = vsel %vm4536, %v4549, %v4550
        %v4552 = vrot.slane %v4320, 5
        %v4553 = vrot.slane %v670, 5
        %v4554 = vsel %vm4536, %v4552, %v4553
        %v4555 = vrot.slane %v4321, 5
        %v4556 = vrot.slane %v671, 5
        %v4557 = vsel %vm4536, %v4555, %v4556
        %v4558 = vrot.slane %v4322, 5
        %v4559 = vrot.slane %v672, 5
        %v4560 = vsel %vm4536, %v4558, %v4559
        %v4561 = vrot.slane %v4323, 5
        %v4562 = vrot.slane %v673, 5
        %v4563 = vsel %vm4536, %v4561, %v4562
        %v4564 = vrot.slane %v4324, 5
        %v4565 = vrot.slane %v674, 5
        %v4566 = vsel %vm4536, %v4564, %v4565
        %v4567 = vrot.slane %v4325, 5
        %v4568 = vrot.slane %v675, 5
        %v4569 = vsel %vm4536, %v4567, %v4568
        %v4570 = vrot.slane %v4326, 5
        %v4571 = vsel %vm4536, %v4538, %v4570
        %v4572 = vrot.slane %v4327, 5
        %v4573 = vsel %vm4536, %v4541, %v4572
        %v4574 = vrot.slane %v4328, 5
        %v4575 = vsel %vm4536, %v4544, %v4574
        %v4576 = vrot.slane %v4329, 5
        %v4577 = vsel %vm4536, %v4547, %v4576
        %v4578 = vrot.slane %v4330, 5
        %v4579 = vsel %vm4536, %v4550, %v4578
        %v4580 = vrot.slane %v4331, 5
        %v4581 = vsel %vm4536, %v4553, %v4580
        %v4582 = vrot.slane %v4332, 5
        %v4583 = vsel %vm4536, %v4556, %v4582
        %v4584 = vrot.slane %v4333, 5
        %v4585 = vsel %vm4536, %v4559, %v4584
        %v4586 = vrot.slane %v4334, 5
        %v4587 = vsel %vm4536, %v4562, %v4586
        %v4588 = vrot.slane %v4335, 5
        %v4589 = vsel %vm4536, %v4565, %v4588
        %v4590 = vrot.slane %v4336, 5
        %v4591 = vsel %vm4536, %v4568, %v4590
        %4614 = vmatprep.subr.mxu0 0.0
        %4615 = vmatpush1.msra.mxu0 %v4338
        %4616 = vmatprep.subr.mxu0 0.0
        %4617 = vmatpush1.msra.mxu0 %v4339
        %4618 = vmatprep.subr.mxu0 0.0
        %4619 = vmatpush1.msra.mxu0 %v4340
        %4620 = vmatprep.subr.mxu0 0.0
        %4621 = vmatpush1.msra.mxu0 %v4341
        %4622 = vmatprep.subr.mxu0 0.0
        %4623 = vmatpush1.msra.mxu0 %v4342
        %4624 = vmatprep.subr.mxu0 0.0
        %4625 = vmatpush1.msra.mxu0 %v4343
        %4626 = vmatprep.subr.mxu0 0.0
        %4627 = vmatpush1.msra.mxu0 %v4344
        %4628 = vmatprep.subr.mxu0 0.0
        %4629 = vmatpush1.msra.mxu0 %v4345
        %4630 = vmatprep.subr.mxu0 0.0
        %4631 = vmatpush1.msra.mxu0 %v4346
        %4632 = vmatprep.subr.mxu0 0.0
        %4633 = vmatpush1.msra.mxu0 %v4347
        %4634 = vmatprep.subr.mxu0 0.0
        %4635 = vmatpush1.msra.mxu0 %v4348
        %4636 = vmatprep.subr.mxu0 0.0
        %4637 = vmatpush1.msra.mxu0 %v4349
        %4638 = vmatprep.subr.mxu0 0.0
        %4639 = vmatpush1.msra.mxu0 %v4350
        %4640 = vmatprep.subr.mxu0 0.0
        %4641 = vmatpush1.msra.mxu0 %v4351
        %4642 = vmatprep.subr.mxu0 0.0
        %4643 = vmatpush1.msra.mxu0 %v4352
        %4644 = vmatprep.subr.mxu0 0.0
        %4645 = vmatpush1.msra.mxu0 %v4353
        %4646 = vmatprep.subr.mxu0 0.0
        %4647 = vmatpush1.msra.mxu0 %v4354
        %4648 = vmatprep.subr.mxu0 0.0
        %4649 = vmatpush1.msra.mxu0 %v4355
        %4650 = vmatprep.subr.mxu0 0.0
        %4651 = vmatpush1.msra.mxu0 %v4356
        %4652 = vmatprep.subr.mxu0 0.0
        %4653 = vmatpush1.msra.mxu0 %v4357
        %4654 = vmatprep.subr.mxu0 0.0
        %4655 = vmatpush1.msra.mxu0 %v4358
        %4656 = vmatprep.subr.mxu0 0.0
        %4657 = vmatpush1.msra.mxu0 %v4359
        %4658 = vmatprep.subr.mxu0 0.0
        %4659 = vmatpush1.msra.mxu0 %v4360
        %4660 = vmatprep.subr.mxu0 0.0
        %4661 = vmatpush1.msra.mxu0 %v4361
        %4662 = vmatprep.subr.mxu0 0.0
        %4663 = vmatpush1.msra.mxu0 %v4362
        %4664 = vmatprep.subr.mxu0 0.0
        %4665 = vmatpush1.msra.mxu0 %v4363
        %4666 = vmatprep.subr.mxu0 0.0
        %4667 = vmatpush1.msra.mxu0 %v4364
        %4668 = vmatprep.subr.mxu0 0.0
        %4669 = vmatpush1.msra.mxu0 %v4365
        %4670 = vmatprep.subr.mxu0 0.0
        %4671 = vmatpush1.msra.mxu0 %v4366
        %4672 = vmatprep.subr.mxu0 0.0
        %4673 = vmatpush1.msra.mxu0 %v4367
        %4674 = vmatprep.subr.mxu0 0.0
        %4675 = vmatpush1.msra.mxu0 %v4368
        %4676 = vmatprep.subr.mxu0 0.0
        %4677 = vmatpush1.msra.mxu0 %v4369
        %4678 = vmatprep.mubr.f32.mxu0 %v4542
        %4679 = vmatmul.mubr.f32.gmra.mrb[0].mxu0 %v4539
        %v4680 = vpop.f32.mrb[0].mxu0
        %v4681 = vadd.f32 0.0, %v4680
        %v4682 = vpop.f32.mrb[0].mxu0
        %4683 = vmatprep.mubr.f32.mxu0 %v4573
        %4684 = vmatmul.mubr.f32.gmra.mrb[0].mxu0 %v4571
        %v4685 = vpop.f32.mrb[0].mxu0
        %v4686 = vadd.f32 0.0, %v4685
        %v4687 = vpop.f32.mrb[0].mxu0
        %4688 = vdwg.mxu0
        %4689 = vmatprep.subr.mxu0 0.0
        %4690 = vmatpush1.msra.mxu0 %v4370
        %4691 = vmatprep.subr.mxu0 0.0
        %4692 = vmatpush1.msra.mxu0 %v4371
        %4693 = vmatprep.subr.mxu0 0.0
        %4694 = vmatpush1.msra.mxu0 %v4372
        %4695 = vmatprep.subr.mxu0 0.0
        %4696 = vmatpush1.msra.mxu0 %v4373
        %4697 = vmatprep.subr.mxu0 0.0
        %4698 = vmatpush1.msra.mxu0 %v4374
        %4699 = vmatprep.subr.mxu0 0.0
        %4700 = vmatpush1.msra.mxu0 %v4375
        %4701 = vmatprep.subr.mxu0 0.0
        %4702 = vmatpush1.msra.mxu0 %v4376
        %4703 = vmatprep.subr.mxu0 0.0
        %4704 = vmatpush1.msra.mxu0 %v4377
        %4705 = vmatprep.subr.mxu0 0.0
        %4706 = vmatpush1.msra.mxu0 %v4378
        %4707 = vmatprep.subr.mxu0 0.0
        %4708 = vmatpush1.msra.mxu0 %v4379
        %4709 = vmatprep.subr.mxu0 0.0
        %4710 = vmatpush1.msra.mxu0 %v4380
        %4711 = vmatprep.subr.mxu0 0.0
        %4712 = vmatpush1.msra.mxu0 %v4381
        %4713 = vmatprep.subr.mxu0 0.0
        %4714 = vmatpush1.msra.mxu0 %v4382
        %4715 = vmatprep.subr.mxu0 0.0
        %4716 = vmatpush1.msra.mxu0 %v4383
        %4717 = vmatprep.subr.mxu0 0.0
        %4718 = vmatpush1.msra.mxu0 %v4384
        %4719 = vmatprep.subr.mxu0 0.0
        %4720 = vmatpush1.msra.mxu0 %v4385
        %4721 = vmatprep.subr.mxu0 0.0
        %4722 = vmatpush1.msra.mxu0 %v4386
        %4723 = vmatprep.subr.mxu0 0.0
        %4724 = vmatpush1.msra.mxu0 %v4387
        %4725 = vmatprep.subr.mxu0 0.0
        %4726 = vmatpush1.msra.mxu0 %v4388
        %4727 = vmatprep.subr.mxu0 0.0
        %4728 = vmatpush1.msra.mxu0 %v4389
        %4729 = vmatprep.subr.mxu0 0.0
        %4730 = vmatpush1.msra.mxu0 %v4390
        %4731 = vmatprep.subr.mxu0 0.0
        %4732 = vmatpush1.msra.mxu0 %v4391
        %4733 = vmatprep.subr.mxu0 0.0
        %4734 = vmatpush1.msra.mxu0 %v4392
        %4735 = vmatprep.subr.mxu0 0.0
        %4736 = vmatpush1.msra.mxu0 %v4393
        %4737 = vmatprep.subr.mxu0 0.0
        %4738 = vmatpush1.msra.mxu0 %v4394
        %4739 = vmatprep.subr.mxu0 0.0
        %4740 = vmatpush1.msra.mxu0 %v4395
        %4741 = vmatprep.subr.mxu0 0.0
        %4742 = vmatpush1.msra.mxu0 %v4396
        %4743 = vmatprep.subr.mxu0 0.0
        %4744 = vmatpush1.msra.mxu0 %v4397
        %4745 = vmatprep.subr.mxu0 0.0
        %4746 = vmatpush1.msra.mxu0 %v4398
        %4747 = vmatprep.subr.mxu0 0.0
        %4748 = vmatpush1.msra.mxu0 %v4399
        %4749 = vmatprep.subr.mxu0 0.0
        %4750 = vmatpush1.msra.mxu0 %v4400
        %4751 = vmatprep.subr.mxu0 0.0
        %4752 = vmatpush1.msra.mxu0 %v4401
        %4753 = vmatprep.mubr.f32.mxu0 %v4548
        %4754 = vmatmul.mubr.f32.gmra.mrb[0].mxu0 %v4545
        %v4755 = vpop.f32.mrb[0].mxu0
        %v4756 = vadd.f32 %v4681, %v4755
        %v4757 = vpop.f32.mrb[0].mxu0
        %4758 = vmatprep.mubr.f32.mxu0 %v4577
        %4759 = vmatmul.mubr.f32.gmra.mrb[0].mxu0 %v4575
        %v4760 = vpop.f32.mrb[0].mxu0
        %v4761 = vadd.f32 %v4686, %v4760
        %v4762 = vpop.f32.mrb[0].mxu0
        %4763 = vdwg.mxu0
        %4764 = vmatprep.subr.mxu0 0.0
        %4765 = vmatpush1.msra.mxu0 %v4402
        %4766 = vmatprep.subr.mxu0 0.0
        %4767 = vmatpush1.msra.mxu0 %v4403
        %4768 = vmatprep.subr.mxu0 0.0
        %4769 = vmatpush1.msra.mxu0 %v4404
        %4770 = vmatprep.subr.mxu0 0.0
        %4771 = vmatpush1.msra.mxu0 %v4405
        %4772 = vmatprep.subr.mxu0 0.0
        %4773 = vmatpush1.msra.mxu0 %v4406
        %4774 = vmatprep.subr.mxu0 0.0
        %4775 = vmatpush1.msra.mxu0 %v4407
        %4776 = vmatprep.subr.mxu0 0.0
        %4777 = vmatpush1.msra.mxu0 %v4408
        %4778 = vmatprep.subr.mxu0 0.0
        %4779 = vmatpush1.msra.mxu0 %v4409
        %4780 = vmatprep.subr.mxu0 0.0
        %4781 = vmatpush1.msra.mxu0 %v4410
        %4782 = vmatprep.subr.mxu0 0.0
        %4783 = vmatpush1.msra.mxu0 %v4411
        %4784 = vmatprep.subr.mxu0 0.0
        %4785 = vmatpush1.msra.mxu0 %v4412
        %4786 = vmatprep.subr.mxu0 0.0
        %4787 = vmatpush1.msra.mxu0 %v4413
        %4788 = vmatprep.subr.mxu0 0.0
        %4789 = vmatpush1.msra.mxu0 %v4414
        %4790 = vmatprep.subr.mxu0 0.0
        %4791 = vmatpush1.msra.mxu0 %v4415
        %4792 = vmatprep.subr.mxu0 0.0
        %4793 = vmatpush1.msra.mxu0 %v4416
        %4794 = vmatprep.subr.mxu0 0.0
        %4795 = vmatpush1.msra.mxu0 %v4417
        %4796 = vmatprep.subr.mxu0 0.0
        %4797 = vmatpush1.msra.mxu0 %v4418
        %4798 = vmatprep.subr.mxu0 0.0
        %4799 = vmatpush1.msra.mxu0 %v4419
        %4800 = vmatprep.subr.mxu0 0.0
        %4801 = vmatpush1.msra.mxu0 %v4420
        %4802 = vmatprep.subr.mxu0 0.0
        %4803 = vmatpush1.msra.mxu0 %v4421
        %4804 = vmatprep.subr.mxu0 0.0
        %4805 = vmatpush1.msra.mxu0 %v4422
        %4806 = vmatprep.subr.mxu0 0.0
        %4807 = vmatpush1.msra.mxu0 %v4423
        %4808 = vmatprep.subr.mxu0 0.0
        %4809 = vmatpush1.msra.mxu0 %v4424
        %4810 = vmatprep.subr.mxu0 0.0
        %4811 = vmatpush1.msra.mxu0 %v4425
        %4812 = vmatprep.subr.mxu0 0.0
        %4813 = vmatpush1.msra.mxu0 %v4426
        %4814 = vmatprep.subr.mxu0 0.0
        %4815 = vmatpush1.msra.mxu0 %v4427
        %4816 = vmatprep.subr.mxu0 0.0
        %4817 = vmatpush1.msra.mxu0 %v4428
        %4818 = vmatprep.subr.mxu0 0.0
        %4819 = vmatpush1.msra.mxu0 %v4429
        %4820 = vmatprep.subr.mxu0 0.0
        %4821 = vmatpush1.msra.mxu0 %v4430
        %4822 = vmatprep.subr.mxu0 0.0
        %4823 = vmatpush1.msra.mxu0 %v4431
        %4824 = vmatprep.subr.mxu0 0.0
        %4825 = vmatpush1.msra.mxu0 %v4432
        %4826 = vmatprep.subr.mxu0 0.0
        %4827 = vmatpush1.msra.mxu0 %v4433
        %4828 = vmatprep.mubr.f32.mxu0 %v4554
        %4829 = vmatmul.mubr.f32.gmra.mrb[0].mxu0 %v4551
        %v4830 = vpop.f32.mrb[0].mxu0
        %v4831 = vadd.f32 %v4756, %v4830
        %v4832 = vpop.f32.mrb[0].mxu0
        %4833 = vmatprep.mubr.f32.mxu0 %v4581
        %4834 = vmatmul.mubr.f32.gmra.mrb[0].mxu0 %v4579
        %v4835 = vpop.f32.mrb[0].mxu0
        %v4836 = vadd.f32 %v4761, %v4835
        %v4837 = vpop.f32.mrb[0].mxu0
        %4838 = vdwg.mxu0
        %4839 = vmatprep.subr.mxu0 0.0
        %4840 = vmatpush1.msra.mxu0 %v4434
        %4841 = vmatprep.subr.mxu0 0.0
        %4842 = vmatpush1.msra.mxu0 %v4435
        %4843 = vmatprep.subr.mxu0 0.0
        %4844 = vmatpush1.msra.mxu0 %v4436
        %4845 = vmatprep.subr.mxu0 0.0
        %4846 = vmatpush1.msra.mxu0 %v4437
        %4847 = vmatprep.subr.mxu0 0.0
        %4848 = vmatpush1.msra.mxu0 %v4438
        %4849 = vmatprep.subr.mxu0 0.0
        %4850 = vmatpush1.msra.mxu0 %v4439
        %4851 = vmatprep.subr.mxu0 0.0
        %4852 = vmatpush1.msra.mxu0 %v4440
        %4853 = vmatprep.subr.mxu0 0.0
        %4854 = vmatpush1.msra.mxu0 %v4441
        %4855 = vmatprep.subr.mxu0 0.0
        %4856 = vmatpush1.msra.mxu0 %v4442
        %4857 = vmatprep.subr.mxu0 0.0
        %4858 = vmatpush1.msra.mxu0 %v4443
        %4859 = vmatprep.subr.mxu0 0.0
        %4860 = vmatpush1.msra.mxu0 %v4444
        %4861 = vmatprep.subr.mxu0 0.0
        %4862 = vmatpush1.msra.mxu0 %v4445
        %4863 = vmatprep.subr.mxu0 0.0
        %4864 = vmatpush1.msra.mxu0 %v4446
        %4865 = vmatprep.subr.mxu0 0.0
        %4866 = vmatpush1.msra.mxu0 %v4447
        %4867 = vmatprep.subr.mxu0 0.0
        %4868 = vmatpush1.msra.mxu0 %v4448
        %4869 = vmatprep.subr.mxu0 0.0
        %4870 = vmatpush1.msra.mxu0 %v4449
        %4871 = vmatprep.subr.mxu0 0.0
        %4872 = vmatpush1.msra.mxu0 %v4450
        %4873 = vmatprep.subr.mxu0 0.0
        %4874 = vmatpush1.msra.mxu0 %v4451
        %4875 = vmatprep.subr.mxu0 0.0
        %4876 = vmatpush1.msra.mxu0 %v4452
        %4877 = vmatprep.subr.mxu0 0.0
        %4878 = vmatpush1.msra.mxu0 %v4453
        %4879 = vmatprep.subr.mxu0 0.0
        %4880 = vmatpush1.msra.mxu0 %v4454
        %4881 = vmatprep.subr.mxu0 0.0
        %4882 = vmatpush1.msra.mxu0 %v4455
        %4883 = vmatprep.subr.mxu0 0.0
        %4884 = vmatpush1.msra.mxu0 %v4456
        %4885 = vmatprep.subr.mxu0 0.0
        %4886 = vmatpush1.msra.mxu0 %v4457
        %4887 = vmatprep.subr.mxu0 0.0
        %4888 = vmatpush1.msra.mxu0 %v4458
        %4889 = vmatprep.subr.mxu0 0.0
        %4890 = vmatpush1.msra.mxu0 %v4459
        %4891 = vmatprep.subr.mxu0 0.0
        %4892 = vmatpush1.msra.mxu0 %v4460
        %4893 = vmatprep.subr.mxu0 0.0
        %4894 = vmatpush1.msra.mxu0 %v4461
        %4895 = vmatprep.subr.mxu0 0.0
        %4896 = vmatpush1.msra.mxu0 %v4462
        %4897 = vmatprep.subr.mxu0 0.0
        %4898 = vmatpush1.msra.mxu0 %v4463
        %4899 = vmatprep.subr.mxu0 0.0
        %4900 = vmatpush1.msra.mxu0 %v4464
        %4901 = vmatprep.subr.mxu0 0.0
        %4902 = vmatpush1.msra.mxu0 %v4465
        %4903 = vmatprep.mubr.f32.mxu0 %v4560
        %4904 = vmatmul.mubr.f32.gmra.mrb[0].mxu0 %v4557
        %v4905 = vpop.f32.mrb[0].mxu0
        %v4906 = vadd.f32 %v4831, %v4905
        %v4907 = vpop.f32.mrb[0].mxu0
        %4908 = vmatprep.mubr.f32.mxu0 %v4585
        %4909 = vmatmul.mubr.f32.gmra.mrb[0].mxu0 %v4583
        %v4910 = vpop.f32.mrb[0].mxu0
        %v4911 = vadd.f32 %v4836, %v4910
        %v4912 = vpop.f32.mrb[0].mxu0
        %4913 = vdwg.mxu0
        %4914 = vmatprep.subr.mxu0 0.0
        %4915 = vmatpush1.msra.mxu0 %v4466
        %4916 = vmatprep.subr.mxu0 0.0
        %4917 = vmatpush1.msra.mxu0 %v4467
        %4918 = vmatprep.subr.mxu0 0.0
        %4919 = vmatpush1.msra.mxu0 %v4468
        %4920 = vmatprep.subr.mxu0 0.0
        %4921 = vmatpush1.msra.mxu0 %v4469
        %4922 = vmatprep.subr.mxu0 0.0
        %4923 = vmatpush1.msra.mxu0 %v4470
        %4924 = vmatprep.subr.mxu0 0.0
        %4925 = vmatpush1.msra.mxu0 %v4471
        %4926 = vmatprep.subr.mxu0 0.0
        %4927 = vmatpush1.msra.mxu0 %v4472
        %4928 = vmatprep.subr.mxu0 0.0
        %4929 = vmatpush1.msra.mxu0 %v4473
        %4930 = vmatprep.subr.mxu0 0.0
        %4931 = vmatpush1.msra.mxu0 %v4474
        %4932 = vmatprep.subr.mxu0 0.0
        %4933 = vmatpush1.msra.mxu0 %v4475
        %4934 = vmatprep.subr.mxu0 0.0
        %4935 = vmatpush1.msra.mxu0 %v4476
        %4936 = vmatprep.subr.mxu0 0.0
        %4937 = vmatpush1.msra.mxu0 %v4477
        %4938 = vmatprep.subr.mxu0 0.0
        %4939 = vmatpush1.msra.mxu0 %v4478
        %4940 = vmatprep.subr.mxu0 0.0
        %4941 = vmatpush1.msra.mxu0 %v4479
        %4942 = vmatprep.subr.mxu0 0.0
        %4943 = vmatpush1.msra.mxu0 %v4480
        %4944 = vmatprep.subr.mxu0 0.0
        %4945 = vmatpush1.msra.mxu0 %v4481
        %4946 = vmatprep.subr.mxu0 0.0
        %4947 = vmatpush1.msra.mxu0 %v4482
        %4948 = vmatprep.subr.mxu0 0.0
        %4949 = vmatpush1.msra.mxu0 %v4483
        %4950 = vmatprep.subr.mxu0 0.0
        %4951 = vmatpush1.msra.mxu0 %v4484
        %4952 = vmatprep.subr.mxu0 0.0
        %4953 = vmatpush1.msra.mxu0 %v4485
        %4954 = vmatprep.subr.mxu0 0.0
        %4955 = vmatpush1.msra.mxu0 %v4486
        %4956 = vmatprep.subr.mxu0 0.0
        %4957 = vmatpush1.msra.mxu0 %v4487
        %4958 = vmatprep.subr.mxu0 0.0
        %4959 = vmatpush1.msra.mxu0 %v4488
        %4960 = vmatprep.subr.mxu0 0.0
        %4961 = vmatpush1.msra.mxu0 %v4489
        %4962 = vmatprep.subr.mxu0 0.0
        %4963 = vmatpush1.msra.mxu0 %v4490
        %4964 = vmatprep.subr.mxu0 0.0
        %4965 = vmatpush1.msra.mxu0 %v4491
        %4966 = vmatprep.subr.mxu0 0.0
        %4967 = vmatpush1.msra.mxu0 %v4492
        %4968 = vmatprep.subr.mxu0 0.0
        %4969 = vmatpush1.msra.mxu0 %v4493
        %4970 = vmatprep.subr.mxu0 0.0
        %4971 = vmatpush1.msra.mxu0 %v4494
        %4972 = vmatprep.subr.mxu0 0.0
        %4973 = vmatpush1.msra.mxu0 %v4495
        %4974 = vmatprep.subr.mxu0 0.0
        %4975 = vmatpush1.msra.mxu0 %v4496
        %4976 = vmatprep.subr.mxu0 0.0
        %4977 = vmatpush1.msra.mxu0 %v4497
        %4978 = vmatprep.mubr.f32.mxu0 %v4566
        %4979 = vmatmul.mubr.f32.gmra.mrb[0].mxu0 %v4563
        %v4980 = vpop.f32.mrb[0].mxu0
        %v4981 = vadd.f32 %v4906, %v4980
        %v4982 = vpop.f32.mrb[0].mxu0
        %4983 = vmatprep.mubr.f32.mxu0 %v4589
        %4984 = vmatmul.mubr.f32.gmra.mrb[0].mxu0 %v4587
        %v4985 = vpop.f32.mrb[0].mxu0
        %v4986 = vadd.f32 %v4911, %v4985
        %v4987 = vpop.f32.mrb[0].mxu0
        %4988 = vdwg.mxu0
        %4989 = vmatprep.subr.mxu0 0.0
        %4990 = vmatpush1.msra.mxu0 %v4498
        %4991 = vmatprep.subr.mxu0 0.0
        %4992 = vmatpush1.msra.mxu0 %v4499
        %4993 = vmatprep.subr.mxu0 0.0
        %4994 = vmatpush1.msra.mxu0 %v4500
        %4995 = vmatprep.subr.mxu0 0.0
        %4996 = vmatpush1.msra.mxu0 %v4501
        %4997 = vmatprep.subr.mxu0 0.0
        %4998 = vmatpush1.msra.mxu0 %v4502
        %4999 = vmatprep.subr.mxu0 0.0
        %5000 = vmatpush1.msra.mxu0 %v4503
        %5001 = vmatprep.subr.mxu0 0.0
        %5002 = vmatpush1.msra.mxu0 %v4504
        %5003 = vmatprep.subr.mxu0 0.0
        %5004 = vmatpush1.msra.mxu0 %v4505
        %5005 = vmatprep.subr.mxu0 0.0
        %5006 = vmatpush1.msra.mxu0 %v4506
        %5007 = vmatprep.subr.mxu0 0.0
        %5008 = vmatpush1.msra.mxu0 %v4507
        %5009 = vmatprep.subr.mxu0 0.0
        %5010 = vmatpush1.msra.mxu0 %v4508
        %5011 = vmatprep.subr.mxu0 0.0
        %5012 = vmatpush1.msra.mxu0 %v4509
        %5013 = vmatprep.subr.mxu0 0.0
        %5014 = vmatpush1.msra.mxu0 %v4510
        %5015 = vmatprep.subr.mxu0 0.0
        %5016 = vmatpush1.msra.mxu0 %v4511
        %5017 = vmatprep.subr.mxu0 0.0
        %5018 = vmatpush1.msra.mxu0 %v4512
        %5019 = vmatprep.subr.mxu0 0.0
        %5020 = vmatpush1.msra.mxu0 %v4513
        %5021 = vmatprep.subr.mxu0 0.0
        %5022 = vmatpush1.msra.mxu0 0.0
        %5023 = vmatprep.subr.mxu0 0.0
        %5024 = vmatpush1.msra.mxu0 0.0
        %5025 = vmatprep.subr.mxu0 0.0
        %5026 = vmatpush1.msra.mxu0 0.0
        %5027 = vmatprep.subr.mxu0 0.0
        %5028 = vmatpush1.msra.mxu0 0.0
        %5029 = vmatprep.subr.mxu0 0.0
        %5030 = vmatpush1.msra.mxu0 0.0
        %5031 = vmatprep.subr.mxu0 0.0
        %5032 = vmatpush1.msra.mxu0 0.0
        %5033 = vmatprep.subr.mxu0 0.0
        %5034 = vmatpush1.msra.mxu0 0.0
        %5035 = vmatprep.subr.mxu0 0.0
        %5036 = vmatpush1.msra.mxu0 0.0
        %5037 = vmatprep.subr.mxu0 0.0
        %5038 = vmatpush1.msra.mxu0 0.0
        %5039 = vmatprep.subr.mxu0 0.0
        %5040 = vmatpush1.msra.mxu0 0.0
        %5041 = vmatprep.subr.mxu0 0.0
        %5042 = vmatpush1.msra.mxu0 0.0
        %5043 = vmatprep.subr.mxu0 0.0
        %5044 = vmatpush1.msra.mxu0 0.0
        %5045 = vmatprep.subr.mxu0 0.0
        %5046 = vmatpush1.msra.mxu0 0.0
        %5047 = vmatprep.subr.mxu0 0.0
        %5048 = vmatpush1.msra.mxu0 0.0
        %5049 = vmatprep.subr.mxu0 0.0
        %5050 = vmatpush1.msra.mxu0 0.0
        %5051 = vmatprep.subr.mxu0 0.0
        %5052 = vmatpush1.msra.mxu0 0.0
        %5053 = vmatprep.mubr.f32.mxu0 0.0
        %5054 = vmatmul.mubr.f32.gmra.mrb[0].mxu0 %v4569
        %v5055 = vpop.f32.mrb[0].mxu0
        %v5056 = vadd.f32 %v4981, %v5055
        %v5057 = vpop.f32.mrb[0].mxu0
        %5058 = vmatprep.mubr.f32.mxu0 0.0
        %5059 = vmatmul.mubr.f32.gmra.mrb[0].mxu0 %v4591
        %v5060 = vpop.f32.mrb[0].mxu0
        %v5061 = vadd.f32 %v4986, %v5060
        %v5062 = vpop.f32.mrb[0].mxu0
        %5063 = vdwg.mxu0
        %v5064 = vadd.f32 %v4313, %v5056
        %v5065 = vadd.f32 %v4314, %v5061
        %v5066 = vld [vmem:[%s653] sm:$0xc0]
        %v5067 = vld [vmem:[%s653 + $0x8] sm:$0xc0]
        %v5068 = vld [vmem:[%s653 + $0x10] sm:$0xc0]
        %v5069 = vld [vmem:[%s653 + $0x18] sm:$0xc0]
        %v5070 = vld [vmem:[%s653 + $0x20] sm:$0xc0]
        %v5071 = vld [vmem:[%s653 + $0x28] sm:$0xc0]
        %v5072 = vld [vmem:[%s653 + $0x30] sm:$0xc0]
        %v5073 = vld [vmem:[%s653 + $0x38] sm:$0xc0]
        %v5074 = vld [vmem:[%s653 + $0x40] sm:$0xc0]
        %v5075 = vld [vmem:[%s653 + $0x48] sm:$0xc0]
        %v5076 = vld [vmem:[%s653 + $0x50] sm:$0xc0]
        %v5077 = vld [vmem:[%s653 + $0xb0] sm:$0x3f]
        %v5078 = vld [vmem:[%s653 + $0xb8] sm:$0x3f]
        %v5079 = vld [vmem:[%s653 + $0xc0] sm:$0x3f]
        %v5080 = vld [vmem:[%s653 + $0xc8] sm:$0x3f]
        %v5081 = vld [vmem:[%s653 + $0xd0] sm:$0x3f]
        %v5082 = vld [vmem:[%s653 + $0xd8] sm:$0x3f]
        %v5083 = vld [vmem:[%s653 + $0xe0] sm:$0x3f]
        %v5084 = vld [vmem:[%s653 + $0xe8] sm:$0x3f]
        %v5085 = vld [vmem:[%s653 + $0xf0] sm:$0x3f]
        %v5086 = vld [vmem:[%s653 + $0xf8] sm:$0x3f]
        %v5087 = vld [vmem:[%s653 + $0x100] sm:$0x3f]
        %s5088 = scalar_lea.vmem %s1, 8448
        %v5089 = vld [vmem:[%s5088] sm:$0xff]
        %v5090 = vld [vmem:[%s5088 + $0x8] sm:$0xff]
        %v5091 = vld [vmem:[%s5088 + $0x10] sm:$0xff]
        %v5092 = vld [vmem:[%s5088 + $0x18] sm:$0xff]
        %v5093 = vld [vmem:[%s5088 + $0x20] sm:$0xff]
        %v5094 = vld [vmem:[%s5088 + $0x28] sm:$0xff]
        %v5095 = vld [vmem:[%s5088 + $0x30] sm:$0xff]
        %v5096 = vld [vmem:[%s5088 + $0x38] sm:$0xff]
        %v5097 = vld [vmem:[%s5088 + $0x40] sm:$0xff]
        %v5098 = vld [vmem:[%s5088 + $0x48] sm:$0xff]
        %v5099 = vld [vmem:[%s5088 + $0x50] sm:$0xff]
        %v5100 = vld [vmem:[%s5088 + $0x58] sm:$0xff]
        %v5101 = vld [vmem:[%s5088 + $0x60] sm:$0xff]
        %v5102 = vld [vmem:[%s5088 + $0x68] sm:$0xff]
        %v5103 = vld [vmem:[%s5088 + $0x70] sm:$0xff]
        %v5104 = vld [vmem:[%s5088 + $0x78] sm:$0xff]
        %v5105 = vld [vmem:[%s5088 + $0x80] sm:$0xff]
        %v5106 = vld [vmem:[%s5088 + $0x88] sm:$0xff]
        %v5107 = vld [vmem:[%s5088 + $0x90] sm:$0xff]
        %v5108 = vld [vmem:[%s5088 + $0x98] sm:$0xff]
        %v5109 = vld [vmem:[%s5088 + $0xa0] sm:$0xff]
        %v5110 = vld [vmem:[%s5088 + $0xa8] sm:$0xff]
        %v5111 = vld [vmem:[%s5088 + $0xb0] sm:$0xff]
        %v5112 = vld [vmem:[%s5088 + $0xb8] sm:$0xff]
        %v5113 = vld [vmem:[%s5088 + $0xc0] sm:$0xff]
        %v5114 = vld [vmem:[%s5088 + $0xc8] sm:$0xff]
        %v5115 = vld [vmem:[%s5088 + $0xd0] sm:$0xff]
        %v5116 = vld [vmem:[%s5088 + $0xd8] sm:$0xff]
        %v5117 = vld [vmem:[%s5088 + $0xe0] sm:$0xff]
        %v5118 = vld [vmem:[%s5088 + $0xe8] sm:$0xff]
        %v5119 = vld [vmem:[%s5088 + $0xf0] sm:$0xff]
        %v5120 = vld [vmem:[%s5088 + $0xf8] sm:$0xff]
        %v5121 = vld [vmem:[%s5088 + $0x100] sm:$0xff]
        %v5122 = vld [vmem:[%s5088 + $0x108] sm:$0xff]
        %v5123 = vld [vmem:[%s5088 + $0x110] sm:$0xff]
        %v5124 = vld [vmem:[%s5088 + $0x118] sm:$0xff]
        %v5125 = vld [vmem:[%s5088 + $0x120] sm:$0xff]
        %v5126 = vld [vmem:[%s5088 + $0x128] sm:$0xff]
        %v5127 = vld [vmem:[%s5088 + $0x130] sm:$0xff]
        %v5128 = vld [vmem:[%s5088 + $0x138] sm:$0xff]
        %v5129 = vld [vmem:[%s5088 + $0x140] sm:$0xff]
        %v5130 = vld [vmem:[%s5088 + $0x148] sm:$0xff]
        %v5131 = vld [vmem:[%s5088 + $0x150] sm:$0xff]
        %v5132 = vld [vmem:[%s5088 + $0x158] sm:$0xff]
        %v5133 = vld [vmem:[%s5088 + $0x160] sm:$0xff]
        %v5134 = vld [vmem:[%s5088 + $0x168] sm:$0xff]
        %v5135 = vld [vmem:[%s5088 + $0x170] sm:$0xff]
        %v5136 = vld [vmem:[%s5088 + $0x178] sm:$0xff]
        %v5137 = vld [vmem:[%s5088 + $0x180] sm:$0xff]
        %v5138 = vld [vmem:[%s5088 + $0x188] sm:$0xff]
        %v5139 = vld [vmem:[%s5088 + $0x190] sm:$0xff]
        %v5140 = vld [vmem:[%s5088 + $0x198] sm:$0xff]
        %v5141 = vld [vmem:[%s5088 + $0x1a0] sm:$0xff]
        %v5142 = vld [vmem:[%s5088 + $0x1a8] sm:$0xff]
        %v5143 = vld [vmem:[%s5088 + $0x1b0] sm:$0xff]
        %v5144 = vld [vmem:[%s5088 + $0x1b8] sm:$0xff]
        %v5145 = vld [vmem:[%s5088 + $0x1c0] sm:$0xff]
        %v5146 = vld [vmem:[%s5088 + $0x1c8] sm:$0xff]
        %v5147 = vld [vmem:[%s5088 + $0x1d0] sm:$0xff]
        %v5148 = vld [vmem:[%s5088 + $0x1d8] sm:$0xff]
        %v5149 = vld [vmem:[%s5088 + $0x1e0] sm:$0xff]
        %v5150 = vld [vmem:[%s5088 + $0x1e8] sm:$0xff]
        %v5151 = vld [vmem:[%s5088 + $0x1f0] sm:$0xff]
        %v5152 = vld [vmem:[%s5088 + $0x1f8] sm:$0xff]
        %v5153 = vld [vmem:[%s5088 + $0x200] sm:$0xff]
        %v5154 = vld [vmem:[%s5088 + $0x208] sm:$0xff]
        %v5155 = vld [vmem:[%s5088 + $0x210] sm:$0xff]
        %v5156 = vld [vmem:[%s5088 + $0x218] sm:$0xff]
        %v5157 = vld [vmem:[%s5088 + $0x220] sm:$0xff]
        %v5158 = vld [vmem:[%s5088 + $0x228] sm:$0xff]
        %v5159 = vld [vmem:[%s5088 + $0x230] sm:$0xff]
        %v5160 = vld [vmem:[%s5088 + $0x238] sm:$0xff]
        %v5161 = vld [vmem:[%s5088 + $0x240] sm:$0xff]
        %v5162 = vld [vmem:[%s5088 + $0x248] sm:$0xff]
        %v5163 = vld [vmem:[%s5088 + $0x250] sm:$0xff]
        %v5164 = vld [vmem:[%s5088 + $0x258] sm:$0xff]
        %v5165 = vld [vmem:[%s5088 + $0x260] sm:$0xff]
        %v5166 = vld [vmem:[%s5088 + $0x268] sm:$0xff]
        %v5167 = vld [vmem:[%s5088 + $0x270] sm:$0xff]
        %v5168 = vld [vmem:[%s5088 + $0x278] sm:$0xff]
        %v5169 = vld [vmem:[%s5088 + $0x280] sm:$0xff]
        %v5170 = vld [vmem:[%s5088 + $0x288] sm:$0xff]
        %v5171 = vld [vmem:[%s5088 + $0x290] sm:$0xff]
        %v5172 = vld [vmem:[%s5088 + $0x298] sm:$0xff]
        %v5173 = vld [vmem:[%s5088 + $0x2a0] sm:$0xff]
        %v5174 = vld [vmem:[%s5088 + $0x2a8] sm:$0xff]
        %v5175 = vld [vmem:[%s5088 + $0x2b0] sm:$0xff]
        %v5176 = vld [vmem:[%s5088 + $0x2b8] sm:$0xff]
        %v5177 = vld [vmem:[%s5088 + $0x2c0] sm:$0xff]
        %v5178 = vld [vmem:[%s5088 + $0x2c8] sm:$0xff]
        %v5179 = vld [vmem:[%s5088 + $0x2d0] sm:$0xff]
        %v5180 = vld [vmem:[%s5088 + $0x2d8] sm:$0xff]
        %v5181 = vld [vmem:[%s5088 + $0x2e0] sm:$0xff]
        %v5182 = vld [vmem:[%s5088 + $0x2e8] sm:$0xff]
        %v5183 = vld [vmem:[%s5088 + $0x2f0] sm:$0xff]
        %v5184 = vld [vmem:[%s5088 + $0x2f8] sm:$0xff]
        %v5185 = vld [vmem:[%s5088 + $0x300] sm:$0xff]
        %v5186 = vld [vmem:[%s5088 + $0x308] sm:$0xff]
        %v5187 = vld [vmem:[%s5088 + $0x310] sm:$0xff]
        %v5188 = vld [vmem:[%s5088 + $0x318] sm:$0xff]
        %v5189 = vld [vmem:[%s5088 + $0x320] sm:$0xff]
        %v5190 = vld [vmem:[%s5088 + $0x328] sm:$0xff]
        %v5191 = vld [vmem:[%s5088 + $0x330] sm:$0xff]
        %v5192 = vld [vmem:[%s5088 + $0x338] sm:$0xff]
        %v5193 = vld [vmem:[%s5088 + $0x340] sm:$0xff]
        %v5194 = vld [vmem:[%s5088 + $0x348] sm:$0xff]
        %v5195 = vld [vmem:[%s5088 + $0x350] sm:$0xff]
        %v5196 = vld [vmem:[%s5088 + $0x358] sm:$0xff]
        %v5197 = vld [vmem:[%s5088 + $0x360] sm:$0xff]
        %v5198 = vld [vmem:[%s5088 + $0x368] sm:$0xff]
        %v5199 = vld [vmem:[%s5088 + $0x370] sm:$0xff]
        %v5200 = vld [vmem:[%s5088 + $0x378] sm:$0xff]
        %v5201 = vld [vmem:[%s5088 + $0x380] sm:$0xff]
        %v5202 = vld [vmem:[%s5088 + $0x388] sm:$0xff]
        %v5203 = vld [vmem:[%s5088 + $0x390] sm:$0xff]
        %v5204 = vld [vmem:[%s5088 + $0x398] sm:$0xff]
        %v5205 = vld [vmem:[%s5088 + $0x3a0] sm:$0xff]
        %v5206 = vld [vmem:[%s5088 + $0x3a8] sm:$0xff]
        %v5207 = vld [vmem:[%s5088 + $0x3b0] sm:$0xff]
        %v5208 = vld [vmem:[%s5088 + $0x3b8] sm:$0xff]
        %v5209 = vld [vmem:[%s5088 + $0x3c0] sm:$0xff]
        %v5210 = vld [vmem:[%s5088 + $0x3c8] sm:$0xff]
        %v5211 = vld [vmem:[%s5088 + $0x3d0] sm:$0xff]
        %v5212 = vld [vmem:[%s5088 + $0x3d8] sm:$0xff]
        %v5213 = vld [vmem:[%s5088 + $0x3e0] sm:$0xff]
        %v5214 = vld [vmem:[%s5088 + $0x3e8] sm:$0xff]
        %v5215 = vld [vmem:[%s5088 + $0x3f0] sm:$0xff]
        %v5216 = vld [vmem:[%s5088 + $0x3f8] sm:$0xff]
        %v5217 = vld [vmem:[%s5088 + $0x400] sm:$0xff]
        %v5218 = vld [vmem:[%s5088 + $0x408] sm:$0xff]
        %v5219 = vld [vmem:[%s5088 + $0x410] sm:$0xff]
        %v5220 = vld [vmem:[%s5088 + $0x418] sm:$0xff]
        %v5221 = vld [vmem:[%s5088 + $0x420] sm:$0xff]
        %v5222 = vld [vmem:[%s5088 + $0x428] sm:$0xff]
        %v5223 = vld [vmem:[%s5088 + $0x430] sm:$0xff]
        %v5224 = vld [vmem:[%s5088 + $0x438] sm:$0xff]
        %v5225 = vld [vmem:[%s5088 + $0x440] sm:$0xff]
        %v5226 = vld [vmem:[%s5088 + $0x448] sm:$0xff]
        %v5227 = vld [vmem:[%s5088 + $0x450] sm:$0xff]
        %v5228 = vld [vmem:[%s5088 + $0x458] sm:$0xff]
        %v5229 = vld [vmem:[%s5088 + $0x460] sm:$0xff]
        %v5230 = vld [vmem:[%s5088 + $0x468] sm:$0xff]
        %v5231 = vld [vmem:[%s5088 + $0x470] sm:$0xff]
        %v5232 = vld [vmem:[%s5088 + $0x478] sm:$0xff]
        %v5233 = vld [vmem:[%s5088 + $0x480] sm:$0xff]
        %v5234 = vld [vmem:[%s5088 + $0x488] sm:$0xff]
        %v5235 = vld [vmem:[%s5088 + $0x490] sm:$0xff]
        %v5236 = vld [vmem:[%s5088 + $0x498] sm:$0xff]
        %v5237 = vld [vmem:[%s5088 + $0x4a0] sm:$0xff]
        %v5238 = vld [vmem:[%s5088 + $0x4a8] sm:$0xff]
        %v5239 = vld [vmem:[%s5088 + $0x4b0] sm:$0xff]
        %v5240 = vld [vmem:[%s5088 + $0x4b8] sm:$0xff]
        %v5241 = vld [vmem:[%s5088 + $0x4c0] sm:$0xff]
        %v5242 = vld [vmem:[%s5088 + $0x4c8] sm:$0xff]
        %v5243 = vld [vmem:[%s5088 + $0x4d0] sm:$0xff]
        %v5244 = vld [vmem:[%s5088 + $0x4d8] sm:$0xff]
        %v5245 = vld [vmem:[%s5088 + $0x4e0] sm:$0xff]
        %v5246 = vld [vmem:[%s5088 + $0x4e8] sm:$0xff]
        %v5247 = vld [vmem:[%s5088 + $0x4f0] sm:$0xff]
        %v5248 = vld [vmem:[%s5088 + $0x4f8] sm:$0xff]
        %v5249 = vld [vmem:[%s5088 + $0x500] sm:$0xff]
        %v5250 = vld [vmem:[%s5088 + $0x508] sm:$0xff]
        %v5251 = vld [vmem:[%s5088 + $0x510] sm:$0xff]
        %v5252 = vld [vmem:[%s5088 + $0x518] sm:$0xff]
        %v5253 = vld [vmem:[%s5088 + $0x520] sm:$0xff]
        %v5254 = vld [vmem:[%s5088 + $0x528] sm:$0xff]
        %v5255 = vld [vmem:[%s5088 + $0x530] sm:$0xff]
        %v5256 = vld [vmem:[%s5088 + $0x538] sm:$0xff]
        %v5257 = vld [vmem:[%s5088 + $0x540] sm:$0xff]
        %v5258 = vld [vmem:[%s5088 + $0x548] sm:$0xff]
        %v5259 = vld [vmem:[%s5088 + $0x550] sm:$0xff]
        %v5260 = vld [vmem:[%s5088 + $0x558] sm:$0xff]
        %v5261 = vld [vmem:[%s5088 + $0x560] sm:$0xff]
        %v5262 = vld [vmem:[%s5088 + $0x568] sm:$0xff]
        %v5263 = vld [vmem:[%s5088 + $0x570] sm:$0xff]
        %v5264 = vld [vmem:[%s5088 + $0x578] sm:$0xff]
        %vm5287 = vcmask 1041408
        %v5288 = vrot.slane %v5066, 6
        %v5289 = vrot.slane %v665, 6
        %v5290 = vsel %vm5287, %v5288, %v5289
        %v5291 = vrot.slane %v5067, 6
        %v5292 = vrot.slane %v666, 6
        %v5293 = vsel %vm5287, %v5291, %v5292
        %v5294 = vrot.slane %v5068, 6
        %v5295 = vrot.slane %v667, 6
        %v5296 = vsel %vm5287, %v5294, %v5295
        %v5297 = vrot.slane %v5069, 6
        %v5298 = vrot.slane %v668, 6
        %v5299 = vsel %vm5287, %v5297, %v5298
        %v5300 = vrot.slane %v5070, 6
        %v5301 = vrot.slane %v669, 6
        %v5302 = vsel %vm5287, %v5300, %v5301
        %v5303 = vrot.slane %v5071, 6
        %v5304 = vrot.slane %v670, 6
        %v5305 = vsel %vm5287, %v5303, %v5304
        %v5306 = vrot.slane %v5072, 6
        %v5307 = vrot.slane %v671, 6
        %v5308 = vsel %vm5287, %v5306, %v5307
        %v5309 = vrot.slane %v5073, 6
        %v5310 = vrot.slane %v672, 6
        %v5311 = vsel %vm5287, %v5309, %v5310
        %v5312 = vrot.slane %v5074, 6
        %v5313 = vrot.slane %v673, 6
        %v5314 = vsel %vm5287, %v5312, %v5313
        %v5315 = vrot.slane %v5075, 6
        %v5316 = vrot.slane %v674, 6
        %v5317 = vsel %vm5287, %v5315, %v5316
        %v5318 = vrot.slane %v5076, 6
        %v5319 = vrot.slane %v675, 6
        %v5320 = vsel %vm5287, %v5318, %v5319
        %v5321 = vrot.slane %v5077, 6
        %v5322 = vsel %vm5287, %v5289, %v5321
        %v5323 = vrot.slane %v5078, 6
        %v5324 = vsel %vm5287, %v5292, %v5323
        %v5325 = vrot.slane %v5079, 6
        %v5326 = vsel %vm5287, %v5295, %v5325
        %v5327 = vrot.slane %v5080, 6
        %v5328 = vsel %vm5287, %v5298, %v5327
        %v5329 = vrot.slane %v5081, 6
        %v5330 = vsel %vm5287, %v5301, %v5329
        %v5331 = vrot.slane %v5082, 6
        %v5332 = vsel %vm5287, %v5304, %v5331
        %v5333 = vrot.slane %v5083, 6
        %v5334 = vsel %vm5287, %v5307, %v5333
        %v5335 = vrot.slane %v5084, 6
        %v5336 = vsel %vm5287, %v5310, %v5335
        %v5337 = vrot.slane %v5085, 6
        %v5338 = vsel %vm5287, %v5313, %v5337
        %v5339 = vrot.slane %v5086, 6
        %v5340 = vsel %vm5287, %v5316, %v5339
        %v5341 = vrot.slane %v5087, 6
        %v5342 = vsel %vm5287, %v5319, %v5341
        %5365 = vmatprep.subr.mxu0 0.0
        %5366 = vmatpush1.msra.mxu0 %v5089
        %5367 = vmatprep.subr.mxu0 0.0
        %5368 = vmatpush1.msra.mxu0 %v5090
        %5369 = vmatprep.subr.mxu0 0.0
        %5370 = vmatpush1.msra.mxu0 %v5091
        %5371 = vmatprep.subr.mxu0 0.0
        %5372 = vmatpush1.msra.mxu0 %v5092
        %5373 = vmatprep.subr.mxu0 0.0
        %5374 = vmatpush1.msra.mxu0 %v5093
        %5375 = vmatprep.subr.mxu0 0.0
        %5376 = vmatpush1.msra.mxu0 %v5094
        %5377 = vmatprep.subr.mxu0 0.0
        %5378 = vmatpush1.msra.mxu0 %v5095
        %5379 = vmatprep.subr.mxu0 0.0
        %5380 = vmatpush1.msra.mxu0 %v5096
        %5381 = vmatprep.subr.mxu0 0.0
        %5382 = vmatpush1.msra.mxu0 %v5097
        %5383 = vmatprep.subr.mxu0 0.0
        %5384 = vmatpush1.msra.mxu0 %v5098
        %5385 = vmatprep.subr.mxu0 0.0
        %5386 = vmatpush1.msra.mxu0 %v5099
        %5387 = vmatprep.subr.mxu0 0.0
        %5388 = vmatpush1.msra.mxu0 %v5100
        %5389 = vmatprep.subr.mxu0 0.0
        %5390 = vmatpush1.msra.mxu0 %v5101
        %5391 = vmatprep.subr.mxu0 0.0
        %5392 = vmatpush1.msra.mxu0 %v5102
        %5393 = vmatprep.subr.mxu0 0.0
        %5394 = vmatpush1.msra.mxu0 %v5103
        %5395 = vmatprep.subr.mxu0 0.0
        %5396 = vmatpush1.msra.mxu0 %v5104
        %5397 = vmatprep.subr.mxu0 0.0
        %5398 = vmatpush1.msra.mxu0 %v5105
        %5399 = vmatprep.subr.mxu0 0.0
        %5400 = vmatpush1.msra.mxu0 %v5106
        %5401 = vmatprep.subr.mxu0 0.0
        %5402 = vmatpush1.msra.mxu0 %v5107
        %5403 = vmatprep.subr.mxu0 0.0
        %5404 = vmatpush1.msra.mxu0 %v5108
        %5405 = vmatprep.subr.mxu0 0.0
        %5406 = vmatpush1.msra.mxu0 %v5109
        %5407 = vmatprep.subr.mxu0 0.0
        %5408 = vmatpush1.msra.mxu0 %v5110
        %5409 = vmatprep.subr.mxu0 0.0
        %5410 = vmatpush1.msra.mxu0 %v5111
        %5411 = vmatprep.subr.mxu0 0.0
        %5412 = vmatpush1.msra.mxu0 %v5112
        %5413 = vmatprep.subr.mxu0 0.0
        %5414 = vmatpush1.msra.mxu0 %v5113
        %5415 = vmatprep.subr.mxu0 0.0
        %5416 = vmatpush1.msra.mxu0 %v5114
        %5417 = vmatprep.subr.mxu0 0.0
        %5418 = vmatpush1.msra.mxu0 %v5115
        %5419 = vmatprep.subr.mxu0 0.0
        %5420 = vmatpush1.msra.mxu0 %v5116
        %5421 = vmatprep.subr.mxu0 0.0
        %5422 = vmatpush1.msra.mxu0 %v5117
        %5423 = vmatprep.subr.mxu0 0.0
        %5424 = vmatpush1.msra.mxu0 %v5118
        %5425 = vmatprep.subr.mxu0 0.0
        %5426 = vmatpush1.msra.mxu0 %v5119
        %5427 = vmatprep.subr.mxu0 0.0
        %5428 = vmatpush1.msra.mxu0 %v5120
        %5429 = vmatprep.mubr.f32.mxu0 %v5293
        %5430 = vmatmul.mubr.f32.gmra.mrb[0].mxu0 %v5290
        %v5431 = vpop.f32.mrb[0].mxu0
        %v5432 = vadd.f32 0.0, %v5431
        %v5433 = vpop.f32.mrb[0].mxu0
        %5434 = vmatprep.mubr.f32.mxu0 %v5324
        %5435 = vmatmul.mubr.f32.gmra.mrb[0].mxu0 %v5322
        %v5436 = vpop.f32.mrb[0].mxu0
        %v5437 = vadd.f32 0.0, %v5436
        %v5438 = vpop.f32.mrb[0].mxu0
        %5439 = vdwg.mxu0
        %5440 = vmatprep.subr.mxu0 0.0
        %5441 = vmatpush1.msra.mxu0 %v5121
        %5442 = vmatprep.subr.mxu0 0.0
        %5443 = vmatpush1.msra.mxu0 %v5122
        %5444 = vmatprep.subr.mxu0 0.0
        %5445 = vmatpush1.msra.mxu0 %v5123
        %5446 = vmatprep.subr.mxu0 0.0
        %5447 = vmatpush1.msra.mxu0 %v5124
        %5448 = vmatprep.subr.mxu0 0.0
        %5449 = vmatpush1.msra.mxu0 %v5125
        %5450 = vmatprep.subr.mxu0 0.0
        %5451 = vmatpush1.msra.mxu0 %v5126
        %5452 = vmatprep.subr.mxu0 0.0
        %5453 = vmatpush1.msra.mxu0 %v5127
        %5454 = vmatprep.subr.mxu0 0.0
        %5455 = vmatpush1.msra.mxu0 %v5128
        %5456 = vmatprep.subr.mxu0 0.0
        %5457 = vmatpush1.msra.mxu0 %v5129
        %5458 = vmatprep.subr.mxu0 0.0
        %5459 = vmatpush1.msra.mxu0 %v5130
        %5460 = vmatprep.subr.mxu0 0.0
        %5461 = vmatpush1.msra.mxu0 %v5131
        %5462 = vmatprep.subr.mxu0 0.0
        %5463 = vmatpush1.msra.mxu0 %v5132
        %5464 = vmatprep.subr.mxu0 0.0
        %5465 = vmatpush1.msra.mxu0 %v5133
        %5466 = vmatprep.subr.mxu0 0.0
        %5467 = vmatpush1.msra.mxu0 %v5134
        %5468 = vmatprep.subr.mxu0 0.0
        %5469 = vmatpush1.msra.mxu0 %v5135
        %5470 = vmatprep.subr.mxu0 0.0
        %5471 = vmatpush1.msra.mxu0 %v5136
        %5472 = vmatprep.subr.mxu0 0.0
        %5473 = vmatpush1.msra.mxu0 %v5137
        %5474 = vmatprep.subr.mxu0 0.0
        %5475 = vmatpush1.msra.mxu0 %v5138
        %5476 = vmatprep.subr.mxu0 0.0
        %5477 = vmatpush1.msra.mxu0 %v5139
        %5478 = vmatprep.subr.mxu0 0.0
        %5479 = vmatpush1.msra.mxu0 %v5140
        %5480 = vmatprep.subr.mxu0 0.0
        %5481 = vmatpush1.msra.mxu0 %v5141
        %5482 = vmatprep.subr.mxu0 0.0
        %5483 = vmatpush1.msra.mxu0 %v5142
        %5484 = vmatprep.subr.mxu0 0.0
        %5485 = vmatpush1.msra.mxu0 %v5143
        %5486 = vmatprep.subr.mxu0 0.0
        %5487 = vmatpush1.msra.mxu0 %v5144
        %5488 = vmatprep.subr.mxu0 0.0
        %5489 = vmatpush1.msra.mxu0 %v5145
        %5490 = vmatprep.subr.mxu0 0.0
        %5491 = vmatpush1.msra.mxu0 %v5146
        %5492 = vmatprep.subr.mxu0 0.0
        %5493 = vmatpush1.msra.mxu0 %v5147
        %5494 = vmatprep.subr.mxu0 0.0
        %5495 = vmatpush1.msra.mxu0 %v5148
        %5496 = vmatprep.subr.mxu0 0.0
        %5497 = vmatpush1.msra.mxu0 %v5149
        %5498 = vmatprep.subr.mxu0 0.0
        %5499 = vmatpush1.msra.mxu0 %v5150
        %5500 = vmatprep.subr.mxu0 0.0
        %5501 = vmatpush1.msra.mxu0 %v5151
        %5502 = vmatprep.subr.mxu0 0.0
        %5503 = vmatpush1.msra.mxu0 %v5152
        %5504 = vmatprep.mubr.f32.mxu0 %v5299
        %5505 = vmatmul.mubr.f32.gmra.mrb[0].mxu0 %v5296
        %v5506 = vpop.f32.mrb[0].mxu0
        %v5507 = vadd.f32 %v5432, %v5506
        %v5508 = vpop.f32.mrb[0].mxu0
        %5509 = vmatprep.mubr.f32.mxu0 %v5328
        %5510 = vmatmul.mubr.f32.gmra.mrb[0].mxu0 %v5326
        %v5511 = vpop.f32.mrb[0].mxu0
        %v5512 = vadd.f32 %v5437, %v5511
        %v5513 = vpop.f32.mrb[0].mxu0
        %5514 = vdwg.mxu0
        %5515 = vmatprep.subr.mxu0 0.0
        %5516 = vmatpush1.msra.mxu0 %v5153
        %5517 = vmatprep.subr.mxu0 0.0
        %5518 = vmatpush1.msra.mxu0 %v5154
        %5519 = vmatprep.subr.mxu0 0.0
        %5520 = vmatpush1.msra.mxu0 %v5155
        %5521 = vmatprep.subr.mxu0 0.0
        %5522 = vmatpush1.msra.mxu0 %v5156
        %5523 = vmatprep.subr.mxu0 0.0
        %5524 = vmatpush1.msra.mxu0 %v5157
        %5525 = vmatprep.subr.mxu0 0.0
        %5526 = vmatpush1.msra.mxu0 %v5158
        %5527 = vmatprep.subr.mxu0 0.0
        %5528 = vmatpush1.msra.mxu0 %v5159
        %5529 = vmatprep.subr.mxu0 0.0
        %5530 = vmatpush1.msra.mxu0 %v5160
        %5531 = vmatprep.subr.mxu0 0.0
        %5532 = vmatpush1.msra.mxu0 %v5161
        %5533 = vmatprep.subr.mxu0 0.0
        %5534 = vmatpush1.msra.mxu0 %v5162
        %5535 = vmatprep.subr.mxu0 0.0
        %5536 = vmatpush1.msra.mxu0 %v5163
        %5537 = vmatprep.subr.mxu0 0.0
        %5538 = vmatpush1.msra.mxu0 %v5164
        %5539 = vmatprep.subr.mxu0 0.0
        %5540 = vmatpush1.msra.mxu0 %v5165
        %5541 = vmatprep.subr.mxu0 0.0
        %5542 = vmatpush1.msra.mxu0 %v5166
        %5543 = vmatprep.subr.mxu0 0.0
        %5544 = vmatpush1.msra.mxu0 %v5167
        %5545 = vmatprep.subr.mxu0 0.0
        %5546 = vmatpush1.msra.mxu0 %v5168
        %5547 = vmatprep.subr.mxu0 0.0
        %5548 = vmatpush1.msra.mxu0 %v5169
        %5549 = vmatprep.subr.mxu0 0.0
        %5550 = vmatpush1.msra.mxu0 %v5170
        %5551 = vmatprep.subr.mxu0 0.0
        %5552 = vmatpush1.msra.mxu0 %v5171
        %5553 = vmatprep.subr.mxu0 0.0
        %5554 = vmatpush1.msra.mxu0 %v5172
        %5555 = vmatprep.subr.mxu0 0.0
        %5556 = vmatpush1.msra.mxu0 %v5173
        %5557 = vmatprep.subr.mxu0 0.0
        %5558 = vmatpush1.msra.mxu0 %v5174
        %5559 = vmatprep.subr.mxu0 0.0
        %5560 = vmatpush1.msra.mxu0 %v5175
        %5561 = vmatprep.subr.mxu0 0.0
        %5562 = vmatpush1.msra.mxu0 %v5176
        %5563 = vmatprep.subr.mxu0 0.0
        %5564 = vmatpush1.msra.mxu0 %v5177
        %5565 = vmatprep.subr.mxu0 0.0
        %5566 = vmatpush1.msra.mxu0 %v5178
        %5567 = vmatprep.subr.mxu0 0.0
        %5568 = vmatpush1.msra.mxu0 %v5179
        %5569 = vmatprep.subr.mxu0 0.0
        %5570 = vmatpush1.msra.mxu0 %v5180
        %5571 = vmatprep.subr.mxu0 0.0
        %5572 = vmatpush1.msra.mxu0 %v5181
        %5573 = vmatprep.subr.mxu0 0.0
        %5574 = vmatpush1.msra.mxu0 %v5182
        %5575 = vmatprep.subr.mxu0 0.0
        %5576 = vmatpush1.msra.mxu0 %v5183
        %5577 = vmatprep.subr.mxu0 0.0
        %5578 = vmatpush1.msra.mxu0 %v5184
        %5579 = vmatprep.mubr.f32.mxu0 %v5305
        %5580 = vmatmul.mubr.f32.gmra.mrb[0].mxu0 %v5302
        %v5581 = vpop.f32.mrb[0].mxu0
        %v5582 = vadd.f32 %v5507, %v5581
        %v5583 = vpop.f32.mrb[0].mxu0
        %5584 = vmatprep.mubr.f32.mxu0 %v5332
        %5585 = vmatmul.mubr.f32.gmra.mrb[0].mxu0 %v5330
        %v5586 = vpop.f32.mrb[0].mxu0
        %v5587 = vadd.f32 %v5512, %v5586
        %v5588 = vpop.f32.mrb[0].mxu0
        %5589 = vdwg.mxu0
        %5590 = vmatprep.subr.mxu0 0.0
        %5591 = vmatpush1.msra.mxu0 %v5185
        %5592 = vmatprep.subr.mxu0 0.0
        %5593 = vmatpush1.msra.mxu0 %v5186
        %5594 = vmatprep.subr.mxu0 0.0
        %5595 = vmatpush1.msra.mxu0 %v5187
        %5596 = vmatprep.subr.mxu0 0.0
        %5597 = vmatpush1.msra.mxu0 %v5188
        %5598 = vmatprep.subr.mxu0 0.0
        %5599 = vmatpush1.msra.mxu0 %v5189
        %5600 = vmatprep.subr.mxu0 0.0
        %5601 = vmatpush1.msra.mxu0 %v5190
        %5602 = vmatprep.subr.mxu0 0.0
        %5603 = vmatpush1.msra.mxu0 %v5191
        %5604 = vmatprep.subr.mxu0 0.0
        %5605 = vmatpush1.msra.mxu0 %v5192
        %5606 = vmatprep.subr.mxu0 0.0
        %5607 = vmatpush1.msra.mxu0 %v5193
        %5608 = vmatprep.subr.mxu0 0.0
        %5609 = vmatpush1.msra.mxu0 %v5194
        %5610 = vmatprep.subr.mxu0 0.0
        %5611 = vmatpush1.msra.mxu0 %v5195
        %5612 = vmatprep.subr.mxu0 0.0
        %5613 = vmatpush1.msra.mxu0 %v5196
        %5614 = vmatprep.subr.mxu0 0.0
        %5615 = vmatpush1.msra.mxu0 %v5197
        %5616 = vmatprep.subr.mxu0 0.0
        %5617 = vmatpush1.msra.mxu0 %v5198
        %5618 = vmatprep.subr.mxu0 0.0
        %5619 = vmatpush1.msra.mxu0 %v5199
        %5620 = vmatprep.subr.mxu0 0.0
        %5621 = vmatpush1.msra.mxu0 %v5200
        %5622 = vmatprep.subr.mxu0 0.0
        %5623 = vmatpush1.msra.mxu0 %v5201
        %5624 = vmatprep.subr.mxu0 0.0
        %5625 = vmatpush1.msra.mxu0 %v5202
        %5626 = vmatprep.subr.mxu0 0.0
        %5627 = vmatpush1.msra.mxu0 %v5203
        %5628 = vmatprep.subr.mxu0 0.0
        %5629 = vmatpush1.msra.mxu0 %v5204
        %5630 = vmatprep.subr.mxu0 0.0
        %5631 = vmatpush1.msra.mxu0 %v5205
        %5632 = vmatprep.subr.mxu0 0.0
        %5633 = vmatpush1.msra.mxu0 %v5206
        %5634 = vmatprep.subr.mxu0 0.0
        %5635 = vmatpush1.msra.mxu0 %v5207
        %5636 = vmatprep.subr.mxu0 0.0
        %5637 = vmatpush1.msra.mxu0 %v5208
        %5638 = vmatprep.subr.mxu0 0.0
        %5639 = vmatpush1.msra.mxu0 %v5209
        %5640 = vmatprep.subr.mxu0 0.0
        %5641 = vmatpush1.msra.mxu0 %v5210
        %5642 = vmatprep.subr.mxu0 0.0
        %5643 = vmatpush1.msra.mxu0 %v5211
        %5644 = vmatprep.subr.mxu0 0.0
        %5645 = vmatpush1.msra.mxu0 %v5212
        %5646 = vmatprep.subr.mxu0 0.0
        %5647 = vmatpush1.msra.mxu0 %v5213
        %5648 = vmatprep.subr.mxu0 0.0
        %5649 = vmatpush1.msra.mxu0 %v5214
        %5650 = vmatprep.subr.mxu0 0.0
        %5651 = vmatpush1.msra.mxu0 %v5215
        %5652 = vmatprep.subr.mxu0 0.0
        %5653 = vmatpush1.msra.mxu0 %v5216
        %5654 = vmatprep.mubr.f32.mxu0 %v5311
        %5655 = vmatmul.mubr.f32.gmra.mrb[0].mxu0 %v5308
        %v5656 = vpop.f32.mrb[0].mxu0
        %v5657 = vadd.f32 %v5582, %v5656
        %v5658 = vpop.f32.mrb[0].mxu0
        %5659 = vmatprep.mubr.f32.mxu0 %v5336
        %5660 = vmatmul.mubr.f32.gmra.mrb[0].mxu0 %v5334
        %v5661 = vpop.f32.mrb[0].mxu0
        %v5662 = vadd.f32 %v5587, %v5661
        %v5663 = vpop.f32.mrb[0].mxu0
        %5664 = vdwg.mxu0
        %5665 = vmatprep.subr.mxu0 0.0
        %5666 = vmatpush1.msra.mxu0 %v5217
        %5667 = vmatprep.subr.mxu0 0.0
        %5668 = vmatpush1.msra.mxu0 %v5218
        %5669 = vmatprep.subr.mxu0 0.0
        %5670 = vmatpush1.msra.mxu0 %v5219
        %5671 = vmatprep.subr.mxu0 0.0
        %5672 = vmatpush1.msra.mxu0 %v5220
        %5673 = vmatprep.subr.mxu0 0.0
        %5674 = vmatpush1.msra.mxu0 %v5221
        %5675 = vmatprep.subr.mxu0 0.0
        %5676 = vmatpush1.msra.mxu0 %v5222
        %5677 = vmatprep.subr.mxu0 0.0
        %5678 = vmatpush1.msra.mxu0 %v5223
        %5679 = vmatprep.subr.mxu0 0.0
        %5680 = vmatpush1.msra.mxu0 %v5224
        %5681 = vmatprep.subr.mxu0 0.0
        %5682 = vmatpush1.msra.mxu0 %v5225
        %5683 = vmatprep.subr.mxu0 0.0
        %5684 = vmatpush1.msra.mxu0 %v5226
        %5685 = vmatprep.subr.mxu0 0.0
        %5686 = vmatpush1.msra.mxu0 %v5227
        %5687 = vmatprep.subr.mxu0 0.0
        %5688 = vmatpush1.msra.mxu0 %v5228
        %5689 = vmatprep.subr.mxu0 0.0
        %5690 = vmatpush1.msra.mxu0 %v5229
        %5691 = vmatprep.subr.mxu0 0.0
        %5692 = vmatpush1.msra.mxu0 %v5230
        %5693 = vmatprep.subr.mxu0 0.0
        %5694 = vmatpush1.msra.mxu0 %v5231
        %5695 = vmatprep.subr.mxu0 0.0
        %5696 = vmatpush1.msra.mxu0 %v5232
        %5697 = vmatprep.subr.mxu0 0.0
        %5698 = vmatpush1.msra.mxu0 %v5233
        %5699 = vmatprep.subr.mxu0 0.0
        %5700 = vmatpush1.msra.mxu0 %v5234
        %5701 = vmatprep.subr.mxu0 0.0
        %5702 = vmatpush1.msra.mxu0 %v5235
        %5703 = vmatprep.subr.mxu0 0.0
        %5704 = vmatpush1.msra.mxu0 %v5236
        %5705 = vmatprep.subr.mxu0 0.0
        %5706 = vmatpush1.msra.mxu0 %v5237
        %5707 = vmatprep.subr.mxu0 0.0
        %5708 = vmatpush1.msra.mxu0 %v5238
        %5709 = vmatprep.subr.mxu0 0.0
        %5710 = vmatpush1.msra.mxu0 %v5239
        %5711 = vmatprep.subr.mxu0 0.0
        %5712 = vmatpush1.msra.mxu0 %v5240
        %5713 = vmatprep.subr.mxu0 0.0
        %5714 = vmatpush1.msra.mxu0 %v5241
        %5715 = vmatprep.subr.mxu0 0.0
        %5716 = vmatpush1.msra.mxu0 %v5242
        %5717 = vmatprep.subr.mxu0 0.0
        %5718 = vmatpush1.msra.mxu0 %v5243
        %5719 = vmatprep.subr.mxu0 0.0
        %5720 = vmatpush1.msra.mxu0 %v5244
        %5721 = vmatprep.subr.mxu0 0.0
        %5722 = vmatpush1.msra.mxu0 %v5245
        %5723 = vmatprep.subr.mxu0 0.0
        %5724 = vmatpush1.msra.mxu0 %v5246
        %5725 = vmatprep.subr.mxu0 0.0
        %5726 = vmatpush1.msra.mxu0 %v5247
        %5727 = vmatprep.subr.mxu0 0.0
        %5728 = vmatpush1.msra.mxu0 %v5248
        %5729 = vmatprep.mubr.f32.mxu0 %v5317
        %5730 = vmatmul.mubr.f32.gmra.mrb[0].mxu0 %v5314
        %v5731 = vpop.f32.mrb[0].mxu0
        %v5732 = vadd.f32 %v5657, %v5731
        %v5733 = vpop.f32.mrb[0].mxu0
        %5734 = vmatprep.mubr.f32.mxu0 %v5340
        %5735 = vmatmul.mubr.f32.gmra.mrb[0].mxu0 %v5338
        %v5736 = vpop.f32.mrb[0].mxu0
        %v5737 = vadd.f32 %v5662, %v5736
        %v5738 = vpop.f32.mrb[0].mxu0
        %5739 = vdwg.mxu0
        %5740 = vmatprep.subr.mxu0 0.0
        %5741 = vmatpush1.msra.mxu0 %v5249
        %5742 = vmatprep.subr.mxu0 0.0
        %5743 = vmatpush1.msra.mxu0 %v5250
        %5744 = vmatprep.subr.mxu0 0.0
        %5745 = vmatpush1.msra.mxu0 %v5251
        %5746 = vmatprep.subr.mxu0 0.0
        %5747 = vmatpush1.msra.mxu0 %v5252
        %5748 = vmatprep.subr.mxu0 0.0
        %5749 = vmatpush1.msra.mxu0 %v5253
        %5750 = vmatprep.subr.mxu0 0.0
        %5751 = vmatpush1.msra.mxu0 %v5254
        %5752 = vmatprep.subr.mxu0 0.0
        %5753 = vmatpush1.msra.mxu0 %v5255
        %5754 = vmatprep.subr.mxu0 0.0
        %5755 = vmatpush1.msra.mxu0 %v5256
        %5756 = vmatprep.subr.mxu0 0.0
        %5757 = vmatpush1.msra.mxu0 %v5257
        %5758 = vmatprep.subr.mxu0 0.0
        %5759 = vmatpush1.msra.mxu0 %v5258
        %5760 = vmatprep.subr.mxu0 0.0
        %5761 = vmatpush1.msra.mxu0 %v5259
        %5762 = vmatprep.subr.mxu0 0.0
        %5763 = vmatpush1.msra.mxu0 %v5260
        %5764 = vmatprep.subr.mxu0 0.0
        %5765 = vmatpush1.msra.mxu0 %v5261
        %5766 = vmatprep.subr.mxu0 0.0
        %5767 = vmatpush1.msra.mxu0 %v5262
        %5768 = vmatprep.subr.mxu0 0.0
        %5769 = vmatpush1.msra.mxu0 %v5263
        %5770 = vmatprep.subr.mxu0 0.0
        %5771 = vmatpush1.msra.mxu0 %v5264
        %5772 = vmatprep.subr.mxu0 0.0
        %5773 = vmatpush1.msra.mxu0 0.0
        %5774 = vmatprep.subr.mxu0 0.0
        %5775 = vmatpush1.msra.mxu0 0.0
        %5776 = vmatprep.subr.mxu0 0.0
        %5777 = vmatpush1.msra.mxu0 0.0
        %5778 = vmatprep.subr.mxu0 0.0
        %5779 = vmatpush1.msra.mxu0 0.0
        %5780 = vmatprep.subr.mxu0 0.0
        %5781 = vmatpush1.msra.mxu0 0.0
        %5782 = vmatprep.subr.mxu0 0.0
        %5783 = vmatpush1.msra.mxu0 0.0
        %5784 = vmatprep.subr.mxu0 0.0
        %5785 = vmatpush1.msra.mxu0 0.0
        %5786 = vmatprep.subr.mxu0 0.0
        %5787 = vmatpush1.msra.mxu0 0.0
        %5788 = vmatprep.subr.mxu0 0.0
        %5789 = vmatpush1.msra.mxu0 0.0
        %5790 = vmatprep.subr.mxu0 0.0
        %5791 = vmatpush1.msra.mxu0 0.0
        %5792 = vmatprep.subr.mxu0 0.0
        %5793 = vmatpush1.msra.mxu0 0.0
        %5794 = vmatprep.subr.mxu0 0.0
        %5795 = vmatpush1.msra.mxu0 0.0
        %5796 = vmatprep.subr.mxu0 0.0
        %5797 = vmatpush1.msra.mxu0 0.0
        %5798 = vmatprep.subr.mxu0 0.0
        %5799 = vmatpush1.msra.mxu0 0.0
        %5800 = vmatprep.subr.mxu0 0.0
        %5801 = vmatpush1.msra.mxu0 0.0
        %5802 = vmatprep.subr.mxu0 0.0
        %5803 = vmatpush1.msra.mxu0 0.0
        %5804 = vmatprep.mubr.f32.mxu0 0.0
        %5805 = vmatmul.mubr.f32.gmra.mrb[0].mxu0 %v5320
        %v5806 = vpop.f32.mrb[0].mxu0
        %v5807 = vadd.f32 %v5732, %v5806
        %v5808 = vpop.f32.mrb[0].mxu0
        %5809 = vmatprep.mubr.f32.mxu0 0.0
        %5810 = vmatmul.mubr.f32.gmra.mrb[0].mxu0 %v5342
        %v5811 = vpop.f32.mrb[0].mxu0
        %v5812 = vadd.f32 %v5737, %v5811
        %v5813 = vpop.f32.mrb[0].mxu0
        %5814 = vdwg.mxu0
        %v5815 = vadd.f32 %v5064, %v5807
        %v5816 = vadd.f32 %v5065, %v5812
        %v5817 = vld [vmem:[%s2] sm:$0x1]
        %v5819 = vlaneseq
        %v5820 = vshrl.u32 %v5819, 7
        %v5821 = vsub.s32 0, %v5820
        %v5822 = vrot.slane %v5817, %v5821
        %v5824 = vadd.f32 %v5815, %v5822
        %v5825 = vadd.f32 %v5816, %v5822
        %v5826 = vmax.f32 %v5824, 0.0
        %v5827 = vmax.f32 %v5825, 0.0
        %v5828 = vld [vmem:[%s4] sm:$0xf]
        %v5829 = vld [vmem:[%s3] sm:$0xff]
        %v5830 = vld [vmem:[%s3 + $0x8] sm:$0xff]
        %v5831 = vld [vmem:[%s3 + $0x10] sm:$0xff]
        %v5832 = vld [vmem:[%s3 + $0x18] sm:$0xff]
        %v5833 = vld [vmem:[%s3 + $0x20] sm:$0xff]
        %v5834 = vld [vmem:[%s3 + $0x28] sm:$0xff]
        %v5835 = vld [vmem:[%s3 + $0x30] sm:$0xff]
        %v5836 = vld [vmem:[%s3 + $0x38] sm:$0xff]
        %v5837 = vld [vmem:[%s3 + $0x40] sm:$0xff]
        %v5838 = vld [vmem:[%s3 + $0x48] sm:$0xff]
        %v5839 = vld [vmem:[%s3 + $0x50] sm:$0xff]
        %v5840 = vld [vmem:[%s3 + $0x58] sm:$0xff]
        %v5841 = vld [vmem:[%s3 + $0x60] sm:$0xff]
        %v5842 = vld [vmem:[%s3 + $0x68] sm:$0xff]
        %v5843 = vld [vmem:[%s3 + $0x70] sm:$0xff]
        %v5844 = vld [vmem:[%s3 + $0x78] sm:$0xff]
        %v5845 = vld [vmem:[%s3 + $0x80] sm:$0xff]
        %v5846 = vld [vmem:[%s3 + $0x88] sm:$0xff]
        %v5847 = vld [vmem:[%s3 + $0x90] sm:$0xff]
        %v5848 = vld [vmem:[%s3 + $0x98] sm:$0xff]
        %v5849 = vld [vmem:[%s3 + $0xa0] sm:$0xff]
        %v5850 = vld [vmem:[%s3 + $0xa8] sm:$0xff]
        %v5851 = vld [vmem:[%s3 + $0xb0] sm:$0xff]
        %v5852 = vld [vmem:[%s3 + $0xb8] sm:$0xff]
        %v5853 = vld [vmem:[%s3 + $0xc0] sm:$0xff]
        %v5854 = vld [vmem:[%s3 + $0xc8] sm:$0xff]
        %v5855 = vld [vmem:[%s3 + $0xd0] sm:$0xff]
        %v5856 = vld [vmem:[%s3 + $0xd8] sm:$0xff]
        %v5857 = vld [vmem:[%s3 + $0xe0] sm:$0xff]
        %v5858 = vld [vmem:[%s3 + $0xe8] sm:$0xff]
        %v5859 = vld [vmem:[%s3 + $0xf0] sm:$0xff]
        %v5860 = vld [vmem:[%s3 + $0xf8] sm:$0xff]
        %vm5861 = vcmask 523264
        %v5863 = vsel %vm5861, %v5826, 0
        %5865 = vmatprep.subr.mxu0 %v5830
        %5866 = vmatpush1.msra.mxu0 %v5829
        %5867 = vmatprep.subr.mxu0 %v5834
        %5868 = vmatpush1.msra.mxu0 %v5833
        %5869 = vmatprep.subr.mxu0 %v5838
        %5870 = vmatpush1.msra.mxu0 %v5837
        %5871 = vmatprep.subr.mxu0 %v5842
        %5872 = vmatpush1.msra.mxu0 %v5841
        %5873 = vmatprep.subr.mxu0 %v5846
        %5874 = vmatpush1.msra.mxu0 %v5845
        %5875 = vmatprep.subr.mxu0 %v5850
        %5876 = vmatpush1.msra.mxu0 %v5849
        %5877 = vmatprep.subr.mxu0 %v5854
        %5878 = vmatpush1.msra.mxu0 %v5853
        %5879 = vmatprep.subr.mxu0 %v5858
        %5880 = vmatpush1.msra.mxu0 %v5857
        %5881 = vmatprep.subr.mxu0 0.0
        %5882 = vmatpush1.msra.mxu0 0.0
        %5883 = vmatprep.subr.mxu0 0.0
        %5884 = vmatpush1.msra.mxu0 0.0
        %5885 = vmatprep.subr.mxu0 0.0
        %5886 = vmatpush1.msra.mxu0 0.0
        %5887 = vmatprep.subr.mxu0 0.0
        %5888 = vmatpush1.msra.mxu0 0.0
        %5889 = vmatprep.subr.mxu0 0.0
        %5890 = vmatpush1.msra.mxu0 0.0
        %5891 = vmatprep.subr.mxu0 0.0
        %5892 = vmatpush1.msra.mxu0 0.0
        %5893 = vmatprep.subr.mxu0 0.0
        %5894 = vmatpush1.msra.mxu0 0.0
        %5895 = vmatprep.subr.mxu0 0.0
        %5896 = vmatpush1.msra.mxu0 0.0
        %5897 = vmatprep.subr.mxu0 0.0
        %5898 = vmatpush1.msra.mxu0 0.0
        %5899 = vmatprep.subr.mxu0 0.0
        %5900 = vmatpush1.msra.mxu0 0.0
        %5901 = vmatprep.subr.mxu0 0.0
        %5902 = vmatpush1.msra.mxu0 0.0
        %5903 = vmatprep.subr.mxu0 0.0
        %5904 = vmatpush1.msra.mxu0 0.0
        %5905 = vmatprep.subr.mxu0 0.0
        %5906 = vmatpush1.msra.mxu0 0.0
        %5907 = vmatprep.subr.mxu0 0.0
        %5908 = vmatpush1.msra.mxu0 0.0
        %5909 = vmatprep.subr.mxu0 0.0
        %5910 = vmatpush1.msra.mxu0 0.0
        %5911 = vmatprep.subr.mxu0 0.0
        %5912 = vmatpush1.msra.mxu0 0.0
        %5913 = vmatprep.subr.mxu0 0.0
        %5914 = vmatpush1.msra.mxu0 0.0
        %5915 = vmatprep.subr.mxu0 0.0
        %5916 = vmatpush1.msra.mxu0 0.0
        %5917 = vmatprep.subr.mxu0 0.0
        %5918 = vmatpush1.msra.mxu0 0.0
        %5919 = vmatprep.subr.mxu0 0.0
        %5920 = vmatpush1.msra.mxu0 0.0
        %5921 = vmatprep.subr.mxu0 0.0
        %5922 = vmatpush1.msra.mxu0 0.0
        %5923 = vmatprep.subr.mxu0 0.0
        %5924 = vmatpush1.msra.mxu0 0.0
        %5925 = vmatprep.subr.mxu0 0.0
        %5926 = vmatpush1.msra.mxu0 0.0
        %5927 = vmatprep.subr.mxu0 0.0
        %5928 = vmatpush1.msra.mxu0 0.0
        %5929 = vmatprep.mubr.f32.mxu0 0.0
        %5930 = vmatmul.mubr.f32.gmra.mrb[0].mxu0 %v5863
        %v5931 = vpop.f32.mrb[0].mxu0
        %v5932 = vadd.f32 0.0, %v5931
        %v5933 = vpop.f32.mrb[0].mxu0
        %v5934 = vadd.f32 0.0, %v5933
        %5935 = vdwg.mxu0
        %5936 = vmatprep.subr.mxu0 %v5832
        %5937 = vmatpush1.msra.mxu0 %v5831
        %5938 = vmatprep.subr.mxu0 %v5836
        %5939 = vmatpush1.msra.mxu0 %v5835
        %5940 = vmatprep.subr.mxu0 %v5840
        %5941 = vmatpush1.msra.mxu0 %v5839
        %5942 = vmatprep.subr.mxu0 %v5844
        %5943 = vmatpush1.msra.mxu0 %v5843
        %5944 = vmatprep.subr.mxu0 %v5848
        %5945 = vmatpush1.msra.mxu0 %v5847
        %5946 = vmatprep.subr.mxu0 %v5852
        %5947 = vmatpush1.msra.mxu0 %v5851
        %5948 = vmatprep.subr.mxu0 %v5856
        %5949 = vmatpush1.msra.mxu0 %v5855
        %5950 = vmatprep.subr.mxu0 %v5860
        %5951 = vmatpush1.msra.mxu0 %v5859
        %5952 = vmatprep.subr.mxu0 0.0
        %5953 = vmatpush1.msra.mxu0 0.0
        %5954 = vmatprep.subr.mxu0 0.0
        %5955 = vmatpush1.msra.mxu0 0.0
        %5956 = vmatprep.subr.mxu0 0.0
        %5957 = vmatpush1.msra.mxu0 0.0
        %5958 = vmatprep.subr.mxu0 0.0
        %5959 = vmatpush1.msra.mxu0 0.0
        %5960 = vmatprep.subr.mxu0 0.0
        %5961 = vmatpush1.msra.mxu0 0.0
        %5962 = vmatprep.subr.mxu0 0.0
        %5963 = vmatpush1.msra.mxu0 0.0
        %5964 = vmatprep.subr.mxu0 0.0
        %5965 = vmatpush1.msra.mxu0 0.0
        %5966 = vmatprep.subr.mxu0 0.0
        %5967 = vmatpush1.msra.mxu0 0.0
        %5968 = vmatprep.subr.mxu0 0.0
        %5969 = vmatpush1.msra.mxu0 0.0
        %5970 = vmatprep.subr.mxu0 0.0
        %5971 = vmatpush1.msra.mxu0 0.0
        %5972 = vmatprep.subr.mxu0 0.0
        %5973 = vmatpush1.msra.mxu0 0.0
        %5974 = vmatprep.subr.mxu0 0.0
        %5975 = vmatpush1.msra.mxu0 0.0
        %5976 = vmatprep.subr.mxu0 0.0
        %5977 = vmatpush1.msra.mxu0 0.0
        %5978 = vmatprep.subr.mxu0 0.0
        %5979 = vmatpush1.msra.mxu0 0.0
        %5980 = vmatprep.subr.mxu0 0.0
        %5981 = vmatpush1.msra.mxu0 0.0
        %5982 = vmatprep.subr.mxu0 0.0
        %5983 = vmatpush1.msra.mxu0 0.0
        %5984 = vmatprep.subr.mxu0 0.0
        %5985 = vmatpush1.msra.mxu0 0.0
        %5986 = vmatprep.subr.mxu0 0.0
        %5987 = vmatpush1.msra.mxu0 0.0
        %5988 = vmatprep.subr.mxu0 0.0
        %5989 = vmatpush1.msra.mxu0 0.0
        %5990 = vmatprep.subr.mxu0 0.0
        %5991 = vmatpush1.msra.mxu0 0.0
        %5992 = vmatprep.subr.mxu0 0.0
        %5993 = vmatpush1.msra.mxu0 0.0
        %5994 = vmatprep.subr.mxu0 0.0
        %5995 = vmatpush1.msra.mxu0 0.0
        %5996 = vmatprep.subr.mxu0 0.0
        %5997 = vmatpush1.msra.mxu0 0.0
        %5998 = vmatprep.subr.mxu0 0.0
        %5999 = vmatpush1.msra.mxu0 0.0
        %6000 = vmatprep.mubr.f32.mxu0 0.0
        %6001 = vmatmul.mubr.f32.gmra.mrb[0].mxu0 %v5863
        %v6002 = vpop.f32.mrb[0].mxu0
        %v6003 = vadd.f32 0.0, %v6002
        %v6004 = vpop.f32.mrb[0].mxu0
        %v6005 = vadd.f32 0.0, %v6004
        %6006 = vdwg.mxu0
        %v6011 = vcombine.low %v5932, %v5934
        %v6012 = vcombine.low %v6003, %v6005
        %v6014 = vunpack.c.l.s4 1966171168
        %v6015 = vunpack.c.0.s8 %v6014
        %v6016 = vlaneseq
        %v6017 = vshrl.u32 %v6016, 7
        %v6018 = vsub.s32 %v6015, %v6017
        %v6019 = vrot.slane %v6011, %v6018
        %v6021 = vunpack.c.l.s4 1966171168
        %v6022 = vunpack.c.0.s8 %v6021
        %v6023 = vlaneseq
        %v6024 = vshrl.u32 %v6023, 7
        %v6025 = vsub.s32 %v6022, %v6024
        %v6026 = vrot.slane %v6012, %v6025
        %v6027 = vcombine.low %v6019, %v6026
        %v6029 = vunpack.c.l.s4 1966171168
        %v6030 = vunpack.c.0.s8 %v6029
        %v6031 = vlaneseq
        %v6032 = vshrl.u32 %v6031, 7
        %v6033 = vsub.s32 %v6030, %v6032
        %v6034 = vrot.slane %v6027, %v6033
        %v6036 = vadd.f32 %v5828, %v6034
        %v6037 = vld [vmem:[%s3 + $0x100] sm:$0xff]
        %v6038 = vld [vmem:[%s3 + $0x108] sm:$0xff]
        %v6039 = vld [vmem:[%s3 + $0x110] sm:$0xff]
        %v6040 = vld [vmem:[%s3 + $0x118] sm:$0xff]
        %v6041 = vld [vmem:[%s3 + $0x120] sm:$0xff]
        %v6042 = vld [vmem:[%s3 + $0x128] sm:$0xff]
        %v6043 = vld [vmem:[%s3 + $0x130] sm:$0xff]
        %v6044 = vld [vmem:[%s3 + $0x138] sm:$0xff]
        %v6045 = vld [vmem:[%s3 + $0x140] sm:$0xff]
        %v6046 = vld [vmem:[%s3 + $0x148] sm:$0xff]
        %v6047 = vld [vmem:[%s3 + $0x150] sm:$0xff]
        %v6048 = vld [vmem:[%s3 + $0x158] sm:$0xff]
        %v6049 = vld [vmem:[%s3 + $0x160] sm:$0xff]
        %v6050 = vld [vmem:[%s3 + $0x168] sm:$0xff]
        %v6051 = vld [vmem:[%s3 + $0x170] sm:$0xff]
        %v6052 = vld [vmem:[%s3 + $0x178] sm:$0xff]
        %v6053 = vld [vmem:[%s3 + $0x180] sm:$0xff]
        %v6054 = vld [vmem:[%s3 + $0x188] sm:$0xff]
        %v6055 = vld [vmem:[%s3 + $0x190] sm:$0xff]
        %v6056 = vld [vmem:[%s3 + $0x198] sm:$0xff]
        %v6057 = vld [vmem:[%s3 + $0x1a0] sm:$0xff]
        %v6058 = vld [vmem:[%s3 + $0x1a8] sm:$0xff]
        %v6059 = vld [vmem:[%s3 + $0x1b0] sm:$0xff]
        %v6060 = vld [vmem:[%s3 + $0x1b8] sm:$0xff]
        %v6061 = vld [vmem:[%s3 + $0x1c0] sm:$0xff]
        %v6062 = vld [vmem:[%s3 + $0x1c8] sm:$0xff]
        %v6063 = vld [vmem:[%s3 + $0x1d0] sm:$0xff]
        %v6064 = vld [vmem:[%s3 + $0x1d8] sm:$0xff]
        %v6065 = vld [vmem:[%s3 + $0x1e0] sm:$0xff]
        %v6066 = vld [vmem:[%s3 + $0x1e8] sm:$0xff]
        %v6067 = vld [vmem:[%s3 + $0x1f0] sm:$0xff]
        %v6068 = vld [vmem:[%s3 + $0x1f8] sm:$0xff]
        %v6069 = vrot.slane %v5826, 1
        %v6070 = vsel %vm5861, %v6069, 0
        %6072 = vmatprep.subr.mxu0 %v6038
        %6073 = vmatpush1.msra.mxu0 %v6037
        %6074 = vmatprep.subr.mxu0 %v6042
        %6075 = vmatpush1.msra.mxu0 %v6041
        %6076 = vmatprep.subr.mxu0 %v6046
        %6077 = vmatpush1.msra.mxu0 %v6045
        %6078 = vmatprep.subr.mxu0 %v6050
        %6079 = vmatpush1.msra.mxu0 %v6049
        %6080 = vmatprep.subr.mxu0 %v6054
        %6081 = vmatpush1.msra.mxu0 %v6053
        %6082 = vmatprep.subr.mxu0 %v6058
        %6083 = vmatpush1.msra.mxu0 %v6057
        %6084 = vmatprep.subr.mxu0 %v6062
        %6085 = vmatpush1.msra.mxu0 %v6061
        %6086 = vmatprep.subr.mxu0 %v6066
        %6087 = vmatpush1.msra.mxu0 %v6065
        %6088 = vmatprep.subr.mxu0 0.0
        %6089 = vmatpush1.msra.mxu0 0.0
        %6090 = vmatprep.subr.mxu0 0.0
        %6091 = vmatpush1.msra.mxu0 0.0
        %6092 = vmatprep.subr.mxu0 0.0
        %6093 = vmatpush1.msra.mxu0 0.0
        %6094 = vmatprep.subr.mxu0 0.0
        %6095 = vmatpush1.msra.mxu0 0.0
        %6096 = vmatprep.subr.mxu0 0.0
        %6097 = vmatpush1.msra.mxu0 0.0
        %6098 = vmatprep.subr.mxu0 0.0
        %6099 = vmatpush1.msra.mxu0 0.0
        %6100 = vmatprep.subr.mxu0 0.0
        %6101 = vmatpush1.msra.mxu0 0.0
        %6102 = vmatprep.subr.mxu0 0.0
        %6103 = vmatpush1.msra.mxu0 0.0
        %6104 = vmatprep.subr.mxu0 0.0
        %6105 = vmatpush1.msra.mxu0 0.0
        %6106 = vmatprep.subr.mxu0 0.0
        %6107 = vmatpush1.msra.mxu0 0.0
        %6108 = vmatprep.subr.mxu0 0.0
        %6109 = vmatpush1.msra.mxu0 0.0
        %6110 = vmatprep.subr.mxu0 0.0
        %6111 = vmatpush1.msra.mxu0 0.0
        %6112 = vmatprep.subr.mxu0 0.0
        %6113 = vmatpush1.msra.mxu0 0.0
        %6114 = vmatprep.subr.mxu0 0.0
        %6115 = vmatpush1.msra.mxu0 0.0
        %6116 = vmatprep.subr.mxu0 0.0
        %6117 = vmatpush1.msra.mxu0 0.0
        %6118 = vmatprep.subr.mxu0 0.0
        %6119 = vmatpush1.msra.mxu0 0.0
        %6120 = vmatprep.subr.mxu0 0.0
        %6121 = vmatpush1.msra.mxu0 0.0
        %6122 = vmatprep.subr.mxu0 0.0
        %6123 = vmatpush1.msra.mxu0 0.0
        %6124 = vmatprep.subr.mxu0 0.0
        %6125 = vmatpush1.msra.mxu0 0.0
        %6126 = vmatprep.subr.mxu0 0.0
        %6127 = vmatpush1.msra.mxu0 0.0
        %6128 = vmatprep.subr.mxu0 0.0
        %6129 = vmatpush1.msra.mxu0 0.0
        %6130 = vmatprep.subr.mxu0 0.0
        %6131 = vmatpush1.msra.mxu0 0.0
        %6132 = vmatprep.subr.mxu0 0.0
        %6133 = vmatpush1.msra.mxu0 0.0
        %6134 = vmatprep.subr.mxu0 0.0
        %6135 = vmatpush1.msra.mxu0 0.0
        %6136 = vmatprep.mubr.f32.mxu0 0.0
        %6137 = vmatmul.mubr.f32.gmra.mrb[0].mxu0 %v6070
        %v6138 = vpop.f32.mrb[0].mxu0
        %v6139 = vadd.f32 0.0, %v6138
        %v6140 = vpop.f32.mrb[0].mxu0
        %v6141 = vadd.f32 0.0, %v6140
        %6142 = vdwg.mxu0
        %6143 = vmatprep.subr.mxu0 %v6040
        %6144 = vmatpush1.msra.mxu0 %v6039
        %6145 = vmatprep.subr.mxu0 %v6044
        %6146 = vmatpush1.msra.mxu0 %v6043
        %6147 = vmatprep.subr.mxu0 %v6048
        %6148 = vmatpush1.msra.mxu0 %v6047
        %6149 = vmatprep.subr.mxu0 %v6052
        %6150 = vmatpush1.msra.mxu0 %v6051
        %6151 = vmatprep.subr.mxu0 %v6056
        %6152 = vmatpush1.msra.mxu0 %v6055
        %6153 = vmatprep.subr.mxu0 %v6060
        %6154 = vmatpush1.msra.mxu0 %v6059
        %6155 = vmatprep.subr.mxu0 %v6064
        %6156 = vmatpush1.msra.mxu0 %v6063
        %6157 = vmatprep.subr.mxu0 %v6068
        %6158 = vmatpush1.msra.mxu0 %v6067
        %6159 = vmatprep.subr.mxu0 0.0
        %6160 = vmatpush1.msra.mxu0 0.0
        %6161 = vmatprep.subr.mxu0 0.0
        %6162 = vmatpush1.msra.mxu0 0.0
        %6163 = vmatprep.subr.mxu0 0.0
        %6164 = vmatpush1.msra.mxu0 0.0
        %6165 = vmatprep.subr.mxu0 0.0
        %6166 = vmatpush1.msra.mxu0 0.0
        %6167 = vmatprep.subr.mxu0 0.0
        %6168 = vmatpush1.msra.mxu0 0.0
        %6169 = vmatprep.subr.mxu0 0.0
        %6170 = vmatpush1.msra.mxu0 0.0
        %6171 = vmatprep.subr.mxu0 0.0
        %6172 = vmatpush1.msra.mxu0 0.0
        %6173 = vmatprep.subr.mxu0 0.0
        %6174 = vmatpush1.msra.mxu0 0.0
        %6175 = vmatprep.subr.mxu0 0.0
        %6176 = vmatpush1.msra.mxu0 0.0
        %6177 = vmatprep.subr.mxu0 0.0
        %6178 = vmatpush1.msra.mxu0 0.0
        %6179 = vmatprep.subr.mxu0 0.0
        %6180 = vmatpush1.msra.mxu0 0.0
        %6181 = vmatprep.subr.mxu0 0.0
        %6182 = vmatpush1.msra.mxu0 0.0
        %6183 = vmatprep.subr.mxu0 0.0
        %6184 = vmatpush1.msra.mxu0 0.0
        %6185 = vmatprep.subr.mxu0 0.0
        %6186 = vmatpush1.msra.mxu0 0.0
        %6187 = vmatprep.subr.mxu0 0.0
        %6188 = vmatpush1.msra.mxu0 0.0
        %6189 = vmatprep.subr.mxu0 0.0
        %6190 = vmatpush1.msra.mxu0 0.0
        %6191 = vmatprep.subr.mxu0 0.0
        %6192 = vmatpush1.msra.mxu0 0.0
        %6193 = vmatprep.subr.mxu0 0.0
        %6194 = vmatpush1.msra.mxu0 0.0
        %6195 = vmatprep.subr.mxu0 0.0
        %6196 = vmatpush1.msra.mxu0 0.0
        %6197 = vmatprep.subr.mxu0 0.0
        %6198 = vmatpush1.msra.mxu0 0.0
        %6199 = vmatprep.subr.mxu0 0.0
        %6200 = vmatpush1.msra.mxu0 0.0
        %6201 = vmatprep.subr.mxu0 0.0
        %6202 = vmatpush1.msra.mxu0 0.0
        %6203 = vmatprep.subr.mxu0 0.0
        %6204 = vmatpush1.msra.mxu0 0.0
        %6205 = vmatprep.subr.mxu0 0.0
        %6206 = vmatpush1.msra.mxu0 0.0
        %6207 = vmatprep.mubr.f32.mxu0 0.0
        %6208 = vmatmul.mubr.f32.gmra.mrb[0].mxu0 %v6070
        %v6209 = vpop.f32.mrb[0].mxu0
        %v6210 = vadd.f32 0.0, %v6209
        %v6211 = vpop.f32.mrb[0].mxu0
        %v6212 = vadd.f32 0.0, %v6211
        %6213 = vdwg.mxu0
        %v6218 = vcombine.low %v6139, %v6141
        %v6219 = vcombine.low %v6210, %v6212
        %v6221 = vunpack.c.l.s4 1966171168
        %v6222 = vunpack.c.0.s8 %v6221
        %v6223 = vlaneseq
        %v6224 = vshrl.u32 %v6223, 7
        %v6225 = vsub.s32 %v6222, %v6224
        %v6226 = vrot.slane %v6218, %v6225
        %v6228 = vunpack.c.l.s4 1966171168
        %v6229 = vunpack.c.0.s8 %v6228
        %v6230 = vlaneseq
        %v6231 = vshrl.u32 %v6230, 7
        %v6232 = vsub.s32 %v6229, %v6231
        %v6233 = vrot.slane %v6219, %v6232
        %v6234 = vcombine.low %v6226, %v6233
        %v6236 = vunpack.c.l.s4 1966171168
        %v6237 = vunpack.c.0.s8 %v6236
        %v6238 = vlaneseq
        %v6239 = vshrl.u32 %v6238, 7
        %v6240 = vsub.s32 %v6237, %v6239
        %v6241 = vrot.slane %v6234, %v6240
        %v6243 = vadd.f32 %v6036, %v6241
        %v6244 = vld [vmem:[%s3 + $0x200] sm:$0xff]
        %v6245 = vld [vmem:[%s3 + $0x208] sm:$0xff]
        %v6246 = vld [vmem:[%s3 + $0x210] sm:$0xff]
        %v6247 = vld [vmem:[%s3 + $0x218] sm:$0xff]
        %v6248 = vld [vmem:[%s3 + $0x220] sm:$0xff]
        %v6249 = vld [vmem:[%s3 + $0x228] sm:$0xff]
        %v6250 = vld [vmem:[%s3 + $0x230] sm:$0xff]
        %v6251 = vld [vmem:[%s3 + $0x238] sm:$0xff]
        %v6252 = vld [vmem:[%s3 + $0x240] sm:$0xff]
        %v6253 = vld [vmem:[%s3 + $0x248] sm:$0xff]
        %v6254 = vld [vmem:[%s3 + $0x250] sm:$0xff]
        %v6255 = vld [vmem:[%s3 + $0x258] sm:$0xff]
        %v6256 = vld [vmem:[%s3 + $0x260] sm:$0xff]
        %v6257 = vld [vmem:[%s3 + $0x268] sm:$0xff]
        %v6258 = vld [vmem:[%s3 + $0x270] sm:$0xff]
        %v6259 = vld [vmem:[%s3 + $0x278] sm:$0xff]
        %v6260 = vld [vmem:[%s3 + $0x280] sm:$0xff]
        %v6261 = vld [vmem:[%s3 + $0x288] sm:$0xff]
        %v6262 = vld [vmem:[%s3 + $0x290] sm:$0xff]
        %v6263 = vld [vmem:[%s3 + $0x298] sm:$0xff]
        %v6264 = vld [vmem:[%s3 + $0x2a0] sm:$0xff]
        %v6265 = vld [vmem:[%s3 + $0x2a8] sm:$0xff]
        %v6266 = vld [vmem:[%s3 + $0x2b0] sm:$0xff]
        %v6267 = vld [vmem:[%s3 + $0x2b8] sm:$0xff]
        %v6268 = vld [vmem:[%s3 + $0x2c0] sm:$0xff]
        %v6269 = vld [vmem:[%s3 + $0x2c8] sm:$0xff]
        %v6270 = vld [vmem:[%s3 + $0x2d0] sm:$0xff]
        %v6271 = vld [vmem:[%s3 + $0x2d8] sm:$0xff]
        %v6272 = vld [vmem:[%s3 + $0x2e0] sm:$0xff]
        %v6273 = vld [vmem:[%s3 + $0x2e8] sm:$0xff]
        %v6274 = vld [vmem:[%s3 + $0x2f0] sm:$0xff]
        %v6275 = vld [vmem:[%s3 + $0x2f8] sm:$0xff]
        %v6276 = vrot.slane %v5826, 2
        %v6277 = vsel %vm5861, %v6276, 0
        %6279 = vmatprep.subr.mxu0 %v6245
        %6280 = vmatpush1.msra.mxu0 %v6244
        %6281 = vmatprep.subr.mxu0 %v6249
        %6282 = vmatpush1.msra.mxu0 %v6248
        %6283 = vmatprep.subr.mxu0 %v6253
        %6284 = vmatpush1.msra.mxu0 %v6252
        %6285 = vmatprep.subr.mxu0 %v6257
        %6286 = vmatpush1.msra.mxu0 %v6256
        %6287 = vmatprep.subr.mxu0 %v6261
        %6288 = vmatpush1.msra.mxu0 %v6260
        %6289 = vmatprep.subr.mxu0 %v6265
        %6290 = vmatpush1.msra.mxu0 %v6264
        %6291 = vmatprep.subr.mxu0 %v6269
        %6292 = vmatpush1.msra.mxu0 %v6268
        %6293 = vmatprep.subr.mxu0 %v6273
        %6294 = vmatpush1.msra.mxu0 %v6272
        %6295 = vmatprep.subr.mxu0 0.0
        %6296 = vmatpush1.msra.mxu0 0.0
        %6297 = vmatprep.subr.mxu0 0.0
        %6298 = vmatpush1.msra.mxu0 0.0
        %6299 = vmatprep.subr.mxu0 0.0
        %6300 = vmatpush1.msra.mxu0 0.0
        %6301 = vmatprep.subr.mxu0 0.0
        %6302 = vmatpush1.msra.mxu0 0.0
        %6303 = vmatprep.subr.mxu0 0.0
        %6304 = vmatpush1.msra.mxu0 0.0
        %6305 = vmatprep.subr.mxu0 0.0
        %6306 = vmatpush1.msra.mxu0 0.0
        %6307 = vmatprep.subr.mxu0 0.0
        %6308 = vmatpush1.msra.mxu0 0.0
        %6309 = vmatprep.subr.mxu0 0.0
        %6310 = vmatpush1.msra.mxu0 0.0
        %6311 = vmatprep.subr.mxu0 0.0
        %6312 = vmatpush1.msra.mxu0 0.0
        %6313 = vmatprep.subr.mxu0 0.0
        %6314 = vmatpush1.msra.mxu0 0.0
        %6315 = vmatprep.subr.mxu0 0.0
        %6316 = vmatpush1.msra.mxu0 0.0
        %6317 = vmatprep.subr.mxu0 0.0
        %6318 = vmatpush1.msra.mxu0 0.0
        %6319 = vmatprep.subr.mxu0 0.0
        %6320 = vmatpush1.msra.mxu0 0.0
        %6321 = vmatprep.subr.mxu0 0.0
        %6322 = vmatpush1.msra.mxu0 0.0
        %6323 = vmatprep.subr.mxu0 0.0
        %6324 = vmatpush1.msra.mxu0 0.0
        %6325 = vmatprep.subr.mxu0 0.0
        %6326 = vmatpush1.msra.mxu0 0.0
        %6327 = vmatprep.subr.mxu0 0.0
        %6328 = vmatpush1.msra.mxu0 0.0
        %6329 = vmatprep.subr.mxu0 0.0
        %6330 = vmatpush1.msra.mxu0 0.0
        %6331 = vmatprep.subr.mxu0 0.0
        %6332 = vmatpush1.msra.mxu0 0.0
        %6333 = vmatprep.subr.mxu0 0.0
        %6334 = vmatpush1.msra.mxu0 0.0
        %6335 = vmatprep.subr.mxu0 0.0
        %6336 = vmatpush1.msra.mxu0 0.0
        %6337 = vmatprep.subr.mxu0 0.0
        %6338 = vmatpush1.msra.mxu0 0.0
        %6339 = vmatprep.subr.mxu0 0.0
        %6340 = vmatpush1.msra.mxu0 0.0
        %6341 = vmatprep.subr.mxu0 0.0
        %6342 = vmatpush1.msra.mxu0 0.0
        %6343 = vmatprep.mubr.f32.mxu0 0.0
        %6344 = vmatmul.mubr.f32.gmra.mrb[0].mxu0 %v6277
        %v6345 = vpop.f32.mrb[0].mxu0
        %v6346 = vadd.f32 0.0, %v6345
        %v6347 = vpop.f32.mrb[0].mxu0
        %v6348 = vadd.f32 0.0, %v6347
        %6349 = vdwg.mxu0
        %6350 = vmatprep.subr.mxu0 %v6247
        %6351 = vmatpush1.msra.mxu0 %v6246
        %6352 = vmatprep.subr.mxu0 %v6251
        %6353 = vmatpush1.msra.mxu0 %v6250
        %6354 = vmatprep.subr.mxu0 %v6255
        %6355 = vmatpush1.msra.mxu0 %v6254
        %6356 = vmatprep.subr.mxu0 %v6259
        %6357 = vmatpush1.msra.mxu0 %v6258
        %6358 = vmatprep.subr.mxu0 %v6263
        %6359 = vmatpush1.msra.mxu0 %v6262
        %6360 = vmatprep.subr.mxu0 %v6267
        %6361 = vmatpush1.msra.mxu0 %v6266
        %6362 = vmatprep.subr.mxu0 %v6271
        %6363 = vmatpush1.msra.mxu0 %v6270
        %6364 = vmatprep.subr.mxu0 %v6275
        %6365 = vmatpush1.msra.mxu0 %v6274
        %6366 = vmatprep.subr.mxu0 0.0
        %6367 = vmatpush1.msra.mxu0 0.0
        %6368 = vmatprep.subr.mxu0 0.0
        %6369 = vmatpush1.msra.mxu0 0.0
        %6370 = vmatprep.subr.mxu0 0.0
        %6371 = vmatpush1.msra.mxu0 0.0
        %6372 = vmatprep.subr.mxu0 0.0
        %6373 = vmatpush1.msra.mxu0 0.0
        %6374 = vmatprep.subr.mxu0 0.0
        %6375 = vmatpush1.msra.mxu0 0.0
        %6376 = vmatprep.subr.mxu0 0.0
        %6377 = vmatpush1.msra.mxu0 0.0
        %6378 = vmatprep.subr.mxu0 0.0
        %6379 = vmatpush1.msra.mxu0 0.0
        %6380 = vmatprep.subr.mxu0 0.0
        %6381 = vmatpush1.msra.mxu0 0.0
        %6382 = vmatprep.subr.mxu0 0.0
        %6383 = vmatpush1.msra.mxu0 0.0
        %6384 = vmatprep.subr.mxu0 0.0
        %6385 = vmatpush1.msra.mxu0 0.0
        %6386 = vmatprep.subr.mxu0 0.0
        %6387 = vmatpush1.msra.mxu0 0.0
        %6388 = vmatprep.subr.mxu0 0.0
        %6389 = vmatpush1.msra.mxu0 0.0
        %6390 = vmatprep.subr.mxu0 0.0
        %6391 = vmatpush1.msra.mxu0 0.0
        %6392 = vmatprep.subr.mxu0 0.0
        %6393 = vmatpush1.msra.mxu0 0.0
        %6394 = vmatprep.subr.mxu0 0.0
        %6395 = vmatpush1.msra.mxu0 0.0
        %6396 = vmatprep.subr.mxu0 0.0
        %6397 = vmatpush1.msra.mxu0 0.0
        %6398 = vmatprep.subr.mxu0 0.0
        %6399 = vmatpush1.msra.mxu0 0.0
        %6400 = vmatprep.subr.mxu0 0.0
        %6401 = vmatpush1.msra.mxu0 0.0
        %6402 = vmatprep.subr.mxu0 0.0
        %6403 = vmatpush1.msra.mxu0 0.0
        %6404 = vmatprep.subr.mxu0 0.0
        %6405 = vmatpush1.msra.mxu0 0.0
        %6406 = vmatprep.subr.mxu0 0.0
        %6407 = vmatpush1.msra.mxu0 0.0
        %6408 = vmatprep.subr.mxu0 0.0
        %6409 = vmatpush1.msra.mxu0 0.0
        %6410 = vmatprep.subr.mxu0 0.0
        %6411 = vmatpush1.msra.mxu0 0.0
        %6412 = vmatprep.subr.mxu0 0.0
        %6413 = vmatpush1.msra.mxu0 0.0
        %6414 = vmatprep.mubr.f32.mxu0 0.0
        %6415 = vmatmul.mubr.f32.gmra.mrb[0].mxu0 %v6277
        %v6416 = vpop.f32.mrb[0].mxu0
        %v6417 = vadd.f32 0.0, %v6416
        %v6418 = vpop.f32.mrb[0].mxu0
        %v6419 = vadd.f32 0.0, %v6418
        %6420 = vdwg.mxu0
        %v6425 = vcombine.low %v6346, %v6348
        %v6426 = vcombine.low %v6417, %v6419
        %v6428 = vunpack.c.l.s4 1966171168
        %v6429 = vunpack.c.0.s8 %v6428
        %v6430 = vlaneseq
        %v6431 = vshrl.u32 %v6430, 7
        %v6432 = vsub.s32 %v6429, %v6431
        %v6433 = vrot.slane %v6425, %v6432
        %v6435 = vunpack.c.l.s4 1966171168
        %v6436 = vunpack.c.0.s8 %v6435
        %v6437 = vlaneseq
        %v6438 = vshrl.u32 %v6437, 7
        %v6439 = vsub.s32 %v6436, %v6438
        %v6440 = vrot.slane %v6426, %v6439
        %v6441 = vcombine.low %v6433, %v6440
        %v6443 = vunpack.c.l.s4 1966171168
        %v6444 = vunpack.c.0.s8 %v6443
        %v6445 = vlaneseq
        %v6446 = vshrl.u32 %v6445, 7
        %v6447 = vsub.s32 %v6444, %v6446
        %v6448 = vrot.slane %v6441, %v6447
        %v6450 = vadd.f32 %v6243, %v6448
        %v6451 = vld [vmem:[%s3 + $0x300] sm:$0xff]
        %v6452 = vld [vmem:[%s3 + $0x308] sm:$0xff]
        %v6453 = vld [vmem:[%s3 + $0x310] sm:$0xff]
        %v6454 = vld [vmem:[%s3 + $0x318] sm:$0xff]
        %v6455 = vld [vmem:[%s3 + $0x320] sm:$0xff]
        %v6456 = vld [vmem:[%s3 + $0x328] sm:$0xff]
        %v6457 = vld [vmem:[%s3 + $0x330] sm:$0xff]
        %v6458 = vld [vmem:[%s3 + $0x338] sm:$0xff]
        %v6459 = vld [vmem:[%s3 + $0x340] sm:$0xff]
        %v6460 = vld [vmem:[%s3 + $0x348] sm:$0xff]
        %v6461 = vld [vmem:[%s3 + $0x350] sm:$0xff]
        %v6462 = vld [vmem:[%s3 + $0x358] sm:$0xff]
        %v6463 = vld [vmem:[%s3 + $0x360] sm:$0xff]
        %v6464 = vld [vmem:[%s3 + $0x368] sm:$0xff]
        %v6465 = vld [vmem:[%s3 + $0x370] sm:$0xff]
        %v6466 = vld [vmem:[%s3 + $0x378] sm:$0xff]
        %v6467 = vld [vmem:[%s3 + $0x380] sm:$0xff]
        %v6468 = vld [vmem:[%s3 + $0x388] sm:$0xff]
        %v6469 = vld [vmem:[%s3 + $0x390] sm:$0xff]
        %v6470 = vld [vmem:[%s3 + $0x398] sm:$0xff]
        %v6471 = vld [vmem:[%s3 + $0x3a0] sm:$0xff]
        %v6472 = vld [vmem:[%s3 + $0x3a8] sm:$0xff]
        %v6473 = vld [vmem:[%s3 + $0x3b0] sm:$0xff]
        %v6474 = vld [vmem:[%s3 + $0x3b8] sm:$0xff]
        %v6475 = vld [vmem:[%s3 + $0x3c0] sm:$0xff]
        %v6476 = vld [vmem:[%s3 + $0x3c8] sm:$0xff]
        %v6477 = vld [vmem:[%s3 + $0x3d0] sm:$0xff]
        %v6478 = vld [vmem:[%s3 + $0x3d8] sm:$0xff]
        %v6479 = vld [vmem:[%s3 + $0x3e0] sm:$0xff]
        %v6480 = vld [vmem:[%s3 + $0x3e8] sm:$0xff]
        %v6481 = vld [vmem:[%s3 + $0x3f0] sm:$0xff]
        %v6482 = vld [vmem:[%s3 + $0x3f8] sm:$0xff]
        %v6483 = vrot.slane %v5826, 3
        %v6484 = vsel %vm5861, %v6483, 0
        %6486 = vmatprep.subr.mxu0 %v6452
        %6487 = vmatpush1.msra.mxu0 %v6451
        %6488 = vmatprep.subr.mxu0 %v6456
        %6489 = vmatpush1.msra.mxu0 %v6455
        %6490 = vmatprep.subr.mxu0 %v6460
        %6491 = vmatpush1.msra.mxu0 %v6459
        %6492 = vmatprep.subr.mxu0 %v6464
        %6493 = vmatpush1.msra.mxu0 %v6463
        %6494 = vmatprep.subr.mxu0 %v6468
        %6495 = vmatpush1.msra.mxu0 %v6467
        %6496 = vmatprep.subr.mxu0 %v6472
        %6497 = vmatpush1.msra.mxu0 %v6471
        %6498 = vmatprep.subr.mxu0 %v6476
        %6499 = vmatpush1.msra.mxu0 %v6475
        %6500 = vmatprep.subr.mxu0 %v6480
        %6501 = vmatpush1.msra.mxu0 %v6479
        %6502 = vmatprep.subr.mxu0 0.0
        %6503 = vmatpush1.msra.mxu0 0.0
        %6504 = vmatprep.subr.mxu0 0.0
        %6505 = vmatpush1.msra.mxu0 0.0
        %6506 = vmatprep.subr.mxu0 0.0
        %6507 = vmatpush1.msra.mxu0 0.0
        %6508 = vmatprep.subr.mxu0 0.0
        %6509 = vmatpush1.msra.mxu0 0.0
        %6510 = vmatprep.subr.mxu0 0.0
        %6511 = vmatpush1.msra.mxu0 0.0
        %6512 = vmatprep.subr.mxu0 0.0
        %6513 = vmatpush1.msra.mxu0 0.0
        %6514 = vmatprep.subr.mxu0 0.0
        %6515 = vmatpush1.msra.mxu0 0.0
        %6516 = vmatprep.subr.mxu0 0.0
        %6517 = vmatpush1.msra.mxu0 0.0
        %6518 = vmatprep.subr.mxu0 0.0
        %6519 = vmatpush1.msra.mxu0 0.0
        %6520 = vmatprep.subr.mxu0 0.0
        %6521 = vmatpush1.msra.mxu0 0.0
        %6522 = vmatprep.subr.mxu0 0.0
        %6523 = vmatpush1.msra.mxu0 0.0
        %6524 = vmatprep.subr.mxu0 0.0
        %6525 = vmatpush1.msra.mxu0 0.0
        %6526 = vmatprep.subr.mxu0 0.0
        %6527 = vmatpush1.msra.mxu0 0.0
        %6528 = vmatprep.subr.mxu0 0.0
        %6529 = vmatpush1.msra.mxu0 0.0
        %6530 = vmatprep.subr.mxu0 0.0
        %6531 = vmatpush1.msra.mxu0 0.0
        %6532 = vmatprep.subr.mxu0 0.0
        %6533 = vmatpush1.msra.mxu0 0.0
        %6534 = vmatprep.subr.mxu0 0.0
        %6535 = vmatpush1.msra.mxu0 0.0
        %6536 = vmatprep.subr.mxu0 0.0
        %6537 = vmatpush1.msra.mxu0 0.0
        %6538 = vmatprep.subr.mxu0 0.0
        %6539 = vmatpush1.msra.mxu0 0.0
        %6540 = vmatprep.subr.mxu0 0.0
        %6541 = vmatpush1.msra.mxu0 0.0
        %6542 = vmatprep.subr.mxu0 0.0
        %6543 = vmatpush1.msra.mxu0 0.0
        %6544 = vmatprep.subr.mxu0 0.0
        %6545 = vmatpush1.msra.mxu0 0.0
        %6546 = vmatprep.subr.mxu0 0.0
        %6547 = vmatpush1.msra.mxu0 0.0
        %6548 = vmatprep.subr.mxu0 0.0
        %6549 = vmatpush1.msra.mxu0 0.0
        %6550 = vmatprep.mubr.f32.mxu0 0.0
        %6551 = vmatmul.mubr.f32.gmra.mrb[0].mxu0 %v6484
        %v6552 = vpop.f32.mrb[0].mxu0
        %v6553 = vadd.f32 0.0, %v6552
        %v6554 = vpop.f32.mrb[0].mxu0
        %v6555 = vadd.f32 0.0, %v6554
        %6556 = vdwg.mxu0
        %6557 = vmatprep.subr.mxu0 %v6454
        %6558 = vmatpush1.msra.mxu0 %v6453
        %6559 = vmatprep.subr.mxu0 %v6458
        %6560 = vmatpush1.msra.mxu0 %v6457
        %6561 = vmatprep.subr.mxu0 %v6462
        %6562 = vmatpush1.msra.mxu0 %v6461
        %6563 = vmatprep.subr.mxu0 %v6466
        %6564 = vmatpush1.msra.mxu0 %v6465
        %6565 = vmatprep.subr.mxu0 %v6470
        %6566 = vmatpush1.msra.mxu0 %v6469
        %6567 = vmatprep.subr.mxu0 %v6474
        %6568 = vmatpush1.msra.mxu0 %v6473
        %6569 = vmatprep.subr.mxu0 %v6478
        %6570 = vmatpush1.msra.mxu0 %v6477
        %6571 = vmatprep.subr.mxu0 %v6482
        %6572 = vmatpush1.msra.mxu0 %v6481
        %6573 = vmatprep.subr.mxu0 0.0
        %6574 = vmatpush1.msra.mxu0 0.0
        %6575 = vmatprep.subr.mxu0 0.0
        %6576 = vmatpush1.msra.mxu0 0.0
        %6577 = vmatprep.subr.mxu0 0.0
        %6578 = vmatpush1.msra.mxu0 0.0
        %6579 = vmatprep.subr.mxu0 0.0
        %6580 = vmatpush1.msra.mxu0 0.0
        %6581 = vmatprep.subr.mxu0 0.0
        %6582 = vmatpush1.msra.mxu0 0.0
        %6583 = vmatprep.subr.mxu0 0.0
        %6584 = vmatpush1.msra.mxu0 0.0
        %6585 = vmatprep.subr.mxu0 0.0
        %6586 = vmatpush1.msra.mxu0 0.0
        %6587 = vmatprep.subr.mxu0 0.0
        %6588 = vmatpush1.msra.mxu0 0.0
        %6589 = vmatprep.subr.mxu0 0.0
        %6590 = vmatpush1.msra.mxu0 0.0
        %6591 = vmatprep.subr.mxu0 0.0
        %6592 = vmatpush1.msra.mxu0 0.0
        %6593 = vmatprep.subr.mxu0 0.0
        %6594 = vmatpush1.msra.mxu0 0.0
        %6595 = vmatprep.subr.mxu0 0.0
        %6596 = vmatpush1.msra.mxu0 0.0
        %6597 = vmatprep.subr.mxu0 0.0
        %6598 = vmatpush1.msra.mxu0 0.0
        %6599 = vmatprep.subr.mxu0 0.0
        %6600 = vmatpush1.msra.mxu0 0.0
        %6601 = vmatprep.subr.mxu0 0.0
        %6602 = vmatpush1.msra.mxu0 0.0
        %6603 = vmatprep.subr.mxu0 0.0
        %6604 = vmatpush1.msra.mxu0 0.0
        %6605 = vmatprep.subr.mxu0 0.0
        %6606 = vmatpush1.msra.mxu0 0.0
        %6607 = vmatprep.subr.mxu0 0.0
        %6608 = vmatpush1.msra.mxu0 0.0
        %6609 = vmatprep.subr.mxu0 0.0
        %6610 = vmatpush1.msra.mxu0 0.0
        %6611 = vmatprep.subr.mxu0 0.0
        %6612 = vmatpush1.msra.mxu0 0.0
        %6613 = vmatprep.subr.mxu0 0.0
        %6614 = vmatpush1.msra.mxu0 0.0
        %6615 = vmatprep.subr.mxu0 0.0
        %6616 = vmatpush1.msra.mxu0 0.0
        %6617 = vmatprep.subr.mxu0 0.0
        %6618 = vmatpush1.msra.mxu0 0.0
        %6619 = vmatprep.subr.mxu0 0.0
        %6620 = vmatpush1.msra.mxu0 0.0
        %6621 = vmatprep.mubr.f32.mxu0 0.0
        %6622 = vmatmul.mubr.f32.gmra.mrb[0].mxu0 %v6484
        %v6623 = vpop.f32.mrb[0].mxu0
        %v6624 = vadd.f32 0.0, %v6623
        %v6625 = vpop.f32.mrb[0].mxu0
        %v6626 = vadd.f32 0.0, %v6625
        %6627 = vdwg.mxu0
        %v6632 = vcombine.low %v6553, %v6555
        %v6633 = vcombine.low %v6624, %v6626
        %v6635 = vunpack.c.l.s4 1966171168
        %v6636 = vunpack.c.0.s8 %v6635
        %v6637 = vlaneseq
        %v6638 = vshrl.u32 %v6637, 7
        %v6639 = vsub.s32 %v6636, %v6638
        %v6640 = vrot.slane %v6632, %v6639
        %v6642 = vunpack.c.l.s4 1966171168
        %v6643 = vunpack.c.0.s8 %v6642
        %v6644 = vlaneseq
        %v6645 = vshrl.u32 %v6644, 7
        %v6646 = vsub.s32 %v6643, %v6645
        %v6647 = vrot.slane %v6633, %v6646
        %v6648 = vcombine.low %v6640, %v6647
        %v6650 = vunpack.c.l.s4 1966171168
        %v6651 = vunpack.c.0.s8 %v6650
        %v6652 = vlaneseq
        %v6653 = vshrl.u32 %v6652, 7
        %v6654 = vsub.s32 %v6651, %v6653
        %v6655 = vrot.slane %v6648, %v6654
        %v6657 = vadd.f32 %v6450, %v6655
        %v6658 = vld [vmem:[%s3 + $0x400] sm:$0xff]
        %v6659 = vld [vmem:[%s3 + $0x408] sm:$0xff]
        %v6660 = vld [vmem:[%s3 + $0x410] sm:$0xff]
        %v6661 = vld [vmem:[%s3 + $0x418] sm:$0xff]
        %v6662 = vld [vmem:[%s3 + $0x420] sm:$0xff]
        %v6663 = vld [vmem:[%s3 + $0x428] sm:$0xff]
        %v6664 = vld [vmem:[%s3 + $0x430] sm:$0xff]
        %v6665 = vld [vmem:[%s3 + $0x438] sm:$0xff]
        %v6666 = vld [vmem:[%s3 + $0x440] sm:$0xff]
        %v6667 = vld [vmem:[%s3 + $0x448] sm:$0xff]
        %v6668 = vld [vmem:[%s3 + $0x450] sm:$0xff]
        %v6669 = vld [vmem:[%s3 + $0x458] sm:$0xff]
        %v6670 = vld [vmem:[%s3 + $0x460] sm:$0xff]
        %v6671 = vld [vmem:[%s3 + $0x468] sm:$0xff]
        %v6672 = vld [vmem:[%s3 + $0x470] sm:$0xff]
        %v6673 = vld [vmem:[%s3 + $0x478] sm:$0xff]
        %v6674 = vld [vmem:[%s3 + $0x480] sm:$0xff]
        %v6675 = vld [vmem:[%s3 + $0x488] sm:$0xff]
        %v6676 = vld [vmem:[%s3 + $0x490] sm:$0xff]
        %v6677 = vld [vmem:[%s3 + $0x498] sm:$0xff]
        %v6678 = vld [vmem:[%s3 + $0x4a0] sm:$0xff]
        %v6679 = vld [vmem:[%s3 + $0x4a8] sm:$0xff]
        %v6680 = vld [vmem:[%s3 + $0x4b0] sm:$0xff]
        %v6681 = vld [vmem:[%s3 + $0x4b8] sm:$0xff]
        %v6682 = vld [vmem:[%s3 + $0x4c0] sm:$0xff]
        %v6683 = vld [vmem:[%s3 + $0x4c8] sm:$0xff]
        %v6684 = vld [vmem:[%s3 + $0x4d0] sm:$0xff]
        %v6685 = vld [vmem:[%s3 + $0x4d8] sm:$0xff]
        %v6686 = vld [vmem:[%s3 + $0x4e0] sm:$0xff]
        %v6687 = vld [vmem:[%s3 + $0x4e8] sm:$0xff]
        %v6688 = vld [vmem:[%s3 + $0x4f0] sm:$0xff]
        %v6689 = vld [vmem:[%s3 + $0x4f8] sm:$0xff]
        %v6690 = vrot.slane %v5826, 4
        %v6691 = vsel %vm5861, %v6690, 0
        %6693 = vmatprep.subr.mxu0 %v6659
        %6694 = vmatpush1.msra.mxu0 %v6658
        %6695 = vmatprep.subr.mxu0 %v6663
        %6696 = vmatpush1.msra.mxu0 %v6662
        %6697 = vmatprep.subr.mxu0 %v6667
        %6698 = vmatpush1.msra.mxu0 %v6666
        %6699 = vmatprep.subr.mxu0 %v6671
        %6700 = vmatpush1.msra.mxu0 %v6670
        %6701 = vmatprep.subr.mxu0 %v6675
        %6702 = vmatpush1.msra.mxu0 %v6674
        %6703 = vmatprep.subr.mxu0 %v6679
        %6704 = vmatpush1.msra.mxu0 %v6678
        %6705 = vmatprep.subr.mxu0 %v6683
        %6706 = vmatpush1.msra.mxu0 %v6682
        %6707 = vmatprep.subr.mxu0 %v6687
        %6708 = vmatpush1.msra.mxu0 %v6686
        %6709 = vmatprep.subr.mxu0 0.0
        %6710 = vmatpush1.msra.mxu0 0.0
        %6711 = vmatprep.subr.mxu0 0.0
        %6712 = vmatpush1.msra.mxu0 0.0
        %6713 = vmatprep.subr.mxu0 0.0
        %6714 = vmatpush1.msra.mxu0 0.0
        %6715 = vmatprep.subr.mxu0 0.0
        %6716 = vmatpush1.msra.mxu0 0.0
        %6717 = vmatprep.subr.mxu0 0.0
        %6718 = vmatpush1.msra.mxu0 0.0
        %6719 = vmatprep.subr.mxu0 0.0
        %6720 = vmatpush1.msra.mxu0 0.0
        %6721 = vmatprep.subr.mxu0 0.0
        %6722 = vmatpush1.msra.mxu0 0.0
        %6723 = vmatprep.subr.mxu0 0.0
        %6724 = vmatpush1.msra.mxu0 0.0
        %6725 = vmatprep.subr.mxu0 0.0
        %6726 = vmatpush1.msra.mxu0 0.0
        %6727 = vmatprep.subr.mxu0 0.0
        %6728 = vmatpush1.msra.mxu0 0.0
        %6729 = vmatprep.subr.mxu0 0.0
        %6730 = vmatpush1.msra.mxu0 0.0
        %6731 = vmatprep.subr.mxu0 0.0
        %6732 = vmatpush1.msra.mxu0 0.0
        %6733 = vmatprep.subr.mxu0 0.0
        %6734 = vmatpush1.msra.mxu0 0.0
        %6735 = vmatprep.subr.mxu0 0.0
        %6736 = vmatpush1.msra.mxu0 0.0
        %6737 = vmatprep.subr.mxu0 0.0
        %6738 = vmatpush1.msra.mxu0 0.0
        %6739 = vmatprep.subr.mxu0 0.0
        %6740 = vmatpush1.msra.mxu0 0.0
        %6741 = vmatprep.subr.mxu0 0.0
        %6742 = vmatpush1.msra.mxu0 0.0
        %6743 = vmatprep.subr.mxu0 0.0
        %6744 = vmatpush1.msra.mxu0 0.0
        %6745 = vmatprep.subr.mxu0 0.0
        %6746 = vmatpush1.msra.mxu0 0.0
        %6747 = vmatprep.subr.mxu0 0.0
        %6748 = vmatpush1.msra.mxu0 0.0
        %6749 = vmatprep.subr.mxu0 0.0
        %6750 = vmatpush1.msra.mxu0 0.0
        %6751 = vmatprep.subr.mxu0 0.0
        %6752 = vmatpush1.msra.mxu0 0.0
        %6753 = vmatprep.subr.mxu0 0.0
        %6754 = vmatpush1.msra.mxu0 0.0
        %6755 = vmatprep.subr.mxu0 0.0
        %6756 = vmatpush1.msra.mxu0 0.0
        %6757 = vmatprep.mubr.f32.mxu0 0.0
        %6758 = vmatmul.mubr.f32.gmra.mrb[0].mxu0 %v6691
        %v6759 = vpop.f32.mrb[0].mxu0
        %v6760 = vadd.f32 0.0, %v6759
        %v6761 = vpop.f32.mrb[0].mxu0
        %v6762 = vadd.f32 0.0, %v6761
        %6763 = vdwg.mxu0
        %6764 = vmatprep.subr.mxu0 %v6661
        %6765 = vmatpush1.msra.mxu0 %v6660
        %6766 = vmatprep.subr.mxu0 %v6665
        %6767 = vmatpush1.msra.mxu0 %v6664
        %6768 = vmatprep.subr.mxu0 %v6669
        %6769 = vmatpush1.msra.mxu0 %v6668
        %6770 = vmatprep.subr.mxu0 %v6673
        %6771 = vmatpush1.msra.mxu0 %v6672
        %6772 = vmatprep.subr.mxu0 %v6677
        %6773 = vmatpush1.msra.mxu0 %v6676
        %6774 = vmatprep.subr.mxu0 %v6681
        %6775 = vmatpush1.msra.mxu0 %v6680
        %6776 = vmatprep.subr.mxu0 %v6685
        %6777 = vmatpush1.msra.mxu0 %v6684
        %6778 = vmatprep.subr.mxu0 %v6689
        %6779 = vmatpush1.msra.mxu0 %v6688
        %6780 = vmatprep.subr.mxu0 0.0
        %6781 = vmatpush1.msra.mxu0 0.0
        %6782 = vmatprep.subr.mxu0 0.0
        %6783 = vmatpush1.msra.mxu0 0.0
        %6784 = vmatprep.subr.mxu0 0.0
        %6785 = vmatpush1.msra.mxu0 0.0
        %6786 = vmatprep.subr.mxu0 0.0
        %6787 = vmatpush1.msra.mxu0 0.0
        %6788 = vmatprep.subr.mxu0 0.0
        %6789 = vmatpush1.msra.mxu0 0.0
        %6790 = vmatprep.subr.mxu0 0.0
        %6791 = vmatpush1.msra.mxu0 0.0
        %6792 = vmatprep.subr.mxu0 0.0
        %6793 = vmatpush1.msra.mxu0 0.0
        %6794 = vmatprep.subr.mxu0 0.0
        %6795 = vmatpush1.msra.mxu0 0.0
        %6796 = vmatprep.subr.mxu0 0.0
        %6797 = vmatpush1.msra.mxu0 0.0
        %6798 = vmatprep.subr.mxu0 0.0
        %6799 = vmatpush1.msra.mxu0 0.0
        %6800 = vmatprep.subr.mxu0 0.0
        %6801 = vmatpush1.msra.mxu0 0.0
        %6802 = vmatprep.subr.mxu0 0.0
        %6803 = vmatpush1.msra.mxu0 0.0
        %6804 = vmatprep.subr.mxu0 0.0
        %6805 = vmatpush1.msra.mxu0 0.0
        %6806 = vmatprep.subr.mxu0 0.0
        %6807 = vmatpush1.msra.mxu0 0.0
        %6808 = vmatprep.subr.mxu0 0.0
        %6809 = vmatpush1.msra.mxu0 0.0
        %6810 = vmatprep.subr.mxu0 0.0
        %6811 = vmatpush1.msra.mxu0 0.0
        %6812 = vmatprep.subr.mxu0 0.0
        %6813 = vmatpush1.msra.mxu0 0.0
        %6814 = vmatprep.subr.mxu0 0.0
        %6815 = vmatpush1.msra.mxu0 0.0
        %6816 = vmatprep.subr.mxu0 0.0
        %6817 = vmatpush1.msra.mxu0 0.0
        %6818 = vmatprep.subr.mxu0 0.0
        %6819 = vmatpush1.msra.mxu0 0.0
        %6820 = vmatprep.subr.mxu0 0.0
        %6821 = vmatpush1.msra.mxu0 0.0
        %6822 = vmatprep.subr.mxu0 0.0
        %6823 = vmatpush1.msra.mxu0 0.0
        %6824 = vmatprep.subr.mxu0 0.0
        %6825 = vmatpush1.msra.mxu0 0.0
        %6826 = vmatprep.subr.mxu0 0.0
        %6827 = vmatpush1.msra.mxu0 0.0
        %6828 = vmatprep.mubr.f32.mxu0 0.0
        %6829 = vmatmul.mubr.f32.gmra.mrb[0].mxu0 %v6691
        %v6830 = vpop.f32.mrb[0].mxu0
        %v6831 = vadd.f32 0.0, %v6830
        %v6832 = vpop.f32.mrb[0].mxu0
        %v6833 = vadd.f32 0.0, %v6832
        %6834 = vdwg.mxu0
        %v6839 = vcombine.low %v6760, %v6762
        %v6840 = vcombine.low %v6831, %v6833
        %v6842 = vunpack.c.l.s4 1966171168
        %v6843 = vunpack.c.0.s8 %v6842
        %v6844 = vlaneseq
        %v6845 = vshrl.u32 %v6844, 7
        %v6846 = vsub.s32 %v6843, %v6845
        %v6847 = vrot.slane %v6839, %v6846
        %v6849 = vunpack.c.l.s4 1966171168
        %v6850 = vunpack.c.0.s8 %v6849
        %v6851 = vlaneseq
        %v6852 = vshrl.u32 %v6851, 7
        %v6853 = vsub.s32 %v6850, %v6852
        %v6854 = vrot.slane %v6840, %v6853
        %v6855 = vcombine.low %v6847, %v6854
        %v6857 = vunpack.c.l.s4 1966171168
        %v6858 = vunpack.c.0.s8 %v6857
        %v6859 = vlaneseq
        %v6860 = vshrl.u32 %v6859, 7
        %v6861 = vsub.s32 %v6858, %v6860
        %v6862 = vrot.slane %v6855, %v6861
        %v6864 = vadd.f32 %v6657, %v6862
        %v6865 = vld [vmem:[%s3 + $0x500] sm:$0xff]
        %v6866 = vld [vmem:[%s3 + $0x508] sm:$0xff]
        %v6867 = vld [vmem:[%s3 + $0x510] sm:$0xff]
        %v6868 = vld [vmem:[%s3 + $0x518] sm:$0xff]
        %v6869 = vld [vmem:[%s3 + $0x520] sm:$0xff]
        %v6870 = vld [vmem:[%s3 + $0x528] sm:$0xff]
        %v6871 = vld [vmem:[%s3 + $0x530] sm:$0xff]
        %v6872 = vld [vmem:[%s3 + $0x538] sm:$0xff]
        %v6873 = vld [vmem:[%s3 + $0x540] sm:$0xff]
        %v6874 = vld [vmem:[%s3 + $0x548] sm:$0xff]
        %v6875 = vld [vmem:[%s3 + $0x550] sm:$0xff]
        %v6876 = vld [vmem:[%s3 + $0x558] sm:$0xff]
        %v6877 = vld [vmem:[%s3 + $0x560] sm:$0xff]
        %v6878 = vld [vmem:[%s3 + $0x568] sm:$0xff]
        %v6879 = vld [vmem:[%s3 + $0x570] sm:$0xff]
        %v6880 = vld [vmem:[%s3 + $0x578] sm:$0xff]
        %v6881 = vld [vmem:[%s3 + $0x580] sm:$0xff]
        %v6882 = vld [vmem:[%s3 + $0x588] sm:$0xff]
        %v6883 = vld [vmem:[%s3 + $0x590] sm:$0xff]
        %v6884 = vld [vmem:[%s3 + $0x598] sm:$0xff]
        %v6885 = vld [vmem:[%s3 + $0x5a0] sm:$0xff]
        %v6886 = vld [vmem:[%s3 + $0x5a8] sm:$0xff]
        %v6887 = vld [vmem:[%s3 + $0x5b0] sm:$0xff]
        %v6888 = vld [vmem:[%s3 + $0x5b8] sm:$0xff]
        %v6889 = vld [vmem:[%s3 + $0x5c0] sm:$0xff]
        %v6890 = vld [vmem:[%s3 + $0x5c8] sm:$0xff]
        %v6891 = vld [vmem:[%s3 + $0x5d0] sm:$0xff]
        %v6892 = vld [vmem:[%s3 + $0x5d8] sm:$0xff]
        %v6893 = vld [vmem:[%s3 + $0x5e0] sm:$0xff]
        %v6894 = vld [vmem:[%s3 + $0x5e8] sm:$0xff]
        %v6895 = vld [vmem:[%s3 + $0x5f0] sm:$0xff]
        %v6896 = vld [vmem:[%s3 + $0x5f8] sm:$0xff]
        %v6897 = vrot.slane %v5826, 5
        %v6898 = vsel %vm5861, %v6897, 0
        %6900 = vmatprep.subr.mxu0 %v6866
        %6901 = vmatpush1.msra.mxu0 %v6865
        %6902 = vmatprep.subr.mxu0 %v6870
        %6903 = vmatpush1.msra.mxu0 %v6869
        %6904 = vmatprep.subr.mxu0 %v6874
        %6905 = vmatpush1.msra.mxu0 %v6873
        %6906 = vmatprep.subr.mxu0 %v6878
        %6907 = vmatpush1.msra.mxu0 %v6877
        %6908 = vmatprep.subr.mxu0 %v6882
        %6909 = vmatpush1.msra.mxu0 %v6881
        %6910 = vmatprep.subr.mxu0 %v6886
        %6911 = vmatpush1.msra.mxu0 %v6885
        %6912 = vmatprep.subr.mxu0 %v6890
        %6913 = vmatpush1.msra.mxu0 %v6889
        %6914 = vmatprep.subr.mxu0 %v6894
        %6915 = vmatpush1.msra.mxu0 %v6893
        %6916 = vmatprep.subr.mxu0 0.0
        %6917 = vmatpush1.msra.mxu0 0.0
        %6918 = vmatprep.subr.mxu0 0.0
        %6919 = vmatpush1.msra.mxu0 0.0
        %6920 = vmatprep.subr.mxu0 0.0
        %6921 = vmatpush1.msra.mxu0 0.0
        %6922 = vmatprep.subr.mxu0 0.0
        %6923 = vmatpush1.msra.mxu0 0.0
        %6924 = vmatprep.subr.mxu0 0.0
        %6925 = vmatpush1.msra.mxu0 0.0
        %6926 = vmatprep.subr.mxu0 0.0
        %6927 = vmatpush1.msra.mxu0 0.0
        %6928 = vmatprep.subr.mxu0 0.0
        %6929 = vmatpush1.msra.mxu0 0.0
        %6930 = vmatprep.subr.mxu0 0.0
        %6931 = vmatpush1.msra.mxu0 0.0
        %6932 = vmatprep.subr.mxu0 0.0
        %6933 = vmatpush1.msra.mxu0 0.0
        %6934 = vmatprep.subr.mxu0 0.0
        %6935 = vmatpush1.msra.mxu0 0.0
        %6936 = vmatprep.subr.mxu0 0.0
        %6937 = vmatpush1.msra.mxu0 0.0
        %6938 = vmatprep.subr.mxu0 0.0
        %6939 = vmatpush1.msra.mxu0 0.0
        %6940 = vmatprep.subr.mxu0 0.0
        %6941 = vmatpush1.msra.mxu0 0.0
        %6942 = vmatprep.subr.mxu0 0.0
        %6943 = vmatpush1.msra.mxu0 0.0
        %6944 = vmatprep.subr.mxu0 0.0
        %6945 = vmatpush1.msra.mxu0 0.0
        %6946 = vmatprep.subr.mxu0 0.0
        %6947 = vmatpush1.msra.mxu0 0.0
        %6948 = vmatprep.subr.mxu0 0.0
        %6949 = vmatpush1.msra.mxu0 0.0
        %6950 = vmatprep.subr.mxu0 0.0
        %6951 = vmatpush1.msra.mxu0 0.0
        %6952 = vmatprep.subr.mxu0 0.0
        %6953 = vmatpush1.msra.mxu0 0.0
        %6954 = vmatprep.subr.mxu0 0.0
        %6955 = vmatpush1.msra.mxu0 0.0
        %6956 = vmatprep.subr.mxu0 0.0
        %6957 = vmatpush1.msra.mxu0 0.0
        %6958 = vmatprep.subr.mxu0 0.0
        %6959 = vmatpush1.msra.mxu0 0.0
        %6960 = vmatprep.subr.mxu0 0.0
        %6961 = vmatpush1.msra.mxu0 0.0
        %6962 = vmatprep.subr.mxu0 0.0
        %6963 = vmatpush1.msra.mxu0 0.0
        %6964 = vmatprep.mubr.f32.mxu0 0.0
        %6965 = vmatmul.mubr.f32.gmra.mrb[0].mxu0 %v6898
        %v6966 = vpop.f32.mrb[0].mxu0
        %v6967 = vadd.f32 0.0, %v6966
        %v6968 = vpop.f32.mrb[0].mxu0
        %v6969 = vadd.f32 0.0, %v6968
        %6970 = vdwg.mxu0
        %6971 = vmatprep.subr.mxu0 %v6868
        %6972 = vmatpush1.msra.mxu0 %v6867
        %6973 = vmatprep.subr.mxu0 %v6872
        %6974 = vmatpush1.msra.mxu0 %v6871
        %6975 = vmatprep.subr.mxu0 %v6876
        %6976 = vmatpush1.msra.mxu0 %v6875
        %6977 = vmatprep.subr.mxu0 %v6880
        %6978 = vmatpush1.msra.mxu0 %v6879
        %6979 = vmatprep.subr.mxu0 %v6884
        %6980 = vmatpush1.msra.mxu0 %v6883
        %6981 = vmatprep.subr.mxu0 %v6888
        %6982 = vmatpush1.msra.mxu0 %v6887
        %6983 = vmatprep.subr.mxu0 %v6892
        %6984 = vmatpush1.msra.mxu0 %v6891
        %6985 = vmatprep.subr.mxu0 %v6896
        %6986 = vmatpush1.msra.mxu0 %v6895
        %6987 = vmatprep.subr.mxu0 0.0
        %6988 = vmatpush1.msra.mxu0 0.0
        %6989 = vmatprep.subr.mxu0 0.0
        %6990 = vmatpush1.msra.mxu0 0.0
        %6991 = vmatprep.subr.mxu0 0.0
        %6992 = vmatpush1.msra.mxu0 0.0
        %6993 = vmatprep.subr.mxu0 0.0
        %6994 = vmatpush1.msra.mxu0 0.0
        %6995 = vmatprep.subr.mxu0 0.0
        %6996 = vmatpush1.msra.mxu0 0.0
        %6997 = vmatprep.subr.mxu0 0.0
        %6998 = vmatpush1.msra.mxu0 0.0
        %6999 = vmatprep.subr.mxu0 0.0
        %7000 = vmatpush1.msra.mxu0 0.0
        %7001 = vmatprep.subr.mxu0 0.0
        %7002 = vmatpush1.msra.mxu0 0.0
        %7003 = vmatprep.subr.mxu0 0.0
        %7004 = vmatpush1.msra.mxu0 0.0
        %7005 = vmatprep.subr.mxu0 0.0
        %7006 = vmatpush1.msra.mxu0 0.0
        %7007 = vmatprep.subr.mxu0 0.0
        %7008 = vmatpush1.msra.mxu0 0.0
        %7009 = vmatprep.subr.mxu0 0.0
        %7010 = vmatpush1.msra.mxu0 0.0
        %7011 = vmatprep.subr.mxu0 0.0
        %7012 = vmatpush1.msra.mxu0 0.0
        %7013 = vmatprep.subr.mxu0 0.0
        %7014 = vmatpush1.msra.mxu0 0.0
        %7015 = vmatprep.subr.mxu0 0.0
        %7016 = vmatpush1.msra.mxu0 0.0
        %7017 = vmatprep.subr.mxu0 0.0
        %7018 = vmatpush1.msra.mxu0 0.0
        %7019 = vmatprep.subr.mxu0 0.0
        %7020 = vmatpush1.msra.mxu0 0.0
        %7021 = vmatprep.subr.mxu0 0.0
        %7022 = vmatpush1.msra.mxu0 0.0
        %7023 = vmatprep.subr.mxu0 0.0
        %7024 = vmatpush1.msra.mxu0 0.0
        %7025 = vmatprep.subr.mxu0 0.0
        %7026 = vmatpush1.msra.mxu0 0.0
        %7027 = vmatprep.subr.mxu0 0.0
        %7028 = vmatpush1.msra.mxu0 0.0
        %7029 = vmatprep.subr.mxu0 0.0
        %7030 = vmatpush1.msra.mxu0 0.0
        %7031 = vmatprep.subr.mxu0 0.0
        %7032 = vmatpush1.msra.mxu0 0.0
        %7033 = vmatprep.subr.mxu0 0.0
        %7034 = vmatpush1.msra.mxu0 0.0
        %7035 = vmatprep.mubr.f32.mxu0 0.0
        %7036 = vmatmul.mubr.f32.gmra.mrb[0].mxu0 %v6898
        %v7037 = vpop.f32.mrb[0].mxu0
        %v7038 = vadd.f32 0.0, %v7037
        %v7039 = vpop.f32.mrb[0].mxu0
        %v7040 = vadd.f32 0.0, %v7039
        %7041 = vdwg.mxu0
        %v7046 = vcombine.low %v6967, %v6969
        %v7047 = vcombine.low %v7038, %v7040
        %v7049 = vunpack.c.l.s4 1966171168
        %v7050 = vunpack.c.0.s8 %v7049
        %v7051 = vlaneseq
        %v7052 = vshrl.u32 %v7051, 7
        %v7053 = vsub.s32 %v7050, %v7052
        %v7054 = vrot.slane %v7046, %v7053
        %v7056 = vunpack.c.l.s4 1966171168
        %v7057 = vunpack.c.0.s8 %v7056
        %v7058 = vlaneseq
        %v7059 = vshrl.u32 %v7058, 7
        %v7060 = vsub.s32 %v7057, %v7059
        %v7061 = vrot.slane %v7047, %v7060
        %v7062 = vcombine.low %v7054, %v7061
        %v7064 = vunpack.c.l.s4 1966171168
        %v7065 = vunpack.c.0.s8 %v7064
        %v7066 = vlaneseq
        %v7067 = vshrl.u32 %v7066, 7
        %v7068 = vsub.s32 %v7065, %v7067
        %v7069 = vrot.slane %v7062, %v7068
        %v7071 = vadd.f32 %v6864, %v7069
        %v7072 = vld [vmem:[%s3 + $0x600] sm:$0xff]
        %v7073 = vld [vmem:[%s3 + $0x608] sm:$0xff]
        %v7074 = vld [vmem:[%s3 + $0x610] sm:$0xff]
        %v7075 = vld [vmem:[%s3 + $0x618] sm:$0xff]
        %v7076 = vld [vmem:[%s3 + $0x620] sm:$0xff]
        %v7077 = vld [vmem:[%s3 + $0x628] sm:$0xff]
        %v7078 = vld [vmem:[%s3 + $0x630] sm:$0xff]
        %v7079 = vld [vmem:[%s3 + $0x638] sm:$0xff]
        %v7080 = vld [vmem:[%s3 + $0x640] sm:$0xff]
        %v7081 = vld [vmem:[%s3 + $0x648] sm:$0xff]
        %v7082 = vld [vmem:[%s3 + $0x650] sm:$0xff]
        %v7083 = vld [vmem:[%s3 + $0x658] sm:$0xff]
        %v7084 = vld [vmem:[%s3 + $0x660] sm:$0xff]
        %v7085 = vld [vmem:[%s3 + $0x668] sm:$0xff]
        %v7086 = vld [vmem:[%s3 + $0x670] sm:$0xff]
        %v7087 = vld [vmem:[%s3 + $0x678] sm:$0xff]
        %v7088 = vld [vmem:[%s3 + $0x680] sm:$0xff]
        %v7089 = vld [vmem:[%s3 + $0x688] sm:$0xff]
        %v7090 = vld [vmem:[%s3 + $0x690] sm:$0xff]
        %v7091 = vld [vmem:[%s3 + $0x698] sm:$0xff]
        %v7092 = vld [vmem:[%s3 + $0x6a0] sm:$0xff]
        %v7093 = vld [vmem:[%s3 + $0x6a8] sm:$0xff]
        %v7094 = vld [vmem:[%s3 + $0x6b0] sm:$0xff]
        %v7095 = vld [vmem:[%s3 + $0x6b8] sm:$0xff]
        %v7096 = vld [vmem:[%s3 + $0x6c0] sm:$0xff]
        %v7097 = vld [vmem:[%s3 + $0x6c8] sm:$0xff]
        %v7098 = vld [vmem:[%s3 + $0x6d0] sm:$0xff]
        %v7099 = vld [vmem:[%s3 + $0x6d8] sm:$0xff]
        %v7100 = vld [vmem:[%s3 + $0x6e0] sm:$0xff]
        %v7101 = vld [vmem:[%s3 + $0x6e8] sm:$0xff]
        %v7102 = vld [vmem:[%s3 + $0x6f0] sm:$0xff]
        %v7103 = vld [vmem:[%s3 + $0x6f8] sm:$0xff]
        %v7104 = vrot.slane %v5826, 6
        %v7105 = vsel %vm5861, %v7104, 0
        %7107 = vmatprep.subr.mxu0 %v7073
        %7108 = vmatpush1.msra.mxu0 %v7072
        %7109 = vmatprep.subr.mxu0 %v7077
        %7110 = vmatpush1.msra.mxu0 %v7076
        %7111 = vmatprep.subr.mxu0 %v7081
        %7112 = vmatpush1.msra.mxu0 %v7080
        %7113 = vmatprep.subr.mxu0 %v7085
        %7114 = vmatpush1.msra.mxu0 %v7084
        %7115 = vmatprep.subr.mxu0 %v7089
        %7116 = vmatpush1.msra.mxu0 %v7088
        %7117 = vmatprep.subr.mxu0 %v7093
        %7118 = vmatpush1.msra.mxu0 %v7092
        %7119 = vmatprep.subr.mxu0 %v7097
        %7120 = vmatpush1.msra.mxu0 %v7096
        %7121 = vmatprep.subr.mxu0 %v7101
        %7122 = vmatpush1.msra.mxu0 %v7100
        %7123 = vmatprep.subr.mxu0 0.0
        %7124 = vmatpush1.msra.mxu0 0.0
        %7125 = vmatprep.subr.mxu0 0.0
        %7126 = vmatpush1.msra.mxu0 0.0
        %7127 = vmatprep.subr.mxu0 0.0
        %7128 = vmatpush1.msra.mxu0 0.0
        %7129 = vmatprep.subr.mxu0 0.0
        %7130 = vmatpush1.msra.mxu0 0.0
        %7131 = vmatprep.subr.mxu0 0.0
        %7132 = vmatpush1.msra.mxu0 0.0
        %7133 = vmatprep.subr.mxu0 0.0
        %7134 = vmatpush1.msra.mxu0 0.0
        %7135 = vmatprep.subr.mxu0 0.0
        %7136 = vmatpush1.msra.mxu0 0.0
        %7137 = vmatprep.subr.mxu0 0.0
        %7138 = vmatpush1.msra.mxu0 0.0
        %7139 = vmatprep.subr.mxu0 0.0
        %7140 = vmatpush1.msra.mxu0 0.0
        %7141 = vmatprep.subr.mxu0 0.0
        %7142 = vmatpush1.msra.mxu0 0.0
        %7143 = vmatprep.subr.mxu0 0.0
        %7144 = vmatpush1.msra.mxu0 0.0
        %7145 = vmatprep.subr.mxu0 0.0
        %7146 = vmatpush1.msra.mxu0 0.0
        %7147 = vmatprep.subr.mxu0 0.0
        %7148 = vmatpush1.msra.mxu0 0.0
        %7149 = vmatprep.subr.mxu0 0.0
        %7150 = vmatpush1.msra.mxu0 0.0
        %7151 = vmatprep.subr.mxu0 0.0
        %7152 = vmatpush1.msra.mxu0 0.0
        %7153 = vmatprep.subr.mxu0 0.0
        %7154 = vmatpush1.msra.mxu0 0.0
        %7155 = vmatprep.subr.mxu0 0.0
        %7156 = vmatpush1.msra.mxu0 0.0
        %7157 = vmatprep.subr.mxu0 0.0
        %7158 = vmatpush1.msra.mxu0 0.0
        %7159 = vmatprep.subr.mxu0 0.0
        %7160 = vmatpush1.msra.mxu0 0.0
        %7161 = vmatprep.subr.mxu0 0.0
        %7162 = vmatpush1.msra.mxu0 0.0
        %7163 = vmatprep.subr.mxu0 0.0
        %7164 = vmatpush1.msra.mxu0 0.0
        %7165 = vmatprep.subr.mxu0 0.0
        %7166 = vmatpush1.msra.mxu0 0.0
        %7167 = vmatprep.subr.mxu0 0.0
        %7168 = vmatpush1.msra.mxu0 0.0
        %7169 = vmatprep.subr.mxu0 0.0
        %7170 = vmatpush1.msra.mxu0 0.0
        %7171 = vmatprep.mubr.f32.mxu0 0.0
        %7172 = vmatmul.mubr.f32.gmra.mrb[0].mxu0 %v7105
        %v7173 = vpop.f32.mrb[0].mxu0
        %v7174 = vadd.f32 0.0, %v7173
        %v7175 = vpop.f32.mrb[0].mxu0
        %v7176 = vadd.f32 0.0, %v7175
        %7177 = vdwg.mxu0
        %7178 = vmatprep.subr.mxu0 %v7075
        %7179 = vmatpush1.msra.mxu0 %v7074
        %7180 = vmatprep.subr.mxu0 %v7079
        %7181 = vmatpush1.msra.mxu0 %v7078
        %7182 = vmatprep.subr.mxu0 %v7083
        %7183 = vmatpush1.msra.mxu0 %v7082
        %7184 = vmatprep.subr.mxu0 %v7087
        %7185 = vmatpush1.msra.mxu0 %v7086
        %7186 = vmatprep.subr.mxu0 %v7091
        %7187 = vmatpush1.msra.mxu0 %v7090
        %7188 = vmatprep.subr.mxu0 %v7095
        %7189 = vmatpush1.msra.mxu0 %v7094
        %7190 = vmatprep.subr.mxu0 %v7099
        %7191 = vmatpush1.msra.mxu0 %v7098
        %7192 = vmatprep.subr.mxu0 %v7103
        %7193 = vmatpush1.msra.mxu0 %v7102
        %7194 = vmatprep.subr.mxu0 0.0
        %7195 = vmatpush1.msra.mxu0 0.0
        %7196 = vmatprep.subr.mxu0 0.0
        %7197 = vmatpush1.msra.mxu0 0.0
        %7198 = vmatprep.subr.mxu0 0.0
        %7199 = vmatpush1.msra.mxu0 0.0
        %7200 = vmatprep.subr.mxu0 0.0
        %7201 = vmatpush1.msra.mxu0 0.0
        %7202 = vmatprep.subr.mxu0 0.0
        %7203 = vmatpush1.msra.mxu0 0.0
        %7204 = vmatprep.subr.mxu0 0.0
        %7205 = vmatpush1.msra.mxu0 0.0
        %7206 = vmatprep.subr.mxu0 0.0
        %7207 = vmatpush1.msra.mxu0 0.0
        %7208 = vmatprep.subr.mxu0 0.0
        %7209 = vmatpush1.msra.mxu0 0.0
        %7210 = vmatprep.subr.mxu0 0.0
        %7211 = vmatpush1.msra.mxu0 0.0
        %7212 = vmatprep.subr.mxu0 0.0
        %7213 = vmatpush1.msra.mxu0 0.0
        %7214 = vmatprep.subr.mxu0 0.0
        %7215 = vmatpush1.msra.mxu0 0.0
        %7216 = vmatprep.subr.mxu0 0.0
        %7217 = vmatpush1.msra.mxu0 0.0
        %7218 = vmatprep.subr.mxu0 0.0
        %7219 = vmatpush1.msra.mxu0 0.0
        %7220 = vmatprep.subr.mxu0 0.0
        %7221 = vmatpush1.msra.mxu0 0.0
        %7222 = vmatprep.subr.mxu0 0.0
        %7223 = vmatpush1.msra.mxu0 0.0
        %7224 = vmatprep.subr.mxu0 0.0
        %7225 = vmatpush1.msra.mxu0 0.0
        %7226 = vmatprep.subr.mxu0 0.0
        %7227 = vmatpush1.msra.mxu0 0.0
        %7228 = vmatprep.subr.mxu0 0.0
        %7229 = vmatpush1.msra.mxu0 0.0
        %7230 = vmatprep.subr.mxu0 0.0
        %7231 = vmatpush1.msra.mxu0 0.0
        %7232 = vmatprep.subr.mxu0 0.0
        %7233 = vmatpush1.msra.mxu0 0.0
        %7234 = vmatprep.subr.mxu0 0.0
        %7235 = vmatpush1.msra.mxu0 0.0
        %7236 = vmatprep.subr.mxu0 0.0
        %7237 = vmatpush1.msra.mxu0 0.0
        %7238 = vmatprep.subr.mxu0 0.0
        %7239 = vmatpush1.msra.mxu0 0.0
        %7240 = vmatprep.subr.mxu0 0.0
        %7241 = vmatpush1.msra.mxu0 0.0
        %7242 = vmatprep.mubr.f32.mxu0 0.0
        %7243 = vmatmul.mubr.f32.gmra.mrb[0].mxu0 %v7105
        %v7244 = vpop.f32.mrb[0].mxu0
        %v7245 = vadd.f32 0.0, %v7244
        %v7246 = vpop.f32.mrb[0].mxu0
        %v7247 = vadd.f32 0.0, %v7246
        %7248 = vdwg.mxu0
        %v7253 = vcombine.low %v7174, %v7176
        %v7254 = vcombine.low %v7245, %v7247
        %v7256 = vunpack.c.l.s4 1966171168
        %v7257 = vunpack.c.0.s8 %v7256
        %v7258 = vlaneseq
        %v7259 = vshrl.u32 %v7258, 7
        %v7260 = vsub.s32 %v7257, %v7259
        %v7261 = vrot.slane %v7253, %v7260
        %v7263 = vunpack.c.l.s4 1966171168
        %v7264 = vunpack.c.0.s8 %v7263
        %v7265 = vlaneseq
        %v7266 = vshrl.u32 %v7265, 7
        %v7267 = vsub.s32 %v7264, %v7266
        %v7268 = vrot.slane %v7254, %v7267
        %v7269 = vcombine.low %v7261, %v7268
        %v7271 = vunpack.c.l.s4 1966171168
        %v7272 = vunpack.c.0.s8 %v7271
        %v7273 = vlaneseq
        %v7274 = vshrl.u32 %v7273, 7
        %v7275 = vsub.s32 %v7272, %v7274
        %v7276 = vrot.slane %v7269, %v7275
        %v7278 = vadd.f32 %v7071, %v7276
        %v7279 = vld [vmem:[%s3 + $0x700] sm:$0xff]
        %v7280 = vld [vmem:[%s3 + $0x708] sm:$0xff]
        %v7281 = vld [vmem:[%s3 + $0x710] sm:$0xff]
        %v7282 = vld [vmem:[%s3 + $0x718] sm:$0xff]
        %v7283 = vld [vmem:[%s3 + $0x720] sm:$0xff]
        %v7284 = vld [vmem:[%s3 + $0x728] sm:$0xff]
        %v7285 = vld [vmem:[%s3 + $0x730] sm:$0xff]
        %v7286 = vld [vmem:[%s3 + $0x738] sm:$0xff]
        %v7287 = vld [vmem:[%s3 + $0x740] sm:$0xff]
        %v7288 = vld [vmem:[%s3 + $0x748] sm:$0xff]
        %v7289 = vld [vmem:[%s3 + $0x750] sm:$0xff]
        %v7290 = vld [vmem:[%s3 + $0x758] sm:$0xff]
        %v7291 = vld [vmem:[%s3 + $0x760] sm:$0xff]
        %v7292 = vld [vmem:[%s3 + $0x768] sm:$0xff]
        %v7293 = vld [vmem:[%s3 + $0x770] sm:$0xff]
        %v7294 = vld [vmem:[%s3 + $0x778] sm:$0xff]
        %v7295 = vld [vmem:[%s3 + $0x780] sm:$0xff]
        %v7296 = vld [vmem:[%s3 + $0x788] sm:$0xff]
        %v7297 = vld [vmem:[%s3 + $0x790] sm:$0xff]
        %v7298 = vld [vmem:[%s3 + $0x798] sm:$0xff]
        %v7299 = vld [vmem:[%s3 + $0x7a0] sm:$0xff]
        %v7300 = vld [vmem:[%s3 + $0x7a8] sm:$0xff]
        %v7301 = vld [vmem:[%s3 + $0x7b0] sm:$0xff]
        %v7302 = vld [vmem:[%s3 + $0x7b8] sm:$0xff]
        %v7303 = vld [vmem:[%s3 + $0x7c0] sm:$0xff]
        %v7304 = vld [vmem:[%s3 + $0x7c8] sm:$0xff]
        %v7305 = vld [vmem:[%s3 + $0x7d0] sm:$0xff]
        %v7306 = vld [vmem:[%s3 + $0x7d8] sm:$0xff]
        %v7307 = vld [vmem:[%s3 + $0x7e0] sm:$0xff]
        %v7308 = vld [vmem:[%s3 + $0x7e8] sm:$0xff]
        %v7309 = vld [vmem:[%s3 + $0x7f0] sm:$0xff]
        %v7310 = vld [vmem:[%s3 + $0x7f8] sm:$0xff]
        %v7311 = vrot.slane %v5826, 7
        %v7312 = vsel %vm5861, %v7311, 0
        %7314 = vmatprep.subr.mxu0 %v7280
        %7315 = vmatpush1.msra.mxu0 %v7279
        %7316 = vmatprep.subr.mxu0 %v7284
        %7317 = vmatpush1.msra.mxu0 %v7283
        %7318 = vmatprep.subr.mxu0 %v7288
        %7319 = vmatpush1.msra.mxu0 %v7287
        %7320 = vmatprep.subr.mxu0 %v7292
        %7321 = vmatpush1.msra.mxu0 %v7291
        %7322 = vmatprep.subr.mxu0 %v7296
        %7323 = vmatpush1.msra.mxu0 %v7295
        %7324 = vmatprep.subr.mxu0 %v7300
        %7325 = vmatpush1.msra.mxu0 %v7299
        %7326 = vmatprep.subr.mxu0 %v7304
        %7327 = vmatpush1.msra.mxu0 %v7303
        %7328 = vmatprep.subr.mxu0 %v7308
        %7329 = vmatpush1.msra.mxu0 %v7307
        %7330 = vmatprep.subr.mxu0 0.0
        %7331 = vmatpush1.msra.mxu0 0.0
        %7332 = vmatprep.subr.mxu0 0.0
        %7333 = vmatpush1.msra.mxu0 0.0
        %7334 = vmatprep.subr.mxu0 0.0
        %7335 = vmatpush1.msra.mxu0 0.0
        %7336 = vmatprep.subr.mxu0 0.0
        %7337 = vmatpush1.msra.mxu0 0.0
        %7338 = vmatprep.subr.mxu0 0.0
        %7339 = vmatpush1.msra.mxu0 0.0
        %7340 = vmatprep.subr.mxu0 0.0
        %7341 = vmatpush1.msra.mxu0 0.0
        %7342 = vmatprep.subr.mxu0 0.0
        %7343 = vmatpush1.msra.mxu0 0.0
        %7344 = vmatprep.subr.mxu0 0.0
        %7345 = vmatpush1.msra.mxu0 0.0
        %7346 = vmatprep.subr.mxu0 0.0
        %7347 = vmatpush1.msra.mxu0 0.0
        %7348 = vmatprep.subr.mxu0 0.0
        %7349 = vmatpush1.msra.mxu0 0.0
        %7350 = vmatprep.subr.mxu0 0.0
        %7351 = vmatpush1.msra.mxu0 0.0
        %7352 = vmatprep.subr.mxu0 0.0
        %7353 = vmatpush1.msra.mxu0 0.0
        %7354 = vmatprep.subr.mxu0 0.0
        %7355 = vmatpush1.msra.mxu0 0.0
        %7356 = vmatprep.subr.mxu0 0.0
        %7357 = vmatpush1.msra.mxu0 0.0
        %7358 = vmatprep.subr.mxu0 0.0
        %7359 = vmatpush1.msra.mxu0 0.0
        %7360 = vmatprep.subr.mxu0 0.0
        %7361 = vmatpush1.msra.mxu0 0.0
        %7362 = vmatprep.subr.mxu0 0.0
        %7363 = vmatpush1.msra.mxu0 0.0
        %7364 = vmatprep.subr.mxu0 0.0
        %7365 = vmatpush1.msra.mxu0 0.0
        %7366 = vmatprep.subr.mxu0 0.0
        %7367 = vmatpush1.msra.mxu0 0.0
        %7368 = vmatprep.subr.mxu0 0.0
        %7369 = vmatpush1.msra.mxu0 0.0
        %7370 = vmatprep.subr.mxu0 0.0
        %7371 = vmatpush1.msra.mxu0 0.0
        %7372 = vmatprep.subr.mxu0 0.0
        %7373 = vmatpush1.msra.mxu0 0.0
        %7374 = vmatprep.subr.mxu0 0.0
        %7375 = vmatpush1.msra.mxu0 0.0
        %7376 = vmatprep.subr.mxu0 0.0
        %7377 = vmatpush1.msra.mxu0 0.0
        %7378 = vmatprep.mubr.f32.mxu0 0.0
        %7379 = vmatmul.mubr.f32.gmra.mrb[0].mxu0 %v7312
        %v7380 = vpop.f32.mrb[0].mxu0
        %v7381 = vadd.f32 0.0, %v7380
        %v7382 = vpop.f32.mrb[0].mxu0
        %v7383 = vadd.f32 0.0, %v7382
        %7384 = vdwg.mxu0
        %7385 = vmatprep.subr.mxu0 %v7282
        %7386 = vmatpush1.msra.mxu0 %v7281
        %7387 = vmatprep.subr.mxu0 %v7286
        %7388 = vmatpush1.msra.mxu0 %v7285
        %7389 = vmatprep.subr.mxu0 %v7290
        %7390 = vmatpush1.msra.mxu0 %v7289
        %7391 = vmatprep.subr.mxu0 %v7294
        %7392 = vmatpush1.msra.mxu0 %v7293
        %7393 = vmatprep.subr.mxu0 %v7298
        %7394 = vmatpush1.msra.mxu0 %v7297
        %7395 = vmatprep.subr.mxu0 %v7302
        %7396 = vmatpush1.msra.mxu0 %v7301
        %7397 = vmatprep.subr.mxu0 %v7306
        %7398 = vmatpush1.msra.mxu0 %v7305
        %7399 = vmatprep.subr.mxu0 %v7310
        %7400 = vmatpush1.msra.mxu0 %v7309
        %7401 = vmatprep.subr.mxu0 0.0
        %7402 = vmatpush1.msra.mxu0 0.0
        %7403 = vmatprep.subr.mxu0 0.0
        %7404 = vmatpush1.msra.mxu0 0.0
        %7405 = vmatprep.subr.mxu0 0.0
        %7406 = vmatpush1.msra.mxu0 0.0
        %7407 = vmatprep.subr.mxu0 0.0
        %7408 = vmatpush1.msra.mxu0 0.0
        %7409 = vmatprep.subr.mxu0 0.0
        %7410 = vmatpush1.msra.mxu0 0.0
        %7411 = vmatprep.subr.mxu0 0.0
        %7412 = vmatpush1.msra.mxu0 0.0
        %7413 = vmatprep.subr.mxu0 0.0
        %7414 = vmatpush1.msra.mxu0 0.0
        %7415 = vmatprep.subr.mxu0 0.0
        %7416 = vmatpush1.msra.mxu0 0.0
        %7417 = vmatprep.subr.mxu0 0.0
        %7418 = vmatpush1.msra.mxu0 0.0
        %7419 = vmatprep.subr.mxu0 0.0
        %7420 = vmatpush1.msra.mxu0 0.0
        %7421 = vmatprep.subr.mxu0 0.0
        %7422 = vmatpush1.msra.mxu0 0.0
        %7423 = vmatprep.subr.mxu0 0.0
        %7424 = vmatpush1.msra.mxu0 0.0
        %7425 = vmatprep.subr.mxu0 0.0
        %7426 = vmatpush1.msra.mxu0 0.0
        %7427 = vmatprep.subr.mxu0 0.0
        %7428 = vmatpush1.msra.mxu0 0.0
        %7429 = vmatprep.subr.mxu0 0.0
        %7430 = vmatpush1.msra.mxu0 0.0
        %7431 = vmatprep.subr.mxu0 0.0
        %7432 = vmatpush1.msra.mxu0 0.0
        %7433 = vmatprep.subr.mxu0 0.0
        %7434 = vmatpush1.msra.mxu0 0.0
        %7435 = vmatprep.subr.mxu0 0.0
        %7436 = vmatpush1.msra.mxu0 0.0
        %7437 = vmatprep.subr.mxu0 0.0
        %7438 = vmatpush1.msra.mxu0 0.0
        %7439 = vmatprep.subr.mxu0 0.0
        %7440 = vmatpush1.msra.mxu0 0.0
        %7441 = vmatprep.subr.mxu0 0.0
        %7442 = vmatpush1.msra.mxu0 0.0
        %7443 = vmatprep.subr.mxu0 0.0
        %7444 = vmatpush1.msra.mxu0 0.0
        %7445 = vmatprep.subr.mxu0 0.0
        %7446 = vmatpush1.msra.mxu0 0.0
        %7447 = vmatprep.subr.mxu0 0.0
        %7448 = vmatpush1.msra.mxu0 0.0
        %7449 = vmatprep.mubr.f32.mxu0 0.0
        %7450 = vmatmul.mubr.f32.gmra.mrb[0].mxu0 %v7312
        %v7451 = vpop.f32.mrb[0].mxu0
        %v7452 = vadd.f32 0.0, %v7451
        %v7453 = vpop.f32.mrb[0].mxu0
        %v7454 = vadd.f32 0.0, %v7453
        %7455 = vdwg.mxu0
        %v7460 = vcombine.low %v7381, %v7383
        %v7461 = vcombine.low %v7452, %v7454
        %v7463 = vunpack.c.l.s4 1966171168
        %v7464 = vunpack.c.0.s8 %v7463
        %v7465 = vlaneseq
        %v7466 = vshrl.u32 %v7465, 7
        %v7467 = vsub.s32 %v7464, %v7466
        %v7468 = vrot.slane %v7460, %v7467
        %v7470 = vunpack.c.l.s4 1966171168
        %v7471 = vunpack.c.0.s8 %v7470
        %v7472 = vlaneseq
        %v7473 = vshrl.u32 %v7472, 7
        %v7474 = vsub.s32 %v7471, %v7473
        %v7475 = vrot.slane %v7461, %v7474
        %v7476 = vcombine.low %v7468, %v7475
        %v7478 = vunpack.c.l.s4 1966171168
        %v7479 = vunpack.c.0.s8 %v7478
        %v7480 = vlaneseq
        %v7481 = vshrl.u32 %v7480, 7
        %v7482 = vsub.s32 %v7479, %v7481
        %v7483 = vrot.slane %v7476, %v7482
        %v7485 = vadd.f32 %v7278, %v7483
        %v7486 = vld [vmem:[%s3 + $0x800] sm:$0xff]
        %v7487 = vld [vmem:[%s3 + $0x808] sm:$0xff]
        %v7488 = vld [vmem:[%s3 + $0x810] sm:$0xff]
        %v7489 = vld [vmem:[%s3 + $0x818] sm:$0xff]
        %v7490 = vld [vmem:[%s3 + $0x820] sm:$0xff]
        %v7491 = vld [vmem:[%s3 + $0x828] sm:$0xff]
        %v7492 = vld [vmem:[%s3 + $0x830] sm:$0xff]
        %v7493 = vld [vmem:[%s3 + $0x838] sm:$0xff]
        %v7494 = vld [vmem:[%s3 + $0x840] sm:$0xff]
        %v7495 = vld [vmem:[%s3 + $0x848] sm:$0xff]
        %v7496 = vld [vmem:[%s3 + $0x850] sm:$0xff]
        %v7497 = vld [vmem:[%s3 + $0x858] sm:$0xff]
        %v7498 = vld [vmem:[%s3 + $0x860] sm:$0xff]
        %v7499 = vld [vmem:[%s3 + $0x868] sm:$0xff]
        %v7500 = vld [vmem:[%s3 + $0x870] sm:$0xff]
        %v7501 = vld [vmem:[%s3 + $0x878] sm:$0xff]
        %v7502 = vld [vmem:[%s3 + $0x880] sm:$0xff]
        %v7503 = vld [vmem:[%s3 + $0x888] sm:$0xff]
        %v7504 = vld [vmem:[%s3 + $0x890] sm:$0xff]
        %v7505 = vld [vmem:[%s3 + $0x898] sm:$0xff]
        %v7506 = vld [vmem:[%s3 + $0x8a0] sm:$0xff]
        %v7507 = vld [vmem:[%s3 + $0x8a8] sm:$0xff]
        %v7508 = vld [vmem:[%s3 + $0x8b0] sm:$0xff]
        %v7509 = vld [vmem:[%s3 + $0x8b8] sm:$0xff]
        %v7510 = vld [vmem:[%s3 + $0x8c0] sm:$0xff]
        %v7511 = vld [vmem:[%s3 + $0x8c8] sm:$0xff]
        %v7512 = vld [vmem:[%s3 + $0x8d0] sm:$0xff]
        %v7513 = vld [vmem:[%s3 + $0x8d8] sm:$0xff]
        %v7514 = vld [vmem:[%s3 + $0x8e0] sm:$0xff]
        %v7515 = vld [vmem:[%s3 + $0x8e8] sm:$0xff]
        %v7516 = vld [vmem:[%s3 + $0x8f0] sm:$0xff]
        %v7517 = vld [vmem:[%s3 + $0x8f8] sm:$0xff]
        %v7519 = vsel %vm5861, %v5827, 0
        %7521 = vmatprep.subr.mxu0 %v7487
        %7522 = vmatpush1.msra.mxu0 %v7486
        %7523 = vmatprep.subr.mxu0 %v7491
        %7524 = vmatpush1.msra.mxu0 %v7490
        %7525 = vmatprep.subr.mxu0 %v7495
        %7526 = vmatpush1.msra.mxu0 %v7494
        %7527 = vmatprep.subr.mxu0 %v7499
        %7528 = vmatpush1.msra.mxu0 %v7498
        %7529 = vmatprep.subr.mxu0 %v7503
        %7530 = vmatpush1.msra.mxu0 %v7502
        %7531 = vmatprep.subr.mxu0 %v7507
        %7532 = vmatpush1.msra.mxu0 %v7506
        %7533 = vmatprep.subr.mxu0 %v7511
        %7534 = vmatpush1.msra.mxu0 %v7510
        %7535 = vmatprep.subr.mxu0 %v7515
        %7536 = vmatpush1.msra.mxu0 %v7514
        %7537 = vmatprep.subr.mxu0 0.0
        %7538 = vmatpush1.msra.mxu0 0.0
        %7539 = vmatprep.subr.mxu0 0.0
        %7540 = vmatpush1.msra.mxu0 0.0
        %7541 = vmatprep.subr.mxu0 0.0
        %7542 = vmatpush1.msra.mxu0 0.0
        %7543 = vmatprep.subr.mxu0 0.0
        %7544 = vmatpush1.msra.mxu0 0.0
        %7545 = vmatprep.subr.mxu0 0.0
        %7546 = vmatpush1.msra.mxu0 0.0
        %7547 = vmatprep.subr.mxu0 0.0
        %7548 = vmatpush1.msra.mxu0 0.0
        %7549 = vmatprep.subr.mxu0 0.0
        %7550 = vmatpush1.msra.mxu0 0.0
        %7551 = vmatprep.subr.mxu0 0.0
        %7552 = vmatpush1.msra.mxu0 0.0
        %7553 = vmatprep.subr.mxu0 0.0
        %7554 = vmatpush1.msra.mxu0 0.0
        %7555 = vmatprep.subr.mxu0 0.0
        %7556 = vmatpush1.msra.mxu0 0.0
        %7557 = vmatprep.subr.mxu0 0.0
        %7558 = vmatpush1.msra.mxu0 0.0
        %7559 = vmatprep.subr.mxu0 0.0
        %7560 = vmatpush1.msra.mxu0 0.0
        %7561 = vmatprep.subr.mxu0 0.0
        %7562 = vmatpush1.msra.mxu0 0.0
        %7563 = vmatprep.subr.mxu0 0.0
        %7564 = vmatpush1.msra.mxu0 0.0
        %7565 = vmatprep.subr.mxu0 0.0
        %7566 = vmatpush1.msra.mxu0 0.0
        %7567 = vmatprep.subr.mxu0 0.0
        %7568 = vmatpush1.msra.mxu0 0.0
        %7569 = vmatprep.subr.mxu0 0.0
        %7570 = vmatpush1.msra.mxu0 0.0
        %7571 = vmatprep.subr.mxu0 0.0
        %7572 = vmatpush1.msra.mxu0 0.0
        %7573 = vmatprep.subr.mxu0 0.0
        %7574 = vmatpush1.msra.mxu0 0.0
        %7575 = vmatprep.subr.mxu0 0.0
        %7576 = vmatpush1.msra.mxu0 0.0
        %7577 = vmatprep.subr.mxu0 0.0
        %7578 = vmatpush1.msra.mxu0 0.0
        %7579 = vmatprep.subr.mxu0 0.0
        %7580 = vmatpush1.msra.mxu0 0.0
        %7581 = vmatprep.subr.mxu0 0.0
        %7582 = vmatpush1.msra.mxu0 0.0
        %7583 = vmatprep.subr.mxu0 0.0
        %7584 = vmatpush1.msra.mxu0 0.0
        %7585 = vmatprep.mubr.f32.mxu0 0.0
        %7586 = vmatmul.mubr.f32.gmra.mrb[0].mxu0 %v7519
        %v7587 = vpop.f32.mrb[0].mxu0
        %v7588 = vadd.f32 0.0, %v7587
        %v7589 = vpop.f32.mrb[0].mxu0
        %v7590 = vadd.f32 0.0, %v7589
        %7591 = vdwg.mxu0
        %7592 = vmatprep.subr.mxu0 %v7489
        %7593 = vmatpush1.msra.mxu0 %v7488
        %7594 = vmatprep.subr.mxu0 %v7493
        %7595 = vmatpush1.msra.mxu0 %v7492
        %7596 = vmatprep.subr.mxu0 %v7497
        %7597 = vmatpush1.msra.mxu0 %v7496
        %7598 = vmatprep.subr.mxu0 %v7501
        %7599 = vmatpush1.msra.mxu0 %v7500
        %7600 = vmatprep.subr.mxu0 %v7505
        %7601 = vmatpush1.msra.mxu0 %v7504
        %7602 = vmatprep.subr.mxu0 %v7509
        %7603 = vmatpush1.msra.mxu0 %v7508
        %7604 = vmatprep.subr.mxu0 %v7513
        %7605 = vmatpush1.msra.mxu0 %v7512
        %7606 = vmatprep.subr.mxu0 %v7517
        %7607 = vmatpush1.msra.mxu0 %v7516
        %7608 = vmatprep.subr.mxu0 0.0
        %7609 = vmatpush1.msra.mxu0 0.0
        %7610 = vmatprep.subr.mxu0 0.0
        %7611 = vmatpush1.msra.mxu0 0.0
        %7612 = vmatprep.subr.mxu0 0.0
        %7613 = vmatpush1.msra.mxu0 0.0
        %7614 = vmatprep.subr.mxu0 0.0
        %7615 = vmatpush1.msra.mxu0 0.0
        %7616 = vmatprep.subr.mxu0 0.0
        %7617 = vmatpush1.msra.mxu0 0.0
        %7618 = vmatprep.subr.mxu0 0.0
        %7619 = vmatpush1.msra.mxu0 0.0
        %7620 = vmatprep.subr.mxu0 0.0
        %7621 = vmatpush1.msra.mxu0 0.0
        %7622 = vmatprep.subr.mxu0 0.0
        %7623 = vmatpush1.msra.mxu0 0.0
        %7624 = vmatprep.subr.mxu0 0.0
        %7625 = vmatpush1.msra.mxu0 0.0
        %7626 = vmatprep.subr.mxu0 0.0
        %7627 = vmatpush1.msra.mxu0 0.0
        %7628 = vmatprep.subr.mxu0 0.0
        %7629 = vmatpush1.msra.mxu0 0.0
        %7630 = vmatprep.subr.mxu0 0.0
        %7631 = vmatpush1.msra.mxu0 0.0
        %7632 = vmatprep.subr.mxu0 0.0
        %7633 = vmatpush1.msra.mxu0 0.0
        %7634 = vmatprep.subr.mxu0 0.0
        %7635 = vmatpush1.msra.mxu0 0.0
        %7636 = vmatprep.subr.mxu0 0.0
        %7637 = vmatpush1.msra.mxu0 0.0
        %7638 = vmatprep.subr.mxu0 0.0
        %7639 = vmatpush1.msra.mxu0 0.0
        %7640 = vmatprep.subr.mxu0 0.0
        %7641 = vmatpush1.msra.mxu0 0.0
        %7642 = vmatprep.subr.mxu0 0.0
        %7643 = vmatpush1.msra.mxu0 0.0
        %7644 = vmatprep.subr.mxu0 0.0
        %7645 = vmatpush1.msra.mxu0 0.0
        %7646 = vmatprep.subr.mxu0 0.0
        %7647 = vmatpush1.msra.mxu0 0.0
        %7648 = vmatprep.subr.mxu0 0.0
        %7649 = vmatpush1.msra.mxu0 0.0
        %7650 = vmatprep.subr.mxu0 0.0
        %7651 = vmatpush1.msra.mxu0 0.0
        %7652 = vmatprep.subr.mxu0 0.0
        %7653 = vmatpush1.msra.mxu0 0.0
        %7654 = vmatprep.subr.mxu0 0.0
        %7655 = vmatpush1.msra.mxu0 0.0
        %7656 = vmatprep.mubr.f32.mxu0 0.0
        %7657 = vmatmul.mubr.f32.gmra.mrb[0].mxu0 %v7519
        %v7658 = vpop.f32.mrb[0].mxu0
        %v7659 = vadd.f32 0.0, %v7658
        %v7660 = vpop.f32.mrb[0].mxu0
        %v7661 = vadd.f32 0.0, %v7660
        %7662 = vdwg.mxu0
        %v7667 = vcombine.low %v7588, %v7590
        %v7668 = vcombine.low %v7659, %v7661
        %v7670 = vunpack.c.l.s4 1966171168
        %v7671 = vunpack.c.0.s8 %v7670
        %v7672 = vlaneseq
        %v7673 = vshrl.u32 %v7672, 7
        %v7674 = vsub.s32 %v7671, %v7673
        %v7675 = vrot.slane %v7667, %v7674
        %v7677 = vunpack.c.l.s4 1966171168
        %v7678 = vunpack.c.0.s8 %v7677
        %v7679 = vlaneseq
        %v7680 = vshrl.u32 %v7679, 7
        %v7681 = vsub.s32 %v7678, %v7680
        %v7682 = vrot.slane %v7668, %v7681
        %v7683 = vcombine.low %v7675, %v7682
        %v7685 = vunpack.c.l.s4 1966171168
        %v7686 = vunpack.c.0.s8 %v7685
        %v7687 = vlaneseq
        %v7688 = vshrl.u32 %v7687, 7
        %v7689 = vsub.s32 %v7686, %v7688
        %v7690 = vrot.slane %v7683, %v7689
        %v7692 = vadd.f32 %v7485, %v7690
        %v7693 = vld [vmem:[%s3 + $0x900] sm:$0xff]
        %v7694 = vld [vmem:[%s3 + $0x908] sm:$0xff]
        %v7695 = vld [vmem:[%s3 + $0x910] sm:$0xff]
        %v7696 = vld [vmem:[%s3 + $0x918] sm:$0xff]
        %v7697 = vld [vmem:[%s3 + $0x920] sm:$0xff]
        %v7698 = vld [vmem:[%s3 + $0x928] sm:$0xff]
        %v7699 = vld [vmem:[%s3 + $0x930] sm:$0xff]
        %v7700 = vld [vmem:[%s3 + $0x938] sm:$0xff]
        %v7701 = vld [vmem:[%s3 + $0x940] sm:$0xff]
        %v7702 = vld [vmem:[%s3 + $0x948] sm:$0xff]
        %v7703 = vld [vmem:[%s3 + $0x950] sm:$0xff]
        %v7704 = vld [vmem:[%s3 + $0x958] sm:$0xff]
        %v7705 = vld [vmem:[%s3 + $0x960] sm:$0xff]
        %v7706 = vld [vmem:[%s3 + $0x968] sm:$0xff]
        %v7707 = vld [vmem:[%s3 + $0x970] sm:$0xff]
        %v7708 = vld [vmem:[%s3 + $0x978] sm:$0xff]
        %v7709 = vld [vmem:[%s3 + $0x980] sm:$0xff]
        %v7710 = vld [vmem:[%s3 + $0x988] sm:$0xff]
        %v7711 = vld [vmem:[%s3 + $0x990] sm:$0xff]
        %v7712 = vld [vmem:[%s3 + $0x998] sm:$0xff]
        %v7713 = vld [vmem:[%s3 + $0x9a0] sm:$0xff]
        %v7714 = vld [vmem:[%s3 + $0x9a8] sm:$0xff]
        %v7715 = vld [vmem:[%s3 + $0x9b0] sm:$0xff]
        %v7716 = vld [vmem:[%s3 + $0x9b8] sm:$0xff]
        %v7717 = vld [vmem:[%s3 + $0x9c0] sm:$0xff]
        %v7718 = vld [vmem:[%s3 + $0x9c8] sm:$0xff]
        %v7719 = vld [vmem:[%s3 + $0x9d0] sm:$0xff]
        %v7720 = vld [vmem:[%s3 + $0x9d8] sm:$0xff]
        %v7721 = vld [vmem:[%s3 + $0x9e0] sm:$0xff]
        %v7722 = vld [vmem:[%s3 + $0x9e8] sm:$0xff]
        %v7723 = vld [vmem:[%s3 + $0x9f0] sm:$0xff]
        %v7724 = vld [vmem:[%s3 + $0x9f8] sm:$0xff]
        %v7725 = vrot.slane %v5827, 1
        %v7726 = vsel %vm5861, %v7725, 0
        %7728 = vmatprep.subr.mxu0 %v7694
        %7729 = vmatpush1.msra.mxu0 %v7693
        %7730 = vmatprep.subr.mxu0 %v7698
        %7731 = vmatpush1.msra.mxu0 %v7697
        %7732 = vmatprep.subr.mxu0 %v7702
        %7733 = vmatpush1.msra.mxu0 %v7701
        %7734 = vmatprep.subr.mxu0 %v7706
        %7735 = vmatpush1.msra.mxu0 %v7705
        %7736 = vmatprep.subr.mxu0 %v7710
        %7737 = vmatpush1.msra.mxu0 %v7709
        %7738 = vmatprep.subr.mxu0 %v7714
        %7739 = vmatpush1.msra.mxu0 %v7713
        %7740 = vmatprep.subr.mxu0 %v7718
        %7741 = vmatpush1.msra.mxu0 %v7717
        %7742 = vmatprep.subr.mxu0 %v7722
        %7743 = vmatpush1.msra.mxu0 %v7721
        %7744 = vmatprep.subr.mxu0 0.0
        %7745 = vmatpush1.msra.mxu0 0.0
        %7746 = vmatprep.subr.mxu0 0.0
        %7747 = vmatpush1.msra.mxu0 0.0
        %7748 = vmatprep.subr.mxu0 0.0
        %7749 = vmatpush1.msra.mxu0 0.0
        %7750 = vmatprep.subr.mxu0 0.0
        %7751 = vmatpush1.msra.mxu0 0.0
        %7752 = vmatprep.subr.mxu0 0.0
        %7753 = vmatpush1.msra.mxu0 0.0
        %7754 = vmatprep.subr.mxu0 0.0
        %7755 = vmatpush1.msra.mxu0 0.0
        %7756 = vmatprep.subr.mxu0 0.0
        %7757 = vmatpush1.msra.mxu0 0.0
        %7758 = vmatprep.subr.mxu0 0.0
        %7759 = vmatpush1.msra.mxu0 0.0
        %7760 = vmatprep.subr.mxu0 0.0
        %7761 = vmatpush1.msra.mxu0 0.0
        %7762 = vmatprep.subr.mxu0 0.0
        %7763 = vmatpush1.msra.mxu0 0.0
        %7764 = vmatprep.subr.mxu0 0.0
        %7765 = vmatpush1.msra.mxu0 0.0
        %7766 = vmatprep.subr.mxu0 0.0
        %7767 = vmatpush1.msra.mxu0 0.0
        %7768 = vmatprep.subr.mxu0 0.0
        %7769 = vmatpush1.msra.mxu0 0.0
        %7770 = vmatprep.subr.mxu0 0.0
        %7771 = vmatpush1.msra.mxu0 0.0
        %7772 = vmatprep.subr.mxu0 0.0
        %7773 = vmatpush1.msra.mxu0 0.0
        %7774 = vmatprep.subr.mxu0 0.0
        %7775 = vmatpush1.msra.mxu0 0.0
        %7776 = vmatprep.subr.mxu0 0.0
        %7777 = vmatpush1.msra.mxu0 0.0
        %7778 = vmatprep.subr.mxu0 0.0
        %7779 = vmatpush1.msra.mxu0 0.0
        %7780 = vmatprep.subr.mxu0 0.0
        %7781 = vmatpush1.msra.mxu0 0.0
        %7782 = vmatprep.subr.mxu0 0.0
        %7783 = vmatpush1.msra.mxu0 0.0
        %7784 = vmatprep.subr.mxu0 0.0
        %7785 = vmatpush1.msra.mxu0 0.0
        %7786 = vmatprep.subr.mxu0 0.0
        %7787 = vmatpush1.msra.mxu0 0.0
        %7788 = vmatprep.subr.mxu0 0.0
        %7789 = vmatpush1.msra.mxu0 0.0
        %7790 = vmatprep.subr.mxu0 0.0
        %7791 = vmatpush1.msra.mxu0 0.0
        %7792 = vmatprep.mubr.f32.mxu0 0.0
        %7793 = vmatmul.mubr.f32.gmra.mrb[0].mxu0 %v7726
        %v7794 = vpop.f32.mrb[0].mxu0
        %v7795 = vadd.f32 0.0, %v7794
        %v7796 = vpop.f32.mrb[0].mxu0
        %v7797 = vadd.f32 0.0, %v7796
        %7798 = vdwg.mxu0
        %7799 = vmatprep.subr.mxu0 %v7696
        %7800 = vmatpush1.msra.mxu0 %v7695
        %7801 = vmatprep.subr.mxu0 %v7700
        %7802 = vmatpush1.msra.mxu0 %v7699
        %7803 = vmatprep.subr.mxu0 %v7704
        %7804 = vmatpush1.msra.mxu0 %v7703
        %7805 = vmatprep.subr.mxu0 %v7708
        %7806 = vmatpush1.msra.mxu0 %v7707
        %7807 = vmatprep.subr.mxu0 %v7712
        %7808 = vmatpush1.msra.mxu0 %v7711
        %7809 = vmatprep.subr.mxu0 %v7716
        %7810 = vmatpush1.msra.mxu0 %v7715
        %7811 = vmatprep.subr.mxu0 %v7720
        %7812 = vmatpush1.msra.mxu0 %v7719
        %7813 = vmatprep.subr.mxu0 %v7724
        %7814 = vmatpush1.msra.mxu0 %v7723
        %7815 = vmatprep.subr.mxu0 0.0
        %7816 = vmatpush1.msra.mxu0 0.0
        %7817 = vmatprep.subr.mxu0 0.0
        %7818 = vmatpush1.msra.mxu0 0.0
        %7819 = vmatprep.subr.mxu0 0.0
        %7820 = vmatpush1.msra.mxu0 0.0
        %7821 = vmatprep.subr.mxu0 0.0
        %7822 = vmatpush1.msra.mxu0 0.0
        %7823 = vmatprep.subr.mxu0 0.0
        %7824 = vmatpush1.msra.mxu0 0.0
        %7825 = vmatprep.subr.mxu0 0.0
        %7826 = vmatpush1.msra.mxu0 0.0
        %7827 = vmatprep.subr.mxu0 0.0
        %7828 = vmatpush1.msra.mxu0 0.0
        %7829 = vmatprep.subr.mxu0 0.0
        %7830 = vmatpush1.msra.mxu0 0.0
        %7831 = vmatprep.subr.mxu0 0.0
        %7832 = vmatpush1.msra.mxu0 0.0
        %7833 = vmatprep.subr.mxu0 0.0
        %7834 = vmatpush1.msra.mxu0 0.0
        %7835 = vmatprep.subr.mxu0 0.0
        %7836 = vmatpush1.msra.mxu0 0.0
        %7837 = vmatprep.subr.mxu0 0.0
        %7838 = vmatpush1.msra.mxu0 0.0
        %7839 = vmatprep.subr.mxu0 0.0
        %7840 = vmatpush1.msra.mxu0 0.0
        %7841 = vmatprep.subr.mxu0 0.0
        %7842 = vmatpush1.msra.mxu0 0.0
        %7843 = vmatprep.subr.mxu0 0.0
        %7844 = vmatpush1.msra.mxu0 0.0
        %7845 = vmatprep.subr.mxu0 0.0
        %7846 = vmatpush1.msra.mxu0 0.0
        %7847 = vmatprep.subr.mxu0 0.0
        %7848 = vmatpush1.msra.mxu0 0.0
        %7849 = vmatprep.subr.mxu0 0.0
        %7850 = vmatpush1.msra.mxu0 0.0
        %7851 = vmatprep.subr.mxu0 0.0
        %7852 = vmatpush1.msra.mxu0 0.0
        %7853 = vmatprep.subr.mxu0 0.0
        %7854 = vmatpush1.msra.mxu0 0.0
        %7855 = vmatprep.subr.mxu0 0.0
        %7856 = vmatpush1.msra.mxu0 0.0
        %7857 = vmatprep.subr.mxu0 0.0
        %7858 = vmatpush1.msra.mxu0 0.0
        %7859 = vmatprep.subr.mxu0 0.0
        %7860 = vmatpush1.msra.mxu0 0.0
        %7861 = vmatprep.subr.mxu0 0.0
        %7862 = vmatpush1.msra.mxu0 0.0
        %7863 = vmatprep.mubr.f32.mxu0 0.0
        %7864 = vmatmul.mubr.f32.gmra.mrb[0].mxu0 %v7726
        %v7865 = vpop.f32.mrb[0].mxu0
        %v7866 = vadd.f32 0.0, %v7865
        %v7867 = vpop.f32.mrb[0].mxu0
        %v7868 = vadd.f32 0.0, %v7867
        %7869 = vdwg.mxu0
        %v7874 = vcombine.low %v7795, %v7797
        %v7875 = vcombine.low %v7866, %v7868
        %v7877 = vunpack.c.l.s4 1966171168
        %v7878 = vunpack.c.0.s8 %v7877
        %v7879 = vlaneseq
        %v7880 = vshrl.u32 %v7879, 7
        %v7881 = vsub.s32 %v7878, %v7880
        %v7882 = vrot.slane %v7874, %v7881
        %v7884 = vunpack.c.l.s4 1966171168
        %v7885 = vunpack.c.0.s8 %v7884
        %v7886 = vlaneseq
        %v7887 = vshrl.u32 %v7886, 7
        %v7888 = vsub.s32 %v7885, %v7887
        %v7889 = vrot.slane %v7875, %v7888
        %v7890 = vcombine.low %v7882, %v7889
        %v7892 = vunpack.c.l.s4 1966171168
        %v7893 = vunpack.c.0.s8 %v7892
        %v7894 = vlaneseq
        %v7895 = vshrl.u32 %v7894, 7
        %v7896 = vsub.s32 %v7893, %v7895
        %v7897 = vrot.slane %v7890, %v7896
        %v7899 = vadd.f32 %v7692, %v7897
        %v7900 = vld [vmem:[%s3 + $0xa00] sm:$0xff]
        %v7901 = vld [vmem:[%s3 + $0xa08] sm:$0xff]
        %v7902 = vld [vmem:[%s3 + $0xa10] sm:$0xff]
        %v7903 = vld [vmem:[%s3 + $0xa18] sm:$0xff]
        %v7904 = vld [vmem:[%s3 + $0xa20] sm:$0xff]
        %v7905 = vld [vmem:[%s3 + $0xa28] sm:$0xff]
        %v7906 = vld [vmem:[%s3 + $0xa30] sm:$0xff]
        %v7907 = vld [vmem:[%s3 + $0xa38] sm:$0xff]
        %v7908 = vld [vmem:[%s3 + $0xa40] sm:$0xff]
        %v7909 = vld [vmem:[%s3 + $0xa48] sm:$0xff]
        %v7910 = vld [vmem:[%s3 + $0xa50] sm:$0xff]
        %v7911 = vld [vmem:[%s3 + $0xa58] sm:$0xff]
        %v7912 = vld [vmem:[%s3 + $0xa60] sm:$0xff]
        %v7913 = vld [vmem:[%s3 + $0xa68] sm:$0xff]
        %v7914 = vld [vmem:[%s3 + $0xa70] sm:$0xff]
        %v7915 = vld [vmem:[%s3 + $0xa78] sm:$0xff]
        %v7916 = vld [vmem:[%s3 + $0xa80] sm:$0xff]
        %v7917 = vld [vmem:[%s3 + $0xa88] sm:$0xff]
        %v7918 = vld [vmem:[%s3 + $0xa90] sm:$0xff]
        %v7919 = vld [vmem:[%s3 + $0xa98] sm:$0xff]
        %v7920 = vld [vmem:[%s3 + $0xaa0] sm:$0xff]
        %v7921 = vld [vmem:[%s3 + $0xaa8] sm:$0xff]
        %v7922 = vld [vmem:[%s3 + $0xab0] sm:$0xff]
        %v7923 = vld [vmem:[%s3 + $0xab8] sm:$0xff]
        %v7924 = vld [vmem:[%s3 + $0xac0] sm:$0xff]
        %v7925 = vld [vmem:[%s3 + $0xac8] sm:$0xff]
        %v7926 = vld [vmem:[%s3 + $0xad0] sm:$0xff]
        %v7927 = vld [vmem:[%s3 + $0xad8] sm:$0xff]
        %v7928 = vld [vmem:[%s3 + $0xae0] sm:$0xff]
        %v7929 = vld [vmem:[%s3 + $0xae8] sm:$0xff]
        %v7930 = vld [vmem:[%s3 + $0xaf0] sm:$0xff]
        %v7931 = vld [vmem:[%s3 + $0xaf8] sm:$0xff]
        %v7932 = vrot.slane %v5827, 2
        %v7933 = vsel %vm5861, %v7932, 0
        %7935 = vmatprep.subr.mxu0 %v7901
        %7936 = vmatpush1.msra.mxu0 %v7900
        %7937 = vmatprep.subr.mxu0 %v7905
        %7938 = vmatpush1.msra.mxu0 %v7904
        %7939 = vmatprep.subr.mxu0 %v7909
        %7940 = vmatpush1.msra.mxu0 %v7908
        %7941 = vmatprep.subr.mxu0 %v7913
        %7942 = vmatpush1.msra.mxu0 %v7912
        %7943 = vmatprep.subr.mxu0 %v7917
        %7944 = vmatpush1.msra.mxu0 %v7916
        %7945 = vmatprep.subr.mxu0 %v7921
        %7946 = vmatpush1.msra.mxu0 %v7920
        %7947 = vmatprep.subr.mxu0 %v7925
        %7948 = vmatpush1.msra.mxu0 %v7924
        %7949 = vmatprep.subr.mxu0 %v7929
        %7950 = vmatpush1.msra.mxu0 %v7928
        %7951 = vmatprep.subr.mxu0 0.0
        %7952 = vmatpush1.msra.mxu0 0.0
        %7953 = vmatprep.subr.mxu0 0.0
        %7954 = vmatpush1.msra.mxu0 0.0
        %7955 = vmatprep.subr.mxu0 0.0
        %7956 = vmatpush1.msra.mxu0 0.0
        %7957 = vmatprep.subr.mxu0 0.0
        %7958 = vmatpush1.msra.mxu0 0.0
        %7959 = vmatprep.subr.mxu0 0.0
        %7960 = vmatpush1.msra.mxu0 0.0
        %7961 = vmatprep.subr.mxu0 0.0
        %7962 = vmatpush1.msra.mxu0 0.0
        %7963 = vmatprep.subr.mxu0 0.0
        %7964 = vmatpush1.msra.mxu0 0.0
        %7965 = vmatprep.subr.mxu0 0.0
        %7966 = vmatpush1.msra.mxu0 0.0
        %7967 = vmatprep.subr.mxu0 0.0
        %7968 = vmatpush1.msra.mxu0 0.0
        %7969 = vmatprep.subr.mxu0 0.0
        %7970 = vmatpush1.msra.mxu0 0.0
        %7971 = vmatprep.subr.mxu0 0.0
        %7972 = vmatpush1.msra.mxu0 0.0
        %7973 = vmatprep.subr.mxu0 0.0
        %7974 = vmatpush1.msra.mxu0 0.0
        %7975 = vmatprep.subr.mxu0 0.0
        %7976 = vmatpush1.msra.mxu0 0.0
        %7977 = vmatprep.subr.mxu0 0.0
        %7978 = vmatpush1.msra.mxu0 0.0
        %7979 = vmatprep.subr.mxu0 0.0
        %7980 = vmatpush1.msra.mxu0 0.0
        %7981 = vmatprep.subr.mxu0 0.0
        %7982 = vmatpush1.msra.mxu0 0.0
        %7983 = vmatprep.subr.mxu0 0.0
        %7984 = vmatpush1.msra.mxu0 0.0
        %7985 = vmatprep.subr.mxu0 0.0
        %7986 = vmatpush1.msra.mxu0 0.0
        %7987 = vmatprep.subr.mxu0 0.0
        %7988 = vmatpush1.msra.mxu0 0.0
        %7989 = vmatprep.subr.mxu0 0.0
        %7990 = vmatpush1.msra.mxu0 0.0
        %7991 = vmatprep.subr.mxu0 0.0
        %7992 = vmatpush1.msra.mxu0 0.0
        %7993 = vmatprep.subr.mxu0 0.0
        %7994 = vmatpush1.msra.mxu0 0.0
        %7995 = vmatprep.subr.mxu0 0.0
        %7996 = vmatpush1.msra.mxu0 0.0
        %7997 = vmatprep.subr.mxu0 0.0
        %7998 = vmatpush1.msra.mxu0 0.0
        %7999 = vmatprep.mubr.f32.mxu0 0.0
        %8000 = vmatmul.mubr.f32.gmra.mrb[0].mxu0 %v7933
        %v8001 = vpop.f32.mrb[0].mxu0
        %v8002 = vadd.f32 0.0, %v8001
        %v8003 = vpop.f32.mrb[0].mxu0
        %v8004 = vadd.f32 0.0, %v8003
        %8005 = vdwg.mxu0
        %8006 = vmatprep.subr.mxu0 %v7903
        %8007 = vmatpush1.msra.mxu0 %v7902
        %8008 = vmatprep.subr.mxu0 %v7907
        %8009 = vmatpush1.msra.mxu0 %v7906
        %8010 = vmatprep.subr.mxu0 %v7911
        %8011 = vmatpush1.msra.mxu0 %v7910
        %8012 = vmatprep.subr.mxu0 %v7915
        %8013 = vmatpush1.msra.mxu0 %v7914
        %8014 = vmatprep.subr.mxu0 %v7919
        %8015 = vmatpush1.msra.mxu0 %v7918
        %8016 = vmatprep.subr.mxu0 %v7923
        %8017 = vmatpush1.msra.mxu0 %v7922
        %8018 = vmatprep.subr.mxu0 %v7927
        %8019 = vmatpush1.msra.mxu0 %v7926
        %8020 = vmatprep.subr.mxu0 %v7931
        %8021 = vmatpush1.msra.mxu0 %v7930
        %8022 = vmatprep.subr.mxu0 0.0
        %8023 = vmatpush1.msra.mxu0 0.0
        %8024 = vmatprep.subr.mxu0 0.0
        %8025 = vmatpush1.msra.mxu0 0.0
        %8026 = vmatprep.subr.mxu0 0.0
        %8027 = vmatpush1.msra.mxu0 0.0
        %8028 = vmatprep.subr.mxu0 0.0
        %8029 = vmatpush1.msra.mxu0 0.0
        %8030 = vmatprep.subr.mxu0 0.0
        %8031 = vmatpush1.msra.mxu0 0.0
        %8032 = vmatprep.subr.mxu0 0.0
        %8033 = vmatpush1.msra.mxu0 0.0
        %8034 = vmatprep.subr.mxu0 0.0
        %8035 = vmatpush1.msra.mxu0 0.0
        %8036 = vmatprep.subr.mxu0 0.0
        %8037 = vmatpush1.msra.mxu0 0.0
        %8038 = vmatprep.subr.mxu0 0.0
        %8039 = vmatpush1.msra.mxu0 0.0
        %8040 = vmatprep.subr.mxu0 0.0
        %8041 = vmatpush1.msra.mxu0 0.0
        %8042 = vmatprep.subr.mxu0 0.0
        %8043 = vmatpush1.msra.mxu0 0.0
        %8044 = vmatprep.subr.mxu0 0.0
        %8045 = vmatpush1.msra.mxu0 0.0
        %8046 = vmatprep.subr.mxu0 0.0
        %8047 = vmatpush1.msra.mxu0 0.0
        %8048 = vmatprep.subr.mxu0 0.0
        %8049 = vmatpush1.msra.mxu0 0.0
        %8050 = vmatprep.subr.mxu0 0.0
        %8051 = vmatpush1.msra.mxu0 0.0
        %8052 = vmatprep.subr.mxu0 0.0
        %8053 = vmatpush1.msra.mxu0 0.0
        %8054 = vmatprep.subr.mxu0 0.0
        %8055 = vmatpush1.msra.mxu0 0.0
        %8056 = vmatprep.subr.mxu0 0.0
        %8057 = vmatpush1.msra.mxu0 0.0
        %8058 = vmatprep.subr.mxu0 0.0
        %8059 = vmatpush1.msra.mxu0 0.0
        %8060 = vmatprep.subr.mxu0 0.0
        %8061 = vmatpush1.msra.mxu0 0.0
        %8062 = vmatprep.subr.mxu0 0.0
        %8063 = vmatpush1.msra.mxu0 0.0
        %8064 = vmatprep.subr.mxu0 0.0
        %8065 = vmatpush1.msra.mxu0 0.0
        %8066 = vmatprep.subr.mxu0 0.0
        %8067 = vmatpush1.msra.mxu0 0.0
        %8068 = vmatprep.subr.mxu0 0.0
        %8069 = vmatpush1.msra.mxu0 0.0
        %8070 = vmatprep.mubr.f32.mxu0 0.0
        %8071 = vmatmul.mubr.f32.gmra.mrb[0].mxu0 %v7933
        %v8072 = vpop.f32.mrb[0].mxu0
        %v8073 = vadd.f32 0.0, %v8072
        %v8074 = vpop.f32.mrb[0].mxu0
        %v8075 = vadd.f32 0.0, %v8074
        %8076 = vdwg.mxu0
        %v8081 = vcombine.low %v8002, %v8004
        %v8082 = vcombine.low %v8073, %v8075
        %v8084 = vunpack.c.l.s4 1966171168
        %v8085 = vunpack.c.0.s8 %v8084
        %v8086 = vlaneseq
        %v8087 = vshrl.u32 %v8086, 7
        %v8088 = vsub.s32 %v8085, %v8087
        %v8089 = vrot.slane %v8081, %v8088
        %v8091 = vunpack.c.l.s4 1966171168
        %v8092 = vunpack.c.0.s8 %v8091
        %v8093 = vlaneseq
        %v8094 = vshrl.u32 %v8093, 7
        %v8095 = vsub.s32 %v8092, %v8094
        %v8096 = vrot.slane %v8082, %v8095
        %v8097 = vcombine.low %v8089, %v8096
        %v8099 = vunpack.c.l.s4 1966171168
        %v8100 = vunpack.c.0.s8 %v8099
        %v8101 = vlaneseq
        %v8102 = vshrl.u32 %v8101, 7
        %v8103 = vsub.s32 %v8100, %v8102
        %v8104 = vrot.slane %v8097, %v8103
        %v8106 = vadd.f32 %v7899, %v8104
        %v8107 = vld [vmem:[%s3 + $0xb00] sm:$0xff]
        %v8108 = vld [vmem:[%s3 + $0xb08] sm:$0xff]
        %v8109 = vld [vmem:[%s3 + $0xb10] sm:$0xff]
        %v8110 = vld [vmem:[%s3 + $0xb18] sm:$0xff]
        %v8111 = vld [vmem:[%s3 + $0xb20] sm:$0xff]
        %v8112 = vld [vmem:[%s3 + $0xb28] sm:$0xff]
        %v8113 = vld [vmem:[%s3 + $0xb30] sm:$0xff]
        %v8114 = vld [vmem:[%s3 + $0xb38] sm:$0xff]
        %v8115 = vld [vmem:[%s3 + $0xb40] sm:$0xff]
        %v8116 = vld [vmem:[%s3 + $0xb48] sm:$0xff]
        %v8117 = vld [vmem:[%s3 + $0xb50] sm:$0xff]
        %v8118 = vld [vmem:[%s3 + $0xb58] sm:$0xff]
        %v8119 = vld [vmem:[%s3 + $0xb60] sm:$0xff]
        %v8120 = vld [vmem:[%s3 + $0xb68] sm:$0xff]
        %v8121 = vld [vmem:[%s3 + $0xb70] sm:$0xff]
        %v8122 = vld [vmem:[%s3 + $0xb78] sm:$0xff]
        %v8123 = vld [vmem:[%s3 + $0xb80] sm:$0xff]
        %v8124 = vld [vmem:[%s3 + $0xb88] sm:$0xff]
        %v8125 = vld [vmem:[%s3 + $0xb90] sm:$0xff]
        %v8126 = vld [vmem:[%s3 + $0xb98] sm:$0xff]
        %v8127 = vld [vmem:[%s3 + $0xba0] sm:$0xff]
        %v8128 = vld [vmem:[%s3 + $0xba8] sm:$0xff]
        %v8129 = vld [vmem:[%s3 + $0xbb0] sm:$0xff]
        %v8130 = vld [vmem:[%s3 + $0xbb8] sm:$0xff]
        %v8131 = vld [vmem:[%s3 + $0xbc0] sm:$0xff]
        %v8132 = vld [vmem:[%s3 + $0xbc8] sm:$0xff]
        %v8133 = vld [vmem:[%s3 + $0xbd0] sm:$0xff]
        %v8134 = vld [vmem:[%s3 + $0xbd8] sm:$0xff]
        %v8135 = vld [vmem:[%s3 + $0xbe0] sm:$0xff]
        %v8136 = vld [vmem:[%s3 + $0xbe8] sm:$0xff]
        %v8137 = vld [vmem:[%s3 + $0xbf0] sm:$0xff]
        %v8138 = vld [vmem:[%s3 + $0xbf8] sm:$0xff]
        %v8139 = vrot.slane %v5827, 3
        %v8140 = vsel %vm5861, %v8139, 0
        %8142 = vmatprep.subr.mxu0 %v8108
        %8143 = vmatpush1.msra.mxu0 %v8107
        %8144 = vmatprep.subr.mxu0 %v8112
        %8145 = vmatpush1.msra.mxu0 %v8111
        %8146 = vmatprep.subr.mxu0 %v8116
        %8147 = vmatpush1.msra.mxu0 %v8115
        %8148 = vmatprep.subr.mxu0 %v8120
        %8149 = vmatpush1.msra.mxu0 %v8119
        %8150 = vmatprep.subr.mxu0 %v8124
        %8151 = vmatpush1.msra.mxu0 %v8123
        %8152 = vmatprep.subr.mxu0 %v8128
        %8153 = vmatpush1.msra.mxu0 %v8127
        %8154 = vmatprep.subr.mxu0 %v8132
        %8155 = vmatpush1.msra.mxu0 %v8131
        %8156 = vmatprep.subr.mxu0 %v8136
        %8157 = vmatpush1.msra.mxu0 %v8135
        %8158 = vmatprep.subr.mxu0 0.0
        %8159 = vmatpush1.msra.mxu0 0.0
        %8160 = vmatprep.subr.mxu0 0.0
        %8161 = vmatpush1.msra.mxu0 0.0
        %8162 = vmatprep.subr.mxu0 0.0
        %8163 = vmatpush1.msra.mxu0 0.0
        %8164 = vmatprep.subr.mxu0 0.0
        %8165 = vmatpush1.msra.mxu0 0.0
        %8166 = vmatprep.subr.mxu0 0.0
        %8167 = vmatpush1.msra.mxu0 0.0
        %8168 = vmatprep.subr.mxu0 0.0
        %8169 = vmatpush1.msra.mxu0 0.0
        %8170 = vmatprep.subr.mxu0 0.0
        %8171 = vmatpush1.msra.mxu0 0.0
        %8172 = vmatprep.subr.mxu0 0.0
        %8173 = vmatpush1.msra.mxu0 0.0
        %8174 = vmatprep.subr.mxu0 0.0
        %8175 = vmatpush1.msra.mxu0 0.0
        %8176 = vmatprep.subr.mxu0 0.0
        %8177 = vmatpush1.msra.mxu0 0.0
        %8178 = vmatprep.subr.mxu0 0.0
        %8179 = vmatpush1.msra.mxu0 0.0
        %8180 = vmatprep.subr.mxu0 0.0
        %8181 = vmatpush1.msra.mxu0 0.0
        %8182 = vmatprep.subr.mxu0 0.0
        %8183 = vmatpush1.msra.mxu0 0.0
        %8184 = vmatprep.subr.mxu0 0.0
        %8185 = vmatpush1.msra.mxu0 0.0
        %8186 = vmatprep.subr.mxu0 0.0
        %8187 = vmatpush1.msra.mxu0 0.0
        %8188 = vmatprep.subr.mxu0 0.0
        %8189 = vmatpush1.msra.mxu0 0.0
        %8190 = vmatprep.subr.mxu0 0.0
        %8191 = vmatpush1.msra.mxu0 0.0
        %8192 = vmatprep.subr.mxu0 0.0
        %8193 = vmatpush1.msra.mxu0 0.0
        %8194 = vmatprep.subr.mxu0 0.0
        %8195 = vmatpush1.msra.mxu0 0.0
        %8196 = vmatprep.subr.mxu0 0.0
        %8197 = vmatpush1.msra.mxu0 0.0
        %8198 = vmatprep.subr.mxu0 0.0
        %8199 = vmatpush1.msra.mxu0 0.0
        %8200 = vmatprep.subr.mxu0 0.0
        %8201 = vmatpush1.msra.mxu0 0.0
        %8202 = vmatprep.subr.mxu0 0.0
        %8203 = vmatpush1.msra.mxu0 0.0
        %8204 = vmatprep.subr.mxu0 0.0
        %8205 = vmatpush1.msra.mxu0 0.0
        %8206 = vmatprep.mubr.f32.mxu0 0.0
        %8207 = vmatmul.mubr.f32.gmra.mrb[0].mxu0 %v8140
        %v8208 = vpop.f32.mrb[0].mxu0
        %v8209 = vadd.f32 0.0, %v8208
        %v8210 = vpop.f32.mrb[0].mxu0
        %v8211 = vadd.f32 0.0, %v8210
        %8212 = vdwg.mxu0
        %8213 = vmatprep.subr.mxu0 %v8110
        %8214 = vmatpush1.msra.mxu0 %v8109
        %8215 = vmatprep.subr.mxu0 %v8114
        %8216 = vmatpush1.msra.mxu0 %v8113
        %8217 = vmatprep.subr.mxu0 %v8118
        %8218 = vmatpush1.msra.mxu0 %v8117
        %8219 = vmatprep.subr.mxu0 %v8122
        %8220 = vmatpush1.msra.mxu0 %v8121
        %8221 = vmatprep.subr.mxu0 %v8126
        %8222 = vmatpush1.msra.mxu0 %v8125
        %8223 = vmatprep.subr.mxu0 %v8130
        %8224 = vmatpush1.msra.mxu0 %v8129
        %8225 = vmatprep.subr.mxu0 %v8134
        %8226 = vmatpush1.msra.mxu0 %v8133
        %8227 = vmatprep.subr.mxu0 %v8138
        %8228 = vmatpush1.msra.mxu0 %v8137
        %8229 = vmatprep.subr.mxu0 0.0
        %8230 = vmatpush1.msra.mxu0 0.0
        %8231 = vmatprep.subr.mxu0 0.0
        %8232 = vmatpush1.msra.mxu0 0.0
        %8233 = vmatprep.subr.mxu0 0.0
        %8234 = vmatpush1.msra.mxu0 0.0
        %8235 = vmatprep.subr.mxu0 0.0
        %8236 = vmatpush1.msra.mxu0 0.0
        %8237 = vmatprep.subr.mxu0 0.0
        %8238 = vmatpush1.msra.mxu0 0.0
        %8239 = vmatprep.subr.mxu0 0.0
        %8240 = vmatpush1.msra.mxu0 0.0
        %8241 = vmatprep.subr.mxu0 0.0
        %8242 = vmatpush1.msra.mxu0 0.0
        %8243 = vmatprep.subr.mxu0 0.0
        %8244 = vmatpush1.msra.mxu0 0.0
        %8245 = vmatprep.subr.mxu0 0.0
        %8246 = vmatpush1.msra.mxu0 0.0
        %8247 = vmatprep.subr.mxu0 0.0
        %8248 = vmatpush1.msra.mxu0 0.0
        %8249 = vmatprep.subr.mxu0 0.0
        %8250 = vmatpush1.msra.mxu0 0.0
        %8251 = vmatprep.subr.mxu0 0.0
        %8252 = vmatpush1.msra.mxu0 0.0
        %8253 = vmatprep.subr.mxu0 0.0
        %8254 = vmatpush1.msra.mxu0 0.0
        %8255 = vmatprep.subr.mxu0 0.0
        %8256 = vmatpush1.msra.mxu0 0.0
        %8257 = vmatprep.subr.mxu0 0.0
        %8258 = vmatpush1.msra.mxu0 0.0
        %8259 = vmatprep.subr.mxu0 0.0
        %8260 = vmatpush1.msra.mxu0 0.0
        %8261 = vmatprep.subr.mxu0 0.0
        %8262 = vmatpush1.msra.mxu0 0.0
        %8263 = vmatprep.subr.mxu0 0.0
        %8264 = vmatpush1.msra.mxu0 0.0
        %8265 = vmatprep.subr.mxu0 0.0
        %8266 = vmatpush1.msra.mxu0 0.0
        %8267 = vmatprep.subr.mxu0 0.0
        %8268 = vmatpush1.msra.mxu0 0.0
        %8269 = vmatprep.subr.mxu0 0.0
        %8270 = vmatpush1.msra.mxu0 0.0
        %8271 = vmatprep.subr.mxu0 0.0
        %8272 = vmatpush1.msra.mxu0 0.0
        %8273 = vmatprep.subr.mxu0 0.0
        %8274 = vmatpush1.msra.mxu0 0.0
        %8275 = vmatprep.subr.mxu0 0.0
        %8276 = vmatpush1.msra.mxu0 0.0
        %8277 = vmatprep.mubr.f32.mxu0 0.0
        %8278 = vmatmul.mubr.f32.gmra.mrb[0].mxu0 %v8140
        %v8279 = vpop.f32.mrb[0].mxu0
        %v8280 = vadd.f32 0.0, %v8279
        %v8281 = vpop.f32.mrb[0].mxu0
        %v8282 = vadd.f32 0.0, %v8281
        %8283 = vdwg.mxu0
        %v8288 = vcombine.low %v8209, %v8211
        %v8289 = vcombine.low %v8280, %v8282
        %v8291 = vunpack.c.l.s4 1966171168
        %v8292 = vunpack.c.0.s8 %v8291
        %v8293 = vlaneseq
        %v8294 = vshrl.u32 %v8293, 7
        %v8295 = vsub.s32 %v8292, %v8294
        %v8296 = vrot.slane %v8288, %v8295
        %v8298 = vunpack.c.l.s4 1966171168
        %v8299 = vunpack.c.0.s8 %v8298
        %v8300 = vlaneseq
        %v8301 = vshrl.u32 %v8300, 7
        %v8302 = vsub.s32 %v8299, %v8301
        %v8303 = vrot.slane %v8289, %v8302
        %v8304 = vcombine.low %v8296, %v8303
        %v8306 = vunpack.c.l.s4 1966171168
        %v8307 = vunpack.c.0.s8 %v8306
        %v8308 = vlaneseq
        %v8309 = vshrl.u32 %v8308, 7
        %v8310 = vsub.s32 %v8307, %v8309
        %v8311 = vrot.slane %v8304, %v8310
        %v8313 = vadd.f32 %v8106, %v8311
        %v8314 = vld [vmem:[%s3 + $0xc00] sm:$0xff]
        %v8315 = vld [vmem:[%s3 + $0xc08] sm:$0xff]
        %v8316 = vld [vmem:[%s3 + $0xc10] sm:$0xff]
        %v8317 = vld [vmem:[%s3 + $0xc18] sm:$0xff]
        %v8318 = vld [vmem:[%s3 + $0xc20] sm:$0xff]
        %v8319 = vld [vmem:[%s3 + $0xc28] sm:$0xff]
        %v8320 = vld [vmem:[%s3 + $0xc30] sm:$0xff]
        %v8321 = vld [vmem:[%s3 + $0xc38] sm:$0xff]
        %v8322 = vld [vmem:[%s3 + $0xc40] sm:$0xff]
        %v8323 = vld [vmem:[%s3 + $0xc48] sm:$0xff]
        %v8324 = vld [vmem:[%s3 + $0xc50] sm:$0xff]
        %v8325 = vld [vmem:[%s3 + $0xc58] sm:$0xff]
        %v8326 = vld [vmem:[%s3 + $0xc60] sm:$0xff]
        %v8327 = vld [vmem:[%s3 + $0xc68] sm:$0xff]
        %v8328 = vld [vmem:[%s3 + $0xc70] sm:$0xff]
        %v8329 = vld [vmem:[%s3 + $0xc78] sm:$0xff]
        %v8330 = vld [vmem:[%s3 + $0xc80] sm:$0xff]
        %v8331 = vld [vmem:[%s3 + $0xc88] sm:$0xff]
        %v8332 = vld [vmem:[%s3 + $0xc90] sm:$0xff]
        %v8333 = vld [vmem:[%s3 + $0xc98] sm:$0xff]
        %v8334 = vld [vmem:[%s3 + $0xca0] sm:$0xff]
        %v8335 = vld [vmem:[%s3 + $0xca8] sm:$0xff]
        %v8336 = vld [vmem:[%s3 + $0xcb0] sm:$0xff]
        %v8337 = vld [vmem:[%s3 + $0xcb8] sm:$0xff]
        %v8338 = vld [vmem:[%s3 + $0xcc0] sm:$0xff]
        %v8339 = vld [vmem:[%s3 + $0xcc8] sm:$0xff]
        %v8340 = vld [vmem:[%s3 + $0xcd0] sm:$0xff]
        %v8341 = vld [vmem:[%s3 + $0xcd8] sm:$0xff]
        %v8342 = vld [vmem:[%s3 + $0xce0] sm:$0xff]
        %v8343 = vld [vmem:[%s3 + $0xce8] sm:$0xff]
        %v8344 = vld [vmem:[%s3 + $0xcf0] sm:$0xff]
        %v8345 = vld [vmem:[%s3 + $0xcf8] sm:$0xff]
        %v8346 = vrot.slane %v5827, 4
        %v8347 = vsel %vm5861, %v8346, 0
        %8349 = vmatprep.subr.mxu0 %v8315
        %8350 = vmatpush1.msra.mxu0 %v8314
        %8351 = vmatprep.subr.mxu0 %v8319
        %8352 = vmatpush1.msra.mxu0 %v8318
        %8353 = vmatprep.subr.mxu0 %v8323
        %8354 = vmatpush1.msra.mxu0 %v8322
        %8355 = vmatprep.subr.mxu0 %v8327
        %8356 = vmatpush1.msra.mxu0 %v8326
        %8357 = vmatprep.subr.mxu0 %v8331
        %8358 = vmatpush1.msra.mxu0 %v8330
        %8359 = vmatprep.subr.mxu0 %v8335
        %8360 = vmatpush1.msra.mxu0 %v8334
        %8361 = vmatprep.subr.mxu0 %v8339
        %8362 = vmatpush1.msra.mxu0 %v8338
        %8363 = vmatprep.subr.mxu0 %v8343
        %8364 = vmatpush1.msra.mxu0 %v8342
        %8365 = vmatprep.subr.mxu0 0.0
        %8366 = vmatpush1.msra.mxu0 0.0
        %8367 = vmatprep.subr.mxu0 0.0
        %8368 = vmatpush1.msra.mxu0 0.0
        %8369 = vmatprep.subr.mxu0 0.0
        %8370 = vmatpush1.msra.mxu0 0.0
        %8371 = vmatprep.subr.mxu0 0.0
        %8372 = vmatpush1.msra.mxu0 0.0
        %8373 = vmatprep.subr.mxu0 0.0
        %8374 = vmatpush1.msra.mxu0 0.0
        %8375 = vmatprep.subr.mxu0 0.0
        %8376 = vmatpush1.msra.mxu0 0.0
        %8377 = vmatprep.subr.mxu0 0.0
        %8378 = vmatpush1.msra.mxu0 0.0
        %8379 = vmatprep.subr.mxu0 0.0
        %8380 = vmatpush1.msra.mxu0 0.0
        %8381 = vmatprep.subr.mxu0 0.0
        %8382 = vmatpush1.msra.mxu0 0.0
        %8383 = vmatprep.subr.mxu0 0.0
        %8384 = vmatpush1.msra.mxu0 0.0
        %8385 = vmatprep.subr.mxu0 0.0
        %8386 = vmatpush1.msra.mxu0 0.0
        %8387 = vmatprep.subr.mxu0 0.0
        %8388 = vmatpush1.msra.mxu0 0.0
        %8389 = vmatprep.subr.mxu0 0.0
        %8390 = vmatpush1.msra.mxu0 0.0
        %8391 = vmatprep.subr.mxu0 0.0
        %8392 = vmatpush1.msra.mxu0 0.0
        %8393 = vmatprep.subr.mxu0 0.0
        %8394 = vmatpush1.msra.mxu0 0.0
        %8395 = vmatprep.subr.mxu0 0.0
        %8396 = vmatpush1.msra.mxu0 0.0
        %8397 = vmatprep.subr.mxu0 0.0
        %8398 = vmatpush1.msra.mxu0 0.0
        %8399 = vmatprep.subr.mxu0 0.0
        %8400 = vmatpush1.msra.mxu0 0.0
        %8401 = vmatprep.subr.mxu0 0.0
        %8402 = vmatpush1.msra.mxu0 0.0
        %8403 = vmatprep.subr.mxu0 0.0
        %8404 = vmatpush1.msra.mxu0 0.0
        %8405 = vmatprep.subr.mxu0 0.0
        %8406 = vmatpush1.msra.mxu0 0.0
        %8407 = vmatprep.subr.mxu0 0.0
        %8408 = vmatpush1.msra.mxu0 0.0
        %8409 = vmatprep.subr.mxu0 0.0
        %8410 = vmatpush1.msra.mxu0 0.0
        %8411 = vmatprep.subr.mxu0 0.0
        %8412 = vmatpush1.msra.mxu0 0.0
        %8413 = vmatprep.mubr.f32.mxu0 0.0
        %8414 = vmatmul.mubr.f32.gmra.mrb[0].mxu0 %v8347
        %v8415 = vpop.f32.mrb[0].mxu0
        %v8416 = vadd.f32 0.0, %v8415
        %v8417 = vpop.f32.mrb[0].mxu0
        %v8418 = vadd.f32 0.0, %v8417
        %8419 = vdwg.mxu0
        %8420 = vmatprep.subr.mxu0 %v8317
        %8421 = vmatpush1.msra.mxu0 %v8316
        %8422 = vmatprep.subr.mxu0 %v8321
        %8423 = vmatpush1.msra.mxu0 %v8320
        %8424 = vmatprep.subr.mxu0 %v8325
        %8425 = vmatpush1.msra.mxu0 %v8324
        %8426 = vmatprep.subr.mxu0 %v8329
        %8427 = vmatpush1.msra.mxu0 %v8328
        %8428 = vmatprep.subr.mxu0 %v8333
        %8429 = vmatpush1.msra.mxu0 %v8332
        %8430 = vmatprep.subr.mxu0 %v8337
        %8431 = vmatpush1.msra.mxu0 %v8336
        %8432 = vmatprep.subr.mxu0 %v8341
        %8433 = vmatpush1.msra.mxu0 %v8340
        %8434 = vmatprep.subr.mxu0 %v8345
        %8435 = vmatpush1.msra.mxu0 %v8344
        %8436 = vmatprep.subr.mxu0 0.0
        %8437 = vmatpush1.msra.mxu0 0.0
        %8438 = vmatprep.subr.mxu0 0.0
        %8439 = vmatpush1.msra.mxu0 0.0
        %8440 = vmatprep.subr.mxu0 0.0
        %8441 = vmatpush1.msra.mxu0 0.0
        %8442 = vmatprep.subr.mxu0 0.0
        %8443 = vmatpush1.msra.mxu0 0.0
        %8444 = vmatprep.subr.mxu0 0.0
        %8445 = vmatpush1.msra.mxu0 0.0
        %8446 = vmatprep.subr.mxu0 0.0
        %8447 = vmatpush1.msra.mxu0 0.0
        %8448 = vmatprep.subr.mxu0 0.0
        %8449 = vmatpush1.msra.mxu0 0.0
        %8450 = vmatprep.subr.mxu0 0.0
        %8451 = vmatpush1.msra.mxu0 0.0
        %8452 = vmatprep.subr.mxu0 0.0
        %8453 = vmatpush1.msra.mxu0 0.0
        %8454 = vmatprep.subr.mxu0 0.0
        %8455 = vmatpush1.msra.mxu0 0.0
        %8456 = vmatprep.subr.mxu0 0.0
        %8457 = vmatpush1.msra.mxu0 0.0
        %8458 = vmatprep.subr.mxu0 0.0
        %8459 = vmatpush1.msra.mxu0 0.0
        %8460 = vmatprep.subr.mxu0 0.0
        %8461 = vmatpush1.msra.mxu0 0.0
        %8462 = vmatprep.subr.mxu0 0.0
        %8463 = vmatpush1.msra.mxu0 0.0
        %8464 = vmatprep.subr.mxu0 0.0
        %8465 = vmatpush1.msra.mxu0 0.0
        %8466 = vmatprep.subr.mxu0 0.0
        %8467 = vmatpush1.msra.mxu0 0.0
        %8468 = vmatprep.subr.mxu0 0.0
        %8469 = vmatpush1.msra.mxu0 0.0
        %8470 = vmatprep.subr.mxu0 0.0
        %8471 = vmatpush1.msra.mxu0 0.0
        %8472 = vmatprep.subr.mxu0 0.0
        %8473 = vmatpush1.msra.mxu0 0.0
        %8474 = vmatprep.subr.mxu0 0.0
        %8475 = vmatpush1.msra.mxu0 0.0
        %8476 = vmatprep.subr.mxu0 0.0
        %8477 = vmatpush1.msra.mxu0 0.0
        %8478 = vmatprep.subr.mxu0 0.0
        %8479 = vmatpush1.msra.mxu0 0.0
        %8480 = vmatprep.subr.mxu0 0.0
        %8481 = vmatpush1.msra.mxu0 0.0
        %8482 = vmatprep.subr.mxu0 0.0
        %8483 = vmatpush1.msra.mxu0 0.0
        %8484 = vmatprep.mubr.f32.mxu0 0.0
        %8485 = vmatmul.mubr.f32.gmra.mrb[0].mxu0 %v8347
        %v8486 = vpop.f32.mrb[0].mxu0
        %v8487 = vadd.f32 0.0, %v8486
        %v8488 = vpop.f32.mrb[0].mxu0
        %v8489 = vadd.f32 0.0, %v8488
        %8490 = vdwg.mxu0
        %v8495 = vcombine.low %v8416, %v8418
        %v8496 = vcombine.low %v8487, %v8489
        %v8498 = vunpack.c.l.s4 1966171168
        %v8499 = vunpack.c.0.s8 %v8498
        %v8500 = vlaneseq
        %v8501 = vshrl.u32 %v8500, 7
        %v8502 = vsub.s32 %v8499, %v8501
        %v8503 = vrot.slane %v8495, %v8502
        %v8505 = vunpack.c.l.s4 1966171168
        %v8506 = vunpack.c.0.s8 %v8505
        %v8507 = vlaneseq
        %v8508 = vshrl.u32 %v8507, 7
        %v8509 = vsub.s32 %v8506, %v8508
        %v8510 = vrot.slane %v8496, %v8509
        %v8511 = vcombine.low %v8503, %v8510
        %v8513 = vunpack.c.l.s4 1966171168
        %v8514 = vunpack.c.0.s8 %v8513
        %v8515 = vlaneseq
        %v8516 = vshrl.u32 %v8515, 7
        %v8517 = vsub.s32 %v8514, %v8516
        %v8518 = vrot.slane %v8511, %v8517
        %v8520 = vadd.f32 %v8313, %v8518
        %v8521 = vld [vmem:[%s3 + $0xd00] sm:$0xff]
        %v8522 = vld [vmem:[%s3 + $0xd08] sm:$0xff]
        %v8523 = vld [vmem:[%s3 + $0xd10] sm:$0xff]
        %v8524 = vld [vmem:[%s3 + $0xd18] sm:$0xff]
        %v8525 = vld [vmem:[%s3 + $0xd20] sm:$0xff]
        %v8526 = vld [vmem:[%s3 + $0xd28] sm:$0xff]
        %v8527 = vld [vmem:[%s3 + $0xd30] sm:$0xff]
        %v8528 = vld [vmem:[%s3 + $0xd38] sm:$0xff]
        %v8529 = vld [vmem:[%s3 + $0xd40] sm:$0xff]
        %v8530 = vld [vmem:[%s3 + $0xd48] sm:$0xff]
        %v8531 = vld [vmem:[%s3 + $0xd50] sm:$0xff]
        %v8532 = vld [vmem:[%s3 + $0xd58] sm:$0xff]
        %v8533 = vld [vmem:[%s3 + $0xd60] sm:$0xff]
        %v8534 = vld [vmem:[%s3 + $0xd68] sm:$0xff]
        %v8535 = vld [vmem:[%s3 + $0xd70] sm:$0xff]
        %v8536 = vld [vmem:[%s3 + $0xd78] sm:$0xff]
        %v8537 = vld [vmem:[%s3 + $0xd80] sm:$0xff]
        %v8538 = vld [vmem:[%s3 + $0xd88] sm:$0xff]
        %v8539 = vld [vmem:[%s3 + $0xd90] sm:$0xff]
        %v8540 = vld [vmem:[%s3 + $0xd98] sm:$0xff]
        %v8541 = vld [vmem:[%s3 + $0xda0] sm:$0xff]
        %v8542 = vld [vmem:[%s3 + $0xda8] sm:$0xff]
        %v8543 = vld [vmem:[%s3 + $0xdb0] sm:$0xff]
        %v8544 = vld [vmem:[%s3 + $0xdb8] sm:$0xff]
        %v8545 = vld [vmem:[%s3 + $0xdc0] sm:$0xff]
        %v8546 = vld [vmem:[%s3 + $0xdc8] sm:$0xff]
        %v8547 = vld [vmem:[%s3 + $0xdd0] sm:$0xff]
        %v8548 = vld [vmem:[%s3 + $0xdd8] sm:$0xff]
        %v8549 = vld [vmem:[%s3 + $0xde0] sm:$0xff]
        %v8550 = vld [vmem:[%s3 + $0xde8] sm:$0xff]
        %v8551 = vld [vmem:[%s3 + $0xdf0] sm:$0xff]
        %v8552 = vld [vmem:[%s3 + $0xdf8] sm:$0xff]
        %v8553 = vrot.slane %v5827, 5
        %v8554 = vsel %vm5861, %v8553, 0
        %8556 = vmatprep.subr.mxu0 %v8522
        %8557 = vmatpush1.msra.mxu0 %v8521
        %8558 = vmatprep.subr.mxu0 %v8526
        %8559 = vmatpush1.msra.mxu0 %v8525
        %8560 = vmatprep.subr.mxu0 %v8530
        %8561 = vmatpush1.msra.mxu0 %v8529
        %8562 = vmatprep.subr.mxu0 %v8534
        %8563 = vmatpush1.msra.mxu0 %v8533
        %8564 = vmatprep.subr.mxu0 %v8538
        %8565 = vmatpush1.msra.mxu0 %v8537
        %8566 = vmatprep.subr.mxu0 %v8542
        %8567 = vmatpush1.msra.mxu0 %v8541
        %8568 = vmatprep.subr.mxu0 %v8546
        %8569 = vmatpush1.msra.mxu0 %v8545
        %8570 = vmatprep.subr.mxu0 %v8550
        %8571 = vmatpush1.msra.mxu0 %v8549
        %8572 = vmatprep.subr.mxu0 0.0
        %8573 = vmatpush1.msra.mxu0 0.0
        %8574 = vmatprep.subr.mxu0 0.0
        %8575 = vmatpush1.msra.mxu0 0.0
        %8576 = vmatprep.subr.mxu0 0.0
        %8577 = vmatpush1.msra.mxu0 0.0
        %8578 = vmatprep.subr.mxu0 0.0
        %8579 = vmatpush1.msra.mxu0 0.0
        %8580 = vmatprep.subr.mxu0 0.0
        %8581 = vmatpush1.msra.mxu0 0.0
        %8582 = vmatprep.subr.mxu0 0.0
        %8583 = vmatpush1.msra.mxu0 0.0
        %8584 = vmatprep.subr.mxu0 0.0
        %8585 = vmatpush1.msra.mxu0 0.0
        %8586 = vmatprep.subr.mxu0 0.0
        %8587 = vmatpush1.msra.mxu0 0.0
        %8588 = vmatprep.subr.mxu0 0.0
        %8589 = vmatpush1.msra.mxu0 0.0
        %8590 = vmatprep.subr.mxu0 0.0
        %8591 = vmatpush1.msra.mxu0 0.0
        %8592 = vmatprep.subr.mxu0 0.0
        %8593 = vmatpush1.msra.mxu0 0.0
        %8594 = vmatprep.subr.mxu0 0.0
        %8595 = vmatpush1.msra.mxu0 0.0
        %8596 = vmatprep.subr.mxu0 0.0
        %8597 = vmatpush1.msra.mxu0 0.0
        %8598 = vmatprep.subr.mxu0 0.0
        %8599 = vmatpush1.msra.mxu0 0.0
        %8600 = vmatprep.subr.mxu0 0.0
        %8601 = vmatpush1.msra.mxu0 0.0
        %8602 = vmatprep.subr.mxu0 0.0
        %8603 = vmatpush1.msra.mxu0 0.0
        %8604 = vmatprep.subr.mxu0 0.0
        %8605 = vmatpush1.msra.mxu0 0.0
        %8606 = vmatprep.subr.mxu0 0.0
        %8607 = vmatpush1.msra.mxu0 0.0
        %8608 = vmatprep.subr.mxu0 0.0
        %8609 = vmatpush1.msra.mxu0 0.0
        %8610 = vmatprep.subr.mxu0 0.0
        %8611 = vmatpush1.msra.mxu0 0.0
        %8612 = vmatprep.subr.mxu0 0.0
        %8613 = vmatpush1.msra.mxu0 0.0
        %8614 = vmatprep.subr.mxu0 0.0
        %8615 = vmatpush1.msra.mxu0 0.0
        %8616 = vmatprep.subr.mxu0 0.0
        %8617 = vmatpush1.msra.mxu0 0.0
        %8618 = vmatprep.subr.mxu0 0.0
        %8619 = vmatpush1.msra.mxu0 0.0
        %8620 = vmatprep.mubr.f32.mxu0 0.0
        %8621 = vmatmul.mubr.f32.gmra.mrb[0].mxu0 %v8554
        %v8622 = vpop.f32.mrb[0].mxu0
        %v8623 = vadd.f32 0.0, %v8622
        %v8624 = vpop.f32.mrb[0].mxu0
        %v8625 = vadd.f32 0.0, %v8624
        %8626 = vdwg.mxu0
        %8627 = vmatprep.subr.mxu0 %v8524
        %8628 = vmatpush1.msra.mxu0 %v8523
        %8629 = vmatprep.subr.mxu0 %v8528
        %8630 = vmatpush1.msra.mxu0 %v8527
        %8631 = vmatprep.subr.mxu0 %v8532
        %8632 = vmatpush1.msra.mxu0 %v8531
        %8633 = vmatprep.subr.mxu0 %v8536
        %8634 = vmatpush1.msra.mxu0 %v8535
        %8635 = vmatprep.subr.mxu0 %v8540
        %8636 = vmatpush1.msra.mxu0 %v8539
        %8637 = vmatprep.subr.mxu0 %v8544
        %8638 = vmatpush1.msra.mxu0 %v8543
        %8639 = vmatprep.subr.mxu0 %v8548
        %8640 = vmatpush1.msra.mxu0 %v8547
        %8641 = vmatprep.subr.mxu0 %v8552
        %8642 = vmatpush1.msra.mxu0 %v8551
        %8643 = vmatprep.subr.mxu0 0.0
        %8644 = vmatpush1.msra.mxu0 0.0
        %8645 = vmatprep.subr.mxu0 0.0
        %8646 = vmatpush1.msra.mxu0 0.0
        %8647 = vmatprep.subr.mxu0 0.0
        %8648 = vmatpush1.msra.mxu0 0.0
        %8649 = vmatprep.subr.mxu0 0.0
        %8650 = vmatpush1.msra.mxu0 0.0
        %8651 = vmatprep.subr.mxu0 0.0
        %8652 = vmatpush1.msra.mxu0 0.0
        %8653 = vmatprep.subr.mxu0 0.0
        %8654 = vmatpush1.msra.mxu0 0.0
        %8655 = vmatprep.subr.mxu0 0.0
        %8656 = vmatpush1.msra.mxu0 0.0
        %8657 = vmatprep.subr.mxu0 0.0
        %8658 = vmatpush1.msra.mxu0 0.0
        %8659 = vmatprep.subr.mxu0 0.0
        %8660 = vmatpush1.msra.mxu0 0.0
        %8661 = vmatprep.subr.mxu0 0.0
        %8662 = vmatpush1.msra.mxu0 0.0
        %8663 = vmatprep.subr.mxu0 0.0
        %8664 = vmatpush1.msra.mxu0 0.0
        %8665 = vmatprep.subr.mxu0 0.0
        %8666 = vmatpush1.msra.mxu0 0.0
        %8667 = vmatprep.subr.mxu0 0.0
        %8668 = vmatpush1.msra.mxu0 0.0
        %8669 = vmatprep.subr.mxu0 0.0
        %8670 = vmatpush1.msra.mxu0 0.0
        %8671 = vmatprep.subr.mxu0 0.0
        %8672 = vmatpush1.msra.mxu0 0.0
        %8673 = vmatprep.subr.mxu0 0.0
        %8674 = vmatpush1.msra.mxu0 0.0
        %8675 = vmatprep.subr.mxu0 0.0
        %8676 = vmatpush1.msra.mxu0 0.0
        %8677 = vmatprep.subr.mxu0 0.0
        %8678 = vmatpush1.msra.mxu0 0.0
        %8679 = vmatprep.subr.mxu0 0.0
        %8680 = vmatpush1.msra.mxu0 0.0
        %8681 = vmatprep.subr.mxu0 0.0
        %8682 = vmatpush1.msra.mxu0 0.0
        %8683 = vmatprep.subr.mxu0 0.0
        %8684 = vmatpush1.msra.mxu0 0.0
        %8685 = vmatprep.subr.mxu0 0.0
        %8686 = vmatpush1.msra.mxu0 0.0
        %8687 = vmatprep.subr.mxu0 0.0
        %8688 = vmatpush1.msra.mxu0 0.0
        %8689 = vmatprep.subr.mxu0 0.0
        %8690 = vmatpush1.msra.mxu0 0.0
        %8691 = vmatprep.mubr.f32.mxu0 0.0
        %8692 = vmatmul.mubr.f32.gmra.mrb[0].mxu0 %v8554
        %v8693 = vpop.f32.mrb[0].mxu0
        %v8694 = vadd.f32 0.0, %v8693
        %v8695 = vpop.f32.mrb[0].mxu0
        %v8696 = vadd.f32 0.0, %v8695
        %8697 = vdwg.mxu0
        %v8702 = vcombine.low %v8623, %v8625
        %v8703 = vcombine.low %v8694, %v8696
        %v8705 = vunpack.c.l.s4 1966171168
        %v8706 = vunpack.c.0.s8 %v8705
        %v8707 = vlaneseq
        %v8708 = vshrl.u32 %v8707, 7
        %v8709 = vsub.s32 %v8706, %v8708
        %v8710 = vrot.slane %v8702, %v8709
        %v8712 = vunpack.c.l.s4 1966171168
        %v8713 = vunpack.c.0.s8 %v8712
        %v8714 = vlaneseq
        %v8715 = vshrl.u32 %v8714, 7
        %v8716 = vsub.s32 %v8713, %v8715
        %v8717 = vrot.slane %v8703, %v8716
        %v8718 = vcombine.low %v8710, %v8717
        %v8720 = vunpack.c.l.s4 1966171168
        %v8721 = vunpack.c.0.s8 %v8720
        %v8722 = vlaneseq
        %v8723 = vshrl.u32 %v8722, 7
        %v8724 = vsub.s32 %v8721, %v8723
        %v8725 = vrot.slane %v8718, %v8724
        %v8727 = vadd.f32 %v8520, %v8725
        %v8728 = vld [vmem:[%s3 + $0xe00] sm:$0xff]
        %v8729 = vld [vmem:[%s3 + $0xe08] sm:$0xff]
        %v8730 = vld [vmem:[%s3 + $0xe10] sm:$0xff]
        %v8731 = vld [vmem:[%s3 + $0xe18] sm:$0xff]
        %v8732 = vld [vmem:[%s3 + $0xe20] sm:$0xff]
        %v8733 = vld [vmem:[%s3 + $0xe28] sm:$0xff]
        %v8734 = vld [vmem:[%s3 + $0xe30] sm:$0xff]
        %v8735 = vld [vmem:[%s3 + $0xe38] sm:$0xff]
        %v8736 = vld [vmem:[%s3 + $0xe40] sm:$0xff]
        %v8737 = vld [vmem:[%s3 + $0xe48] sm:$0xff]
        %v8738 = vld [vmem:[%s3 + $0xe50] sm:$0xff]
        %v8739 = vld [vmem:[%s3 + $0xe58] sm:$0xff]
        %v8740 = vld [vmem:[%s3 + $0xe60] sm:$0xff]
        %v8741 = vld [vmem:[%s3 + $0xe68] sm:$0xff]
        %v8742 = vld [vmem:[%s3 + $0xe70] sm:$0xff]
        %v8743 = vld [vmem:[%s3 + $0xe78] sm:$0xff]
        %v8744 = vld [vmem:[%s3 + $0xe80] sm:$0xff]
        %v8745 = vld [vmem:[%s3 + $0xe88] sm:$0xff]
        %v8746 = vld [vmem:[%s3 + $0xe90] sm:$0xff]
        %v8747 = vld [vmem:[%s3 + $0xe98] sm:$0xff]
        %v8748 = vld [vmem:[%s3 + $0xea0] sm:$0xff]
        %v8749 = vld [vmem:[%s3 + $0xea8] sm:$0xff]
        %v8750 = vld [vmem:[%s3 + $0xeb0] sm:$0xff]
        %v8751 = vld [vmem:[%s3 + $0xeb8] sm:$0xff]
        %v8752 = vld [vmem:[%s3 + $0xec0] sm:$0xff]
        %v8753 = vld [vmem:[%s3 + $0xec8] sm:$0xff]
        %v8754 = vld [vmem:[%s3 + $0xed0] sm:$0xff]
        %v8755 = vld [vmem:[%s3 + $0xed8] sm:$0xff]
        %v8756 = vld [vmem:[%s3 + $0xee0] sm:$0xff]
        %v8757 = vld [vmem:[%s3 + $0xee8] sm:$0xff]
        %v8758 = vld [vmem:[%s3 + $0xef0] sm:$0xff]
        %v8759 = vld [vmem:[%s3 + $0xef8] sm:$0xff]
        %v8760 = vrot.slane %v5827, 6
        %v8761 = vsel %vm5861, %v8760, 0
        %8763 = vmatprep.subr.mxu0 %v8729
        %8764 = vmatpush1.msra.mxu0 %v8728
        %8765 = vmatprep.subr.mxu0 %v8733
        %8766 = vmatpush1.msra.mxu0 %v8732
        %8767 = vmatprep.subr.mxu0 %v8737
        %8768 = vmatpush1.msra.mxu0 %v8736
        %8769 = vmatprep.subr.mxu0 %v8741
        %8770 = vmatpush1.msra.mxu0 %v8740
        %8771 = vmatprep.subr.mxu0 %v8745
        %8772 = vmatpush1.msra.mxu0 %v8744
        %8773 = vmatprep.subr.mxu0 %v8749
        %8774 = vmatpush1.msra.mxu0 %v8748
        %8775 = vmatprep.subr.mxu0 %v8753
        %8776 = vmatpush1.msra.mxu0 %v8752
        %8777 = vmatprep.subr.mxu0 %v8757
        %8778 = vmatpush1.msra.mxu0 %v8756
        %8779 = vmatprep.subr.mxu0 0.0
        %8780 = vmatpush1.msra.mxu0 0.0
        %8781 = vmatprep.subr.mxu0 0.0
        %8782 = vmatpush1.msra.mxu0 0.0
        %8783 = vmatprep.subr.mxu0 0.0
        %8784 = vmatpush1.msra.mxu0 0.0
        %8785 = vmatprep.subr.mxu0 0.0
        %8786 = vmatpush1.msra.mxu0 0.0
        %8787 = vmatprep.subr.mxu0 0.0
        %8788 = vmatpush1.msra.mxu0 0.0
        %8789 = vmatprep.subr.mxu0 0.0
        %8790 = vmatpush1.msra.mxu0 0.0
        %8791 = vmatprep.subr.mxu0 0.0
        %8792 = vmatpush1.msra.mxu0 0.0
        %8793 = vmatprep.subr.mxu0 0.0
        %8794 = vmatpush1.msra.mxu0 0.0
        %8795 = vmatprep.subr.mxu0 0.0
        %8796 = vmatpush1.msra.mxu0 0.0
        %8797 = vmatprep.subr.mxu0 0.0
        %8798 = vmatpush1.msra.mxu0 0.0
        %8799 = vmatprep.subr.mxu0 0.0
        %8800 = vmatpush1.msra.mxu0 0.0
        %8801 = vmatprep.subr.mxu0 0.0
        %8802 = vmatpush1.msra.mxu0 0.0
        %8803 = vmatprep.subr.mxu0 0.0
        %8804 = vmatpush1.msra.mxu0 0.0
        %8805 = vmatprep.subr.mxu0 0.0
        %8806 = vmatpush1.msra.mxu0 0.0
        %8807 = vmatprep.subr.mxu0 0.0
        %8808 = vmatpush1.msra.mxu0 0.0
        %8809 = vmatprep.subr.mxu0 0.0
        %8810 = vmatpush1.msra.mxu0 0.0
        %8811 = vmatprep.subr.mxu0 0.0
        %8812 = vmatpush1.msra.mxu0 0.0
        %8813 = vmatprep.subr.mxu0 0.0
        %8814 = vmatpush1.msra.mxu0 0.0
        %8815 = vmatprep.subr.mxu0 0.0
        %8816 = vmatpush1.msra.mxu0 0.0
        %8817 = vmatprep.subr.mxu0 0.0
        %8818 = vmatpush1.msra.mxu0 0.0
        %8819 = vmatprep.subr.mxu0 0.0
        %8820 = vmatpush1.msra.mxu0 0.0
        %8821 = vmatprep.subr.mxu0 0.0
        %8822 = vmatpush1.msra.mxu0 0.0
        %8823 = vmatprep.subr.mxu0 0.0
        %8824 = vmatpush1.msra.mxu0 0.0
        %8825 = vmatprep.subr.mxu0 0.0
        %8826 = vmatpush1.msra.mxu0 0.0
        %8827 = vmatprep.mubr.f32.mxu0 0.0
        %8828 = vmatmul.mubr.f32.gmra.mrb[0].mxu0 %v8761
        %v8829 = vpop.f32.mrb[0].mxu0
        %v8830 = vadd.f32 0.0, %v8829
        %v8831 = vpop.f32.mrb[0].mxu0
        %v8832 = vadd.f32 0.0, %v8831
        %8833 = vdwg.mxu0
        %8834 = vmatprep.subr.mxu0 %v8731
        %8835 = vmatpush1.msra.mxu0 %v8730
        %8836 = vmatprep.subr.mxu0 %v8735
        %8837 = vmatpush1.msra.mxu0 %v8734
        %8838 = vmatprep.subr.mxu0 %v8739
        %8839 = vmatpush1.msra.mxu0 %v8738
        %8840 = vmatprep.subr.mxu0 %v8743
        %8841 = vmatpush1.msra.mxu0 %v8742
        %8842 = vmatprep.subr.mxu0 %v8747
        %8843 = vmatpush1.msra.mxu0 %v8746
        %8844 = vmatprep.subr.mxu0 %v8751
        %8845 = vmatpush1.msra.mxu0 %v8750
        %8846 = vmatprep.subr.mxu0 %v8755
        %8847 = vmatpush1.msra.mxu0 %v8754
        %8848 = vmatprep.subr.mxu0 %v8759
        %8849 = vmatpush1.msra.mxu0 %v8758
        %8850 = vmatprep.subr.mxu0 0.0
        %8851 = vmatpush1.msra.mxu0 0.0
        %8852 = vmatprep.subr.mxu0 0.0
        %8853 = vmatpush1.msra.mxu0 0.0
        %8854 = vmatprep.subr.mxu0 0.0
        %8855 = vmatpush1.msra.mxu0 0.0
        %8856 = vmatprep.subr.mxu0 0.0
        %8857 = vmatpush1.msra.mxu0 0.0
        %8858 = vmatprep.subr.mxu0 0.0
        %8859 = vmatpush1.msra.mxu0 0.0
        %8860 = vmatprep.subr.mxu0 0.0
        %8861 = vmatpush1.msra.mxu0 0.0
        %8862 = vmatprep.subr.mxu0 0.0
        %8863 = vmatpush1.msra.mxu0 0.0
        %8864 = vmatprep.subr.mxu0 0.0
        %8865 = vmatpush1.msra.mxu0 0.0
        %8866 = vmatprep.subr.mxu0 0.0
        %8867 = vmatpush1.msra.mxu0 0.0
        %8868 = vmatprep.subr.mxu0 0.0
        %8869 = vmatpush1.msra.mxu0 0.0
        %8870 = vmatprep.subr.mxu0 0.0
        %8871 = vmatpush1.msra.mxu0 0.0
        %8872 = vmatprep.subr.mxu0 0.0
        %8873 = vmatpush1.msra.mxu0 0.0
        %8874 = vmatprep.subr.mxu0 0.0
        %8875 = vmatpush1.msra.mxu0 0.0
        %8876 = vmatprep.subr.mxu0 0.0
        %8877 = vmatpush1.msra.mxu0 0.0
        %8878 = vmatprep.subr.mxu0 0.0
        %8879 = vmatpush1.msra.mxu0 0.0
        %8880 = vmatprep.subr.mxu0 0.0
        %8881 = vmatpush1.msra.mxu0 0.0
        %8882 = vmatprep.subr.mxu0 0.0
        %8883 = vmatpush1.msra.mxu0 0.0
        %8884 = vmatprep.subr.mxu0 0.0
        %8885 = vmatpush1.msra.mxu0 0.0
        %8886 = vmatprep.subr.mxu0 0.0
        %8887 = vmatpush1.msra.mxu0 0.0
        %8888 = vmatprep.subr.mxu0 0.0
        %8889 = vmatpush1.msra.mxu0 0.0
        %8890 = vmatprep.subr.mxu0 0.0
        %8891 = vmatpush1.msra.mxu0 0.0
        %8892 = vmatprep.subr.mxu0 0.0
        %8893 = vmatpush1.msra.mxu0 0.0
        %8894 = vmatprep.subr.mxu0 0.0
        %8895 = vmatpush1.msra.mxu0 0.0
        %8896 = vmatprep.subr.mxu0 0.0
        %8897 = vmatpush1.msra.mxu0 0.0
        %8898 = vmatprep.mubr.f32.mxu0 0.0
        %8899 = vmatmul.mubr.f32.gmra.mrb[0].mxu0 %v8761
        %v8900 = vpop.f32.mrb[0].mxu0
        %v8901 = vadd.f32 0.0, %v8900
        %v8902 = vpop.f32.mrb[0].mxu0
        %v8903 = vadd.f32 0.0, %v8902
        %8904 = vdwg.mxu0
        %v8909 = vcombine.low %v8830, %v8832
        %v8910 = vcombine.low %v8901, %v8903
        %v8912 = vunpack.c.l.s4 1966171168
        %v8913 = vunpack.c.0.s8 %v8912
        %v8914 = vlaneseq
        %v8915 = vshrl.u32 %v8914, 7
        %v8916 = vsub.s32 %v8913, %v8915
        %v8917 = vrot.slane %v8909, %v8916
        %v8919 = vunpack.c.l.s4 1966171168
        %v8920 = vunpack.c.0.s8 %v8919
        %v8921 = vlaneseq
        %v8922 = vshrl.u32 %v8921, 7
        %v8923 = vsub.s32 %v8920, %v8922
        %v8924 = vrot.slane %v8910, %v8923
        %v8925 = vcombine.low %v8917, %v8924
        %v8927 = vunpack.c.l.s4 1966171168
        %v8928 = vunpack.c.0.s8 %v8927
        %v8929 = vlaneseq
        %v8930 = vshrl.u32 %v8929, 7
        %v8931 = vsub.s32 %v8928, %v8930
        %v8932 = vrot.slane %v8925, %v8931
        %v8934 = vadd.f32 %v8727, %v8932
        %v8935 = vld [vmem:[%s3 + $0xf00] sm:$0xff]
        %v8936 = vld [vmem:[%s3 + $0xf08] sm:$0xff]
        %v8937 = vld [vmem:[%s3 + $0xf10] sm:$0xff]
        %v8938 = vld [vmem:[%s3 + $0xf18] sm:$0xff]
        %v8939 = vld [vmem:[%s3 + $0xf20] sm:$0xff]
        %v8940 = vld [vmem:[%s3 + $0xf28] sm:$0xff]
        %v8941 = vld [vmem:[%s3 + $0xf30] sm:$0xff]
        %v8942 = vld [vmem:[%s3 + $0xf38] sm:$0xff]
        %v8943 = vld [vmem:[%s3 + $0xf40] sm:$0xff]
        %v8944 = vld [vmem:[%s3 + $0xf48] sm:$0xff]
        %v8945 = vld [vmem:[%s3 + $0xf50] sm:$0xff]
        %v8946 = vld [vmem:[%s3 + $0xf58] sm:$0xff]
        %v8947 = vld [vmem:[%s3 + $0xf60] sm:$0xff]
        %v8948 = vld [vmem:[%s3 + $0xf68] sm:$0xff]
        %v8949 = vld [vmem:[%s3 + $0xf70] sm:$0xff]
        %v8950 = vld [vmem:[%s3 + $0xf78] sm:$0xff]
        %v8951 = vld [vmem:[%s3 + $0xf80] sm:$0xff]
        %v8952 = vld [vmem:[%s3 + $0xf88] sm:$0xff]
        %v8953 = vld [vmem:[%s3 + $0xf90] sm:$0xff]
        %v8954 = vld [vmem:[%s3 + $0xf98] sm:$0xff]
        %v8955 = vld [vmem:[%s3 + $0xfa0] sm:$0xff]
        %v8956 = vld [vmem:[%s3 + $0xfa8] sm:$0xff]
        %v8957 = vld [vmem:[%s3 + $0xfb0] sm:$0xff]
        %v8958 = vld [vmem:[%s3 + $0xfb8] sm:$0xff]
        %v8959 = vld [vmem:[%s3 + $0xfc0] sm:$0xff]
        %v8960 = vld [vmem:[%s3 + $0xfc8] sm:$0xff]
        %v8961 = vld [vmem:[%s3 + $0xfd0] sm:$0xff]
        %v8962 = vld [vmem:[%s3 + $0xfd8] sm:$0xff]
        %v8963 = vld [vmem:[%s3 + $0xfe0] sm:$0xff]
        %v8964 = vld [vmem:[%s3 + $0xfe8] sm:$0xff]
        %v8965 = vld [vmem:[%s3 + $0xff0] sm:$0xff]
        %v8966 = vld [vmem:[%s3 + $0xff8] sm:$0xff]
        %v8967 = vrot.slane %v5827, 7
        %v8968 = vsel %vm5861, %v8967, 0
        %8970 = vmatprep.subr.mxu0 %v8936
        %8971 = vmatpush1.msra.mxu0 %v8935
        %8972 = vmatprep.subr.mxu0 %v8940
        %8973 = vmatpush1.msra.mxu0 %v8939
        %8974 = vmatprep.subr.mxu0 %v8944
        %8975 = vmatpush1.msra.mxu0 %v8943
        %8976 = vmatprep.subr.mxu0 %v8948
        %8977 = vmatpush1.msra.mxu0 %v8947
        %8978 = vmatprep.subr.mxu0 %v8952
        %8979 = vmatpush1.msra.mxu0 %v8951
        %8980 = vmatprep.subr.mxu0 %v8956
        %8981 = vmatpush1.msra.mxu0 %v8955
        %8982 = vmatprep.subr.mxu0 %v8960
        %8983 = vmatpush1.msra.mxu0 %v8959
        %8984 = vmatprep.subr.mxu0 %v8964
        %8985 = vmatpush1.msra.mxu0 %v8963
        %8986 = vmatprep.subr.mxu0 0.0
        %8987 = vmatpush1.msra.mxu0 0.0
        %8988 = vmatprep.subr.mxu0 0.0
        %8989 = vmatpush1.msra.mxu0 0.0
        %8990 = vmatprep.subr.mxu0 0.0
        %8991 = vmatpush1.msra.mxu0 0.0
        %8992 = vmatprep.subr.mxu0 0.0
        %8993 = vmatpush1.msra.mxu0 0.0
        %8994 = vmatprep.subr.mxu0 0.0
        %8995 = vmatpush1.msra.mxu0 0.0
        %8996 = vmatprep.subr.mxu0 0.0
        %8997 = vmatpush1.msra.mxu0 0.0
        %8998 = vmatprep.subr.mxu0 0.0
        %8999 = vmatpush1.msra.mxu0 0.0
        %9000 = vmatprep.subr.mxu0 0.0
        %9001 = vmatpush1.msra.mxu0 0.0
        %9002 = vmatprep.subr.mxu0 0.0
        %9003 = vmatpush1.msra.mxu0 0.0
        %9004 = vmatprep.subr.mxu0 0.0
        %9005 = vmatpush1.msra.mxu0 0.0
        %9006 = vmatprep.subr.mxu0 0.0
        %9007 = vmatpush1.msra.mxu0 0.0
        %9008 = vmatprep.subr.mxu0 0.0
        %9009 = vmatpush1.msra.mxu0 0.0
        %9010 = vmatprep.subr.mxu0 0.0
        %9011 = vmatpush1.msra.mxu0 0.0
        %9012 = vmatprep.subr.mxu0 0.0
        %9013 = vmatpush1.msra.mxu0 0.0
        %9014 = vmatprep.subr.mxu0 0.0
        %9015 = vmatpush1.msra.mxu0 0.0
        %9016 = vmatprep.subr.mxu0 0.0
        %9017 = vmatpush1.msra.mxu0 0.0
        %9018 = vmatprep.subr.mxu0 0.0
        %9019 = vmatpush1.msra.mxu0 0.0
        %9020 = vmatprep.subr.mxu0 0.0
        %9021 = vmatpush1.msra.mxu0 0.0
        %9022 = vmatprep.subr.mxu0 0.0
        %9023 = vmatpush1.msra.mxu0 0.0
        %9024 = vmatprep.subr.mxu0 0.0
        %9025 = vmatpush1.msra.mxu0 0.0
        %9026 = vmatprep.subr.mxu0 0.0
        %9027 = vmatpush1.msra.mxu0 0.0
        %9028 = vmatprep.subr.mxu0 0.0
        %9029 = vmatpush1.msra.mxu0 0.0
        %9030 = vmatprep.subr.mxu0 0.0
        %9031 = vmatpush1.msra.mxu0 0.0
        %9032 = vmatprep.subr.mxu0 0.0
        %9033 = vmatpush1.msra.mxu0 0.0
        %9034 = vmatprep.mubr.f32.mxu0 0.0
        %9035 = vmatmul.mubr.f32.gmra.mrb[0].mxu0 %v8968
        %v9036 = vpop.f32.mrb[0].mxu0
        %v9037 = vadd.f32 0.0, %v9036
        %v9038 = vpop.f32.mrb[0].mxu0
        %v9039 = vadd.f32 0.0, %v9038
        %9040 = vdwg.mxu0
        %9041 = vmatprep.subr.mxu0 %v8938
        %9042 = vmatpush1.msra.mxu0 %v8937
        %9043 = vmatprep.subr.mxu0 %v8942
        %9044 = vmatpush1.msra.mxu0 %v8941
        %9045 = vmatprep.subr.mxu0 %v8946
        %9046 = vmatpush1.msra.mxu0 %v8945
        %9047 = vmatprep.subr.mxu0 %v8950
        %9048 = vmatpush1.msra.mxu0 %v8949
        %9049 = vmatprep.subr.mxu0 %v8954
        %9050 = vmatpush1.msra.mxu0 %v8953
        %9051 = vmatprep.subr.mxu0 %v8958
        %9052 = vmatpush1.msra.mxu0 %v8957
        %9053 = vmatprep.subr.mxu0 %v8962
        %9054 = vmatpush1.msra.mxu0 %v8961
        %9055 = vmatprep.subr.mxu0 %v8966
        %9056 = vmatpush1.msra.mxu0 %v8965
        %9057 = vmatprep.subr.mxu0 0.0
        %9058 = vmatpush1.msra.mxu0 0.0
        %9059 = vmatprep.subr.mxu0 0.0
        %9060 = vmatpush1.msra.mxu0 0.0
        %9061 = vmatprep.subr.mxu0 0.0
        %9062 = vmatpush1.msra.mxu0 0.0
        %9063 = vmatprep.subr.mxu0 0.0
        %9064 = vmatpush1.msra.mxu0 0.0
        %9065 = vmatprep.subr.mxu0 0.0
        %9066 = vmatpush1.msra.mxu0 0.0
        %9067 = vmatprep.subr.mxu0 0.0
        %9068 = vmatpush1.msra.mxu0 0.0
        %9069 = vmatprep.subr.mxu0 0.0
        %9070 = vmatpush1.msra.mxu0 0.0
        %9071 = vmatprep.subr.mxu0 0.0
        %9072 = vmatpush1.msra.mxu0 0.0
        %9073 = vmatprep.subr.mxu0 0.0
        %9074 = vmatpush1.msra.mxu0 0.0
        %9075 = vmatprep.subr.mxu0 0.0
        %9076 = vmatpush1.msra.mxu0 0.0
        %9077 = vmatprep.subr.mxu0 0.0
        %9078 = vmatpush1.msra.mxu0 0.0
        %9079 = vmatprep.subr.mxu0 0.0
        %9080 = vmatpush1.msra.mxu0 0.0
        %9081 = vmatprep.subr.mxu0 0.0
        %9082 = vmatpush1.msra.mxu0 0.0
        %9083 = vmatprep.subr.mxu0 0.0
        %9084 = vmatpush1.msra.mxu0 0.0
        %9085 = vmatprep.subr.mxu0 0.0
        %9086 = vmatpush1.msra.mxu0 0.0
        %9087 = vmatprep.subr.mxu0 0.0
        %9088 = vmatpush1.msra.mxu0 0.0
        %9089 = vmatprep.subr.mxu0 0.0
        %9090 = vmatpush1.msra.mxu0 0.0
        %9091 = vmatprep.subr.mxu0 0.0
        %9092 = vmatpush1.msra.mxu0 0.0
        %9093 = vmatprep.subr.mxu0 0.0
        %9094 = vmatpush1.msra.mxu0 0.0
        %9095 = vmatprep.subr.mxu0 0.0
        %9096 = vmatpush1.msra.mxu0 0.0
        %9097 = vmatprep.subr.mxu0 0.0
        %9098 = vmatpush1.msra.mxu0 0.0
        %9099 = vmatprep.subr.mxu0 0.0
        %9100 = vmatpush1.msra.mxu0 0.0
        %9101 = vmatprep.subr.mxu0 0.0
        %9102 = vmatpush1.msra.mxu0 0.0
        %9103 = vmatprep.subr.mxu0 0.0
        %9104 = vmatpush1.msra.mxu0 0.0
        %9105 = vmatprep.mubr.f32.mxu0 0.0
        %9106 = vmatmul.mubr.f32.gmra.mrb[0].mxu0 %v8968
        %v9107 = vpop.f32.mrb[0].mxu0
        %v9108 = vadd.f32 0.0, %v9107
        %v9109 = vpop.f32.mrb[0].mxu0
        %v9110 = vadd.f32 0.0, %v9109
        %9111 = vdwg.mxu0
        %v9116 = vcombine.low %v9037, %v9039
        %v9117 = vcombine.low %v9108, %v9110
        %v9119 = vunpack.c.l.s4 1966171168
        %v9120 = vunpack.c.0.s8 %v9119
        %v9121 = vlaneseq
        %v9122 = vshrl.u32 %v9121, 7
        %v9123 = vsub.s32 %v9120, %v9122
        %v9124 = vrot.slane %v9116, %v9123
        %v9126 = vunpack.c.l.s4 1966171168
        %v9127 = vunpack.c.0.s8 %v9126
        %v9128 = vlaneseq
        %v9129 = vshrl.u32 %v9128, 7
        %v9130 = vsub.s32 %v9127, %v9129
        %v9131 = vrot.slane %v9117, %v9130
        %v9132 = vcombine.low %v9124, %v9131
        %v9134 = vunpack.c.l.s4 1966171168
        %v9135 = vunpack.c.0.s8 %v9134
        %v9136 = vlaneseq
        %v9137 = vshrl.u32 %v9136, 7
        %v9138 = vsub.s32 %v9135, %v9137
        %v9139 = vrot.slane %v9132, %v9138
        %v9141 = vadd.f32 %v8934, %v9139
        %v9142 = vmax.f32 %v9141, 0.0
        %v9143 = vld [vmem:[%s5] sm:$0xff]
        %v9144 = vld [vmem:[%s5 + $0x8] sm:$0xff]
        %v9145 = vld [vmem:[%s5 + $0x10] sm:$0xff]
        %v9146 = vld [vmem:[%s5 + $0x18] sm:$0xff]
        %v9147 = vld [vmem:[%s5 + $0x20] sm:$0xff]
        %v9148 = vld [vmem:[%s5 + $0x28] sm:$0xff]
        %v9149 = vld [vmem:[%s5 + $0x30] sm:$0xff]
        %v9150 = vld [vmem:[%s5 + $0x38] sm:$0xff]
        %v9151 = vld [vmem:[%s5 + $0x40] sm:$0xff]
        %v9152 = vld [vmem:[%s5 + $0x48] sm:$0xff]
        %v9153 = vld [vmem:[%s5 + $0x50] sm:$0xff]
        %v9154 = vld [vmem:[%s5 + $0x58] sm:$0xff]
        %v9155 = vld [vmem:[%s5 + $0x60] sm:$0xff]
        %v9156 = vld [vmem:[%s5 + $0x68] sm:$0xff]
        %v9157 = vld [vmem:[%s5 + $0x70] sm:$0xff]
        %v9158 = vld [vmem:[%s5 + $0x78] sm:$0xff]
        %v9159 = vld [vmem:[%s5 + $0x80] sm:$0xff]
        %v9160 = vld [vmem:[%s5 + $0x88] sm:$0xff]
        %v9161 = vld [vmem:[%s5 + $0x90] sm:$0xff]
        %v9162 = vld [vmem:[%s5 + $0x98] sm:$0xff]
        %v9163 = vld [vmem:[%s5 + $0xa0] sm:$0xff]
        %v9164 = vld [vmem:[%s5 + $0xa8] sm:$0xff]
        %v9165 = vld [vmem:[%s5 + $0xb0] sm:$0xff]
        %v9166 = vld [vmem:[%s5 + $0xb8] sm:$0xff]
        %v9167 = vld [vmem:[%s5 + $0xc0] sm:$0xff]
        %v9168 = vld [vmem:[%s5 + $0xc8] sm:$0xff]
        %v9169 = vld [vmem:[%s5 + $0xd0] sm:$0xff]
        %v9170 = vld [vmem:[%s5 + $0xd8] sm:$0xff]
        %v9171 = vld [vmem:[%s5 + $0xe0] sm:$0xff]
        %v9172 = vld [vmem:[%s5 + $0xe8] sm:$0xff]
        %v9173 = vld [vmem:[%s5 + $0xf0] sm:$0xff]
        %v9174 = vld [vmem:[%s5 + $0xf8] sm:$0xff]
        %v9175 = vld [vmem:[%s5 + $0x100] sm:$0xff]
        %v9176 = vld [vmem:[%s5 + $0x108] sm:$0xff]
        %v9177 = vld [vmem:[%s5 + $0x110] sm:$0xff]
        %v9178 = vld [vmem:[%s5 + $0x118] sm:$0xff]
        %v9179 = vld [vmem:[%s5 + $0x120] sm:$0xff]
        %v9180 = vld [vmem:[%s5 + $0x128] sm:$0xff]
        %v9181 = vld [vmem:[%s5 + $0x130] sm:$0xff]
        %v9182 = vld [vmem:[%s5 + $0x138] sm:$0xff]
        %v9183 = vld [vmem:[%s5 + $0x140] sm:$0xff]
        %v9184 = vld [vmem:[%s5 + $0x148] sm:$0xff]
        %v9185 = vld [vmem:[%s5 + $0x150] sm:$0xff]
        %v9186 = vld [vmem:[%s5 + $0x158] sm:$0xff]
        %v9187 = vld [vmem:[%s5 + $0x160] sm:$0xff]
        %v9188 = vld [vmem:[%s5 + $0x168] sm:$0xff]
        %v9189 = vld [vmem:[%s5 + $0x170] sm:$0xff]
        %v9190 = vld [vmem:[%s5 + $0x178] sm:$0xff]
        %v9191 = vld [vmem:[%s5 + $0x180] sm:$0xff]
        %v9192 = vld [vmem:[%s5 + $0x188] sm:$0xff]
        %v9193 = vld [vmem:[%s5 + $0x190] sm:$0xff]
        %v9194 = vld [vmem:[%s5 + $0x198] sm:$0xff]
        %v9195 = vld [vmem:[%s5 + $0x1a0] sm:$0xff]
        %v9196 = vld [vmem:[%s5 + $0x1a8] sm:$0xff]
        %v9197 = vld [vmem:[%s5 + $0x1b0] sm:$0xff]
        %v9198 = vld [vmem:[%s5 + $0x1b8] sm:$0xff]
        %v9199 = vld [vmem:[%s5 + $0x1c0] sm:$0xff]
        %v9200 = vld [vmem:[%s5 + $0x1c8] sm:$0xff]
        %v9201 = vld [vmem:[%s5 + $0x1d0] sm:$0xff]
        %v9202 = vld [vmem:[%s5 + $0x1d8] sm:$0xff]
        %v9203 = vld [vmem:[%s5 + $0x1e0] sm:$0xff]
        %v9204 = vld [vmem:[%s5 + $0x1e8] sm:$0xff]
        %v9205 = vld [vmem:[%s5 + $0x1f0] sm:$0xff]
        %v9206 = vld [vmem:[%s5 + $0x1f8] sm:$0xff]
        %v9207 = vld [vmem:[%s5 + $0x200] sm:$0xff]
        %v9208 = vld [vmem:[%s5 + $0x208] sm:$0xff]
        %v9209 = vld [vmem:[%s5 + $0x210] sm:$0xff]
        %v9210 = vld [vmem:[%s5 + $0x218] sm:$0xff]
        %v9211 = vld [vmem:[%s5 + $0x220] sm:$0xff]
        %v9212 = vld [vmem:[%s5 + $0x228] sm:$0xff]
        %v9213 = vld [vmem:[%s5 + $0x230] sm:$0xff]
        %v9214 = vld [vmem:[%s5 + $0x238] sm:$0xff]
        %v9215 = vld [vmem:[%s5 + $0x240] sm:$0xff]
        %v9216 = vld [vmem:[%s5 + $0x248] sm:$0xff]
        %v9217 = vld [vmem:[%s5 + $0x250] sm:$0xff]
        %v9218 = vld [vmem:[%s5 + $0x258] sm:$0xff]
        %v9219 = vld [vmem:[%s5 + $0x260] sm:$0xff]
        %v9220 = vld [vmem:[%s5 + $0x268] sm:$0xff]
        %v9221 = vld [vmem:[%s5 + $0x270] sm:$0xff]
        %v9222 = vld [vmem:[%s5 + $0x278] sm:$0xff]
        %v9223 = vld [vmem:[%s5 + $0x280] sm:$0xff]
        %v9224 = vld [vmem:[%s5 + $0x288] sm:$0xff]
        %v9225 = vld [vmem:[%s5 + $0x290] sm:$0xff]
        %v9226 = vld [vmem:[%s5 + $0x298] sm:$0xff]
        %v9227 = vld [vmem:[%s5 + $0x2a0] sm:$0xff]
        %v9228 = vld [vmem:[%s5 + $0x2a8] sm:$0xff]
        %v9229 = vld [vmem:[%s5 + $0x2b0] sm:$0xff]
        %v9230 = vld [vmem:[%s5 + $0x2b8] sm:$0xff]
        %v9231 = vld [vmem:[%s5 + $0x2c0] sm:$0xff]
        %v9232 = vld [vmem:[%s5 + $0x2c8] sm:$0xff]
        %v9233 = vld [vmem:[%s5 + $0x2d0] sm:$0xff]
        %v9234 = vld [vmem:[%s5 + $0x2d8] sm:$0xff]
        %v9235 = vld [vmem:[%s5 + $0x2e0] sm:$0xff]
        %v9236 = vld [vmem:[%s5 + $0x2e8] sm:$0xff]
        %v9237 = vld [vmem:[%s5 + $0x2f0] sm:$0xff]
        %v9238 = vld [vmem:[%s5 + $0x2f8] sm:$0xff]
        %v9239 = vld [vmem:[%s5 + $0x300] sm:$0xff]
        %v9240 = vld [vmem:[%s5 + $0x308] sm:$0xff]
        %v9241 = vld [vmem:[%s5 + $0x310] sm:$0xff]
        %v9242 = vld [vmem:[%s5 + $0x318] sm:$0xff]
        %v9243 = vld [vmem:[%s5 + $0x320] sm:$0xff]
        %v9244 = vld [vmem:[%s5 + $0x328] sm:$0xff]
        %v9245 = vld [vmem:[%s5 + $0x330] sm:$0xff]
        %v9246 = vld [vmem:[%s5 + $0x338] sm:$0xff]
        %v9247 = vld [vmem:[%s5 + $0x340] sm:$0xff]
        %v9248 = vld [vmem:[%s5 + $0x348] sm:$0xff]
        %v9249 = vld [vmem:[%s5 + $0x350] sm:$0xff]
        %v9250 = vld [vmem:[%s5 + $0x358] sm:$0xff]
        %v9251 = vld [vmem:[%s5 + $0x360] sm:$0xff]
        %v9252 = vld [vmem:[%s5 + $0x368] sm:$0xff]
        %v9253 = vld [vmem:[%s5 + $0x370] sm:$0xff]
        %v9254 = vld [vmem:[%s5 + $0x378] sm:$0xff]
        %v9255 = vld [vmem:[%s5 + $0x380] sm:$0xff]
        %v9256 = vld [vmem:[%s5 + $0x388] sm:$0xff]
        %v9257 = vld [vmem:[%s5 + $0x390] sm:$0xff]
        %v9258 = vld [vmem:[%s5 + $0x398] sm:$0xff]
        %v9259 = vld [vmem:[%s5 + $0x3a0] sm:$0xff]
        %v9260 = vld [vmem:[%s5 + $0x3a8] sm:$0xff]
        %v9261 = vld [vmem:[%s5 + $0x3b0] sm:$0xff]
        %v9262 = vld [vmem:[%s5 + $0x3b8] sm:$0xff]
        %v9263 = vld [vmem:[%s5 + $0x3c0] sm:$0xff]
        %v9264 = vld [vmem:[%s5 + $0x3c8] sm:$0xff]
        %v9265 = vld [vmem:[%s5 + $0x3d0] sm:$0xff]
        %v9266 = vld [vmem:[%s5 + $0x3d8] sm:$0xff]
        %v9267 = vld [vmem:[%s5 + $0x3e0] sm:$0xff]
        %v9268 = vld [vmem:[%s5 + $0x3e8] sm:$0xff]
        %v9269 = vld [vmem:[%s5 + $0x3f0] sm:$0xff]
        %v9270 = vld [vmem:[%s5 + $0x3f8] sm:$0xff]
        %v9271 = vld [vmem:[%s6] sm:$0x3]
        %v9273 = vlaneseq
        %v9274 = vshrl.u32 %v9273, 7
        %v9275 = vsub.s32 0, %v9274
        %v9276 = vrot.slane %v9142, %v9275
        %v9277 = vlaneseq
        %v9278 = vshrl.u32 %v9277, 7
        %v9279 = vsub.s32 1, %v9278
        %v9280 = vrot.slane %v9142, %v9279
        %v9281 = vlaneseq
        %v9282 = vshrl.u32 %v9281, 7
        %v9283 = vsub.s32 2, %v9282
        %v9284 = vrot.slane %v9142, %v9283
        %v9285 = vlaneseq
        %v9286 = vshrl.u32 %v9285, 7
        %v9287 = vsub.s32 3, %v9286
        %v9288 = vrot.slane %v9142, %v9287
        %v9294 = vlaneseq
        %v9295 = vshrl.u32 %v9294, 7
        %v9296 = vsub.s32 0, %v9295
        %v9297 = vrot.slane %v9271, %v9296
        %v9298 = vlaneseq
        %v9299 = vshrl.u32 %v9298, 7
        %v9300 = vsub.s32 1, %v9299
        %v9301 = vrot.slane %v9271, %v9300
        %9304 = vmatprep.subr.mxu0 %v9144
        %9305 = vmatpush1.msra.mxu0 %v9143
        %9306 = vmatprep.subr.mxu0 %v9146
        %9307 = vmatpush1.msra.mxu0 %v9145
        %9308 = vmatprep.subr.mxu0 %v9148
        %9309 = vmatpush1.msra.mxu0 %v9147
        %9310 = vmatprep.subr.mxu0 %v9150
        %9311 = vmatpush1.msra.mxu0 %v9149
        %9312 = vmatprep.subr.mxu0 %v9152
        %9313 = vmatpush1.msra.mxu0 %v9151
        %9314 = vmatprep.subr.mxu0 %v9154
        %9315 = vmatpush1.msra.mxu0 %v9153
        %9316 = vmatprep.subr.mxu0 %v9156
        %9317 = vmatpush1.msra.mxu0 %v9155
        %9318 = vmatprep.subr.mxu0 %v9158
        %9319 = vmatpush1.msra.mxu0 %v9157
        %9320 = vmatprep.subr.mxu0 %v9160
        %9321 = vmatpush1.msra.mxu0 %v9159
        %9322 = vmatprep.subr.mxu0 %v9162
        %9323 = vmatpush1.msra.mxu0 %v9161
        %9324 = vmatprep.subr.mxu0 %v9164
        %9325 = vmatpush1.msra.mxu0 %v9163
        %9326 = vmatprep.subr.mxu0 %v9166
        %9327 = vmatpush1.msra.mxu0 %v9165
        %9328 = vmatprep.subr.mxu0 %v9168
        %9329 = vmatpush1.msra.mxu0 %v9167
        %9330 = vmatprep.subr.mxu0 %v9170
        %9331 = vmatpush1.msra.mxu0 %v9169
        %9332 = vmatprep.subr.mxu0 %v9172
        %9333 = vmatpush1.msra.mxu0 %v9171
        %9334 = vmatprep.subr.mxu0 %v9174
        %9335 = vmatpush1.msra.mxu0 %v9173
        %9336 = vmatprep.subr.mxu0 %v9176
        %9337 = vmatpush1.msra.mxu0 %v9175
        %9338 = vmatprep.subr.mxu0 %v9178
        %9339 = vmatpush1.msra.mxu0 %v9177
        %9340 = vmatprep.subr.mxu0 %v9180
        %9341 = vmatpush1.msra.mxu0 %v9179
        %9342 = vmatprep.subr.mxu0 %v9182
        %9343 = vmatpush1.msra.mxu0 %v9181
        %9344 = vmatprep.subr.mxu0 %v9184
        %9345 = vmatpush1.msra.mxu0 %v9183
        %9346 = vmatprep.subr.mxu0 %v9186
        %9347 = vmatpush1.msra.mxu0 %v9185
        %9348 = vmatprep.subr.mxu0 %v9188
        %9349 = vmatpush1.msra.mxu0 %v9187
        %9350 = vmatprep.subr.mxu0 %v9190
        %9351 = vmatpush1.msra.mxu0 %v9189
        %9352 = vmatprep.subr.mxu0 %v9192
        %9353 = vmatpush1.msra.mxu0 %v9191
        %9354 = vmatprep.subr.mxu0 %v9194
        %9355 = vmatpush1.msra.mxu0 %v9193
        %9356 = vmatprep.subr.mxu0 %v9196
        %9357 = vmatpush1.msra.mxu0 %v9195
        %9358 = vmatprep.subr.mxu0 %v9198
        %9359 = vmatpush1.msra.mxu0 %v9197
        %9360 = vmatprep.subr.mxu0 %v9200
        %9361 = vmatpush1.msra.mxu0 %v9199
        %9362 = vmatprep.subr.mxu0 %v9202
        %9363 = vmatpush1.msra.mxu0 %v9201
        %9364 = vmatprep.subr.mxu0 %v9204
        %9365 = vmatpush1.msra.mxu0 %v9203
        %9366 = vmatprep.subr.mxu0 %v9206
        %9367 = vmatpush1.msra.mxu0 %v9205
        %9368 = vmatprep.mubr.f32.mxu0 %v9280
        %9369 = vmatmul.mubr.f32.gmra.mrb[0].mxu0 %v9276
        %v9370 = vpop.f32.mrb[0].mxu0
        %v9371 = vadd.f32 %v9297, %v9370
        %v9372 = vpop.f32.mrb[0].mxu0
        %v9373 = vadd.f32 %v9301, %v9372
        %9374 = vdwg.mxu0
        %9375 = vmatprep.subr.mxu0 %v9208
        %9376 = vmatpush1.msra.mxu0 %v9207
        %9377 = vmatprep.subr.mxu0 %v9210
        %9378 = vmatpush1.msra.mxu0 %v9209
        %9379 = vmatprep.subr.mxu0 %v9212
        %9380 = vmatpush1.msra.mxu0 %v9211
        %9381 = vmatprep.subr.mxu0 %v9214
        %9382 = vmatpush1.msra.mxu0 %v9213
        %9383 = vmatprep.subr.mxu0 %v9216
        %9384 = vmatpush1.msra.mxu0 %v9215
        %9385 = vmatprep.subr.mxu0 %v9218
        %9386 = vmatpush1.msra.mxu0 %v9217
        %9387 = vmatprep.subr.mxu0 %v9220
        %9388 = vmatpush1.msra.mxu0 %v9219
        %9389 = vmatprep.subr.mxu0 %v9222
        %9390 = vmatpush1.msra.mxu0 %v9221
        %9391 = vmatprep.subr.mxu0 %v9224
        %9392 = vmatpush1.msra.mxu0 %v9223
        %9393 = vmatprep.subr.mxu0 %v9226
        %9394 = vmatpush1.msra.mxu0 %v9225
        %9395 = vmatprep.subr.mxu0 %v9228
        %9396 = vmatpush1.msra.mxu0 %v9227
        %9397 = vmatprep.subr.mxu0 %v9230
        %9398 = vmatpush1.msra.mxu0 %v9229
        %9399 = vmatprep.subr.mxu0 %v9232
        %9400 = vmatpush1.msra.mxu0 %v9231
        %9401 = vmatprep.subr.mxu0 %v9234
        %9402 = vmatpush1.msra.mxu0 %v9233
        %9403 = vmatprep.subr.mxu0 %v9236
        %9404 = vmatpush1.msra.mxu0 %v9235
        %9405 = vmatprep.subr.mxu0 %v9238
        %9406 = vmatpush1.msra.mxu0 %v9237
        %9407 = vmatprep.subr.mxu0 %v9240
        %9408 = vmatpush1.msra.mxu0 %v9239
        %9409 = vmatprep.subr.mxu0 %v9242
        %9410 = vmatpush1.msra.mxu0 %v9241
        %9411 = vmatprep.subr.mxu0 %v9244
        %9412 = vmatpush1.msra.mxu0 %v9243
        %9413 = vmatprep.subr.mxu0 %v9246
        %9414 = vmatpush1.msra.mxu0 %v9245
        %9415 = vmatprep.subr.mxu0 %v9248
        %9416 = vmatpush1.msra.mxu0 %v9247
        %9417 = vmatprep.subr.mxu0 %v9250
        %9418 = vmatpush1.msra.mxu0 %v9249
        %9419 = vmatprep.subr.mxu0 %v9252
        %9420 = vmatpush1.msra.mxu0 %v9251
        %9421 = vmatprep.subr.mxu0 %v9254
        %9422 = vmatpush1.msra.mxu0 %v9253
        %9423 = vmatprep.subr.mxu0 %v9256
        %9424 = vmatpush1.msra.mxu0 %v9255
        %9425 = vmatprep.subr.mxu0 %v9258
        %9426 = vmatpush1.msra.mxu0 %v9257
        %9427 = vmatprep.subr.mxu0 %v9260
        %9428 = vmatpush1.msra.mxu0 %v9259
        %9429 = vmatprep.subr.mxu0 %v9262
        %9430 = vmatpush1.msra.mxu0 %v9261
        %9431 = vmatprep.subr.mxu0 %v9264
        %9432 = vmatpush1.msra.mxu0 %v9263
        %9433 = vmatprep.subr.mxu0 %v9266
        %9434 = vmatpush1.msra.mxu0 %v9265
        %9435 = vmatprep.subr.mxu0 %v9268
        %9436 = vmatpush1.msra.mxu0 %v9267
        %9437 = vmatprep.subr.mxu0 %v9270
        %9438 = vmatpush1.msra.mxu0 %v9269
        %9439 = vmatprep.mubr.f32.mxu0 %v9288
        %9440 = vmatmul.mubr.f32.gmra.mrb[0].mxu0 %v9284
        %v9441 = vpop.f32.mrb[0].mxu0
        %v9442 = vadd.f32 %v9371, %v9441
        %v9443 = vpop.f32.mrb[0].mxu0
        %v9444 = vadd.f32 %v9373, %v9443
        %9445 = vdwg.mxu0
        %v9446 = vmax.f32 %v9442, 0.0
        %v9447 = vmax.f32 %v9444, 0.0
        %v9448 = vld [vmem:[%s7] sm:$0xff]
        %v9449 = vld [vmem:[%s7 + $0x8] sm:$0xff]
        %v9450 = vld [vmem:[%s7 + $0x10] sm:$0xff]
        %v9451 = vld [vmem:[%s7 + $0x18] sm:$0xff]
        %v9452 = vld [vmem:[%s7 + $0x20] sm:$0xff]
        %v9453 = vld [vmem:[%s7 + $0x28] sm:$0xff]
        %v9454 = vld [vmem:[%s7 + $0x30] sm:$0xff]
        %v9455 = vld [vmem:[%s7 + $0x38] sm:$0xff]
        %v9456 = vld [vmem:[%s7 + $0x40] sm:$0xff]
        %v9457 = vld [vmem:[%s7 + $0x48] sm:$0xff]
        %v9458 = vld [vmem:[%s7 + $0x50] sm:$0xff]
        %v9459 = vld [vmem:[%s7 + $0x58] sm:$0xff]
        %v9460 = vld [vmem:[%s7 + $0x60] sm:$0xff]
        %v9461 = vld [vmem:[%s7 + $0x68] sm:$0xff]
        %v9462 = vld [vmem:[%s7 + $0x70] sm:$0xff]
        %v9463 = vld [vmem:[%s7 + $0x78] sm:$0xff]
        %v9464 = vld [vmem:[%s7 + $0x80] sm:$0xff]
        %v9465 = vld [vmem:[%s7 + $0x88] sm:$0xff]
        %v9466 = vld [vmem:[%s7 + $0x90] sm:$0xff]
        %v9467 = vld [vmem:[%s7 + $0x98] sm:$0xff]
        %v9468 = vld [vmem:[%s7 + $0xa0] sm:$0xff]
        %v9469 = vld [vmem:[%s7 + $0xa8] sm:$0xff]
        %v9470 = vld [vmem:[%s7 + $0xb0] sm:$0xff]
        %v9471 = vld [vmem:[%s7 + $0xb8] sm:$0xff]
        %v9472 = vld [vmem:[%s7 + $0xc0] sm:$0xff]
        %v9473 = vld [vmem:[%s7 + $0xc8] sm:$0xff]
        %v9474 = vld [vmem:[%s7 + $0xd0] sm:$0xff]
        %v9475 = vld [vmem:[%s7 + $0xd8] sm:$0xff]
        %v9476 = vld [vmem:[%s7 + $0xe0] sm:$0xff]
        %v9477 = vld [vmem:[%s7 + $0xe8] sm:$0xff]
        %v9478 = vld [vmem:[%s7 + $0xf0] sm:$0xff]
        %v9479 = vld [vmem:[%s7 + $0xf8] sm:$0xff]
        %v9480 = vld [vmem:[%s8] sm:$0x1]
        %9481 = vmatprep.subr.mxu0 0.0
        %9482 = vmatpush1.msra.mxu0 %v9448
        %9483 = vmatprep.subr.mxu0 0.0
        %9484 = vmatpush1.msra.mxu0 %v9449
        %9485 = vmatprep.subr.mxu0 0.0
        %9486 = vmatpush1.msra.mxu0 %v9450
        %9487 = vmatprep.subr.mxu0 0.0
        %9488 = vmatpush1.msra.mxu0 %v9451
        %9489 = vmatprep.subr.mxu0 0.0
        %9490 = vmatpush1.msra.mxu0 %v9452
        %9491 = vmatprep.subr.mxu0 0.0
        %9492 = vmatpush1.msra.mxu0 %v9453
        %9493 = vmatprep.subr.mxu0 0.0
        %9494 = vmatpush1.msra.mxu0 %v9454
        %9495 = vmatprep.subr.mxu0 0.0
        %9496 = vmatpush1.msra.mxu0 %v9455
        %9497 = vmatprep.subr.mxu0 0.0
        %9498 = vmatpush1.msra.mxu0 %v9456
        %9499 = vmatprep.subr.mxu0 0.0
        %9500 = vmatpush1.msra.mxu0 %v9457
        %9501 = vmatprep.subr.mxu0 0.0
        %9502 = vmatpush1.msra.mxu0 %v9458
        %9503 = vmatprep.subr.mxu0 0.0
        %9504 = vmatpush1.msra.mxu0 %v9459
        %9505 = vmatprep.subr.mxu0 0.0
        %9506 = vmatpush1.msra.mxu0 %v9460
        %9507 = vmatprep.subr.mxu0 0.0
        %9508 = vmatpush1.msra.mxu0 %v9461
        %9509 = vmatprep.subr.mxu0 0.0
        %9510 = vmatpush1.msra.mxu0 %v9462
        %9511 = vmatprep.subr.mxu0 0.0
        %9512 = vmatpush1.msra.mxu0 %v9463
        %9513 = vmatprep.subr.mxu0 0.0
        %9514 = vmatpush1.msra.mxu0 %v9464
        %9515 = vmatprep.subr.mxu0 0.0
        %9516 = vmatpush1.msra.mxu0 %v9465
        %9517 = vmatprep.subr.mxu0 0.0
        %9518 = vmatpush1.msra.mxu0 %v9466
        %9519 = vmatprep.subr.mxu0 0.0
        %9520 = vmatpush1.msra.mxu0 %v9467
        %9521 = vmatprep.subr.mxu0 0.0
        %9522 = vmatpush1.msra.mxu0 %v9468
        %9523 = vmatprep.subr.mxu0 0.0
        %9524 = vmatpush1.msra.mxu0 %v9469
        %9525 = vmatprep.subr.mxu0 0.0
        %9526 = vmatpush1.msra.mxu0 %v9470
        %9527 = vmatprep.subr.mxu0 0.0
        %9528 = vmatpush1.msra.mxu0 %v9471
        %9529 = vmatprep.subr.mxu0 0.0
        %9530 = vmatpush1.msra.mxu0 %v9472
        %9531 = vmatprep.subr.mxu0 0.0
        %9532 = vmatpush1.msra.mxu0 %v9473
        %9533 = vmatprep.subr.mxu0 0.0
        %9534 = vmatpush1.msra.mxu0 %v9474
        %9535 = vmatprep.subr.mxu0 0.0
        %9536 = vmatpush1.msra.mxu0 %v9475
        %9537 = vmatprep.subr.mxu0 0.0
        %9538 = vmatpush1.msra.mxu0 %v9476
        %9539 = vmatprep.subr.mxu0 0.0
        %9540 = vmatpush1.msra.mxu0 %v9477
        %9541 = vmatprep.subr.mxu0 0.0
        %9542 = vmatpush1.msra.mxu0 %v9478
        %9543 = vmatprep.subr.mxu0 0.0
        %9544 = vmatpush1.msra.mxu0 %v9479
        %9545 = vmatprep.mubr.f32.mxu0 %v9447
        %9546 = vmatmul.mubr.f32.gmra.mrb[0].mxu0 %v9446
        %v9547 = vpop.f32.mrb[0].mxu0
        %v9548 = vadd.f32 %v9480, %v9547
        %v9549 = vpop.f32.mrb[0].mxu0
        %9550 = vdwg.mxu0
        %v9551 = vmax.f32 %v9548, 0.0
        %v9552 = vld [vmem:[%s9] sm:$0xff]
        %v9553 = vld [vmem:[%s9 + $0x8] sm:$0xff]
        %v9554 = vld [vmem:[%s9 + $0x10] sm:$0xff]
        %v9555 = vld [vmem:[%s9 + $0x18] sm:$0xff]
        %v9556 = vld [vmem:[%s9 + $0x20] sm:$0xff]
        %v9557 = vld [vmem:[%s9 + $0x28] sm:$0xff]
        %v9558 = vld [vmem:[%s9 + $0x30] sm:$0xff]
        %v9559 = vld [vmem:[%s9 + $0x38] sm:$0xff]
        %v9560 = vld [vmem:[%s10] sm:$0x1]
        %v9562 = vsel %vm5861, %v9551, 0
        %9564 = vmatprep.subr.mxu0 0.0
        %9565 = vmatpush1.msra.mxu0 %v9552
        %9566 = vmatprep.subr.mxu0 0.0
        %9567 = vmatpush1.msra.mxu0 %v9553
        %9568 = vmatprep.subr.mxu0 0.0
        %9569 = vmatpush1.msra.mxu0 %v9554
        %9570 = vmatprep.subr.mxu0 0.0
        %9571 = vmatpush1.msra.mxu0 %v9555
        %9572 = vmatprep.subr.mxu0 0.0
        %9573 = vmatpush1.msra.mxu0 %v9556
        %9574 = vmatprep.subr.mxu0 0.0
        %9575 = vmatpush1.msra.mxu0 %v9557
        %9576 = vmatprep.subr.mxu0 0.0
        %9577 = vmatpush1.msra.mxu0 %v9558
        %9578 = vmatprep.subr.mxu0 0.0
        %9579 = vmatpush1.msra.mxu0 %v9559
        %9580 = vmatprep.subr.mxu0 0.0
        %9581 = vmatpush1.msra.mxu0 0.0
        %9582 = vmatprep.subr.mxu0 0.0
        %9583 = vmatpush1.msra.mxu0 0.0
        %9584 = vmatprep.subr.mxu0 0.0
        %9585 = vmatpush1.msra.mxu0 0.0
        %9586 = vmatprep.subr.mxu0 0.0
        %9587 = vmatpush1.msra.mxu0 0.0
        %9588 = vmatprep.subr.mxu0 0.0
        %9589 = vmatpush1.msra.mxu0 0.0
        %9590 = vmatprep.subr.mxu0 0.0
        %9591 = vmatpush1.msra.mxu0 0.0
        %9592 = vmatprep.subr.mxu0 0.0
        %9593 = vmatpush1.msra.mxu0 0.0
        %9594 = vmatprep.subr.mxu0 0.0
        %9595 = vmatpush1.msra.mxu0 0.0
        %9596 = vmatprep.subr.mxu0 0.0
        %9597 = vmatpush1.msra.mxu0 0.0
        %9598 = vmatprep.subr.mxu0 0.0
        %9599 = vmatpush1.msra.mxu0 0.0
        %9600 = vmatprep.subr.mxu0 0.0
        %9601 = vmatpush1.msra.mxu0 0.0
        %9602 = vmatprep.subr.mxu0 0.0
        %9603 = vmatpush1.msra.mxu0 0.0
        %9604 = vmatprep.subr.mxu0 0.0
        %9605 = vmatpush1.msra.mxu0 0.0
        %9606 = vmatprep.subr.mxu0 0.0
        %9607 = vmatpush1.msra.mxu0 0.0
        %9608 = vmatprep.subr.mxu0 0.0
        %9609 = vmatpush1.msra.mxu0 0.0
        %9610 = vmatprep.subr.mxu0 0.0
        %9611 = vmatpush1.msra.mxu0 0.0
        %9612 = vmatprep.subr.mxu0 0.0
        %9613 = vmatpush1.msra.mxu0 0.0
        %9614 = vmatprep.subr.mxu0 0.0
        %9615 = vmatpush1.msra.mxu0 0.0
        %9616 = vmatprep.subr.mxu0 0.0
        %9617 = vmatpush1.msra.mxu0 0.0
        %9618 = vmatprep.subr.mxu0 0.0
        %9619 = vmatpush1.msra.mxu0 0.0
        %9620 = vmatprep.subr.mxu0 0.0
        %9621 = vmatpush1.msra.mxu0 0.0
        %9622 = vmatprep.subr.mxu0 0.0
        %9623 = vmatpush1.msra.mxu0 0.0
        %9624 = vmatprep.subr.mxu0 0.0
        %9625 = vmatpush1.msra.mxu0 0.0
        %9626 = vmatprep.subr.mxu0 0.0
        %9627 = vmatpush1.msra.mxu0 0.0
        %9628 = vmatprep.mubr.f32.mxu0 0.0
        %9629 = vmatmul.mubr.f32.gmra.mrb[0].mxu0 %v9562
        %v9630 = vpop.f32.mrb[0].mxu0
        %v9631 = vadd.f32 %v9560, %v9630
        %v9632 = vpop.f32.mrb[0].mxu0
        %9633 = vdwg.mxu0
        %v9634 = vmax.f32 %v9631, 0.0
        %v9635 = vld [vmem:[%s11] sm:$0xff]
        %v9636 = vld [vmem:[%s11 + $0x8] sm:$0xff]
        %v9637 = vld [vmem:[%s12] sm:$0x1]
        %vm9638 = vcmask 130048
        %v9640 = vsel %vm9638, %v9634, 0
        %9642 = vmatprep.subr.mxu0 0.0
        %9643 = vmatpush1.msra.mxu0 %v9635
        %9644 = vmatprep.subr.mxu0 0.0
        %9645 = vmatpush1.msra.mxu0 %v9636
        %9646 = vmatprep.subr.mxu0 0.0
        %9647 = vmatpush1.msra.mxu0 0.0
        %9648 = vmatprep.subr.mxu0 0.0
        %9649 = vmatpush1.msra.mxu0 0.0
        %9650 = vmatprep.subr.mxu0 0.0
        %9651 = vmatpush1.msra.mxu0 0.0
        %9652 = vmatprep.subr.mxu0 0.0
        %9653 = vmatpush1.msra.mxu0 0.0
        %9654 = vmatprep.subr.mxu0 0.0
        %9655 = vmatpush1.msra.mxu0 0.0
        %9656 = vmatprep.subr.mxu0 0.0
        %9657 = vmatpush1.msra.mxu0 0.0
        %9658 = vmatprep.subr.mxu0 0.0
        %9659 = vmatpush1.msra.mxu0 0.0
        %9660 = vmatprep.subr.mxu0 0.0
        %9661 = vmatpush1.msra.mxu0 0.0
        %9662 = vmatprep.subr.mxu0 0.0
        %9663 = vmatpush1.msra.mxu0 0.0
        %9664 = vmatprep.subr.mxu0 0.0
        %9665 = vmatpush1.msra.mxu0 0.0
        %9666 = vmatprep.subr.mxu0 0.0
        %9667 = vmatpush1.msra.mxu0 0.0
        %9668 = vmatprep.subr.mxu0 0.0
        %9669 = vmatpush1.msra.mxu0 0.0
        %9670 = vmatprep.subr.mxu0 0.0
        %9671 = vmatpush1.msra.mxu0 0.0
        %9672 = vmatprep.subr.mxu0 0.0
        %9673 = vmatpush1.msra.mxu0 0.0
        %9674 = vmatprep.subr.mxu0 0.0
        %9675 = vmatpush1.msra.mxu0 0.0
        %9676 = vmatprep.subr.mxu0 0.0
        %9677 = vmatpush1.msra.mxu0 0.0
        %9678 = vmatprep.subr.mxu0 0.0
        %9679 = vmatpush1.msra.mxu0 0.0
        %9680 = vmatprep.subr.mxu0 0.0
        %9681 = vmatpush1.msra.mxu0 0.0
        %9682 = vmatprep.subr.mxu0 0.0
        %9683 = vmatpush1.msra.mxu0 0.0
        %9684 = vmatprep.subr.mxu0 0.0
        %9685 = vmatpush1.msra.mxu0 0.0
        %9686 = vmatprep.subr.mxu0 0.0
        %9687 = vmatpush1.msra.mxu0 0.0
        %9688 = vmatprep.subr.mxu0 0.0
        %9689 = vmatpush1.msra.mxu0 0.0
        %9690 = vmatprep.subr.mxu0 0.0
        %9691 = vmatpush1.msra.mxu0 0.0
        %9692 = vmatprep.subr.mxu0 0.0
        %9693 = vmatpush1.msra.mxu0 0.0
        %9694 = vmatprep.subr.mxu0 0.0
        %9695 = vmatpush1.msra.mxu0 0.0
        %9696 = vmatprep.subr.mxu0 0.0
        %9697 = vmatpush1.msra.mxu0 0.0
        %9698 = vmatprep.subr.mxu0 0.0
        %9699 = vmatpush1.msra.mxu0 0.0
        %9700 = vmatprep.subr.mxu0 0.0
        %9701 = vmatpush1.msra.mxu0 0.0
        %9702 = vmatprep.subr.mxu0 0.0
        %9703 = vmatpush1.msra.mxu0 0.0
        %9704 = vmatprep.subr.mxu0 0.0
        %9705 = vmatpush1.msra.mxu0 0.0
        %9706 = vmatprep.mubr.f32.mxu0 0.0
        %9707 = vmatmul.mubr.f32.gmra.mrb[0].mxu0 %v9640
        %v9708 = vpop.f32.mrb[0].mxu0
        %v9709 = vadd.f32 %v9637, %v9708
        %v9710 = vpop.f32.mrb[0].mxu0
        %9711 = vdwg.mxu0
        %v9712 = vmax.f32 %v9709, 0.0
        %v9713 = vld [vmem:[%s13] sm:$0xff]
        %v9714 = vld [vmem:[%s13 + $0x8] sm:$0xff]
        %v9715 = vld [vmem:[%s14] sm:$0x1]
        %v9717 = vsel %vm9638, %v9712, 0
        %9719 = vmatprep.subr.mxu0 0.0
        %9720 = vmatpush1.msra.mxu0 %v9713
        %9721 = vmatprep.subr.mxu0 0.0
        %9722 = vmatpush1.msra.mxu0 %v9714
        %9723 = vmatprep.subr.mxu0 0.0
        %9724 = vmatpush1.msra.mxu0 0.0
        %9725 = vmatprep.subr.mxu0 0.0
        %9726 = vmatpush1.msra.mxu0 0.0
        %9727 = vmatprep.subr.mxu0 0.0
        %9728 = vmatpush1.msra.mxu0 0.0
        %9729 = vmatprep.subr.mxu0 0.0
        %9730 = vmatpush1.msra.mxu0 0.0
        %9731 = vmatprep.subr.mxu0 0.0
        %9732 = vmatpush1.msra.mxu0 0.0
        %9733 = vmatprep.subr.mxu0 0.0
        %9734 = vmatpush1.msra.mxu0 0.0
        %9735 = vmatprep.subr.mxu0 0.0
        %9736 = vmatpush1.msra.mxu0 0.0
        %9737 = vmatprep.subr.mxu0 0.0
        %9738 = vmatpush1.msra.mxu0 0.0
        %9739 = vmatprep.subr.mxu0 0.0
        %9740 = vmatpush1.msra.mxu0 0.0
        %9741 = vmatprep.subr.mxu0 0.0
        %9742 = vmatpush1.msra.mxu0 0.0
        %9743 = vmatprep.subr.mxu0 0.0
        %9744 = vmatpush1.msra.mxu0 0.0
        %9745 = vmatprep.subr.mxu0 0.0
        %9746 = vmatpush1.msra.mxu0 0.0
        %9747 = vmatprep.subr.mxu0 0.0
        %9748 = vmatpush1.msra.mxu0 0.0
        %9749 = vmatprep.subr.mxu0 0.0
        %9750 = vmatpush1.msra.mxu0 0.0
        %9751 = vmatprep.subr.mxu0 0.0
        %9752 = vmatpush1.msra.mxu0 0.0
        %9753 = vmatprep.subr.mxu0 0.0
        %9754 = vmatpush1.msra.mxu0 0.0
        %9755 = vmatprep.subr.mxu0 0.0
        %9756 = vmatpush1.msra.mxu0 0.0
        %9757 = vmatprep.subr.mxu0 0.0
        %9758 = vmatpush1.msra.mxu0 0.0
        %9759 = vmatprep.subr.mxu0 0.0
        %9760 = vmatpush1.msra.mxu0 0.0
        %9761 = vmatprep.subr.mxu0 0.0
        %9762 = vmatpush1.msra.mxu0 0.0
        %9763 = vmatprep.subr.mxu0 0.0
        %9764 = vmatpush1.msra.mxu0 0.0
        %9765 = vmatprep.subr.mxu0 0.0
        %9766 = vmatpush1.msra.mxu0 0.0
        %9767 = vmatprep.subr.mxu0 0.0
        %9768 = vmatpush1.msra.mxu0 0.0
        %9769 = vmatprep.subr.mxu0 0.0
        %9770 = vmatpush1.msra.mxu0 0.0
        %9771 = vmatprep.subr.mxu0 0.0
        %9772 = vmatpush1.msra.mxu0 0.0
        %9773 = vmatprep.subr.mxu0 0.0
        %9774 = vmatpush1.msra.mxu0 0.0
        %9775 = vmatprep.subr.mxu0 0.0
        %9776 = vmatpush1.msra.mxu0 0.0
        %9777 = vmatprep.subr.mxu0 0.0
        %9778 = vmatpush1.msra.mxu0 0.0
        %9779 = vmatprep.subr.mxu0 0.0
        %9780 = vmatpush1.msra.mxu0 0.0
        %9781 = vmatprep.subr.mxu0 0.0
        %9782 = vmatpush1.msra.mxu0 0.0
        %9783 = vmatprep.mubr.f32.mxu0 0.0
        %9784 = vmatmul.mubr.f32.gmra.mrb[0].mxu0 %v9717
        %v9785 = vpop.f32.mrb[0].mxu0
        %v9786 = vadd.f32 %v9715, %v9785
        %v9787 = vpop.f32.mrb[0].mxu0
        %9788 = vdwg.mxu0
        %v9789 = vmax.f32 %v9786, 0.0
        %v9790 = vld [vmem:[%s15] sm:$0xff]
        %v9791 = vld [vmem:[%s15 + $0x8] sm:$0xff]
        %v9793 = vsel %vm9638, %v9789, 0
        %9795 = vmatprep.subr.mxu0 0.0
        %9796 = vmatpush1.msra.mxu0 %v9790
        %9797 = vmatprep.subr.mxu0 0.0
        %9798 = vmatpush1.msra.mxu0 %v9791
        %9799 = vmatprep.subr.mxu0 0.0
        %9800 = vmatpush1.msra.mxu0 0.0
        %9801 = vmatprep.subr.mxu0 0.0
        %9802 = vmatpush1.msra.mxu0 0.0
        %9803 = vmatprep.subr.mxu0 0.0
        %9804 = vmatpush1.msra.mxu0 0.0
        %9805 = vmatprep.subr.mxu0 0.0
        %9806 = vmatpush1.msra.mxu0 0.0
        %9807 = vmatprep.subr.mxu0 0.0
        %9808 = vmatpush1.msra.mxu0 0.0
        %9809 = vmatprep.subr.mxu0 0.0
        %9810 = vmatpush1.msra.mxu0 0.0
        %9811 = vmatprep.subr.mxu0 0.0
        %9812 = vmatpush1.msra.mxu0 0.0
        %9813 = vmatprep.subr.mxu0 0.0
        %9814 = vmatpush1.msra.mxu0 0.0
        %9815 = vmatprep.subr.mxu0 0.0
        %9816 = vmatpush1.msra.mxu0 0.0
        %9817 = vmatprep.subr.mxu0 0.0
        %9818 = vmatpush1.msra.mxu0 0.0
        %9819 = vmatprep.subr.mxu0 0.0
        %9820 = vmatpush1.msra.mxu0 0.0
        %9821 = vmatprep.subr.mxu0 0.0
        %9822 = vmatpush1.msra.mxu0 0.0
        %9823 = vmatprep.subr.mxu0 0.0
        %9824 = vmatpush1.msra.mxu0 0.0
        %9825 = vmatprep.subr.mxu0 0.0
        %9826 = vmatpush1.msra.mxu0 0.0
        %9827 = vmatprep.subr.mxu0 0.0
        %9828 = vmatpush1.msra.mxu0 0.0
        %9829 = vmatprep.subr.mxu0 0.0
        %9830 = vmatpush1.msra.mxu0 0.0
        %9831 = vmatprep.subr.mxu0 0.0
        %9832 = vmatpush1.msra.mxu0 0.0
        %9833 = vmatprep.subr.mxu0 0.0
        %9834 = vmatpush1.msra.mxu0 0.0
        %9835 = vmatprep.subr.mxu0 0.0
        %9836 = vmatpush1.msra.mxu0 0.0
        %9837 = vmatprep.subr.mxu0 0.0
        %9838 = vmatpush1.msra.mxu0 0.0
        %9839 = vmatprep.subr.mxu0 0.0
        %9840 = vmatpush1.msra.mxu0 0.0
        %9841 = vmatprep.subr.mxu0 0.0
        %9842 = vmatpush1.msra.mxu0 0.0
        %9843 = vmatprep.subr.mxu0 0.0
        %9844 = vmatpush1.msra.mxu0 0.0
        %9845 = vmatprep.subr.mxu0 0.0
        %9846 = vmatpush1.msra.mxu0 0.0
        %9847 = vmatprep.subr.mxu0 0.0
        %9848 = vmatpush1.msra.mxu0 0.0
        %9849 = vmatprep.subr.mxu0 0.0
        %9850 = vmatpush1.msra.mxu0 0.0
        %9851 = vmatprep.subr.mxu0 0.0
        %9852 = vmatpush1.msra.mxu0 0.0
        %9853 = vmatprep.subr.mxu0 0.0
        %9854 = vmatpush1.msra.mxu0 0.0
        %9855 = vmatprep.subr.mxu0 0.0
        %9856 = vmatpush1.msra.mxu0 0.0
        %9857 = vmatprep.subr.mxu0 0.0
        %9858 = vmatpush1.msra.mxu0 0.0
        %9859 = vmatprep.mubr.f32.mxu0 0.0
        %9860 = vmatmul.mubr.f32.gmra.mrb[0].mxu0 %v9793
        %v9861 = vpop.f32.mrb[0].mxu0
        %v9862 = vadd.f32 0.0, %v9861
        %v9863 = vpop.f32.mrb[0].mxu0
        %9864 = vdwg.mxu0
        %v9865 = vadd.f32 %v9712, %v9862
        %v9866 = vld [vmem:[%s16] sm:$0x1]
        %v9867 = vadd.f32 %v9865, %v9866
        %v9868 = vld [vmem:[%s17] sm:$0xff]
        %v9869 = vld [vmem:[%s17 + $0x8] sm:$0xff]
        %v9870 = vld [vmem:[%s18] sm:$0x1]
        %v9872 = vsel %vm9638, %v9867, 0
        %9874 = vmatprep.subr.mxu0 0.0
        %9875 = vmatpush1.msra.mxu0 %v9868
        %9876 = vmatprep.subr.mxu0 0.0
        %9877 = vmatpush1.msra.mxu0 %v9869
        %9878 = vmatprep.subr.mxu0 0.0
        %9879 = vmatpush1.msra.mxu0 0.0
        %9880 = vmatprep.subr.mxu0 0.0
        %9881 = vmatpush1.msra.mxu0 0.0
        %9882 = vmatprep.subr.mxu0 0.0
        %9883 = vmatpush1.msra.mxu0 0.0
        %9884 = vmatprep.subr.mxu0 0.0
        %9885 = vmatpush1.msra.mxu0 0.0
        %9886 = vmatprep.subr.mxu0 0.0
        %9887 = vmatpush1.msra.mxu0 0.0
        %9888 = vmatprep.subr.mxu0 0.0
        %9889 = vmatpush1.msra.mxu0 0.0
        %9890 = vmatprep.subr.mxu0 0.0
        %9891 = vmatpush1.msra.mxu0 0.0
        %9892 = vmatprep.subr.mxu0 0.0
        %9893 = vmatpush1.msra.mxu0 0.0
        %9894 = vmatprep.subr.mxu0 0.0
        %9895 = vmatpush1.msra.mxu0 0.0
        %9896 = vmatprep.subr.mxu0 0.0
        %9897 = vmatpush1.msra.mxu0 0.0
        %9898 = vmatprep.subr.mxu0 0.0
        %9899 = vmatpush1.msra.mxu0 0.0
        %9900 = vmatprep.subr.mxu0 0.0
        %9901 = vmatpush1.msra.mxu0 0.0
        %9902 = vmatprep.subr.mxu0 0.0
        %9903 = vmatpush1.msra.mxu0 0.0
        %9904 = vmatprep.subr.mxu0 0.0
        %9905 = vmatpush1.msra.mxu0 0.0
        %9906 = vmatprep.subr.mxu0 0.0
        %9907 = vmatpush1.msra.mxu0 0.0
        %9908 = vmatprep.subr.mxu0 0.0
        %9909 = vmatpush1.msra.mxu0 0.0
        %9910 = vmatprep.subr.mxu0 0.0
        %9911 = vmatpush1.msra.mxu0 0.0
        %9912 = vmatprep.subr.mxu0 0.0
        %9913 = vmatpush1.msra.mxu0 0.0
        %9914 = vmatprep.subr.mxu0 0.0
        %9915 = vmatpush1.msra.mxu0 0.0
        %9916 = vmatprep.subr.mxu0 0.0
        %9917 = vmatpush1.msra.mxu0 0.0
        %9918 = vmatprep.subr.mxu0 0.0
        %9919 = vmatpush1.msra.mxu0 0.0
        %9920 = vmatprep.subr.mxu0 0.0
        %9921 = vmatpush1.msra.mxu0 0.0
        %9922 = vmatprep.subr.mxu0 0.0
        %9923 = vmatpush1.msra.mxu0 0.0
        %9924 = vmatprep.subr.mxu0 0.0
        %9925 = vmatpush1.msra.mxu0 0.0
        %9926 = vmatprep.subr.mxu0 0.0
        %9927 = vmatpush1.msra.mxu0 0.0
        %9928 = vmatprep.subr.mxu0 0.0
        %9929 = vmatpush1.msra.mxu0 0.0
        %9930 = vmatprep.subr.mxu0 0.0
        %9931 = vmatpush1.msra.mxu0 0.0
        %9932 = vmatprep.subr.mxu0 0.0
        %9933 = vmatpush1.msra.mxu0 0.0
        %9934 = vmatprep.subr.mxu0 0.0
        %9935 = vmatpush1.msra.mxu0 0.0
        %9936 = vmatprep.subr.mxu0 0.0
        %9937 = vmatpush1.msra.mxu0 0.0
        %9938 = vmatprep.mubr.f32.mxu0 0.0
        %9939 = vmatmul.mubr.f32.gmra.mrb[0].mxu0 %v9872
        %v9940 = vpop.f32.mrb[0].mxu0
        %v9941 = vadd.f32 %v9870, %v9940
        %v9942 = vpop.f32.mrb[0].mxu0
        %9943 = vdwg.mxu0
        %v9944 = vmax.f32 %v9941, 0.0
        %v9945 = vld [vmem:[%s19] sm:$0xff]
        %v9946 = vld [vmem:[%s19 + $0x8] sm:$0xff]
        %v9948 = vsel %vm9638, %v9944, 0
        %9950 = vmatprep.subr.mxu0 0.0
        %9951 = vmatpush1.msra.mxu0 %v9945
        %9952 = vmatprep.subr.mxu0 0.0
        %9953 = vmatpush1.msra.mxu0 %v9946
        %9954 = vmatprep.subr.mxu0 0.0
        %9955 = vmatpush1.msra.mxu0 0.0
        %9956 = vmatprep.subr.mxu0 0.0
        %9957 = vmatpush1.msra.mxu0 0.0
        %9958 = vmatprep.subr.mxu0 0.0
        %9959 = vmatpush1.msra.mxu0 0.0
        %9960 = vmatprep.subr.mxu0 0.0
        %9961 = vmatpush1.msra.mxu0 0.0
        %9962 = vmatprep.subr.mxu0 0.0
        %9963 = vmatpush1.msra.mxu0 0.0
        %9964 = vmatprep.subr.mxu0 0.0
        %9965 = vmatpush1.msra.mxu0 0.0
        %9966 = vmatprep.subr.mxu0 0.0
        %9967 = vmatpush1.msra.mxu0 0.0
        %9968 = vmatprep.subr.mxu0 0.0
        %9969 = vmatpush1.msra.mxu0 0.0
        %9970 = vmatprep.subr.mxu0 0.0
        %9971 = vmatpush1.msra.mxu0 0.0
        %9972 = vmatprep.subr.mxu0 0.0
        %9973 = vmatpush1.msra.mxu0 0.0
        %9974 = vmatprep.subr.mxu0 0.0
        %9975 = vmatpush1.msra.mxu0 0.0
        %9976 = vmatprep.subr.mxu0 0.0
        %9977 = vmatpush1.msra.mxu0 0.0
        %9978 = vmatprep.subr.mxu0 0.0
        %9979 = vmatpush1.msra.mxu0 0.0
        %9980 = vmatprep.subr.mxu0 0.0
        %9981 = vmatpush1.msra.mxu0 0.0
        %9982 = vmatprep.subr.mxu0 0.0
        %9983 = vmatpush1.msra.mxu0 0.0
        %9984 = vmatprep.subr.mxu0 0.0
        %9985 = vmatpush1.msra.mxu0 0.0
        %9986 = vmatprep.subr.mxu0 0.0
        %9987 = vmatpush1.msra.mxu0 0.0
        %9988 = vmatprep.subr.mxu0 0.0
        %9989 = vmatpush1.msra.mxu0 0.0
        %9990 = vmatprep.subr.mxu0 0.0
        %9991 = vmatpush1.msra.mxu0 0.0
        %9992 = vmatprep.subr.mxu0 0.0
        %9993 = vmatpush1.msra.mxu0 0.0
        %9994 = vmatprep.subr.mxu0 0.0
        %9995 = vmatpush1.msra.mxu0 0.0
        %9996 = vmatprep.subr.mxu0 0.0
        %9997 = vmatpush1.msra.mxu0 0.0
        %9998 = vmatprep.subr.mxu0 0.0
        %9999 = vmatpush1.msra.mxu0 0.0
        %10000 = vmatprep.subr.mxu0 0.0
        %10001 = vmatpush1.msra.mxu0 0.0
        %10002 = vmatprep.subr.mxu0 0.0
        %10003 = vmatpush1.msra.mxu0 0.0
        %10004 = vmatprep.subr.mxu0 0.0
        %10005 = vmatpush1.msra.mxu0 0.0
        %10006 = vmatprep.subr.mxu0 0.0
        %10007 = vmatpush1.msra.mxu0 0.0
        %10008 = vmatprep.subr.mxu0 0.0
        %10009 = vmatpush1.msra.mxu0 0.0
        %10010 = vmatprep.subr.mxu0 0.0
        %10011 = vmatpush1.msra.mxu0 0.0
        %10012 = vmatprep.subr.mxu0 0.0
        %10013 = vmatpush1.msra.mxu0 0.0
        %10014 = vmatprep.mubr.f32.mxu0 0.0
        %10015 = vmatmul.mubr.f32.gmra.mrb[0].mxu0 %v9948
        %v10016 = vpop.f32.mrb[0].mxu0
        %v10017 = vadd.f32 0.0, %v10016
        %v10018 = vpop.f32.mrb[0].mxu0
        %10019 = vdwg.mxu0
        %v10020 = vadd.f32 %v9867, %v10017
        %v10021 = vld [vmem:[%s20] sm:$0x1]
        %v10022 = vadd.f32 %v10020, %v10021
        %vm10023 = vcmask 122880
        %10024 = vst.msk [vmem:[%s648] sm:$0x1] %vm10023, %v10022
        %s10025 = sand.u32 %s489, 1
        %s10026 = scalar_lea.sflag [#allocation3], %s10025
        %s10027 = sand.u32 %s489, 1
        %s10028 = scalar_lea.vmem [#allocation2], %s10027
        // Predicated region
        $region105: #{forward.1} parent=103 // pred_check
          %p10029 = pneg %p499
        $region106: #{forward.1} parent=103 // pred_check_branch
          %10031 = sbr.rel (%p10029) target = $region108
        $region107: #{forward.1} parent=103 // pred_region
          %s10033 = ssub.s32 16, 16
          %10034 = vsyncadd %s10026, %s10033
          %s10035 = smul.addr %s35, 16
          %s10036 = scalar_lea.hbm %s21, %s10035
          %s10038 = sshll.u32 %s10028, 4
          %s10039 = int_to_ptr.vmem [resolvable:$true] %s10038
          %10041 = dma.vmem_to_hbm [thread:$0]  %s10039, 16, %s10036, %s10026
        $region108: #{forward.1} parent=103 // pred_fallthru
          _
      $region104: #{forward.1} parent=5 // pred_fallthru
        _
      %p10042 = scmp.le.s32.totalorder 2, %s30
      // Predicated region
      $region109: #{forward.1} parent=5 // pred_check
        %p10043 = pneg %p10042
      $region110: #{forward.1} parent=5 // pred_check_branch
        %10045 = sbr.rel (%p10043) target = $region112
      $region111: #{forward.1} parent=5 // pred_region
        %s10046 = ssub.s32 %s30, 2
        // Predicated region
        $region113: #{forward.1} parent=111 // pred_check
          %p10047 = pneg %p505
        $region114: #{forward.1} parent=111 // pred_check_branch
          %10049 = sbr.rel (%p10047) target = $region116
        $region115: #{forward.1} parent=111 // pred_region
          %s10050 = sand.u32 %s490, 1
          %s10051 = scalar_lea.sflag [#allocation3], %s10050
          %s10052 = sand.u32 %s490, 1
          %s10053 = scalar_lea.vmem [#allocation2], %s10052
          %10054 = dma.done %s10051, 16
        $region116: #{forward.1} parent=111 // pred_fallthru
          _
      $region112: #{forward.1} parent=5 // pred_fallthru
        _
    $region6: #{forward.1} parent=1 // loop_footer
      %s34 = sadd.s32 1, %s30
    $region7: #{forward.1} parent=1 // loop_footer_branch
      %29 = sbr.rel target = $region3
    $region8: #{forward.1} parent=1 // loop_exit
      _
    %10055 = vsyncpa [#allocation3], 1
    %s10056 = scalar_lea.sflag [#allocation3], 1
    %10057 = vsyncpa %s10056, 1

</llo_original>
